<compile_context>
chip_gen: v7x
topology: tpu7x:2x2x1
jax: 0.10.0
libtpu: 0.0.40
codegen_flags: <defaults>
</compile_context>

<pallas_src>
import functools

import jax
import jax.numpy as jnp
from jax.experimental import pallas as pl
from jax.experimental.pallas import tpu as pltpu

# Make the pure-JAX reference matmuls run in full f32 so it is comparable with
# the in-kernel MXU matmuls (preferred_element_type=float32).
jax.config.update("jax_default_matmul_precision", "highest")


def _layernorm(z, gamma, beta, eps=1e-5):
    mu = jnp.mean(z, axis=-1, keepdims=True)
    var = jnp.mean(jnp.square(z - mu), axis=-1, keepdims=True)
    return (z - mu) * jax.lax.rsqrt(var + eps) * gamma + beta


def _fused_kernel(
    x_ref,
    wqkv_ref, bqkv_ref, wo_ref, bo_ref,
    g1_ref, be1_ref, w1_ref, b1_ref, w2_ref, b2_ref, g2_ref, be2_ref,
    wp_ref, bp_ref,
    o_ref,
    *, kernel_size: int, n_heads: int,
):
    _, L, C = x_ref.shape
    pad = (kernel_size - 1) // 2
    f32 = jnp.float32

    # ---- series_decomp trend: moving average (stride=1, odd k) -------------
    # Edge replication done in VMEM from the single loaded tile; no padded HBM
    # copy, no zero-init of the accumulator (centre tap seeds it).
    x = x_ref[0].astype(f32)                                      # (L, C), one load
    acc = x                                                       # centre tap d=0
    for d in range(1, pad + 1):
        fwd = jnp.concatenate(
            [x[d:, :], jnp.broadcast_to(x[L - 1:L, :], (d, C))], axis=0)
        bwd = jnp.concatenate(
            [jnp.broadcast_to(x[0:1, :], (d, C)), x[:L - d, :]], axis=0)
        acc = acc + fwd + bwd
    t = acc * (1.0 / kernel_size)                                 # (L, C) trend
    # TODO(synk): for large kernel_size switch to a running-sum / cumsum form.

    def linear(z, w_ref, b_ref):
        return (
            jnp.dot(z, w_ref[...].astype(f32), preferred_element_type=f32)
            + b_ref[...].astype(f32)
        )

    # ---- EncoderLayer: multi-head full attention on the trend --------------
    qkv = linear(t, wqkv_ref, bqkv_ref)                           # (L, 3C) fused
    q, k, v = qkv[:, :C], qkv[:, C:2 * C], qkv[:, 2 * C:]
    dh = C // n_heads
    scale = 1.0 / (dh ** 0.5)
    heads = []
    for h in range(n_heads):                                      # unrolled, H small
        qh = q[:, h * dh:(h + 1) * dh]
        kh = k[:, h * dh:(h + 1) * dh]
        vh = v[:, h * dh:(h + 1) * dh]
        s = jax.lax.dot_general(
            qh, kh, (((1,), (1,)), ((), ())), preferred_element_type=f32
        ) * scale                                                 # (L, L)
        s = s - jnp.max(s, axis=-1, keepdims=True)
        p = jnp.exp(s)
        p = p / jnp.sum(p, axis=-1, keepdims=True)
        heads.append(jnp.dot(p, vh, preferred_element_type=f32))  # (L, dh)
    attn = jnp.concatenate(heads, axis=-1)                        # (L, C)
    new_x = linear(attn, wo_ref, bo_ref)

    # ---- residual + norm1, pointwise-FFN (1x1 convs), residual + norm2 -----
    x1 = _layernorm(t + new_x, g1_ref[...].astype(f32), be1_ref[...].astype(f32))
    y = jnp.maximum(linear(x1, w1_ref, b1_ref), 0.0)              # relu
    y = linear(y, w2_ref, b2_ref)
    x2 = _layernorm(x1 + y, g2_ref[...].astype(f32), be2_ref[...].astype(f32))

    # ---- final projection ---------------------------------------------------
    o_ref[0] = linear(x2, wp_ref, bp_ref).astype(o_ref.dtype)


def residual_decomp_encoder_layer(x, params, *, window_size: int, n_heads: int):
    """x: (B, L, d_model) float. Returns (B, L, d_model)."""
    B, L, C = x.shape
    assert window_size % 2 == 1, "series_decomp uses symmetric padding (odd window)"
    assert C % n_heads == 0

    # Fuse Q/K/V projection weights (wrapper-side, pure layout plumbing).
    wqkv = jnp.concatenate([params["wq"], params["wk"], params["wv"]], axis=1)
    bqkv = jnp.concatenate([params["bq"], params["bk"], params["bv"]], axis=1)
    weights = [
        wqkv, bqkv, params["wo"], params["bo"],
        params["g1"], params["be1"], params["w1"], params["b1"],
        params["w2"], params["b2"], params["g2"], params["be2"],
        params["wp"], params["bp"],
    ]

    kernel = functools.partial(
        _fused_kernel, kernel_size=window_size, n_heads=n_heads
    )

    in_specs = [pl.BlockSpec((1, L, C), lambda b: (b, 0, 0))]
    # Weight blocks are full arrays with constant index maps -> DMA'd once,
    # reused across all grid steps.
    for w in weights:
        in_specs.append(pl.BlockSpec(w.shape, lambda b: (0, 0)))

    return pl.pallas_call(
        kernel,
        out_shape=jax.ShapeDtypeStruct((B, L, C), x.dtype),
        grid_spec=pltpu.PrefetchScalarGridSpec(
            num_scalar_prefetch=0,
            grid=(B,),
            in_specs=in_specs,
            out_specs=pl.BlockSpec((1, L, C), lambda b: (b, 0, 0)),
        ),
        compiler_params=pltpu.CompilerParams(
            dimension_semantics=("parallel",)
        ),
    )(x, *weights)


# ----------------------------- reference & test ------------------------------


def init_params(key, d_model, d_ff=None, dtype=jnp.float32):
    d_ff = d_ff or 4 * d_model
    ks = jax.random.split(key, 9)

    def lin(k, fan_in, fan_out):
        lim = 1.0 / (fan_in ** 0.5)
        kw, kb = jax.random.split(k)
        w = jax.random.uniform(kw, (fan_in, fan_out), dtype, -lim, lim)
        b = jax.random.uniform(kb, (1, fan_out), dtype, -lim, lim)
        return w, b

    p = {}
    p["wq"], p["bq"] = lin(ks[0], d_model, d_model)
    p["wk"], p["bk"] = lin(ks[1], d_model, d_model)
    p["wv"], p["bv"] = lin(ks[2], d_model, d_model)
    p["wo"], p["bo"] = lin(ks[3], d_model, d_model)
    p["w1"], p["b1"] = lin(ks[4], d_model, d_ff)
    p["w2"], p["b2"] = lin(ks[5], d_ff, d_model)
    p["wp"], p["bp"] = lin(ks[6], d_model, d_model)
    p["g1"] = 1.0 + 0.1 * jax.random.normal(ks[7], (1, d_model), dtype)
    p["be1"] = 0.1 * jax.random.normal(ks[7], (1, d_model), dtype)
    p["g2"] = 1.0 + 0.1 * jax.random.normal(ks[8], (1, d_model), dtype)
    p["be2"] = 0.1 * jax.random.normal(ks[8], (1, d_model), dtype)
    return p


def _ref_forward(x, p, *, kernel_size, n_heads):
    # Pure-JAX re-implementation of the PyTorch module (dropout = identity).
    B, L, C = x.shape
    pad = (kernel_size - 1) // 2
    front = jnp.repeat(x[:, 0:1, :], pad, axis=1)
    end = jnp.repeat(x[:, L - 1:L, :], pad, axis=1)
    xp = jnp.concatenate([front, x, end], axis=1)
    t = jnp.stack(
        [jnp.mean(xp[:, i:i + kernel_size, :], axis=1) for i in range(L)], axis=1
    )

    def linear(z, w, b):
        return jnp.einsum("blc,cd->bld", z, w) + b

    dh = C // n_heads
    q = linear(t, p["wq"], p["bq"]).reshape(B, L, n_heads, dh)
    k = linear(t, p["wk"], p["bk"]).reshape(B, L, n_heads, dh)
    v = linear(t, p["wv"], p["bv"]).reshape(B, L, n_heads, dh)
    s = jnp.einsum("blhe,bshe->bhls", q, k) * (1.0 / (dh ** 0.5))
    a = jax.nn.softmax(s, axis=-1)
    o = jnp.einsum("bhls,bshd->blhd", a, v).reshape(B, L, C)
    new_x = linear(o, p["wo"], p["bo"])

    x1 = _layernorm(t + new_x, p["g1"], p["be1"])
    y = jnp.maximum(linear(x1, p["w1"], p["b1"]), 0.0)
    y = linear(y, p["w2"], p["b2"])
    x2 = _layernorm(x1 + y, p["g2"], p["be2"])
    return linear(x2, p["wp"], p["bp"])


if __name__ == "__main__":
    B, L, D_MODEL, N_HEAD = 2, 16, 32, 4
    WINDOW_SIZE = 3                     # module default: 2 + 1

    key = jax.random.PRNGKey(0)
    kx, kp = jax.random.split(key)
    x = jax.random.normal(kx, (B, L, D_MODEL), dtype=jnp.float32)
    params = init_params(kp, D_MODEL)

    out = residual_decomp_encoder_layer(
        x, params, window_size=WINDOW_SIZE, n_heads=N_HEAD
    )
    out = jax.block_until_ready(out)

    ref = _ref_forward(x, params, kernel_size=WINDOW_SIZE, n_heads=N_HEAD)
    assert out.shape == ref.shape, (out.shape, ref.shape)
    max_err = float(jnp.max(jnp.abs(out - ref)))
    assert jnp.allclose(out, ref, atol=2e-4, rtol=2e-4), f"mismatch, max_err={max_err}"

    print("KERNEL_OK")
</pallas_src>

<mosaic_0001>
module attributes {stable_mosaic.version = 11 : i64} {
  func.func @_fused_kernel(%arg0: i32, %arg1: memref<1x16x32xf32, #tpu.memory_space<vmem>>, %arg2: memref<32x96xf32, #tpu.memory_space<vmem>>, %arg3: memref<1x96xf32, #tpu.memory_space<vmem>>, %arg4: memref<32x32xf32, #tpu.memory_space<vmem>>, %arg5: memref<1x32xf32, #tpu.memory_space<vmem>>, %arg6: memref<1x32xf32, #tpu.memory_space<vmem>>, %arg7: memref<1x32xf32, #tpu.memory_space<vmem>>, %arg8: memref<32x128xf32, #tpu.memory_space<vmem>>, %arg9: memref<1x128xf32, #tpu.memory_space<vmem>>, %arg10: memref<128x32xf32, #tpu.memory_space<vmem>>, %arg11: memref<1x32xf32, #tpu.memory_space<vmem>>, %arg12: memref<1x32xf32, #tpu.memory_space<vmem>>, %arg13: memref<1x32xf32, #tpu.memory_space<vmem>>, %arg14: memref<32x32xf32, #tpu.memory_space<vmem>>, %arg15: memref<1x32xf32, #tpu.memory_space<vmem>>, %arg16: memref<1x16x32xf32, #tpu.memory_space<vmem>>) attributes {dimension_semantics = [#tpu.dimension_semantics<parallel>], iteration_bounds = array<i64: 2>, scalar_prefetch = 0 : i64, scratch_operands = 0 : i64, tpu.core_type = #tpu.core_type<tc>, window_params = [{transform_indices = @transform_0, window_bounds = array<i64: 1, 16, 32>}, {pipeline_mode = #tpu.pipeline_mode<synchronous>, transform_indices = @transform_1, window_bounds = array<i64: 32, 96>}, {pipeline_mode = #tpu.pipeline_mode<synchronous>, transform_indices = @transform_2, window_bounds = array<i64: 1, 96>}, {pipeline_mode = #tpu.pipeline_mode<synchronous>, transform_indices = @transform_3, window_bounds = array<i64: 32, 32>}, {pipeline_mode = #tpu.pipeline_mode<synchronous>, transform_indices = @transform_4, window_bounds = array<i64: 1, 32>}, {pipeline_mode = #tpu.pipeline_mode<synchronous>, transform_indices = @transform_5, window_bounds = array<i64: 1, 32>}, {pipeline_mode = #tpu.pipeline_mode<synchronous>, transform_indices = @transform_6, window_bounds = array<i64: 1, 32>}, {pipeline_mode = #tpu.pipeline_mode<synchronous>, transform_indices = @transform_7, window_bounds = array<i64: 32, 128>}, {pipeline_mode = #tpu.pipeline_mode<synchronous>, transform_indices = @transform_8, window_bounds = array<i64: 1, 128>}, {pipeline_mode = #tpu.pipeline_mode<synchronous>, transform_indices = @transform_9, window_bounds = array<i64: 128, 32>}, {pipeline_mode = #tpu.pipeline_mode<synchronous>, transform_indices = @transform_10, window_bounds = array<i64: 1, 32>}, {pipeline_mode = #tpu.pipeline_mode<synchronous>, transform_indices = @transform_11, window_bounds = array<i64: 1, 32>}, {pipeline_mode = #tpu.pipeline_mode<synchronous>, transform_indices = @transform_12, window_bounds = array<i64: 1, 32>}, {pipeline_mode = #tpu.pipeline_mode<synchronous>, transform_indices = @transform_13, window_bounds = array<i64: 32, 32>}, {pipeline_mode = #tpu.pipeline_mode<synchronous>, transform_indices = @transform_14, window_bounds = array<i64: 1, 32>}, {transform_indices = @transform_15, window_bounds = array<i64: 1, 16, 32>}]} {
    %c0 = arith.constant 0 : index
    %c0_0 = arith.constant 0 : index
    %c0_1 = arith.constant 0 : index
    %0 = vector.load %arg1[%c0, %c0_0, %c0_1] : memref<1x16x32xf32, #tpu.memory_space<vmem>>, vector<1x16x32xf32>
    %1 = vector.shape_cast %0 : vector<1x16x32xf32> to vector<16x32xf32>
    %2 = vector.extract_strided_slice %1 {offsets = [1, 0], sizes = [15, 32], strides = [1, 1]} : vector<16x32xf32> to vector<15x32xf32>
    %3 = vector.extract_strided_slice %1 {offsets = [15, 0], sizes = [1, 32], strides = [1, 1]} : vector<16x32xf32> to vector<1x32xf32>
    %4 = tpu.concatenate %2, %3 in 0 : vector<15x32xf32>, vector<1x32xf32> -> vector<16x32xf32>
    %5 = vector.extract_strided_slice %1 {offsets = [0, 0], sizes = [1, 32], strides = [1, 1]} : vector<16x32xf32> to vector<1x32xf32>
    %6 = vector.extract_strided_slice %1 {offsets = [0, 0], sizes = [15, 32], strides = [1, 1]} : vector<16x32xf32> to vector<15x32xf32>
    %7 = tpu.concatenate %5, %6 in 0 : vector<1x32xf32>, vector<15x32xf32> -> vector<16x32xf32>
    %8 = arith.addf %1, %4 : vector<16x32xf32>
    %9 = arith.addf %8, %7 : vector<16x32xf32>
    %cst = arith.constant 0.333333343 : f32
    %10 = vector.broadcast %cst : f32 to vector<16x32xf32>
    %11 = arith.mulf %9, %10 : vector<16x32xf32>
    %c0_2 = arith.constant 0 : index
    %c0_3 = arith.constant 0 : index
    %12 = vector.load %arg2[%c0_2, %c0_3] : memref<32x96xf32, #tpu.memory_space<vmem>>, vector<32x96xf32>
    %cst_4 = arith.constant dense<0.000000e+00> : vector<16x96xf32>
    %13 = tpu.matmul %11, %12, %cst_4 {dimension_numbers = #tpu.dot_dimension_numbers<[1], [0], [0], [1], [0, 0, 1, 1], [], []>, precision = #tpu.contract_precision<fp32>} : vector<16x32xf32>, vector<32x96xf32>, vector<16x96xf32> -> vector<16x96xf32>
    %c0_5 = arith.constant 0 : index
    %c0_6 = arith.constant 0 : index
    %14 = vector.load %arg3[%c0_5, %c0_6] : memref<1x96xf32, #tpu.memory_space<vmem>>, vector<1x96xf32>
    %15 = vector.broadcast %14 : vector<1x96xf32> to vector<16x96xf32>
    %16 = arith.addf %13, %15 : vector<16x96xf32>
    %17 = vector.extract_strided_slice %16 {offsets = [0, 0], sizes = [16, 32], strides = [1, 1]} : vector<16x96xf32> to vector<16x32xf32>
    %18 = vector.extract_strided_slice %16 {offsets = [0, 32], sizes = [16, 32], strides = [1, 1]} : vector<16x96xf32> to vector<16x32xf32>
    %19 = vector.extract_strided_slice %16 {offsets = [0, 64], sizes = [16, 32], strides = [1, 1]} : vector<16x96xf32> to vector<16x32xf32>
    %20 = vector.extract_strided_slice %17 {offsets = [0, 0], sizes = [16, 8], strides = [1, 1]} : vector<16x32xf32> to vector<16x8xf32>
    %21 = vector.extract_strided_slice %18 {offsets = [0, 0], sizes = [16, 8], strides = [1, 1]} : vector<16x32xf32> to vector<16x8xf32>
    %22 = vector.extract_strided_slice %19 {offsets = [0, 0], sizes = [16, 8], strides = [1, 1]} : vector<16x32xf32> to vector<16x8xf32>
    %cst_7 = arith.constant dense<0.000000e+00> : vector<16x16xf32>
    %23 = tpu.matmul %20, %21, %cst_7 {dimension_numbers = #tpu.dot_dimension_numbers<[1], [1], [0], [0], [0, 0, 1, 0], [], []>, precision = #tpu.contract_precision<fp32>} : vector<16x8xf32>, vector<16x8xf32>, vector<16x16xf32> -> vector<16x16xf32>
    %cst_8 = arith.constant 0.353553385 : f32
    %24 = vector.broadcast %cst_8 : f32 to vector<16x16xf32>
    %25 = arith.mulf %23, %24 : vector<16x16xf32>
    %cst_9 = arith.constant dense<0xFF800000> : vector<16xf32>
    %26 = vector.multi_reduction <maximumf>, %25, %cst_9 [1] : vector<16x16xf32> to vector<16xf32>
    %27 = vector.shape_cast %26 : vector<16xf32> to vector<16x1xf32>
    %28 = vector.broadcast %27 : vector<16x1xf32> to vector<16x16xf32>
    %29 = arith.subf %25, %28 : vector<16x16xf32>
    %30 = math.exp %29 : vector<16x16xf32>
    %cst_10 = arith.constant dense<0.000000e+00> : vector<16xf32>
    %31 = vector.multi_reduction <add>, %30, %cst_10 [1] : vector<16x16xf32> to vector<16xf32>
    %32 = vector.shape_cast %31 : vector<16xf32> to vector<16x1xf32>
    %33 = vector.broadcast %32 : vector<16x1xf32> to vector<16x16xf32>
    %34 = arith.divf %30, %33 : vector<16x16xf32>
    %cst_11 = arith.constant dense<0.000000e+00> : vector<16x8xf32>
    %35 = tpu.matmul %34, %22, %cst_11 {dimension_numbers = #tpu.dot_dimension_numbers<[1], [0], [0], [1], [0, 0, 1, 1], [], []>, precision = #tpu.contract_precision<fp32>} : vector<16x16xf32>, vector<16x8xf32>, vector<16x8xf32> -> vector<16x8xf32>
    %36 = vector.extract_strided_slice %17 {offsets = [0, 8], sizes = [16, 8], strides = [1, 1]} : vector<16x32xf32> to vector<16x8xf32>
    %37 = vector.extract_strided_slice %18 {offsets = [0, 8], sizes = [16, 8], strides = [1, 1]} : vector<16x32xf32> to vector<16x8xf32>
    %38 = vector.extract_strided_slice %19 {offsets = [0, 8], sizes = [16, 8], strides = [1, 1]} : vector<16x32xf32> to vector<16x8xf32>
    %cst_12 = arith.constant dense<0.000000e+00> : vector<16x16xf32>
    %39 = tpu.matmul %36, %37, %cst_12 {dimension_numbers = #tpu.dot_dimension_numbers<[1], [1], [0], [0], [0, 0, 1, 0], [], []>, precision = #tpu.contract_precision<fp32>} : vector<16x8xf32>, vector<16x8xf32>, vector<16x16xf32> -> vector<16x16xf32>
    %cst_13 = arith.constant 0.353553385 : f32
    %40 = vector.broadcast %cst_13 : f32 to vector<16x16xf32>
    %41 = arith.mulf %39, %40 : vector<16x16xf32>
    %cst_14 = arith.constant dense<0xFF800000> : vector<16xf32>
    %42 = vector.multi_reduction <maximumf>, %41, %cst_14 [1] : vector<16x16xf32> to vector<16xf32>
    %43 = vector.shape_cast %42 : vector<16xf32> to vector<16x1xf32>
    %44 = vector.broadcast %43 : vector<16x1xf32> to vector<16x16xf32>
    %45 = arith.subf %41, %44 : vector<16x16xf32>
    %46 = math.exp %45 : vector<16x16xf32>
    %cst_15 = arith.constant dense<0.000000e+00> : vector<16xf32>
    %47 = vector.multi_reduction <add>, %46, %cst_15 [1] : vector<16x16xf32> to vector<16xf32>
    %48 = vector.shape_cast %47 : vector<16xf32> to vector<16x1xf32>
    %49 = vector.broadcast %48 : vector<16x1xf32> to vector<16x16xf32>
    %50 = arith.divf %46, %49 : vector<16x16xf32>
    %cst_16 = arith.constant dense<0.000000e+00> : vector<16x8xf32>
    %51 = tpu.matmul %50, %38, %cst_16 {dimension_numbers = #tpu.dot_dimension_numbers<[1], [0], [0], [1], [0, 0, 1, 1], [], []>, precision = #tpu.contract_precision<fp32>} : vector<16x16xf32>, vector<16x8xf32>, vector<16x8xf32> -> vector<16x8xf32>
    %52 = vector.extract_strided_slice %17 {offsets = [0, 16], sizes = [16, 8], strides = [1, 1]} : vector<16x32xf32> to vector<16x8xf32>
    %53 = vector.extract_strided_slice %18 {offsets = [0, 16], sizes = [16, 8], strides = [1, 1]} : vector<16x32xf32> to vector<16x8xf32>
    %54 = vector.extract_strided_slice %19 {offsets = [0, 16], sizes = [16, 8], strides = [1, 1]} : vector<16x32xf32> to vector<16x8xf32>
    %cst_17 = arith.constant dense<0.000000e+00> : vector<16x16xf32>
    %55 = tpu.matmul %52, %53, %cst_17 {dimension_numbers = #tpu.dot_dimension_numbers<[1], [1], [0], [0], [0, 0, 1, 0], [], []>, precision = #tpu.contract_precision<fp32>} : vector<16x8xf32>, vector<16x8xf32>, vector<16x16xf32> -> vector<16x16xf32>
    %cst_18 = arith.constant 0.353553385 : f32
    %56 = vector.broadcast %cst_18 : f32 to vector<16x16xf32>
    %57 = arith.mulf %55, %56 : vector<16x16xf32>
    %cst_19 = arith.constant dense<0xFF800000> : vector<16xf32>
    %58 = vector.multi_reduction <maximumf>, %57, %cst_19 [1] : vector<16x16xf32> to vector<16xf32>
    %59 = vector.shape_cast %58 : vector<16xf32> to vector<16x1xf32>
    %60 = vector.broadcast %59 : vector<16x1xf32> to vector<16x16xf32>
    %61 = arith.subf %57, %60 : vector<16x16xf32>
    %62 = math.exp %61 : vector<16x16xf32>
    %cst_20 = arith.constant dense<0.000000e+00> : vector<16xf32>
    %63 = vector.multi_reduction <add>, %62, %cst_20 [1] : vector<16x16xf32> to vector<16xf32>
    %64 = vector.shape_cast %63 : vector<16xf32> to vector<16x1xf32>
    %65 = vector.broadcast %64 : vector<16x1xf32> to vector<16x16xf32>
    %66 = arith.divf %62, %65 : vector<16x16xf32>
    %cst_21 = arith.constant dense<0.000000e+00> : vector<16x8xf32>
    %67 = tpu.matmul %66, %54, %cst_21 {dimension_numbers = #tpu.dot_dimension_numbers<[1], [0], [0], [1], [0, 0, 1, 1], [], []>, precision = #tpu.contract_precision<fp32>} : vector<16x16xf32>, vector<16x8xf32>, vector<16x8xf32> -> vector<16x8xf32>
    %68 = vector.extract_strided_slice %17 {offsets = [0, 24], sizes = [16, 8], strides = [1, 1]} : vector<16x32xf32> to vector<16x8xf32>
    %69 = vector.extract_strided_slice %18 {offsets = [0, 24], sizes = [16, 8], strides = [1, 1]} : vector<16x32xf32> to vector<16x8xf32>
    %70 = vector.extract_strided_slice %19 {offsets = [0, 24], sizes = [16, 8], strides = [1, 1]} : vector<16x32xf32> to vector<16x8xf32>
    %cst_22 = arith.constant dense<0.000000e+00> : vector<16x16xf32>
    %71 = tpu.matmul %68, %69, %cst_22 {dimension_numbers = #tpu.dot_dimension_numbers<[1], [1], [0], [0], [0, 0, 1, 0], [], []>, precision = #tpu.contract_precision<fp32>} : vector<16x8xf32>, vector<16x8xf32>, vector<16x16xf32> -> vector<16x16xf32>
    %cst_23 = arith.constant 0.353553385 : f32
    %72 = vector.broadcast %cst_23 : f32 to vector<16x16xf32>
    %73 = arith.mulf %71, %72 : vector<16x16xf32>
    %cst_24 = arith.constant dense<0xFF800000> : vector<16xf32>
    %74 = vector.multi_reduction <maximumf>, %73, %cst_24 [1] : vector<16x16xf32> to vector<16xf32>
    %75 = vector.shape_cast %74 : vector<16xf32> to vector<16x1xf32>
    %76 = vector.broadcast %75 : vector<16x1xf32> to vector<16x16xf32>
    %77 = arith.subf %73, %76 : vector<16x16xf32>
    %78 = math.exp %77 : vector<16x16xf32>
    %cst_25 = arith.constant dense<0.000000e+00> : vector<16xf32>
    %79 = vector.multi_reduction <add>, %78, %cst_25 [1] : vector<16x16xf32> to vector<16xf32>
    %80 = vector.shape_cast %79 : vector<16xf32> to vector<16x1xf32>
    %81 = vector.broadcast %80 : vector<16x1xf32> to vector<16x16xf32>
    %82 = arith.divf %78, %81 : vector<16x16xf32>
    %cst_26 = arith.constant dense<0.000000e+00> : vector<16x8xf32>
    %83 = tpu.matmul %82, %70, %cst_26 {dimension_numbers = #tpu.dot_dimension_numbers<[1], [0], [0], [1], [0, 0, 1, 1], [], []>, precision = #tpu.contract_precision<fp32>} : vector<16x16xf32>, vector<16x8xf32>, vector<16x8xf32> -> vector<16x8xf32>
    %84 = tpu.concatenate %35, %51, %67, %83 in 1 : vector<16x8xf32>, vector<16x8xf32>, vector<16x8xf32>, vector<16x8xf32> -> vector<16x32xf32>
    %c0_27 = arith.constant 0 : index
    %c0_28 = arith.constant 0 : index
    %85 = vector.load %arg4[%c0_27, %c0_28] : memref<32x32xf32, #tpu.memory_space<vmem>>, vector<32x32xf32>
    %cst_29 = arith.constant dense<0.000000e+00> : vector<16x32xf32>
    %86 = tpu.matmul %84, %85, %cst_29 {dimension_numbers = #tpu.dot_dimension_numbers<[1], [0], [0], [1], [0, 0, 1, 1], [], []>, precision = #tpu.contract_precision<fp32>} : vector<16x32xf32>, vector<32x32xf32>, vector<16x32xf32> -> vector<16x32xf32>
    %c0_30 = arith.constant 0 : index
    %c0_31 = arith.constant 0 : index
    %87 = vector.load %arg5[%c0_30, %c0_31] : memref<1x32xf32, #tpu.memory_space<vmem>>, vector<1x32xf32>
    %88 = vector.broadcast %87 : vector<1x32xf32> to vector<16x32xf32>
    %89 = arith.addf %86, %88 : vector<16x32xf32>
    %90 = arith.addf %11, %89 : vector<16x32xf32>
    %c0_32 = arith.constant 0 : index
    %c0_33 = arith.constant 0 : index
    %91 = vector.load %arg6[%c0_32, %c0_33] : memref<1x32xf32, #tpu.memory_space<vmem>>, vector<1x32xf32>
    %c0_34 = arith.constant 0 : index
    %c0_35 = arith.constant 0 : index
    %92 = vector.load %arg7[%c0_34, %c0_35] : memref<1x32xf32, #tpu.memory_space<vmem>>, vector<1x32xf32>
    %cst_36 = arith.constant dense<0.000000e+00> : vector<16xf32>
    %93 = vector.multi_reduction <add>, %90, %cst_36 [1] : vector<16x32xf32> to vector<16xf32>
    %94 = vector.shape_cast %93 : vector<16xf32> to vector<16x1xf32>
    %cst_37 = arith.constant 3.200000e+01 : f32
    %95 = vector.broadcast %cst_37 : f32 to vector<16x1xf32>
    %96 = arith.divf %94, %95 : vector<16x1xf32>
    %97 = vector.broadcast %96 : vector<16x1xf32> to vector<16x32xf32>
    %98 = arith.subf %90, %97 : vector<16x32xf32>
    %99 = arith.mulf %98, %98 : vector<16x32xf32>
    %cst_38 = arith.constant dense<0.000000e+00> : vector<16xf32>
    %100 = vector.multi_reduction <add>, %99, %cst_38 [1] : vector<16x32xf32> to vector<16xf32>
    %101 = vector.shape_cast %100 : vector<16xf32> to vector<16x1xf32>
    %cst_39 = arith.constant 3.200000e+01 : f32
    %102 = vector.broadcast %cst_39 : f32 to vector<16x1xf32>
    %103 = arith.divf %101, %102 : vector<16x1xf32>
    %104 = vector.broadcast %96 : vector<16x1xf32> to vector<16x32xf32>
    %105 = arith.subf %90, %104 : vector<16x32xf32>
    %cst_40 = arith.constant 9.99999974E-6 : f32
    %106 = vector.broadcast %cst_40 : f32 to vector<16x1xf32>
    %107 = arith.addf %103, %106 : vector<16x1xf32>
    %108 = math.rsqrt %107 : vector<16x1xf32>
    %109 = vector.broadcast %108 : vector<16x1xf32> to vector<16x32xf32>
    %110 = arith.mulf %105, %109 : vector<16x32xf32>
    %111 = vector.broadcast %91 : vector<1x32xf32> to vector<16x32xf32>
    %112 = arith.mulf %110, %111 : vector<16x32xf32>
    %113 = vector.broadcast %92 : vector<1x32xf32> to vector<16x32xf32>
    %114 = arith.addf %112, %113 : vector<16x32xf32>
    %c0_41 = arith.constant 0 : index
    %c0_42 = arith.constant 0 : index
    %115 = vector.load %arg8[%c0_41, %c0_42] : memref<32x128xf32, #tpu.memory_space<vmem>>, vector<32x128xf32>
    %cst_43 = arith.constant dense<0.000000e+00> : vector<16x128xf32>
    %116 = tpu.matmul %114, %115, %cst_43 {dimension_numbers = #tpu.dot_dimension_numbers<[1], [0], [0], [1], [0, 0, 1, 1], [], []>, precision = #tpu.contract_precision<fp32>} : vector<16x32xf32>, vector<32x128xf32>, vector<16x128xf32> -> vector<16x128xf32>
    %c0_44 = arith.constant 0 : index
    %c0_45 = arith.constant 0 : index
    %117 = vector.load %arg9[%c0_44, %c0_45] : memref<1x128xf32, #tpu.memory_space<vmem>>, vector<1x128xf32>
    %118 = vector.broadcast %117 : vector<1x128xf32> to vector<16x128xf32>
    %119 = arith.addf %116, %118 : vector<16x128xf32>
    %cst_46 = arith.constant 0.000000e+00 : f32
    %120 = vector.broadcast %cst_46 : f32 to vector<16x128xf32>
    %121 = arith.maximumf %119, %120 : vector<16x128xf32>
    %c0_47 = arith.constant 0 : index
    %c0_48 = arith.constant 0 : index
    %122 = vector.load %arg10[%c0_47, %c0_48] : memref<128x32xf32, #tpu.memory_space<vmem>>, vector<128x32xf32>
    %cst_49 = arith.constant dense<0.000000e+00> : vector<16x32xf32>
    %123 = tpu.matmul %121, %122, %cst_49 {dimension_numbers = #tpu.dot_dimension_numbers<[1], [0], [0], [1], [0, 0, 1, 1], [], []>, precision = #tpu.contract_precision<fp32>} : vector<16x128xf32>, vector<128x32xf32>, vector<16x32xf32> -> vector<16x32xf32>
    %c0_50 = arith.constant 0 : index
    %c0_51 = arith.constant 0 : index
    %124 = vector.load %arg11[%c0_50, %c0_51] : memref<1x32xf32, #tpu.memory_space<vmem>>, vector<1x32xf32>
    %125 = vector.broadcast %124 : vector<1x32xf32> to vector<16x32xf32>
    %126 = arith.addf %123, %125 : vector<16x32xf32>
    %127 = arith.addf %114, %126 : vector<16x32xf32>
    %c0_52 = arith.constant 0 : index
    %c0_53 = arith.constant 0 : index
    %128 = vector.load %arg12[%c0_52, %c0_53] : memref<1x32xf32, #tpu.memory_space<vmem>>, vector<1x32xf32>
    %c0_54 = arith.constant 0 : index
    %c0_55 = arith.constant 0 : index
    %129 = vector.load %arg13[%c0_54, %c0_55] : memref<1x32xf32, #tpu.memory_space<vmem>>, vector<1x32xf32>
    %cst_56 = arith.constant dense<0.000000e+00> : vector<16xf32>
    %130 = vector.multi_reduction <add>, %127, %cst_56 [1] : vector<16x32xf32> to vector<16xf32>
    %131 = vector.shape_cast %130 : vector<16xf32> to vector<16x1xf32>
    %cst_57 = arith.constant 3.200000e+01 : f32
    %132 = vector.broadcast %cst_57 : f32 to vector<16x1xf32>
    %133 = arith.divf %131, %132 : vector<16x1xf32>
    %134 = vector.broadcast %133 : vector<16x1xf32> to vector<16x32xf32>
    %135 = arith.subf %127, %134 : vector<16x32xf32>
    %136 = arith.mulf %135, %135 : vector<16x32xf32>
    %cst_58 = arith.constant dense<0.000000e+00> : vector<16xf32>
    %137 = vector.multi_reduction <add>, %136, %cst_58 [1] : vector<16x32xf32> to vector<16xf32>
    %138 = vector.shape_cast %137 : vector<16xf32> to vector<16x1xf32>
    %cst_59 = arith.constant 3.200000e+01 : f32
    %139 = vector.broadcast %cst_59 : f32 to vector<16x1xf32>
    %140 = arith.divf %138, %139 : vector<16x1xf32>
    %141 = vector.broadcast %133 : vector<16x1xf32> to vector<16x32xf32>
    %142 = arith.subf %127, %141 : vector<16x32xf32>
    %cst_60 = arith.constant 9.99999974E-6 : f32
    %143 = vector.broadcast %cst_60 : f32 to vector<16x1xf32>
    %144 = arith.addf %140, %143 : vector<16x1xf32>
    %145 = math.rsqrt %144 : vector<16x1xf32>
    %146 = vector.broadcast %145 : vector<16x1xf32> to vector<16x32xf32>
    %147 = arith.mulf %142, %146 : vector<16x32xf32>
    %148 = vector.broadcast %128 : vector<1x32xf32> to vector<16x32xf32>
    %149 = arith.mulf %147, %148 : vector<16x32xf32>
    %150 = vector.broadcast %129 : vector<1x32xf32> to vector<16x32xf32>
    %151 = arith.addf %149, %150 : vector<16x32xf32>
    %c0_61 = arith.constant 0 : index
    %c0_62 = arith.constant 0 : index
    %152 = vector.load %arg14[%c0_61, %c0_62] : memref<32x32xf32, #tpu.memory_space<vmem>>, vector<32x32xf32>
    %cst_63 = arith.constant dense<0.000000e+00> : vector<16x32xf32>
    %153 = tpu.matmul %151, %152, %cst_63 {dimension_numbers = #tpu.dot_dimension_numbers<[1], [0], [0], [1], [0, 0, 1, 1], [], []>, precision = #tpu.contract_precision<fp32>} : vector<16x32xf32>, vector<32x32xf32>, vector<16x32xf32> -> vector<16x32xf32>
    %c0_64 = arith.constant 0 : index
    %c0_65 = arith.constant 0 : index
    %154 = vector.load %arg15[%c0_64, %c0_65] : memref<1x32xf32, #tpu.memory_space<vmem>>, vector<1x32xf32>
    %155 = vector.broadcast %154 : vector<1x32xf32> to vector<16x32xf32>
    %156 = arith.addf %153, %155 : vector<16x32xf32>
    %c0_66 = arith.constant 0 : index
    %c0_67 = arith.constant 0 : index
    %c0_68 = arith.constant 0 : index
    %157 = vector.load %arg16[%c0_66, %c0_67, %c0_68] : memref<1x16x32xf32, #tpu.memory_space<vmem>>, vector<1x16x32xf32>
    %158 = vector.shape_cast %157 : vector<1x16x32xf32> to vector<16x32xf32>
    %159 = vector.shape_cast %156 : vector<16x32xf32> to vector<1x16x32xf32>
    tpu.vector_store %arg16[%c0_66, %c0_67, %c0_68], %159 {strides = array<i32>} : memref<1x16x32xf32, #tpu.memory_space<vmem>>, vector<1x16x32xf32>,
    return
  }
  func.func @transform_0(%arg0: i32) -> (i32, i32, i32) {
    %c0_i32 = arith.constant 0 : i32
    %c0_i32_0 = arith.constant 0 : i32
    %c0_i32_1 = arith.constant 0 : i32
    return %arg0, %c0_i32, %c0_i32_0 : i32, i32, i32
  }
  func.func @transform_1(%arg0: i32) -> (i32, i32) {
    %c0_i32 = arith.constant 0 : i32
    %c0_i32_0 = arith.constant 0 : i32
    %c0_i32_1 = arith.constant 0 : i32
    return %c0_i32, %c0_i32_0 : i32, i32
  }
  func.func @transform_2(%arg0: i32) -> (i32, i32) {
    %c0_i32 = arith.constant 0 : i32
    %c0_i32_0 = arith.constant 0 : i32
    %c0_i32_1 = arith.constant 0 : i32
    return %c0_i32, %c0_i32_0 : i32, i32
  }
  func.func @transform_3(%arg0: i32) -> (i32, i32) {
    %c0_i32 = arith.constant 0 : i32
    %c0_i32_0 = arith.constant 0 : i32
    %c0_i32_1 = arith.constant 0 : i32
    return %c0_i32, %c0_i32_0 : i32, i32
  }
  func.func @transform_4(%arg0: i32) -> (i32, i32) {
    %c0_i32 = arith.constant 0 : i32
    %c0_i32_0 = arith.constant 0 : i32
    %c0_i32_1 = arith.constant 0 : i32
    return %c0_i32, %c0_i32_0 : i32, i32
  }
  func.func @transform_5(%arg0: i32) -> (i32, i32) {
    %c0_i32 = arith.constant 0 : i32
    %c0_i32_0 = arith.constant 0 : i32
    %c0_i32_1 = arith.constant 0 : i32
    return %c0_i32, %c0_i32_0 : i32, i32
  }
  func.func @transform_6(%arg0: i32) -> (i32, i32) {
    %c0_i32 = arith.constant 0 : i32
    %c0_i32_0 = arith.constant 0 : i32
    %c0_i32_1 = arith.constant 0 : i32
    return %c0_i32, %c0_i32_0 : i32, i32
  }
  func.func @transform_7(%arg0: i32) -> (i32, i32) {
    %c0_i32 = arith.constant 0 : i32
    %c0_i32_0 = arith.constant 0 : i32
    %c0_i32_1 = arith.constant 0 : i32
    return %c0_i32, %c0_i32_0 : i32, i32
  }
  func.func @transform_8(%arg0: i32) -> (i32, i32) {
    %c0_i32 = arith.constant 0 : i32
    %c0_i32_0 = arith.constant 0 : i32
    %c0_i32_1 = arith.constant 0 : i32
    return %c0_i32, %c0_i32_0 : i32, i32
  }
  func.func @transform_9(%arg0: i32) -> (i32, i32) {
    %c0_i32 = arith.constant 0 : i32
    %c0_i32_0 = arith.constant 0 : i32
    %c0_i32_1 = arith.constant 0 : i32
    return %c0_i32, %c0_i32_0 : i32, i32
  }
  func.func @transform_10(%arg0: i32) -> (i32, i32) {
    %c0_i32 = arith.constant 0 : i32
    %c0_i32_0 = arith.constant 0 : i32
    %c0_i32_1 = arith.constant 0 : i32
    return %c0_i32, %c0_i32_0 : i32, i32
  }
  func.func @transform_11(%arg0: i32) -> (i32, i32) {
    %c0_i32 = arith.constant 0 : i32
    %c0_i32_0 = arith.constant 0 : i32
    %c0_i32_1 = arith.constant 0 : i32
    return %c0_i32, %c0_i32_0 : i32, i32
  }
  func.func @transform_12(%arg0: i32) -> (i32, i32) {
    %c0_i32 = arith.constant 0 : i32
    %c0_i32_0 = arith.constant 0 : i32
    %c0_i32_1 = arith.constant 0 : i32
    return %c0_i32, %c0_i32_0 : i32, i32
  }
  func.func @transform_13(%arg0: i32) -> (i32, i32) {
    %c0_i32 = arith.constant 0 : i32
    %c0_i32_0 = arith.constant 0 : i32
    %c0_i32_1 = arith.constant 0 : i32
    return %c0_i32, %c0_i32_0 : i32, i32
  }
  func.func @transform_14(%arg0: i32) -> (i32, i32) {
    %c0_i32 = arith.constant 0 : i32
    %c0_i32_0 = arith.constant 0 : i32
    %c0_i32_1 = arith.constant 0 : i32
    return %c0_i32, %c0_i32_0 : i32, i32
  }
  func.func @transform_15(%arg0: i32) -> (i32, i32, i32) {
    %c0_i32 = arith.constant 0 : i32
    %c0_i32_0 = arith.constant 0 : i32
    %c0_i32_1 = arith.constant 0 : i32
    return %arg0, %c0_i32, %c0_i32_0 : i32, i32, i32
  }
}

</mosaic_0001>

<llo_original>
// kernel: tpu_custom_call.1
$region0: #{tpu_custom_call.1}
  #allocation0 [shape = 'u32[]', space=smem, size = 0x4, offset = 0x4, fixed_abs, tag = 'smem constant byte address 0x4 - core index']
  #allocation1 [shape = 'u32[144,128]{1,0:T(1,128)}', space=vmem, size = 0x12000, scoped, tag = 'internal scratch']
  %s0 = inlined_call_operand.vmem [shape: f32[2,16,32], index: 0, kind: input, shape index: {}]
  %s1 = inlined_call_operand.vmem [shape: f32[32,96], index: 1, kind: input, shape index: {}]
  %s2 = inlined_call_operand.vmem [shape: f32[1,96], index: 2, kind: input, shape index: {}]
  %s3 = inlined_call_operand.vmem [shape: f32[32,32], index: 3, kind: input, shape index: {}]
  %s4 = inlined_call_operand.vmem [shape: f32[1,32], index: 4, kind: input, shape index: {}]
  %s5 = inlined_call_operand.hbm [shape: f32[1,32], index: 5, kind: input, shape index: {}]
  %s6 = inlined_call_operand.hbm [shape: f32[1,32], index: 6, kind: input, shape index: {}]
  %s7 = inlined_call_operand.vmem [shape: f32[32,128], index: 7, kind: input, shape index: {}]
  %s8 = inlined_call_operand.hbm [shape: f32[1,128], index: 8, kind: input, shape index: {}]
  %s9 = inlined_call_operand.vmem [shape: f32[128,32], index: 9, kind: input, shape index: {}]
  %s10 = inlined_call_operand.vmem [shape: f32[1,32], index: 10, kind: input, shape index: {}]
  %s11 = inlined_call_operand.vmem [shape: f32[1,32], index: 11, kind: input, shape index: {}]
  %s12 = inlined_call_operand.vmem [shape: f32[1,32], index: 12, kind: input, shape index: {}]
  %s13 = inlined_call_operand.vmem [shape: f32[32,32], index: 13, kind: input, shape index: {}]
  %s14 = inlined_call_operand.vmem [shape: f32[1,32], index: 14, kind: input, shape index: {}]
  %s15 = inlined_call_operand.hbm [shape: f32[2,16,32], index: 15, kind: output, shape index: {}]
  %s16 = sld [smem:[#allocation0]]
  $region105: #{tpu_custom_call.1} parent=0
    _
  %s18 = ssub.s32 1, %s16
  %s19 = scalar_select 0, %s18, %s16
  $region1: #{tpu_custom_call.1} parent=0
    #allocation2 [shape = 'u8[512]{0}', space=vmem, size = 0x400, scoped, tag = 'input window, operand 5, single buffered']
    #allocation3 [shape = 's32[2]{0}', space=sflag, size = 0x8, scoped, tag = 'scoped memory for tpu_custom_call.1']
    #allocation4 [shape = 's32[2]{0}', space=sflag, size = 0x8, scoped, tag = 'scoped memory for tpu_custom_call.1']
    #allocation5 [shape = 'u8[512]{0}', space=vmem, size = 0x400, scoped, tag = 'input window, operand 6, single buffered']
    #allocation6 [shape = 's32[1]{0}', space=sflag, size = 0x4, scoped, tag = 'scoped memory for tpu_custom_call.1']
    #allocation7 [shape = 'u8[512]{0}', space=vmem, size = 0x400, scoped, tag = 'input window, operand 8, single buffered']
    #allocation8 [shape = 'u8[16384]{0}', space=vmem, size = 0x4000, scoped, tag = 'output window, operand 0']
    %20 = vsyncpa [#allocation3], 0
    %21 = vsyncpa [#allocation6], 0
    %22 = vsyncpa [#allocation4], 0
    %s23 = scalar_lea.sflag [#allocation4], 1
    %24 = vsyncpa %s23, 0
    loop: start=0, step=1, limit=4
    $region2: #{tpu_custom_call.1} parent=1 // loop_pre_header
      _
    $region3: #{tpu_custom_call.1} parent=1 // loop_header
      %s26 = sphi 0, %s30
      %p27 = scmp.ge.s32.totalorder %s26, 4
      %s36 = sphi 0, %s38
      %s39 = sphi 0, %s36
      %s40 = sphi 0, %s39
      %s56 = sphi 0, %s40
      %s60 = sphi 0, %s60
      %s62 = sphi 0, %s60
      %s63 = sphi 0, %s62
      %s77 = sphi 0, %s63
      %s81 = sphi 0, %s81
      %s83 = sphi 0, %s81
      %s84 = sphi 0, %s83
      %s98 = sphi 0, %s84
      %s102 = sphi 0, %s102
      %s104 = sphi 0, %s102
      %s105 = sphi 0, %s104
      %s119 = sphi 0, %s105
      %s123 = sphi 0, %s123
      %s125 = sphi 0, %s123
      %s126 = sphi 0, %s125
      %s140 = sphi 0, %s126
      %s144 = sphi 0, %s144
      %s146 = sphi 0, %s144
      %s147 = sphi 0, %s146
      %s161 = sphi 0, %s147
      %s165 = sphi 0, %s165
      %s167 = sphi 0, %s165
      %s168 = sphi 0, %s167
      %s182 = sphi 0, %s168
      %s186 = sphi 0, %s186
      %s188 = sphi 0, %s186
      %s189 = sphi 0, %s188
      %s203 = sphi 0, %s189
      %s207 = sphi 0, %s207
      %s209 = sphi 0, %s207
      %s210 = sphi 0, %s209
      %s224 = sphi 0, %s210
      %s228 = sphi 0, %s228
      %s230 = sphi 0, %s228
      %s231 = sphi 0, %s230
      %s245 = sphi 0, %s231
      %s249 = sphi 0, %s249
      %s251 = sphi 0, %s249
      %s252 = sphi 0, %s251
      %s266 = sphi 0, %s252
      %s270 = sphi 0, %s270
      %s272 = sphi 0, %s270
      %s273 = sphi 0, %s272
      %s287 = sphi 0, %s273
      %s291 = sphi 0, %s291
      %s293 = sphi 0, %s291
      %s294 = sphi 0, %s293
      %s308 = sphi 0, %s294
      %s312 = sphi 0, %s312
      %s314 = sphi 0, %s312
      %s315 = sphi 0, %s314
      %s329 = sphi 0, %s315
      %s333 = sphi 0, %s333
      %s335 = sphi 0, %s333
      %s336 = sphi 0, %s335
      %s350 = sphi 0, %s336
      %s356 = sphi 0, %s358
      %s359 = sphi 0, %s356
      %s360 = sphi 0, %s359
      %s376 = sphi 0, %s360
    $region4: #{tpu_custom_call.1} parent=1 // loop_header_branch
      %29 = sbr.rel (%p27) target = $region8
    $region5: #{tpu_custom_call.1} parent=1 // loop_body
      %s31 = ssub.s32 %s26, 1
      %s32 = ssub.s32 %s26, 2
      %s33 = sadd.s32 %s26, 1
      %s34 = ssub.s32 %s26, %s33
      %p35 = scmp.eq.s32.totalorder %s34, 0
      %s37 = sadd.s32 %s36, 1
      %s38 = scalar_select %p35, %s36, %s37
      %p41 = pneg %p35
      %p42 = scmp.eq.s32.totalorder %s26, 1
      %p43 = por %p41, %p42
      %p44 = scmp.ne.s32.totalorder %s36, %s39
      %p45 = scmp.eq.s32.totalorder %s26, 0
      %p46 = por %p44, %p45
      %p47 = scmp.ne.s32.totalorder %s36, %s39
      %p48 = scmp.eq.s32.totalorder %s31, 1
      %p49 = por %p47, %p48
      %p50 = scmp.ne.s32.totalorder %s39, %s40
      %p51 = scmp.eq.s32.totalorder %s31, 0
      %p52 = por %p50, %p51
      %p53 = scmp.ne.s32.totalorder %s39, %s40
      %p54 = scmp.eq.s32.totalorder %s32, 1
      %p55 = por %p53, %p54
      %p57 = scmp.ne.s32.totalorder %s40, %s56
      %p58 = scmp.eq.s32.totalorder %s32, 0
      %p59 = por %p57, %p58
      %s61 = sadd.s32 %s60, 1
      %p64 = scmp.eq.s32.totalorder %s26, 1
      %p65 = scmp.ne.s32.totalorder %s60, %s62
      %p66 = scmp.eq.s32.totalorder %s26, 0
      %p67 = por %p65, %p66
      %p68 = scmp.ne.s32.totalorder %s60, %s62
      %p69 = scmp.eq.s32.totalorder %s31, 1
      %p70 = por %p68, %p69
      %p71 = scmp.ne.s32.totalorder %s62, %s63
      %p72 = scmp.eq.s32.totalorder %s31, 0
      %p73 = por %p71, %p72
      %p74 = scmp.ne.s32.totalorder %s62, %s63
      %p75 = scmp.eq.s32.totalorder %s32, 1
      %p76 = por %p74, %p75
      %p78 = scmp.ne.s32.totalorder %s63, %s77
      %p79 = scmp.eq.s32.totalorder %s32, 0
      %p80 = por %p78, %p79
      %s82 = sadd.s32 %s81, 1
      %p85 = scmp.eq.s32.totalorder %s26, 1
      %p86 = scmp.ne.s32.totalorder %s81, %s83
      %p87 = scmp.eq.s32.totalorder %s26, 0
      %p88 = por %p86, %p87
      %p89 = scmp.ne.s32.totalorder %s81, %s83
      %p90 = scmp.eq.s32.totalorder %s31, 1
      %p91 = por %p89, %p90
      %p92 = scmp.ne.s32.totalorder %s83, %s84
      %p93 = scmp.eq.s32.totalorder %s31, 0
      %p94 = por %p92, %p93
      %p95 = scmp.ne.s32.totalorder %s83, %s84
      %p96 = scmp.eq.s32.totalorder %s32, 1
      %p97 = por %p95, %p96
      %p99 = scmp.ne.s32.totalorder %s84, %s98
      %p100 = scmp.eq.s32.totalorder %s32, 0
      %p101 = por %p99, %p100
      %s103 = sadd.s32 %s102, 1
      %p106 = scmp.eq.s32.totalorder %s26, 1
      %p107 = scmp.ne.s32.totalorder %s102, %s104
      %p108 = scmp.eq.s32.totalorder %s26, 0
      %p109 = por %p107, %p108
      %p110 = scmp.ne.s32.totalorder %s102, %s104
      %p111 = scmp.eq.s32.totalorder %s31, 1
      %p112 = por %p110, %p111
      %p113 = scmp.ne.s32.totalorder %s104, %s105
      %p114 = scmp.eq.s32.totalorder %s31, 0
      %p115 = por %p113, %p114
      %p116 = scmp.ne.s32.totalorder %s104, %s105
      %p117 = scmp.eq.s32.totalorder %s32, 1
      %p118 = por %p116, %p117
      %p120 = scmp.ne.s32.totalorder %s105, %s119
      %p121 = scmp.eq.s32.totalorder %s32, 0
      %p122 = por %p120, %p121
      %s124 = sadd.s32 %s123, 1
      %p127 = scmp.eq.s32.totalorder %s26, 1
      %p128 = scmp.ne.s32.totalorder %s123, %s125
      %p129 = scmp.eq.s32.totalorder %s26, 0
      %p130 = por %p128, %p129
      %p131 = scmp.ne.s32.totalorder %s123, %s125
      %p132 = scmp.eq.s32.totalorder %s31, 1
      %p133 = por %p131, %p132
      %p134 = scmp.ne.s32.totalorder %s125, %s126
      %p135 = scmp.eq.s32.totalorder %s31, 0
      %p136 = por %p134, %p135
      %p137 = scmp.ne.s32.totalorder %s125, %s126
      %p138 = scmp.eq.s32.totalorder %s32, 1
      %p139 = por %p137, %p138
      %p141 = scmp.ne.s32.totalorder %s126, %s140
      %p142 = scmp.eq.s32.totalorder %s32, 0
      %p143 = por %p141, %p142
      %s145 = sadd.s32 %s144, 1
      %p148 = scmp.eq.s32.totalorder %s26, 1
      %p149 = scmp.ne.s32.totalorder %s144, %s146
      %p150 = scmp.eq.s32.totalorder %s26, 0
      %p151 = por %p149, %p150
      %p152 = scmp.ne.s32.totalorder %s144, %s146
      %p153 = scmp.eq.s32.totalorder %s31, 1
      %p154 = por %p152, %p153
      %p155 = scmp.ne.s32.totalorder %s146, %s147
      %p156 = scmp.eq.s32.totalorder %s31, 0
      %p157 = por %p155, %p156
      %p158 = scmp.ne.s32.totalorder %s146, %s147
      %p159 = scmp.eq.s32.totalorder %s32, 1
      %p160 = por %p158, %p159
      %p162 = scmp.ne.s32.totalorder %s147, %s161
      %p163 = scmp.eq.s32.totalorder %s32, 0
      %p164 = por %p162, %p163
      %s166 = sadd.s32 %s165, 1
      %p169 = scmp.eq.s32.totalorder %s26, 1
      %p170 = scmp.ne.s32.totalorder %s165, %s167
      %p171 = scmp.eq.s32.totalorder %s26, 0
      %p172 = por %p170, %p171
      %p173 = scmp.ne.s32.totalorder %s165, %s167
      %p174 = scmp.eq.s32.totalorder %s31, 1
      %p175 = por %p173, %p174
      %p176 = scmp.ne.s32.totalorder %s167, %s168
      %p177 = scmp.eq.s32.totalorder %s31, 0
      %p178 = por %p176, %p177
      %p179 = scmp.ne.s32.totalorder %s167, %s168
      %p180 = scmp.eq.s32.totalorder %s32, 1
      %p181 = por %p179, %p180
      %p183 = scmp.ne.s32.totalorder %s168, %s182
      %p184 = scmp.eq.s32.totalorder %s32, 0
      %p185 = por %p183, %p184
      %s187 = sadd.s32 %s186, 1
      %p190 = scmp.eq.s32.totalorder %s26, 1
      %p191 = scmp.ne.s32.totalorder %s186, %s188
      %p192 = scmp.eq.s32.totalorder %s26, 0
      %p193 = por %p191, %p192
      %p194 = scmp.ne.s32.totalorder %s186, %s188
      %p195 = scmp.eq.s32.totalorder %s31, 1
      %p196 = por %p194, %p195
      %p197 = scmp.ne.s32.totalorder %s188, %s189
      %p198 = scmp.eq.s32.totalorder %s31, 0
      %p199 = por %p197, %p198
      %p200 = scmp.ne.s32.totalorder %s188, %s189
      %p201 = scmp.eq.s32.totalorder %s32, 1
      %p202 = por %p200, %p201
      %p204 = scmp.ne.s32.totalorder %s189, %s203
      %p205 = scmp.eq.s32.totalorder %s32, 0
      %p206 = por %p204, %p205
      %s208 = sadd.s32 %s207, 1
      %p211 = scmp.eq.s32.totalorder %s26, 1
      %p212 = scmp.ne.s32.totalorder %s207, %s209
      %p213 = scmp.eq.s32.totalorder %s26, 0
      %p214 = por %p212, %p213
      %p215 = scmp.ne.s32.totalorder %s207, %s209
      %p216 = scmp.eq.s32.totalorder %s31, 1
      %p217 = por %p215, %p216
      %p218 = scmp.ne.s32.totalorder %s209, %s210
      %p219 = scmp.eq.s32.totalorder %s31, 0
      %p220 = por %p218, %p219
      %p221 = scmp.ne.s32.totalorder %s209, %s210
      %p222 = scmp.eq.s32.totalorder %s32, 1
      %p223 = por %p221, %p222
      %p225 = scmp.ne.s32.totalorder %s210, %s224
      %p226 = scmp.eq.s32.totalorder %s32, 0
      %p227 = por %p225, %p226
      %s229 = sadd.s32 %s228, 1
      %p232 = scmp.eq.s32.totalorder %s26, 1
      %p233 = scmp.ne.s32.totalorder %s228, %s230
      %p234 = scmp.eq.s32.totalorder %s26, 0
      %p235 = por %p233, %p234
      %p236 = scmp.ne.s32.totalorder %s228, %s230
      %p237 = scmp.eq.s32.totalorder %s31, 1
      %p238 = por %p236, %p237
      %p239 = scmp.ne.s32.totalorder %s230, %s231
      %p240 = scmp.eq.s32.totalorder %s31, 0
      %p241 = por %p239, %p240
      %p242 = scmp.ne.s32.totalorder %s230, %s231
      %p243 = scmp.eq.s32.totalorder %s32, 1
      %p244 = por %p242, %p243
      %p246 = scmp.ne.s32.totalorder %s231, %s245
      %p247 = scmp.eq.s32.totalorder %s32, 0
      %p248 = por %p246, %p247
      %s250 = sadd.s32 %s249, 1
      %p253 = scmp.eq.s32.totalorder %s26, 1
      %p254 = scmp.ne.s32.totalorder %s249, %s251
      %p255 = scmp.eq.s32.totalorder %s26, 0
      %p256 = por %p254, %p255
      %p257 = scmp.ne.s32.totalorder %s249, %s251
      %p258 = scmp.eq.s32.totalorder %s31, 1
      %p259 = por %p257, %p258
      %p260 = scmp.ne.s32.totalorder %s251, %s252
      %p261 = scmp.eq.s32.totalorder %s31, 0
      %p262 = por %p260, %p261
      %p263 = scmp.ne.s32.totalorder %s251, %s252
      %p264 = scmp.eq.s32.totalorder %s32, 1
      %p265 = por %p263, %p264
      %p267 = scmp.ne.s32.totalorder %s252, %s266
      %p268 = scmp.eq.s32.totalorder %s32, 0
      %p269 = por %p267, %p268
      %s271 = sadd.s32 %s270, 1
      %p274 = scmp.eq.s32.totalorder %s26, 1
      %p275 = scmp.ne.s32.totalorder %s270, %s272
      %p276 = scmp.eq.s32.totalorder %s26, 0
      %p277 = por %p275, %p276
      %p278 = scmp.ne.s32.totalorder %s270, %s272
      %p279 = scmp.eq.s32.totalorder %s31, 1
      %p280 = por %p278, %p279
      %p281 = scmp.ne.s32.totalorder %s272, %s273
      %p282 = scmp.eq.s32.totalorder %s31, 0
      %p283 = por %p281, %p282
      %p284 = scmp.ne.s32.totalorder %s272, %s273
      %p285 = scmp.eq.s32.totalorder %s32, 1
      %p286 = por %p284, %p285
      %p288 = scmp.ne.s32.totalorder %s273, %s287
      %p289 = scmp.eq.s32.totalorder %s32, 0
      %p290 = por %p288, %p289
      %s292 = sadd.s32 %s291, 1
      %p295 = scmp.eq.s32.totalorder %s26, 1
      %p296 = scmp.ne.s32.totalorder %s291, %s293
      %p297 = scmp.eq.s32.totalorder %s26, 0
      %p298 = por %p296, %p297
      %p299 = scmp.ne.s32.totalorder %s291, %s293
      %p300 = scmp.eq.s32.totalorder %s31, 1
      %p301 = por %p299, %p300
      %p302 = scmp.ne.s32.totalorder %s293, %s294
      %p303 = scmp.eq.s32.totalorder %s31, 0
      %p304 = por %p302, %p303
      %p305 = scmp.ne.s32.totalorder %s293, %s294
      %p306 = scmp.eq.s32.totalorder %s32, 1
      %p307 = por %p305, %p306
      %p309 = scmp.ne.s32.totalorder %s294, %s308
      %p310 = scmp.eq.s32.totalorder %s32, 0
      %p311 = por %p309, %p310
      %s313 = sadd.s32 %s312, 1
      %p316 = scmp.eq.s32.totalorder %s26, 1
      %p317 = scmp.ne.s32.totalorder %s312, %s314
      %p318 = scmp.eq.s32.totalorder %s26, 0
      %p319 = por %p317, %p318
      %p320 = scmp.ne.s32.totalorder %s312, %s314
      %p321 = scmp.eq.s32.totalorder %s31, 1
      %p322 = por %p320, %p321
      %p323 = scmp.ne.s32.totalorder %s314, %s315
      %p324 = scmp.eq.s32.totalorder %s31, 0
      %p325 = por %p323, %p324
      %p326 = scmp.ne.s32.totalorder %s314, %s315
      %p327 = scmp.eq.s32.totalorder %s32, 1
      %p328 = por %p326, %p327
      %p330 = scmp.ne.s32.totalorder %s315, %s329
      %p331 = scmp.eq.s32.totalorder %s32, 0
      %p332 = por %p330, %p331
      %s334 = sadd.s32 %s333, 1
      %p337 = scmp.eq.s32.totalorder %s26, 1
      %p338 = scmp.ne.s32.totalorder %s333, %s335
      %p339 = scmp.eq.s32.totalorder %s26, 0
      %p340 = por %p338, %p339
      %p341 = scmp.ne.s32.totalorder %s333, %s335
      %p342 = scmp.eq.s32.totalorder %s31, 1
      %p343 = por %p341, %p342
      %p344 = scmp.ne.s32.totalorder %s335, %s336
      %p345 = scmp.eq.s32.totalorder %s31, 0
      %p346 = por %p344, %p345
      %p347 = scmp.ne.s32.totalorder %s335, %s336
      %p348 = scmp.eq.s32.totalorder %s32, 1
      %p349 = por %p347, %p348
      %p351 = scmp.ne.s32.totalorder %s336, %s350
      %p352 = scmp.eq.s32.totalorder %s32, 0
      %p353 = por %p351, %p352
      %s354 = ssub.s32 %s26, %s33
      %p355 = scmp.eq.s32.totalorder %s354, 0
      %s357 = sadd.s32 %s356, 1
      %s358 = scalar_select %p355, %s356, %s357
      %p361 = pneg %p355
      %p362 = scmp.eq.s32.totalorder %s26, 1
      %p363 = por %p361, %p362
      %p364 = scmp.ne.s32.totalorder %s356, %s359
      %p365 = scmp.eq.s32.totalorder %s26, 0
      %p366 = por %p364, %p365
      %p367 = scmp.ne.s32.totalorder %s356, %s359
      %p368 = scmp.eq.s32.totalorder %s31, 1
      %p369 = por %p367, %p368
      %p370 = scmp.ne.s32.totalorder %s359, %s360
      %p371 = scmp.eq.s32.totalorder %s31, 0
      %p372 = por %p370, %p371
      %p373 = scmp.ne.s32.totalorder %s359, %s360
      %p374 = scmp.eq.s32.totalorder %s32, 1
      %p375 = por %p373, %p374
      %p377 = scmp.ne.s32.totalorder %s360, %s376
      %p378 = scmp.eq.s32.totalorder %s32, 0
      %p379 = por %p377, %p378
      %p380 = scmp.le.s32.totalorder 1, %s26
      %p381 = scmp.lt.s32.totalorder %s26, 3
      %p382 = pnand %p380, %p381
      %p383 = pneg %p382
      // Predicated region
      $region9: #{tpu_custom_call.1} parent=5 // pred_check
        _
      $region10: #{tpu_custom_call.1} parent=5 // pred_check_branch
        %385 = sbr.rel (%p382) target = $region12
      $region11: #{tpu_custom_call.1} parent=5 // pred_region
        %s386 = ssub.s32 %s26, 1
        // Predicated region
        $region13: #{tpu_custom_call.1} parent=11 // pred_check
          %p387 = pneg %p73
        $region14: #{tpu_custom_call.1} parent=11 // pred_check_branch
          %389 = sbr.rel (%p387) target = $region16
        $region15: #{tpu_custom_call.1} parent=11 // pred_region
          _
        $region16: #{tpu_custom_call.1} parent=11 // pred_fallthru
          _
        // Predicated region
        $region17: #{tpu_custom_call.1} parent=11 // pred_check
          %p390 = pneg %p94
        $region18: #{tpu_custom_call.1} parent=11 // pred_check_branch
          %392 = sbr.rel (%p390) target = $region20
        $region19: #{tpu_custom_call.1} parent=11 // pred_region
          _
        $region20: #{tpu_custom_call.1} parent=11 // pred_fallthru
          _
        // Predicated region
        $region21: #{tpu_custom_call.1} parent=11 // pred_check
          %p393 = pneg %p115
        $region22: #{tpu_custom_call.1} parent=11 // pred_check_branch
          %395 = sbr.rel (%p393) target = $region24
        $region23: #{tpu_custom_call.1} parent=11 // pred_region
          _
        $region24: #{tpu_custom_call.1} parent=11 // pred_fallthru
          _
        // Predicated region
        $region25: #{tpu_custom_call.1} parent=11 // pred_check
          %p396 = pneg %p136
        $region26: #{tpu_custom_call.1} parent=11 // pred_check_branch
          %398 = sbr.rel (%p396) target = $region28
        $region27: #{tpu_custom_call.1} parent=11 // pred_region
          _
        $region28: #{tpu_custom_call.1} parent=11 // pred_fallthru
          _
        // Predicated region
        $region29: #{tpu_custom_call.1} parent=11 // pred_check
          %p399 = pneg %p157
        $region30: #{tpu_custom_call.1} parent=11 // pred_check_branch
          %401 = sbr.rel (%p399) target = $region32
        $region31: #{tpu_custom_call.1} parent=11 // pred_region
          %s403 = ssub.s32 16, 16
          %404 = vsyncadd [#allocation3], %s403
          %s406 = sshll.u32 [#allocation2], 4
          %s407 = int_to_ptr.vmem [resolvable:$true] %s406
          %409 = dma.hbm_to_vmem [thread:$0]  %s5, 16, %s407, [#allocation3]
        $region32: #{tpu_custom_call.1} parent=11 // pred_fallthru
          _
        // Predicated region
        $region33: #{tpu_custom_call.1} parent=11 // pred_check
          %p410 = pneg %p178
        $region34: #{tpu_custom_call.1} parent=11 // pred_check_branch
          %412 = sbr.rel (%p410) target = $region36
        $region35: #{tpu_custom_call.1} parent=11 // pred_region
          %s414 = ssub.s32 16, 16
          %415 = vsyncadd [#allocation6], %s414
          %s417 = sshll.u32 [#allocation5], 4
          %s418 = int_to_ptr.vmem [resolvable:$true] %s417
          %420 = dma.hbm_to_vmem [thread:$0]  %s6, 16, %s418, [#allocation6]
        $region36: #{tpu_custom_call.1} parent=11 // pred_fallthru
          _
        // Predicated region
        $region37: #{tpu_custom_call.1} parent=11 // pred_check
          %p421 = pneg %p199
        $region38: #{tpu_custom_call.1} parent=11 // pred_check_branch
          %423 = sbr.rel (%p421) target = $region40
        $region39: #{tpu_custom_call.1} parent=11 // pred_region
          _
        $region40: #{tpu_custom_call.1} parent=11 // pred_fallthru
          _
        // Predicated region
        $region41: #{tpu_custom_call.1} parent=11 // pred_check
          %p424 = pneg %p220
        $region42: #{tpu_custom_call.1} parent=11 // pred_check_branch
          %426 = sbr.rel (%p424) target = $region44
        $region43: #{tpu_custom_call.1} parent=11 // pred_region
          %s428 = ssub.s32 16, 16
          %429 = vsyncadd [#allocation6], %s428
          %s431 = sshll.u32 [#allocation7], 4
          %s432 = int_to_ptr.vmem [resolvable:$true] %s431
          %434 = dma.hbm_to_vmem [thread:$0]  %s8, 16, %s432, [#allocation6]
        $region44: #{tpu_custom_call.1} parent=11 // pred_fallthru
          _
        // Predicated region
        $region45: #{tpu_custom_call.1} parent=11 // pred_check
          %p435 = pneg %p241
        $region46: #{tpu_custom_call.1} parent=11 // pred_check_branch
          %437 = sbr.rel (%p435) target = $region48
        $region47: #{tpu_custom_call.1} parent=11 // pred_region
          _
        $region48: #{tpu_custom_call.1} parent=11 // pred_fallthru
          _
        // Predicated region
        $region49: #{tpu_custom_call.1} parent=11 // pred_check
          %p438 = pneg %p262
        $region50: #{tpu_custom_call.1} parent=11 // pred_check_branch
          %440 = sbr.rel (%p438) target = $region52
        $region51: #{tpu_custom_call.1} parent=11 // pred_region
          _
        $region52: #{tpu_custom_call.1} parent=11 // pred_fallthru
          _
        // Predicated region
        $region53: #{tpu_custom_call.1} parent=11 // pred_check
          %p441 = pneg %p283
        $region54: #{tpu_custom_call.1} parent=11 // pred_check_branch
          %443 = sbr.rel (%p441) target = $region56
        $region55: #{tpu_custom_call.1} parent=11 // pred_region
          _
        $region56: #{tpu_custom_call.1} parent=11 // pred_fallthru
          _
        // Predicated region
        $region57: #{tpu_custom_call.1} parent=11 // pred_check
          %p444 = pneg %p304
        $region58: #{tpu_custom_call.1} parent=11 // pred_check_branch
          %446 = sbr.rel (%p444) target = $region60
        $region59: #{tpu_custom_call.1} parent=11 // pred_region
          _
        $region60: #{tpu_custom_call.1} parent=11 // pred_fallthru
          _
        // Predicated region
        $region61: #{tpu_custom_call.1} parent=11 // pred_check
          %p447 = pneg %p325
        $region62: #{tpu_custom_call.1} parent=11 // pred_check_branch
          %449 = sbr.rel (%p447) target = $region64
        $region63: #{tpu_custom_call.1} parent=11 // pred_region
          _
        $region64: #{tpu_custom_call.1} parent=11 // pred_fallthru
          _
        // Predicated region
        $region65: #{tpu_custom_call.1} parent=11 // pred_check
          %p450 = pneg %p346
        $region66: #{tpu_custom_call.1} parent=11 // pred_check_branch
          %452 = sbr.rel (%p450) target = $region68
        $region67: #{tpu_custom_call.1} parent=11 // pred_region
          _
        $region68: #{tpu_custom_call.1} parent=11 // pred_fallthru
          _
      $region12: #{tpu_custom_call.1} parent=5 // pred_fallthru
        _
      %p453 = scmp.lt.s32.totalorder %s26, 2
      // Predicated region
      $region69: #{tpu_custom_call.1} parent=5 // pred_check
        %p454 = pneg %p453
      $region70: #{tpu_custom_call.1} parent=5 // pred_check_branch
        %456 = sbr.rel (%p454) target = $region72
      $region71: #{tpu_custom_call.1} parent=5 // pred_region
        // Predicated region
        $region73: #{tpu_custom_call.1} parent=71 // pred_check
          %p457 = pneg %p46
        $region74: #{tpu_custom_call.1} parent=71 // pred_check_branch
          %459 = sbr.rel (%p457) target = $region76
        $region75: #{tpu_custom_call.1} parent=71 // pred_region
          %p460 = scmp.lt.s32.totalorder %s26, 1
          %s461 = scalar_select %p460, %s26, 1
          %s462 = smul.addr %s461, 2
          %s463 = smul.addr %s462, 8
          %s464 = scalar_lea.vmem %s0, %s463
        $region76: #{tpu_custom_call.1} parent=71 // pred_fallthru
          _
      $region72: #{tpu_custom_call.1} parent=5 // pred_fallthru
        _
      %p465 = scmp.le.s32.totalorder 1, %s26
      %p466 = scmp.lt.s32.totalorder %s26, 3
      %p467 = pnand %p465, %p466
      %p468 = pneg %p467
      // Predicated region
      $region77: #{tpu_custom_call.1} parent=5 // pred_check
        _
      $region78: #{tpu_custom_call.1} parent=5 // pred_check_branch
        %470 = sbr.rel (%p467) target = $region80
      $region79: #{tpu_custom_call.1} parent=5 // pred_region
        %s471 = ssub.s32 %s26, 1
        // Predicated region
        $region81: #{tpu_custom_call.1} parent=79 // pred_check
          %p472 = pneg %p157
        $region82: #{tpu_custom_call.1} parent=79 // pred_check_branch
          %474 = sbr.rel (%p472) target = $region84
        $region83: #{tpu_custom_call.1} parent=79 // pred_region
          %475 = dma.done [#allocation3], 16
        $region84: #{tpu_custom_call.1} parent=79 // pred_fallthru
          _
        // Predicated region
        $region85: #{tpu_custom_call.1} parent=79 // pred_check
          %p476 = pneg %p178
        $region86: #{tpu_custom_call.1} parent=79 // pred_check_branch
          %478 = sbr.rel (%p476) target = $region88
        $region87: #{tpu_custom_call.1} parent=79 // pred_region
          %479 = dma.done [#allocation6], 16
        $region88: #{tpu_custom_call.1} parent=79 // pred_fallthru
          _
        // Predicated region
        $region89: #{tpu_custom_call.1} parent=79 // pred_check
          %p480 = pneg %p220
        $region90: #{tpu_custom_call.1} parent=79 // pred_check_branch
          %482 = sbr.rel (%p480) target = $region92
        $region91: #{tpu_custom_call.1} parent=79 // pred_region
          %483 = dma.done [#allocation6], 16
        $region92: #{tpu_custom_call.1} parent=79 // pred_fallthru
          _
        %p484 = scmp.lt.s32.totalorder %s31, 1
        %s485 = scalar_select %p484, %s31, 1
        %s486 = smul.addr %s485, 2
        %s487 = smul.addr %s486, 8
        %s488 = scalar_lea.vmem %s0, %s487
        %p489 = pneg %p52
        %p490 = pneg %p49
        %p491 = pneg %p73
        %p492 = pneg %p70
        %p493 = pneg %p94
        %p494 = pneg %p91
        %p495 = pneg %p115
        %p496 = pneg %p112
        %p497 = pneg %p136
        %p498 = pneg %p133
        %p499 = pneg %p157
        %p500 = pneg %p154
        %p501 = pneg %p178
        %p502 = pneg %p175
        %p503 = pneg %p199
        %p504 = pneg %p196
        %p505 = pneg %p220
        %p506 = pneg %p217
        %p507 = pneg %p241
        %p508 = pneg %p238
        %p509 = pneg %p262
        %p510 = pneg %p259
        %p511 = pneg %p283
        %p512 = pneg %p280
        %p513 = pneg %p304
        %p514 = pneg %p301
        %p515 = pneg %p325
        %p516 = pneg %p322
        %p517 = pneg %p346
        %p518 = pneg %p343
        %p519 = pneg %p372
        %p520 = pneg %p369
        %s521 = sand.u32 %s359, 1
        %s522 = scalar_lea.sflag [#allocation4], %s521
        %s523 = sand.u32 %s359, 1
        %s524 = smul.addr %s523, 16
        %s525 = scalar_lea.vmem [#allocation8], %s524
        %p526 = scmp.lt.s32.totalorder %s31, 1
        %s527 = scalar_select %p526, %s31, 1
        %s528 = smul.addr %s527, 2
        %s529 = smul.addr %s528, 8
        %s530 = scalar_lea.vmem %s0, %s529
        %v531 = vld [vmem:[%s530] sm:$0xff]
        %v532 = vld [vmem:[%s530 + $0x8] sm:$0xff]
        %vm535 = vcmask 1046528
        %v536 = vrot.slane %v531, 1
        %v537 = vrot.slane %v532, 1
        %v538 = vsel %vm535, %v536, %v537
        %v541 = vsel %vm535, %v537, %v532
        %vm542 = vcmask 1040384
        %v543 = vrot.slane %v531, 7
        %v544 = vrot.slane %v532, 7
        %v545 = vsel %vm542, %v543, %v544
        %v548 = vsel %vm542, %v531, %v543
        %v549 = vadd.f32 %v531, %v538
        %v550 = vadd.f32 %v532, %v541
        %v551 = vadd.f32 %v549, %v548
        %v552 = vadd.f32 %v550, %v545
        %v553 = vmul.f32 %v551, 0.33333334
        %v554 = vmul.f32 %v552, 0.33333334
        %v555 = vld [vmem:[%s1] sm:$0xff]
        %v556 = vld [vmem:[%s1 + $0x8] sm:$0xff]
        %v557 = vld [vmem:[%s1 + $0x10] sm:$0xff]
        %v558 = vld [vmem:[%s1 + $0x18] sm:$0xff]
        %v559 = vld [vmem:[%s2] sm:$0x1]
        %v561 = vlaneseq
        %v562 = vshrl.u32 %v561, 7
        %v563 = vsub.s32 0, %v562
        %v564 = vrot.slane %v559, %v563
        %vm566 = vcmask 261120
        %v568 = vsel %vm566, %v553, 0
        %v571 = vsel %vm566, %v554, 0
        %573 = vmatprep.subr.mxu0 0.0
        %v574 = vand.u32 %v555, 4294901760
        %575 = vmatpush1.msra.mxu0 %v574
        %576 = vmatprep.subr.mxu0 0.0
        %v577 = vand.u32 %v556, 4294901760
        %578 = vmatpush1.msra.mxu0 %v577
        %579 = vmatprep.subr.mxu0 0.0
        %v580 = vand.u32 %v557, 4294901760
        %581 = vmatpush1.msra.mxu0 %v580
        %582 = vmatprep.subr.mxu0 0.0
        %v583 = vand.u32 %v558, 4294901760
        %584 = vmatpush1.msra.mxu0 %v583
        %585 = vmatprep.subr.mxu0 0.0
        %586 = vmatpush1.msra.mxu0 0.0
        %587 = vmatprep.subr.mxu0 0.0
        %588 = vmatpush1.msra.mxu0 0.0
        %589 = vmatprep.subr.mxu0 0.0
        %590 = vmatpush1.msra.mxu0 0.0
        %591 = vmatprep.subr.mxu0 0.0
        %592 = vmatpush1.msra.mxu0 0.0
        %593 = vmatprep.subr.mxu0 0.0
        %594 = vmatpush1.msra.mxu0 0.0
        %595 = vmatprep.subr.mxu0 0.0
        %596 = vmatpush1.msra.mxu0 0.0
        %597 = vmatprep.subr.mxu0 0.0
        %598 = vmatpush1.msra.mxu0 0.0
        %599 = vmatprep.subr.mxu0 0.0
        %600 = vmatpush1.msra.mxu0 0.0
        %601 = vmatprep.subr.mxu0 0.0
        %602 = vmatpush1.msra.mxu0 0.0
        %603 = vmatprep.subr.mxu0 0.0
        %604 = vmatpush1.msra.mxu0 0.0
        %605 = vmatprep.subr.mxu0 0.0
        %606 = vmatpush1.msra.mxu0 0.0
        %607 = vmatprep.subr.mxu0 0.0
        %608 = vmatpush1.msra.mxu0 0.0
        %609 = vmatprep.subr.mxu0 0.0
        %610 = vmatpush1.msra.mxu0 0.0
        %611 = vmatprep.subr.mxu0 0.0
        %612 = vmatpush1.msra.mxu0 0.0
        %613 = vmatprep.subr.mxu0 0.0
        %614 = vmatpush1.msra.mxu0 0.0
        %615 = vmatprep.subr.mxu0 0.0
        %616 = vmatpush1.msra.mxu0 0.0
        %617 = vmatprep.subr.mxu0 0.0
        %618 = vmatpush1.msra.mxu0 0.0
        %619 = vmatprep.subr.mxu0 0.0
        %620 = vmatpush1.msra.mxu0 0.0
        %621 = vmatprep.subr.mxu0 0.0
        %622 = vmatpush1.msra.mxu0 0.0
        %623 = vmatprep.subr.mxu0 0.0
        %624 = vmatpush1.msra.mxu0 0.0
        %625 = vmatprep.subr.mxu0 0.0
        %626 = vmatpush1.msra.mxu0 0.0
        %627 = vmatprep.subr.mxu0 0.0
        %628 = vmatpush1.msra.mxu0 0.0
        %629 = vmatprep.subr.mxu0 0.0
        %630 = vmatpush1.msra.mxu0 0.0
        %631 = vmatprep.subr.mxu0 0.0
        %632 = vmatpush1.msra.mxu0 0.0
        %633 = vmatprep.subr.mxu0 0.0
        %634 = vmatpush1.msra.mxu0 0.0
        %635 = vmatprep.subr.mxu0 0.0
        %636 = vmatpush1.msra.mxu0 0.0
        %637 = vmatprep.subr.mxu0 0.0
        %638 = vmatpush1.msra.mxu0 0.0
        %639 = vmatprep.subr.mxu0 0.0
        %640 = vmatpush1.msra.mxu0 0.0
        %641 = vmatprep.mubr.f32.mxu0 0.0
        %v642 = vand.u32 %v568, 4294901760
        %v643 = vsub.f32 %v568, %v642
        %v644 = vand.u32 %v643, 4294901760
        %v645 = vsub.f32 %v643, %v644
        %v646 = vand.u32 %v645, 4294901760
        %647 = vmatmul.mubr.f32.gmra.mrb[0].mxu0 %v646
        %v648 = vpop.f32.mrb[0].mxu0
        %v649 = vadd.f32 %v564, %v648
        %v650 = vpop.f32.mrb[0].mxu0
        %651 = vmatprep.mubr.f32.mxu0 0.0
        %v652 = vand.u32 %v571, 4294901760
        %v653 = vsub.f32 %v571, %v652
        %v654 = vand.u32 %v653, 4294901760
        %v655 = vsub.f32 %v653, %v654
        %v656 = vand.u32 %v655, 4294901760
        %657 = vmatmul.mubr.f32.gmra.mrb[0].mxu0 %v656
        %v658 = vpop.f32.mrb[0].mxu0
        %v659 = vadd.f32 %v564, %v658
        %v660 = vpop.f32.mrb[0].mxu0
        %661 = vdwg.mxu0
        %662 = vmatprep.subr.mxu0 0.0
        %v663 = vand.u32 %v555, 4294901760
        %v664 = vsub.f32 %v555, %v663
        %v665 = vand.u32 %v664, 4294901760
        %v666 = vsub.f32 %v664, %v665
        %v667 = vand.u32 %v666, 4294901760
        %668 = vmatpush1.msra.mxu0 %v667
        %669 = vmatprep.subr.mxu0 0.0
        %v670 = vand.u32 %v556, 4294901760
        %v671 = vsub.f32 %v556, %v670
        %v672 = vand.u32 %v671, 4294901760
        %v673 = vsub.f32 %v671, %v672
        %v674 = vand.u32 %v673, 4294901760
        %675 = vmatpush1.msra.mxu0 %v674
        %676 = vmatprep.subr.mxu0 0.0
        %v677 = vand.u32 %v557, 4294901760
        %v678 = vsub.f32 %v557, %v677
        %v679 = vand.u32 %v678, 4294901760
        %v680 = vsub.f32 %v678, %v679
        %v681 = vand.u32 %v680, 4294901760
        %682 = vmatpush1.msra.mxu0 %v681
        %683 = vmatprep.subr.mxu0 0.0
        %v684 = vand.u32 %v558, 4294901760
        %v685 = vsub.f32 %v558, %v684
        %v686 = vand.u32 %v685, 4294901760
        %v687 = vsub.f32 %v685, %v686
        %v688 = vand.u32 %v687, 4294901760
        %689 = vmatpush1.msra.mxu0 %v688
        %690 = vmatprep.subr.mxu0 0.0
        %691 = vmatpush1.msra.mxu0 0.0
        %692 = vmatprep.subr.mxu0 0.0
        %693 = vmatpush1.msra.mxu0 0.0
        %694 = vmatprep.subr.mxu0 0.0
        %695 = vmatpush1.msra.mxu0 0.0
        %696 = vmatprep.subr.mxu0 0.0
        %697 = vmatpush1.msra.mxu0 0.0
        %698 = vmatprep.subr.mxu0 0.0
        %699 = vmatpush1.msra.mxu0 0.0
        %700 = vmatprep.subr.mxu0 0.0
        %701 = vmatpush1.msra.mxu0 0.0
        %702 = vmatprep.subr.mxu0 0.0
        %703 = vmatpush1.msra.mxu0 0.0
        %704 = vmatprep.subr.mxu0 0.0
        %705 = vmatpush1.msra.mxu0 0.0
        %706 = vmatprep.subr.mxu0 0.0
        %707 = vmatpush1.msra.mxu0 0.0
        %708 = vmatprep.subr.mxu0 0.0
        %709 = vmatpush1.msra.mxu0 0.0
        %710 = vmatprep.subr.mxu0 0.0
        %711 = vmatpush1.msra.mxu0 0.0
        %712 = vmatprep.subr.mxu0 0.0
        %713 = vmatpush1.msra.mxu0 0.0
        %714 = vmatprep.subr.mxu0 0.0
        %715 = vmatpush1.msra.mxu0 0.0
        %716 = vmatprep.subr.mxu0 0.0
        %717 = vmatpush1.msra.mxu0 0.0
        %718 = vmatprep.subr.mxu0 0.0
        %719 = vmatpush1.msra.mxu0 0.0
        %720 = vmatprep.subr.mxu0 0.0
        %721 = vmatpush1.msra.mxu0 0.0
        %722 = vmatprep.subr.mxu0 0.0
        %723 = vmatpush1.msra.mxu0 0.0
        %724 = vmatprep.subr.mxu0 0.0
        %725 = vmatpush1.msra.mxu0 0.0
        %726 = vmatprep.subr.mxu0 0.0
        %727 = vmatpush1.msra.mxu0 0.0
        %728 = vmatprep.subr.mxu0 0.0
        %729 = vmatpush1.msra.mxu0 0.0
        %730 = vmatprep.subr.mxu0 0.0
        %731 = vmatpush1.msra.mxu0 0.0
        %732 = vmatprep.subr.mxu0 0.0
        %733 = vmatpush1.msra.mxu0 0.0
        %734 = vmatprep.subr.mxu0 0.0
        %735 = vmatpush1.msra.mxu0 0.0
        %736 = vmatprep.subr.mxu0 0.0
        %737 = vmatpush1.msra.mxu0 0.0
        %738 = vmatprep.subr.mxu0 0.0
        %739 = vmatpush1.msra.mxu0 0.0
        %740 = vmatprep.subr.mxu0 0.0
        %741 = vmatpush1.msra.mxu0 0.0
        %742 = vmatprep.subr.mxu0 0.0
        %743 = vmatpush1.msra.mxu0 0.0
        %744 = vmatprep.subr.mxu0 0.0
        %745 = vmatpush1.msra.mxu0 0.0
        %746 = vmatprep.mubr.f32.mxu0 0.0
        %v747 = vand.u32 %v568, 4294901760
        %748 = vmatmul.mubr.f32.gmra.mrb[0].mxu0 %v747
        %v749 = vpop.f32.mrb[0].mxu0
        %v750 = vadd.f32 %v649, %v749
        %v751 = vpop.f32.mrb[0].mxu0
        %752 = vmatprep.mubr.f32.mxu0 0.0
        %v753 = vand.u32 %v571, 4294901760
        %754 = vmatmul.mubr.f32.gmra.mrb[0].mxu0 %v753
        %v755 = vpop.f32.mrb[0].mxu0
        %v756 = vadd.f32 %v659, %v755
        %v757 = vpop.f32.mrb[0].mxu0
        %758 = vdwg.mxu0
        %759 = vmatprep.subr.mxu0 0.0
        %v760 = vand.u32 %v555, 4294901760
        %v761 = vsub.f32 %v555, %v760
        %762 = vmatpush1.msra.mxu0 %v761
        %763 = vmatprep.subr.mxu0 0.0
        %v764 = vand.u32 %v556, 4294901760
        %v765 = vsub.f32 %v556, %v764
        %766 = vmatpush1.msra.mxu0 %v765
        %767 = vmatprep.subr.mxu0 0.0
        %v768 = vand.u32 %v557, 4294901760
        %v769 = vsub.f32 %v557, %v768
        %770 = vmatpush1.msra.mxu0 %v769
        %771 = vmatprep.subr.mxu0 0.0
        %v772 = vand.u32 %v558, 4294901760
        %v773 = vsub.f32 %v558, %v772
        %774 = vmatpush1.msra.mxu0 %v773
        %775 = vmatprep.subr.mxu0 0.0
        %776 = vmatpush1.msra.mxu0 0.0
        %777 = vmatprep.subr.mxu0 0.0
        %778 = vmatpush1.msra.mxu0 0.0
        %779 = vmatprep.subr.mxu0 0.0
        %780 = vmatpush1.msra.mxu0 0.0
        %781 = vmatprep.subr.mxu0 0.0
        %782 = vmatpush1.msra.mxu0 0.0
        %783 = vmatprep.subr.mxu0 0.0
        %784 = vmatpush1.msra.mxu0 0.0
        %785 = vmatprep.subr.mxu0 0.0
        %786 = vmatpush1.msra.mxu0 0.0
        %787 = vmatprep.subr.mxu0 0.0
        %788 = vmatpush1.msra.mxu0 0.0
        %789 = vmatprep.subr.mxu0 0.0
        %790 = vmatpush1.msra.mxu0 0.0
        %791 = vmatprep.subr.mxu0 0.0
        %792 = vmatpush1.msra.mxu0 0.0
        %793 = vmatprep.subr.mxu0 0.0
        %794 = vmatpush1.msra.mxu0 0.0
        %795 = vmatprep.subr.mxu0 0.0
        %796 = vmatpush1.msra.mxu0 0.0
        %797 = vmatprep.subr.mxu0 0.0
        %798 = vmatpush1.msra.mxu0 0.0
        %799 = vmatprep.subr.mxu0 0.0
        %800 = vmatpush1.msra.mxu0 0.0
        %801 = vmatprep.subr.mxu0 0.0
        %802 = vmatpush1.msra.mxu0 0.0
        %803 = vmatprep.subr.mxu0 0.0
        %804 = vmatpush1.msra.mxu0 0.0
        %805 = vmatprep.subr.mxu0 0.0
        %806 = vmatpush1.msra.mxu0 0.0
        %807 = vmatprep.subr.mxu0 0.0
        %808 = vmatpush1.msra.mxu0 0.0
        %809 = vmatprep.subr.mxu0 0.0
        %810 = vmatpush1.msra.mxu0 0.0
        %811 = vmatprep.subr.mxu0 0.0
        %812 = vmatpush1.msra.mxu0 0.0
        %813 = vmatprep.subr.mxu0 0.0
        %814 = vmatpush1.msra.mxu0 0.0
        %815 = vmatprep.subr.mxu0 0.0
        %816 = vmatpush1.msra.mxu0 0.0
        %817 = vmatprep.subr.mxu0 0.0
        %818 = vmatpush1.msra.mxu0 0.0
        %819 = vmatprep.subr.mxu0 0.0
        %820 = vmatpush1.msra.mxu0 0.0
        %821 = vmatprep.subr.mxu0 0.0
        %822 = vmatpush1.msra.mxu0 0.0
        %823 = vmatprep.subr.mxu0 0.0
        %824 = vmatpush1.msra.mxu0 0.0
        %825 = vmatprep.subr.mxu0 0.0
        %826 = vmatpush1.msra.mxu0 0.0
        %827 = vmatprep.subr.mxu0 0.0
        %828 = vmatpush1.msra.mxu0 0.0
        %829 = vmatprep.subr.mxu0 0.0
        %830 = vmatpush1.msra.mxu0 0.0
        %831 = vmatprep.mubr.f32.mxu0 0.0
        %v832 = vand.u32 %v568, 4294901760
        %v833 = vsub.f32 %v568, %v832
        %834 = vmatmul.mubr.f32.gmra.mrb[0].mxu0 %v833
        %v835 = vpop.f32.mrb[0].mxu0
        %v836 = vadd.f32 %v750, %v835
        %v837 = vpop.f32.mrb[0].mxu0
        %838 = vmatprep.mubr.f32.mxu0 0.0
        %v839 = vand.u32 %v571, 4294901760
        %v840 = vsub.f32 %v571, %v839
        %841 = vmatmul.mubr.f32.gmra.mrb[0].mxu0 %v840
        %v842 = vpop.f32.mrb[0].mxu0
        %v843 = vadd.f32 %v756, %v842
        %v844 = vpop.f32.mrb[0].mxu0
        %845 = vdwg.mxu0
        %846 = vmatprep.subr.mxu0 0.0
        %v847 = vand.u32 %v555, 4294901760
        %848 = vmatpush1.msra.mxu0 %v847
        %849 = vmatprep.subr.mxu0 0.0
        %v850 = vand.u32 %v556, 4294901760
        %851 = vmatpush1.msra.mxu0 %v850
        %852 = vmatprep.subr.mxu0 0.0
        %v853 = vand.u32 %v557, 4294901760
        %854 = vmatpush1.msra.mxu0 %v853
        %855 = vmatprep.subr.mxu0 0.0
        %v856 = vand.u32 %v558, 4294901760
        %857 = vmatpush1.msra.mxu0 %v856
        %858 = vmatprep.subr.mxu0 0.0
        %859 = vmatpush1.msra.mxu0 0.0
        %860 = vmatprep.subr.mxu0 0.0
        %861 = vmatpush1.msra.mxu0 0.0
        %862 = vmatprep.subr.mxu0 0.0
        %863 = vmatpush1.msra.mxu0 0.0
        %864 = vmatprep.subr.mxu0 0.0
        %865 = vmatpush1.msra.mxu0 0.0
        %866 = vmatprep.subr.mxu0 0.0
        %867 = vmatpush1.msra.mxu0 0.0
        %868 = vmatprep.subr.mxu0 0.0
        %869 = vmatpush1.msra.mxu0 0.0
        %870 = vmatprep.subr.mxu0 0.0
        %871 = vmatpush1.msra.mxu0 0.0
        %872 = vmatprep.subr.mxu0 0.0
        %873 = vmatpush1.msra.mxu0 0.0
        %874 = vmatprep.subr.mxu0 0.0
        %875 = vmatpush1.msra.mxu0 0.0
        %876 = vmatprep.subr.mxu0 0.0
        %877 = vmatpush1.msra.mxu0 0.0
        %878 = vmatprep.subr.mxu0 0.0
        %879 = vmatpush1.msra.mxu0 0.0
        %880 = vmatprep.subr.mxu0 0.0
        %881 = vmatpush1.msra.mxu0 0.0
        %882 = vmatprep.subr.mxu0 0.0
        %883 = vmatpush1.msra.mxu0 0.0
        %884 = vmatprep.subr.mxu0 0.0
        %885 = vmatpush1.msra.mxu0 0.0
        %886 = vmatprep.subr.mxu0 0.0
        %887 = vmatpush1.msra.mxu0 0.0
        %888 = vmatprep.subr.mxu0 0.0
        %889 = vmatpush1.msra.mxu0 0.0
        %890 = vmatprep.subr.mxu0 0.0
        %891 = vmatpush1.msra.mxu0 0.0
        %892 = vmatprep.subr.mxu0 0.0
        %893 = vmatpush1.msra.mxu0 0.0
        %894 = vmatprep.subr.mxu0 0.0
        %895 = vmatpush1.msra.mxu0 0.0
        %896 = vmatprep.subr.mxu0 0.0
        %897 = vmatpush1.msra.mxu0 0.0
        %898 = vmatprep.subr.mxu0 0.0
        %899 = vmatpush1.msra.mxu0 0.0
        %900 = vmatprep.subr.mxu0 0.0
        %901 = vmatpush1.msra.mxu0 0.0
        %902 = vmatprep.subr.mxu0 0.0
        %903 = vmatpush1.msra.mxu0 0.0
        %904 = vmatprep.subr.mxu0 0.0
        %905 = vmatpush1.msra.mxu0 0.0
        %906 = vmatprep.subr.mxu0 0.0
        %907 = vmatpush1.msra.mxu0 0.0
        %908 = vmatprep.subr.mxu0 0.0
        %909 = vmatpush1.msra.mxu0 0.0
        %910 = vmatprep.subr.mxu0 0.0
        %911 = vmatpush1.msra.mxu0 0.0
        %912 = vmatprep.subr.mxu0 0.0
        %913 = vmatpush1.msra.mxu0 0.0
        %914 = vmatprep.mubr.f32.mxu0 0.0
        %v915 = vand.u32 %v568, 4294901760
        %v916 = vsub.f32 %v568, %v915
        %v917 = vand.u32 %v916, 4294901760
        %918 = vmatmul.mubr.f32.gmra.mrb[0].mxu0 %v917
        %v919 = vpop.f32.mrb[0].mxu0
        %v920 = vadd.f32 %v836, %v919
        %v921 = vpop.f32.mrb[0].mxu0
        %922 = vmatprep.mubr.f32.mxu0 0.0
        %v923 = vand.u32 %v571, 4294901760
        %v924 = vsub.f32 %v571, %v923
        %v925 = vand.u32 %v924, 4294901760
        %926 = vmatmul.mubr.f32.gmra.mrb[0].mxu0 %v925
        %v927 = vpop.f32.mrb[0].mxu0
        %v928 = vadd.f32 %v843, %v927
        %v929 = vpop.f32.mrb[0].mxu0
        %930 = vdwg.mxu0
        %931 = vmatprep.subr.mxu0 0.0
        %v932 = vand.u32 %v555, 4294901760
        %v933 = vsub.f32 %v555, %v932
        %v934 = vand.u32 %v933, 4294901760
        %935 = vmatpush1.msra.mxu0 %v934
        %936 = vmatprep.subr.mxu0 0.0
        %v937 = vand.u32 %v556, 4294901760
        %v938 = vsub.f32 %v556, %v937
        %v939 = vand.u32 %v938, 4294901760
        %940 = vmatpush1.msra.mxu0 %v939
        %941 = vmatprep.subr.mxu0 0.0
        %v942 = vand.u32 %v557, 4294901760
        %v943 = vsub.f32 %v557, %v942
        %v944 = vand.u32 %v943, 4294901760
        %945 = vmatpush1.msra.mxu0 %v944
        %946 = vmatprep.subr.mxu0 0.0
        %v947 = vand.u32 %v558, 4294901760
        %v948 = vsub.f32 %v558, %v947
        %v949 = vand.u32 %v948, 4294901760
        %950 = vmatpush1.msra.mxu0 %v949
        %951 = vmatprep.subr.mxu0 0.0
        %952 = vmatpush1.msra.mxu0 0.0
        %953 = vmatprep.subr.mxu0 0.0
        %954 = vmatpush1.msra.mxu0 0.0
        %955 = vmatprep.subr.mxu0 0.0
        %956 = vmatpush1.msra.mxu0 0.0
        %957 = vmatprep.subr.mxu0 0.0
        %958 = vmatpush1.msra.mxu0 0.0
        %959 = vmatprep.subr.mxu0 0.0
        %960 = vmatpush1.msra.mxu0 0.0
        %961 = vmatprep.subr.mxu0 0.0
        %962 = vmatpush1.msra.mxu0 0.0
        %963 = vmatprep.subr.mxu0 0.0
        %964 = vmatpush1.msra.mxu0 0.0
        %965 = vmatprep.subr.mxu0 0.0
        %966 = vmatpush1.msra.mxu0 0.0
        %967 = vmatprep.subr.mxu0 0.0
        %968 = vmatpush1.msra.mxu0 0.0
        %969 = vmatprep.subr.mxu0 0.0
        %970 = vmatpush1.msra.mxu0 0.0
        %971 = vmatprep.subr.mxu0 0.0
        %972 = vmatpush1.msra.mxu0 0.0
        %973 = vmatprep.subr.mxu0 0.0
        %974 = vmatpush1.msra.mxu0 0.0
        %975 = vmatprep.subr.mxu0 0.0
        %976 = vmatpush1.msra.mxu0 0.0
        %977 = vmatprep.subr.mxu0 0.0
        %978 = vmatpush1.msra.mxu0 0.0
        %979 = vmatprep.subr.mxu0 0.0
        %980 = vmatpush1.msra.mxu0 0.0
        %981 = vmatprep.subr.mxu0 0.0
        %982 = vmatpush1.msra.mxu0 0.0
        %983 = vmatprep.subr.mxu0 0.0
        %984 = vmatpush1.msra.mxu0 0.0
        %985 = vmatprep.subr.mxu0 0.0
        %986 = vmatpush1.msra.mxu0 0.0
        %987 = vmatprep.subr.mxu0 0.0
        %988 = vmatpush1.msra.mxu0 0.0
        %989 = vmatprep.subr.mxu0 0.0
        %990 = vmatpush1.msra.mxu0 0.0
        %991 = vmatprep.subr.mxu0 0.0
        %992 = vmatpush1.msra.mxu0 0.0
        %993 = vmatprep.subr.mxu0 0.0
        %994 = vmatpush1.msra.mxu0 0.0
        %995 = vmatprep.subr.mxu0 0.0
        %996 = vmatpush1.msra.mxu0 0.0
        %997 = vmatprep.subr.mxu0 0.0
        %998 = vmatpush1.msra.mxu0 0.0
        %999 = vmatprep.subr.mxu0 0.0
        %1000 = vmatpush1.msra.mxu0 0.0
        %1001 = vmatprep.subr.mxu0 0.0
        %1002 = vmatpush1.msra.mxu0 0.0
        %1003 = vmatprep.subr.mxu0 0.0
        %1004 = vmatpush1.msra.mxu0 0.0
        %1005 = vmatprep.subr.mxu0 0.0
        %1006 = vmatpush1.msra.mxu0 0.0
        %1007 = vmatprep.mubr.f32.mxu0 0.0
        %v1008 = vand.u32 %v568, 4294901760
        %1009 = vmatmul.mubr.f32.gmra.mrb[0].mxu0 %v1008
        %v1010 = vpop.f32.mrb[0].mxu0
        %v1011 = vadd.f32 %v920, %v1010
        %v1012 = vpop.f32.mrb[0].mxu0
        %1013 = vmatprep.mubr.f32.mxu0 0.0
        %v1014 = vand.u32 %v571, 4294901760
        %1015 = vmatmul.mubr.f32.gmra.mrb[0].mxu0 %v1014
        %v1016 = vpop.f32.mrb[0].mxu0
        %v1017 = vadd.f32 %v928, %v1016
        %v1018 = vpop.f32.mrb[0].mxu0
        %1019 = vdwg.mxu0
        %1020 = vmatprep.subr.mxu0 0.0
        %v1021 = vand.u32 %v555, 4294901760
        %1022 = vmatpush1.msra.mxu0 %v1021
        %1023 = vmatprep.subr.mxu0 0.0
        %v1024 = vand.u32 %v556, 4294901760
        %1025 = vmatpush1.msra.mxu0 %v1024
        %1026 = vmatprep.subr.mxu0 0.0
        %v1027 = vand.u32 %v557, 4294901760
        %1028 = vmatpush1.msra.mxu0 %v1027
        %1029 = vmatprep.subr.mxu0 0.0
        %v1030 = vand.u32 %v558, 4294901760
        %1031 = vmatpush1.msra.mxu0 %v1030
        %1032 = vmatprep.subr.mxu0 0.0
        %1033 = vmatpush1.msra.mxu0 0.0
        %1034 = vmatprep.subr.mxu0 0.0
        %1035 = vmatpush1.msra.mxu0 0.0
        %1036 = vmatprep.subr.mxu0 0.0
        %1037 = vmatpush1.msra.mxu0 0.0
        %1038 = vmatprep.subr.mxu0 0.0
        %1039 = vmatpush1.msra.mxu0 0.0
        %1040 = vmatprep.subr.mxu0 0.0
        %1041 = vmatpush1.msra.mxu0 0.0
        %1042 = vmatprep.subr.mxu0 0.0
        %1043 = vmatpush1.msra.mxu0 0.0
        %1044 = vmatprep.subr.mxu0 0.0
        %1045 = vmatpush1.msra.mxu0 0.0
        %1046 = vmatprep.subr.mxu0 0.0
        %1047 = vmatpush1.msra.mxu0 0.0
        %1048 = vmatprep.subr.mxu0 0.0
        %1049 = vmatpush1.msra.mxu0 0.0
        %1050 = vmatprep.subr.mxu0 0.0
        %1051 = vmatpush1.msra.mxu0 0.0
        %1052 = vmatprep.subr.mxu0 0.0
        %1053 = vmatpush1.msra.mxu0 0.0
        %1054 = vmatprep.subr.mxu0 0.0
        %1055 = vmatpush1.msra.mxu0 0.0
        %1056 = vmatprep.subr.mxu0 0.0
        %1057 = vmatpush1.msra.mxu0 0.0
        %1058 = vmatprep.subr.mxu0 0.0
        %1059 = vmatpush1.msra.mxu0 0.0
        %1060 = vmatprep.subr.mxu0 0.0
        %1061 = vmatpush1.msra.mxu0 0.0
        %1062 = vmatprep.subr.mxu0 0.0
        %1063 = vmatpush1.msra.mxu0 0.0
        %1064 = vmatprep.subr.mxu0 0.0
        %1065 = vmatpush1.msra.mxu0 0.0
        %1066 = vmatprep.subr.mxu0 0.0
        %1067 = vmatpush1.msra.mxu0 0.0
        %1068 = vmatprep.subr.mxu0 0.0
        %1069 = vmatpush1.msra.mxu0 0.0
        %1070 = vmatprep.subr.mxu0 0.0
        %1071 = vmatpush1.msra.mxu0 0.0
        %1072 = vmatprep.subr.mxu0 0.0
        %1073 = vmatpush1.msra.mxu0 0.0
        %1074 = vmatprep.subr.mxu0 0.0
        %1075 = vmatpush1.msra.mxu0 0.0
        %1076 = vmatprep.subr.mxu0 0.0
        %1077 = vmatpush1.msra.mxu0 0.0
        %1078 = vmatprep.subr.mxu0 0.0
        %1079 = vmatpush1.msra.mxu0 0.0
        %1080 = vmatprep.subr.mxu0 0.0
        %1081 = vmatpush1.msra.mxu0 0.0
        %1082 = vmatprep.subr.mxu0 0.0
        %1083 = vmatpush1.msra.mxu0 0.0
        %1084 = vmatprep.subr.mxu0 0.0
        %1085 = vmatpush1.msra.mxu0 0.0
        %1086 = vmatprep.subr.mxu0 0.0
        %1087 = vmatpush1.msra.mxu0 0.0
        %1088 = vmatprep.mubr.f32.mxu0 0.0
        %v1089 = vand.u32 %v568, 4294901760
        %1090 = vmatmul.mubr.f32.gmra.mrb[0].mxu0 %v1089
        %v1091 = vpop.f32.mrb[0].mxu0
        %v1092 = vadd.f32 %v1011, %v1091
        %v1093 = vpop.f32.mrb[0].mxu0
        %1094 = vmatprep.mubr.f32.mxu0 0.0
        %v1095 = vand.u32 %v571, 4294901760
        %1096 = vmatmul.mubr.f32.gmra.mrb[0].mxu0 %v1095
        %v1097 = vpop.f32.mrb[0].mxu0
        %v1098 = vadd.f32 %v1017, %v1097
        %v1099 = vpop.f32.mrb[0].mxu0
        %1100 = vdwg.mxu0
        %1103 = vrot.lane.b32.xlu0 %v1092, 96
        %v1104 = vpop.permute.xlu0 %1103
        %1105 = vrot.lane.b32.xlu0 %v1098, 96
        %v1106 = vpop.permute.xlu0 %1105
        %vm1107 = vcmask 64512
        %v1108 = vsel %vm1107, %v1092, 0
        %v1110 = vsel %vm1107, %v1098, 0
        %v1112 = vsel %vm1107, %v1104, 0
        %v1114 = vsel %vm1107, %v1106, 0
        %1116 = vmatprep.subr.mxu0 0.0
        %v1117 = vand.u32 %v1112, 4294901760
        %1118 = vmatpush1.xpose.msra.mxu0 %v1117
        %1119 = vmatprep.subr.mxu0 0.0
        %v1120 = vand.u32 %v1114, 4294901760
        %1121 = vmatpush1.xpose.msra.mxu0 %v1120
        %1122 = vmatprep.subr.mxu0 0.0
        %1123 = vmatpush1.xpose.msra.mxu0 0.0
        %1124 = vmatprep.subr.mxu0 0.0
        %1125 = vmatpush1.xpose.msra.mxu0 0.0
        %1126 = vmatprep.subr.mxu0 0.0
        %1127 = vmatpush1.xpose.msra.mxu0 0.0
        %1128 = vmatprep.subr.mxu0 0.0
        %1129 = vmatpush1.xpose.msra.mxu0 0.0
        %1130 = vmatprep.subr.mxu0 0.0
        %1131 = vmatpush1.xpose.msra.mxu0 0.0
        %1132 = vmatprep.subr.mxu0 0.0
        %1133 = vmatpush1.xpose.msra.mxu0 0.0
        %1134 = vmatprep.subr.mxu0 0.0
        %1135 = vmatpush1.xpose.msra.mxu0 0.0
        %1136 = vmatprep.subr.mxu0 0.0
        %1137 = vmatpush1.xpose.msra.mxu0 0.0
        %1138 = vmatprep.subr.mxu0 0.0
        %1139 = vmatpush1.xpose.msra.mxu0 0.0
        %1140 = vmatprep.subr.mxu0 0.0
        %1141 = vmatpush1.xpose.msra.mxu0 0.0
        %1142 = vmatprep.subr.mxu0 0.0
        %1143 = vmatpush1.xpose.msra.mxu0 0.0
        %1144 = vmatprep.subr.mxu0 0.0
        %1145 = vmatpush1.xpose.msra.mxu0 0.0
        %1146 = vmatprep.subr.mxu0 0.0
        %1147 = vmatpush1.xpose.msra.mxu0 0.0
        %1148 = vmatprep.subr.mxu0 0.0
        %1149 = vmatpush1.xpose.msra.mxu0 0.0
        %1150 = vmatprep.subr.mxu0 0.0
        %1151 = vmatpush1.xpose.msra.mxu0 0.0
        %1152 = vmatprep.subr.mxu0 0.0
        %1153 = vmatpush1.xpose.msra.mxu0 0.0
        %1154 = vmatprep.subr.mxu0 0.0
        %1155 = vmatpush1.xpose.msra.mxu0 0.0
        %1156 = vmatprep.subr.mxu0 0.0
        %1157 = vmatpush1.xpose.msra.mxu0 0.0
        %1158 = vmatprep.subr.mxu0 0.0
        %1159 = vmatpush1.xpose.msra.mxu0 0.0
        %1160 = vmatprep.subr.mxu0 0.0
        %1161 = vmatpush1.xpose.msra.mxu0 0.0
        %1162 = vmatprep.subr.mxu0 0.0
        %1163 = vmatpush1.xpose.msra.mxu0 0.0
        %1164 = vmatprep.subr.mxu0 0.0
        %1165 = vmatpush1.xpose.msra.mxu0 0.0
        %1166 = vmatprep.subr.mxu0 0.0
        %1167 = vmatpush1.xpose.msra.mxu0 0.0
        %1168 = vmatprep.subr.mxu0 0.0
        %1169 = vmatpush1.xpose.msra.mxu0 0.0
        %1170 = vmatprep.subr.mxu0 0.0
        %1171 = vmatpush1.xpose.msra.mxu0 0.0
        %1172 = vmatprep.subr.mxu0 0.0
        %1173 = vmatpush1.xpose.msra.mxu0 0.0
        %1174 = vmatprep.subr.mxu0 0.0
        %1175 = vmatpush1.xpose.msra.mxu0 0.0
        %1176 = vmatprep.subr.mxu0 0.0
        %1177 = vmatpush1.xpose.msra.mxu0 0.0
        %1178 = vmatprep.subr.mxu0 0.0
        %1179 = vmatpush1.xpose.msra.mxu0 0.0
        %1180 = vmatprep.subr.mxu0 0.0
        %1181 = vmatpush1.xpose.msra.mxu0 0.0
        %1182 = vmatprep.mubr.f32.mxu0 0.0
        %v1183 = vand.u32 %v1108, 4294901760
        %v1184 = vsub.f32 %v1108, %v1183
        %v1185 = vand.u32 %v1184, 4294901760
        %v1186 = vsub.f32 %v1184, %v1185
        %v1187 = vand.u32 %v1186, 4294901760
        %1188 = vmatmul.mubr.f32.gmra.mrb[0].mxu0 %v1187
        %v1189 = vpop.f32.mrb[0].mxu0
        %v1190 = vadd.f32 0.0, %v1189
        %v1191 = vpop.f32.mrb[0].mxu0
        %1192 = vmatprep.mubr.f32.mxu0 0.0
        %v1193 = vand.u32 %v1110, 4294901760
        %v1194 = vsub.f32 %v1110, %v1193
        %v1195 = vand.u32 %v1194, 4294901760
        %v1196 = vsub.f32 %v1194, %v1195
        %v1197 = vand.u32 %v1196, 4294901760
        %1198 = vmatmul.mubr.f32.gmra.mrb[0].mxu0 %v1197
        %v1199 = vpop.f32.mrb[0].mxu0
        %v1200 = vadd.f32 0.0, %v1199
        %v1201 = vpop.f32.mrb[0].mxu0
        %1202 = vdwg.mxu0
        %1203 = vmatprep.subr.mxu0 0.0
        %v1204 = vand.u32 %v1112, 4294901760
        %v1205 = vsub.f32 %v1112, %v1204
        %v1206 = vand.u32 %v1205, 4294901760
        %v1207 = vsub.f32 %v1205, %v1206
        %v1208 = vand.u32 %v1207, 4294901760
        %1209 = vmatpush1.xpose.msra.mxu0 %v1208
        %1210 = vmatprep.subr.mxu0 0.0
        %v1211 = vand.u32 %v1114, 4294901760
        %v1212 = vsub.f32 %v1114, %v1211
        %v1213 = vand.u32 %v1212, 4294901760
        %v1214 = vsub.f32 %v1212, %v1213
        %v1215 = vand.u32 %v1214, 4294901760
        %1216 = vmatpush1.xpose.msra.mxu0 %v1215
        %1217 = vmatprep.subr.mxu0 0.0
        %1218 = vmatpush1.xpose.msra.mxu0 0.0
        %1219 = vmatprep.subr.mxu0 0.0
        %1220 = vmatpush1.xpose.msra.mxu0 0.0
        %1221 = vmatprep.subr.mxu0 0.0
        %1222 = vmatpush1.xpose.msra.mxu0 0.0
        %1223 = vmatprep.subr.mxu0 0.0
        %1224 = vmatpush1.xpose.msra.mxu0 0.0
        %1225 = vmatprep.subr.mxu0 0.0
        %1226 = vmatpush1.xpose.msra.mxu0 0.0
        %1227 = vmatprep.subr.mxu0 0.0
        %1228 = vmatpush1.xpose.msra.mxu0 0.0
        %1229 = vmatprep.subr.mxu0 0.0
        %1230 = vmatpush1.xpose.msra.mxu0 0.0
        %1231 = vmatprep.subr.mxu0 0.0
        %1232 = vmatpush1.xpose.msra.mxu0 0.0
        %1233 = vmatprep.subr.mxu0 0.0
        %1234 = vmatpush1.xpose.msra.mxu0 0.0
        %1235 = vmatprep.subr.mxu0 0.0
        %1236 = vmatpush1.xpose.msra.mxu0 0.0
        %1237 = vmatprep.subr.mxu0 0.0
        %1238 = vmatpush1.xpose.msra.mxu0 0.0
        %1239 = vmatprep.subr.mxu0 0.0
        %1240 = vmatpush1.xpose.msra.mxu0 0.0
        %1241 = vmatprep.subr.mxu0 0.0
        %1242 = vmatpush1.xpose.msra.mxu0 0.0
        %1243 = vmatprep.subr.mxu0 0.0
        %1244 = vmatpush1.xpose.msra.mxu0 0.0
        %1245 = vmatprep.subr.mxu0 0.0
        %1246 = vmatpush1.xpose.msra.mxu0 0.0
        %1247 = vmatprep.subr.mxu0 0.0
        %1248 = vmatpush1.xpose.msra.mxu0 0.0
        %1249 = vmatprep.subr.mxu0 0.0
        %1250 = vmatpush1.xpose.msra.mxu0 0.0
        %1251 = vmatprep.subr.mxu0 0.0
        %1252 = vmatpush1.xpose.msra.mxu0 0.0
        %1253 = vmatprep.subr.mxu0 0.0
        %1254 = vmatpush1.xpose.msra.mxu0 0.0
        %1255 = vmatprep.subr.mxu0 0.0
        %1256 = vmatpush1.xpose.msra.mxu0 0.0
        %1257 = vmatprep.subr.mxu0 0.0
        %1258 = vmatpush1.xpose.msra.mxu0 0.0
        %1259 = vmatprep.subr.mxu0 0.0
        %1260 = vmatpush1.xpose.msra.mxu0 0.0
        %1261 = vmatprep.subr.mxu0 0.0
        %1262 = vmatpush1.xpose.msra.mxu0 0.0
        %1263 = vmatprep.subr.mxu0 0.0
        %1264 = vmatpush1.xpose.msra.mxu0 0.0
        %1265 = vmatprep.subr.mxu0 0.0
        %1266 = vmatpush1.xpose.msra.mxu0 0.0
        %1267 = vmatprep.subr.mxu0 0.0
        %1268 = vmatpush1.xpose.msra.mxu0 0.0
        %1269 = vmatprep.subr.mxu0 0.0
        %1270 = vmatpush1.xpose.msra.mxu0 0.0
        %1271 = vmatprep.subr.mxu0 0.0
        %1272 = vmatpush1.xpose.msra.mxu0 0.0
        %1273 = vmatprep.subr.mxu0 0.0
        %1274 = vmatpush1.xpose.msra.mxu0 0.0
        %1275 = vmatprep.subr.mxu0 0.0
        %1276 = vmatpush1.xpose.msra.mxu0 0.0
        %1277 = vmatprep.mubr.f32.mxu0 0.0
        %v1278 = vand.u32 %v1108, 4294901760
        %1279 = vmatmul.mubr.f32.gmra.mrb[0].mxu0 %v1278
        %v1280 = vpop.f32.mrb[0].mxu0
        %v1281 = vadd.f32 %v1190, %v1280
        %v1282 = vpop.f32.mrb[0].mxu0
        %1283 = vmatprep.mubr.f32.mxu0 0.0
        %v1284 = vand.u32 %v1110, 4294901760
        %1285 = vmatmul.mubr.f32.gmra.mrb[0].mxu0 %v1284
        %v1286 = vpop.f32.mrb[0].mxu0
        %v1287 = vadd.f32 %v1200, %v1286
        %v1288 = vpop.f32.mrb[0].mxu0
        %1289 = vdwg.mxu0
        %1290 = vmatprep.subr.mxu0 0.0
        %v1291 = vand.u32 %v1112, 4294901760
        %v1292 = vsub.f32 %v1112, %v1291
        %1293 = vmatpush1.xpose.msra.mxu0 %v1292
        %1294 = vmatprep.subr.mxu0 0.0
        %v1295 = vand.u32 %v1114, 4294901760
        %v1296 = vsub.f32 %v1114, %v1295
        %1297 = vmatpush1.xpose.msra.mxu0 %v1296
        %1298 = vmatprep.subr.mxu0 0.0
        %1299 = vmatpush1.xpose.msra.mxu0 0.0
        %1300 = vmatprep.subr.mxu0 0.0
        %1301 = vmatpush1.xpose.msra.mxu0 0.0
        %1302 = vmatprep.subr.mxu0 0.0
        %1303 = vmatpush1.xpose.msra.mxu0 0.0
        %1304 = vmatprep.subr.mxu0 0.0
        %1305 = vmatpush1.xpose.msra.mxu0 0.0
        %1306 = vmatprep.subr.mxu0 0.0
        %1307 = vmatpush1.xpose.msra.mxu0 0.0
        %1308 = vmatprep.subr.mxu0 0.0
        %1309 = vmatpush1.xpose.msra.mxu0 0.0
        %1310 = vmatprep.subr.mxu0 0.0
        %1311 = vmatpush1.xpose.msra.mxu0 0.0
        %1312 = vmatprep.subr.mxu0 0.0
        %1313 = vmatpush1.xpose.msra.mxu0 0.0
        %1314 = vmatprep.subr.mxu0 0.0
        %1315 = vmatpush1.xpose.msra.mxu0 0.0
        %1316 = vmatprep.subr.mxu0 0.0
        %1317 = vmatpush1.xpose.msra.mxu0 0.0
        %1318 = vmatprep.subr.mxu0 0.0
        %1319 = vmatpush1.xpose.msra.mxu0 0.0
        %1320 = vmatprep.subr.mxu0 0.0
        %1321 = vmatpush1.xpose.msra.mxu0 0.0
        %1322 = vmatprep.subr.mxu0 0.0
        %1323 = vmatpush1.xpose.msra.mxu0 0.0
        %1324 = vmatprep.subr.mxu0 0.0
        %1325 = vmatpush1.xpose.msra.mxu0 0.0
        %1326 = vmatprep.subr.mxu0 0.0
        %1327 = vmatpush1.xpose.msra.mxu0 0.0
        %1328 = vmatprep.subr.mxu0 0.0
        %1329 = vmatpush1.xpose.msra.mxu0 0.0
        %1330 = vmatprep.subr.mxu0 0.0
        %1331 = vmatpush1.xpose.msra.mxu0 0.0
        %1332 = vmatprep.subr.mxu0 0.0
        %1333 = vmatpush1.xpose.msra.mxu0 0.0
        %1334 = vmatprep.subr.mxu0 0.0
        %1335 = vmatpush1.xpose.msra.mxu0 0.0
        %1336 = vmatprep.subr.mxu0 0.0
        %1337 = vmatpush1.xpose.msra.mxu0 0.0
        %1338 = vmatprep.subr.mxu0 0.0
        %1339 = vmatpush1.xpose.msra.mxu0 0.0
        %1340 = vmatprep.subr.mxu0 0.0
        %1341 = vmatpush1.xpose.msra.mxu0 0.0
        %1342 = vmatprep.subr.mxu0 0.0
        %1343 = vmatpush1.xpose.msra.mxu0 0.0
        %1344 = vmatprep.subr.mxu0 0.0
        %1345 = vmatpush1.xpose.msra.mxu0 0.0
        %1346 = vmatprep.subr.mxu0 0.0
        %1347 = vmatpush1.xpose.msra.mxu0 0.0
        %1348 = vmatprep.subr.mxu0 0.0
        %1349 = vmatpush1.xpose.msra.mxu0 0.0
        %1350 = vmatprep.subr.mxu0 0.0
        %1351 = vmatpush1.xpose.msra.mxu0 0.0
        %1352 = vmatprep.subr.mxu0 0.0
        %1353 = vmatpush1.xpose.msra.mxu0 0.0
        %1354 = vmatprep.subr.mxu0 0.0
        %1355 = vmatpush1.xpose.msra.mxu0 0.0
        %1356 = vmatprep.subr.mxu0 0.0
        %1357 = vmatpush1.xpose.msra.mxu0 0.0
        %1358 = vmatprep.mubr.f32.mxu0 0.0
        %v1359 = vand.u32 %v1108, 4294901760
        %v1360 = vsub.f32 %v1108, %v1359
        %1361 = vmatmul.mubr.f32.gmra.mrb[0].mxu0 %v1360
        %v1362 = vpop.f32.mrb[0].mxu0
        %v1363 = vadd.f32 %v1281, %v1362
        %v1364 = vpop.f32.mrb[0].mxu0
        %1365 = vmatprep.mubr.f32.mxu0 0.0
        %v1366 = vand.u32 %v1110, 4294901760
        %v1367 = vsub.f32 %v1110, %v1366
        %1368 = vmatmul.mubr.f32.gmra.mrb[0].mxu0 %v1367
        %v1369 = vpop.f32.mrb[0].mxu0
        %v1370 = vadd.f32 %v1287, %v1369
        %v1371 = vpop.f32.mrb[0].mxu0
        %1372 = vdwg.mxu0
        %1373 = vmatprep.subr.mxu0 0.0
        %v1374 = vand.u32 %v1112, 4294901760
        %1375 = vmatpush1.xpose.msra.mxu0 %v1374
        %1376 = vmatprep.subr.mxu0 0.0
        %v1377 = vand.u32 %v1114, 4294901760
        %1378 = vmatpush1.xpose.msra.mxu0 %v1377
        %1379 = vmatprep.subr.mxu0 0.0
        %1380 = vmatpush1.xpose.msra.mxu0 0.0
        %1381 = vmatprep.subr.mxu0 0.0
        %1382 = vmatpush1.xpose.msra.mxu0 0.0
        %1383 = vmatprep.subr.mxu0 0.0
        %1384 = vmatpush1.xpose.msra.mxu0 0.0
        %1385 = vmatprep.subr.mxu0 0.0
        %1386 = vmatpush1.xpose.msra.mxu0 0.0
        %1387 = vmatprep.subr.mxu0 0.0
        %1388 = vmatpush1.xpose.msra.mxu0 0.0
        %1389 = vmatprep.subr.mxu0 0.0
        %1390 = vmatpush1.xpose.msra.mxu0 0.0
        %1391 = vmatprep.subr.mxu0 0.0
        %1392 = vmatpush1.xpose.msra.mxu0 0.0
        %1393 = vmatprep.subr.mxu0 0.0
        %1394 = vmatpush1.xpose.msra.mxu0 0.0
        %1395 = vmatprep.subr.mxu0 0.0
        %1396 = vmatpush1.xpose.msra.mxu0 0.0
        %1397 = vmatprep.subr.mxu0 0.0
        %1398 = vmatpush1.xpose.msra.mxu0 0.0
        %1399 = vmatprep.subr.mxu0 0.0
        %1400 = vmatpush1.xpose.msra.mxu0 0.0
        %1401 = vmatprep.subr.mxu0 0.0
        %1402 = vmatpush1.xpose.msra.mxu0 0.0
        %1403 = vmatprep.subr.mxu0 0.0
        %1404 = vmatpush1.xpose.msra.mxu0 0.0
        %1405 = vmatprep.subr.mxu0 0.0
        %1406 = vmatpush1.xpose.msra.mxu0 0.0
        %1407 = vmatprep.subr.mxu0 0.0
        %1408 = vmatpush1.xpose.msra.mxu0 0.0
        %1409 = vmatprep.subr.mxu0 0.0
        %1410 = vmatpush1.xpose.msra.mxu0 0.0
        %1411 = vmatprep.subr.mxu0 0.0
        %1412 = vmatpush1.xpose.msra.mxu0 0.0
        %1413 = vmatprep.subr.mxu0 0.0
        %1414 = vmatpush1.xpose.msra.mxu0 0.0
        %1415 = vmatprep.subr.mxu0 0.0
        %1416 = vmatpush1.xpose.msra.mxu0 0.0
        %1417 = vmatprep.subr.mxu0 0.0
        %1418 = vmatpush1.xpose.msra.mxu0 0.0
        %1419 = vmatprep.subr.mxu0 0.0
        %1420 = vmatpush1.xpose.msra.mxu0 0.0
        %1421 = vmatprep.subr.mxu0 0.0
        %1422 = vmatpush1.xpose.msra.mxu0 0.0
        %1423 = vmatprep.subr.mxu0 0.0
        %1424 = vmatpush1.xpose.msra.mxu0 0.0
        %1425 = vmatprep.subr.mxu0 0.0
        %1426 = vmatpush1.xpose.msra.mxu0 0.0
        %1427 = vmatprep.subr.mxu0 0.0
        %1428 = vmatpush1.xpose.msra.mxu0 0.0
        %1429 = vmatprep.subr.mxu0 0.0
        %1430 = vmatpush1.xpose.msra.mxu0 0.0
        %1431 = vmatprep.subr.mxu0 0.0
        %1432 = vmatpush1.xpose.msra.mxu0 0.0
        %1433 = vmatprep.subr.mxu0 0.0
        %1434 = vmatpush1.xpose.msra.mxu0 0.0
        %1435 = vmatprep.subr.mxu0 0.0
        %1436 = vmatpush1.xpose.msra.mxu0 0.0
        %1437 = vmatprep.subr.mxu0 0.0
        %1438 = vmatpush1.xpose.msra.mxu0 0.0
        %1439 = vmatprep.mubr.f32.mxu0 0.0
        %v1440 = vand.u32 %v1108, 4294901760
        %v1441 = vsub.f32 %v1108, %v1440
        %v1442 = vand.u32 %v1441, 4294901760
        %1443 = vmatmul.mubr.f32.gmra.mrb[0].mxu0 %v1442
        %v1444 = vpop.f32.mrb[0].mxu0
        %v1445 = vadd.f32 %v1363, %v1444
        %v1446 = vpop.f32.mrb[0].mxu0
        %1447 = vmatprep.mubr.f32.mxu0 0.0
        %v1448 = vand.u32 %v1110, 4294901760
        %v1449 = vsub.f32 %v1110, %v1448
        %v1450 = vand.u32 %v1449, 4294901760
        %1451 = vmatmul.mubr.f32.gmra.mrb[0].mxu0 %v1450
        %v1452 = vpop.f32.mrb[0].mxu0
        %v1453 = vadd.f32 %v1370, %v1452
        %v1454 = vpop.f32.mrb[0].mxu0
        %1455 = vdwg.mxu0
        %1456 = vmatprep.subr.mxu0 0.0
        %v1457 = vand.u32 %v1112, 4294901760
        %v1458 = vsub.f32 %v1112, %v1457
        %v1459 = vand.u32 %v1458, 4294901760
        %1460 = vmatpush1.xpose.msra.mxu0 %v1459
        %1461 = vmatprep.subr.mxu0 0.0
        %v1462 = vand.u32 %v1114, 4294901760
        %v1463 = vsub.f32 %v1114, %v1462
        %v1464 = vand.u32 %v1463, 4294901760
        %1465 = vmatpush1.xpose.msra.mxu0 %v1464
        %1466 = vmatprep.subr.mxu0 0.0
        %1467 = vmatpush1.xpose.msra.mxu0 0.0
        %1468 = vmatprep.subr.mxu0 0.0
        %1469 = vmatpush1.xpose.msra.mxu0 0.0
        %1470 = vmatprep.subr.mxu0 0.0
        %1471 = vmatpush1.xpose.msra.mxu0 0.0
        %1472 = vmatprep.subr.mxu0 0.0
        %1473 = vmatpush1.xpose.msra.mxu0 0.0
        %1474 = vmatprep.subr.mxu0 0.0
        %1475 = vmatpush1.xpose.msra.mxu0 0.0
        %1476 = vmatprep.subr.mxu0 0.0
        %1477 = vmatpush1.xpose.msra.mxu0 0.0
        %1478 = vmatprep.subr.mxu0 0.0
        %1479 = vmatpush1.xpose.msra.mxu0 0.0
        %1480 = vmatprep.subr.mxu0 0.0
        %1481 = vmatpush1.xpose.msra.mxu0 0.0
        %1482 = vmatprep.subr.mxu0 0.0
        %1483 = vmatpush1.xpose.msra.mxu0 0.0
        %1484 = vmatprep.subr.mxu0 0.0
        %1485 = vmatpush1.xpose.msra.mxu0 0.0
        %1486 = vmatprep.subr.mxu0 0.0
        %1487 = vmatpush1.xpose.msra.mxu0 0.0
        %1488 = vmatprep.subr.mxu0 0.0
        %1489 = vmatpush1.xpose.msra.mxu0 0.0
        %1490 = vmatprep.subr.mxu0 0.0
        %1491 = vmatpush1.xpose.msra.mxu0 0.0
        %1492 = vmatprep.subr.mxu0 0.0
        %1493 = vmatpush1.xpose.msra.mxu0 0.0
        %1494 = vmatprep.subr.mxu0 0.0
        %1495 = vmatpush1.xpose.msra.mxu0 0.0
        %1496 = vmatprep.subr.mxu0 0.0
        %1497 = vmatpush1.xpose.msra.mxu0 0.0
        %1498 = vmatprep.subr.mxu0 0.0
        %1499 = vmatpush1.xpose.msra.mxu0 0.0
        %1500 = vmatprep.subr.mxu0 0.0
        %1501 = vmatpush1.xpose.msra.mxu0 0.0
        %1502 = vmatprep.subr.mxu0 0.0
        %1503 = vmatpush1.xpose.msra.mxu0 0.0
        %1504 = vmatprep.subr.mxu0 0.0
        %1505 = vmatpush1.xpose.msra.mxu0 0.0
        %1506 = vmatprep.subr.mxu0 0.0
        %1507 = vmatpush1.xpose.msra.mxu0 0.0
        %1508 = vmatprep.subr.mxu0 0.0
        %1509 = vmatpush1.xpose.msra.mxu0 0.0
        %1510 = vmatprep.subr.mxu0 0.0
        %1511 = vmatpush1.xpose.msra.mxu0 0.0
        %1512 = vmatprep.subr.mxu0 0.0
        %1513 = vmatpush1.xpose.msra.mxu0 0.0
        %1514 = vmatprep.subr.mxu0 0.0
        %1515 = vmatpush1.xpose.msra.mxu0 0.0
        %1516 = vmatprep.subr.mxu0 0.0
        %1517 = vmatpush1.xpose.msra.mxu0 0.0
        %1518 = vmatprep.subr.mxu0 0.0
        %1519 = vmatpush1.xpose.msra.mxu0 0.0
        %1520 = vmatprep.subr.mxu0 0.0
        %1521 = vmatpush1.xpose.msra.mxu0 0.0
        %1522 = vmatprep.subr.mxu0 0.0
        %1523 = vmatpush1.xpose.msra.mxu0 0.0
        %1524 = vmatprep.subr.mxu0 0.0
        %1525 = vmatpush1.xpose.msra.mxu0 0.0
        %1526 = vmatprep.mubr.f32.mxu0 0.0
        %v1527 = vand.u32 %v1108, 4294901760
        %1528 = vmatmul.mubr.f32.gmra.mrb[0].mxu0 %v1527
        %v1529 = vpop.f32.mrb[0].mxu0
        %v1530 = vadd.f32 %v1445, %v1529
        %v1531 = vpop.f32.mrb[0].mxu0
        %1532 = vmatprep.mubr.f32.mxu0 0.0
        %v1533 = vand.u32 %v1110, 4294901760
        %1534 = vmatmul.mubr.f32.gmra.mrb[0].mxu0 %v1533
        %v1535 = vpop.f32.mrb[0].mxu0
        %v1536 = vadd.f32 %v1453, %v1535
        %v1537 = vpop.f32.mrb[0].mxu0
        %1538 = vdwg.mxu0
        %1539 = vmatprep.subr.mxu0 0.0
        %v1540 = vand.u32 %v1112, 4294901760
        %1541 = vmatpush1.xpose.msra.mxu0 %v1540
        %1542 = vmatprep.subr.mxu0 0.0
        %v1543 = vand.u32 %v1114, 4294901760
        %1544 = vmatpush1.xpose.msra.mxu0 %v1543
        %1545 = vmatprep.subr.mxu0 0.0
        %1546 = vmatpush1.xpose.msra.mxu0 0.0
        %1547 = vmatprep.subr.mxu0 0.0
        %1548 = vmatpush1.xpose.msra.mxu0 0.0
        %1549 = vmatprep.subr.mxu0 0.0
        %1550 = vmatpush1.xpose.msra.mxu0 0.0
        %1551 = vmatprep.subr.mxu0 0.0
        %1552 = vmatpush1.xpose.msra.mxu0 0.0
        %1553 = vmatprep.subr.mxu0 0.0
        %1554 = vmatpush1.xpose.msra.mxu0 0.0
        %1555 = vmatprep.subr.mxu0 0.0
        %1556 = vmatpush1.xpose.msra.mxu0 0.0
        %1557 = vmatprep.subr.mxu0 0.0
        %1558 = vmatpush1.xpose.msra.mxu0 0.0
        %1559 = vmatprep.subr.mxu0 0.0
        %1560 = vmatpush1.xpose.msra.mxu0 0.0
        %1561 = vmatprep.subr.mxu0 0.0
        %1562 = vmatpush1.xpose.msra.mxu0 0.0
        %1563 = vmatprep.subr.mxu0 0.0
        %1564 = vmatpush1.xpose.msra.mxu0 0.0
        %1565 = vmatprep.subr.mxu0 0.0
        %1566 = vmatpush1.xpose.msra.mxu0 0.0
        %1567 = vmatprep.subr.mxu0 0.0
        %1568 = vmatpush1.xpose.msra.mxu0 0.0
        %1569 = vmatprep.subr.mxu0 0.0
        %1570 = vmatpush1.xpose.msra.mxu0 0.0
        %1571 = vmatprep.subr.mxu0 0.0
        %1572 = vmatpush1.xpose.msra.mxu0 0.0
        %1573 = vmatprep.subr.mxu0 0.0
        %1574 = vmatpush1.xpose.msra.mxu0 0.0
        %1575 = vmatprep.subr.mxu0 0.0
        %1576 = vmatpush1.xpose.msra.mxu0 0.0
        %1577 = vmatprep.subr.mxu0 0.0
        %1578 = vmatpush1.xpose.msra.mxu0 0.0
        %1579 = vmatprep.subr.mxu0 0.0
        %1580 = vmatpush1.xpose.msra.mxu0 0.0
        %1581 = vmatprep.subr.mxu0 0.0
        %1582 = vmatpush1.xpose.msra.mxu0 0.0
        %1583 = vmatprep.subr.mxu0 0.0
        %1584 = vmatpush1.xpose.msra.mxu0 0.0
        %1585 = vmatprep.subr.mxu0 0.0
        %1586 = vmatpush1.xpose.msra.mxu0 0.0
        %1587 = vmatprep.subr.mxu0 0.0
        %1588 = vmatpush1.xpose.msra.mxu0 0.0
        %1589 = vmatprep.subr.mxu0 0.0
        %1590 = vmatpush1.xpose.msra.mxu0 0.0
        %1591 = vmatprep.subr.mxu0 0.0
        %1592 = vmatpush1.xpose.msra.mxu0 0.0
        %1593 = vmatprep.subr.mxu0 0.0
        %1594 = vmatpush1.xpose.msra.mxu0 0.0
        %1595 = vmatprep.subr.mxu0 0.0
        %1596 = vmatpush1.xpose.msra.mxu0 0.0
        %1597 = vmatprep.subr.mxu0 0.0
        %1598 = vmatpush1.xpose.msra.mxu0 0.0
        %1599 = vmatprep.subr.mxu0 0.0
        %1600 = vmatpush1.xpose.msra.mxu0 0.0
        %1601 = vmatprep.subr.mxu0 0.0
        %1602 = vmatpush1.xpose.msra.mxu0 0.0
        %1603 = vmatprep.subr.mxu0 0.0
        %1604 = vmatpush1.xpose.msra.mxu0 0.0
        %1605 = vmatprep.mubr.f32.mxu0 0.0
        %v1606 = vand.u32 %v1108, 4294901760
        %1607 = vmatmul.mubr.f32.gmra.mrb[0].mxu0 %v1606
        %v1608 = vpop.f32.mrb[0].mxu0
        %v1609 = vadd.f32 %v1530, %v1608
        %v1610 = vpop.f32.mrb[0].mxu0
        %1611 = vmatprep.mubr.f32.mxu0 0.0
        %v1612 = vand.u32 %v1110, 4294901760
        %1613 = vmatmul.mubr.f32.gmra.mrb[0].mxu0 %v1612
        %v1614 = vpop.f32.mrb[0].mxu0
        %v1615 = vadd.f32 %v1536, %v1614
        %v1616 = vpop.f32.mrb[0].mxu0
        %1617 = vdwg.mxu0
        %v1618 = vmul.f32 %v1609, 0.35355338
        %v1619 = vmul.f32 %v1615, 0.35355338
        %vm1620 = vcmask 130048
        %v1621 = vsel %vm1620, %v1618, -inf
        %1622 = vmax.xlane.f32.xlu0 %v1621
        %v1623 = vpop.xlane.xlu0 %1622
        %v1624 = vsel %vm1620, %v1619, -inf
        %1625 = vmax.xlane.f32.xlu0 %v1624
        %v1626 = vpop.xlane.xlu0 %1625
        %v1627 = vsub.f32 %v1618, %v1623
        %v1628 = vsub.f32 %v1619, %v1626
        %v1629 = vmul.f32 %v1627, 1.442695
        %v1630 = vpow.pop %v1629
        %v1631 = vmul.f32 %v1628, 1.442695
        %v1632 = vpow.pop %v1631
        %v1633 = vsel %vm1620, %v1630, 0.0
        %1634 = vadd.xlane.f32.xlu0 %v1633
        %v1635 = vpop.xlane.xlu0 %1634
        %v1636 = vsel %vm1620, %v1632, 0.0
        %1637 = vadd.xlane.f32.xlu0 %v1636
        %v1638 = vpop.xlane.xlu0 %1637
        %v1639 = vrcp.pop %v1635
        %v1640 = vmul.f32 %v1630, %v1639
        %v1641 = vrcp.pop %v1638
        %v1642 = vmul.f32 %v1632, %v1641
        %1643 = vrot.lane.b32.xlu0 %v1092, 64
        %v1644 = vpop.permute.xlu0 %1643
        %1645 = vrot.lane.b32.xlu0 %v1098, 64
        %v1646 = vpop.permute.xlu0 %1645
        %v1650 = vsel %vm1620, %v1640, 0
        %v1653 = vsel %vm1620, %v1642, 0
        %1655 = vmatprep.subr.mxu0 0.0
        %v1656 = vand.u32 %v1644, 4294901760
        %1657 = vmatpush1.msra.mxu0 %v1656
        %1658 = vmatprep.subr.mxu0 0.0
        %v1659 = vand.u32 %v1646, 4294901760
        %1660 = vmatpush1.msra.mxu0 %v1659
        %1661 = vmatprep.subr.mxu0 0.0
        %1662 = vmatpush1.msra.mxu0 0.0
        %1663 = vmatprep.subr.mxu0 0.0
        %1664 = vmatpush1.msra.mxu0 0.0
        %1665 = vmatprep.subr.mxu0 0.0
        %1666 = vmatpush1.msra.mxu0 0.0
        %1667 = vmatprep.subr.mxu0 0.0
        %1668 = vmatpush1.msra.mxu0 0.0
        %1669 = vmatprep.subr.mxu0 0.0
        %1670 = vmatpush1.msra.mxu0 0.0
        %1671 = vmatprep.subr.mxu0 0.0
        %1672 = vmatpush1.msra.mxu0 0.0
        %1673 = vmatprep.subr.mxu0 0.0
        %1674 = vmatpush1.msra.mxu0 0.0
        %1675 = vmatprep.subr.mxu0 0.0
        %1676 = vmatpush1.msra.mxu0 0.0
        %1677 = vmatprep.subr.mxu0 0.0
        %1678 = vmatpush1.msra.mxu0 0.0
        %1679 = vmatprep.subr.mxu0 0.0
        %1680 = vmatpush1.msra.mxu0 0.0
        %1681 = vmatprep.subr.mxu0 0.0
        %1682 = vmatpush1.msra.mxu0 0.0
        %1683 = vmatprep.subr.mxu0 0.0
        %1684 = vmatpush1.msra.mxu0 0.0
        %1685 = vmatprep.subr.mxu0 0.0
        %1686 = vmatpush1.msra.mxu0 0.0
        %1687 = vmatprep.subr.mxu0 0.0
        %1688 = vmatpush1.msra.mxu0 0.0
        %1689 = vmatprep.subr.mxu0 0.0
        %1690 = vmatpush1.msra.mxu0 0.0
        %1691 = vmatprep.subr.mxu0 0.0
        %1692 = vmatpush1.msra.mxu0 0.0
        %1693 = vmatprep.subr.mxu0 0.0
        %1694 = vmatpush1.msra.mxu0 0.0
        %1695 = vmatprep.subr.mxu0 0.0
        %1696 = vmatpush1.msra.mxu0 0.0
        %1697 = vmatprep.subr.mxu0 0.0
        %1698 = vmatpush1.msra.mxu0 0.0
        %1699 = vmatprep.subr.mxu0 0.0
        %1700 = vmatpush1.msra.mxu0 0.0
        %1701 = vmatprep.subr.mxu0 0.0
        %1702 = vmatpush1.msra.mxu0 0.0
        %1703 = vmatprep.subr.mxu0 0.0
        %1704 = vmatpush1.msra.mxu0 0.0
        %1705 = vmatprep.subr.mxu0 0.0
        %1706 = vmatpush1.msra.mxu0 0.0
        %1707 = vmatprep.subr.mxu0 0.0
        %1708 = vmatpush1.msra.mxu0 0.0
        %1709 = vmatprep.subr.mxu0 0.0
        %1710 = vmatpush1.msra.mxu0 0.0
        %1711 = vmatprep.subr.mxu0 0.0
        %1712 = vmatpush1.msra.mxu0 0.0
        %1713 = vmatprep.subr.mxu0 0.0
        %1714 = vmatpush1.msra.mxu0 0.0
        %1715 = vmatprep.subr.mxu0 0.0
        %1716 = vmatpush1.msra.mxu0 0.0
        %1717 = vmatprep.subr.mxu0 0.0
        %1718 = vmatpush1.msra.mxu0 0.0
        %1719 = vmatprep.subr.mxu0 0.0
        %1720 = vmatpush1.msra.mxu0 0.0
        %1721 = vmatprep.mubr.f32.mxu0 0.0
        %v1722 = vand.u32 %v1650, 4294901760
        %v1723 = vsub.f32 %v1650, %v1722
        %v1724 = vand.u32 %v1723, 4294901760
        %v1725 = vsub.f32 %v1723, %v1724
        %v1726 = vand.u32 %v1725, 4294901760
        %1727 = vmatmul.mubr.f32.gmra.mrb[0].mxu0 %v1726
        %v1728 = vpop.f32.mrb[0].mxu0
        %v1729 = vadd.f32 0.0, %v1728
        %v1730 = vpop.f32.mrb[0].mxu0
        %1731 = vmatprep.mubr.f32.mxu0 0.0
        %v1732 = vand.u32 %v1653, 4294901760
        %v1733 = vsub.f32 %v1653, %v1732
        %v1734 = vand.u32 %v1733, 4294901760
        %v1735 = vsub.f32 %v1733, %v1734
        %v1736 = vand.u32 %v1735, 4294901760
        %1737 = vmatmul.mubr.f32.gmra.mrb[0].mxu0 %v1736
        %v1738 = vpop.f32.mrb[0].mxu0
        %v1739 = vadd.f32 0.0, %v1738
        %v1740 = vpop.f32.mrb[0].mxu0
        %1741 = vdwg.mxu0
        %1742 = vmatprep.subr.mxu0 0.0
        %v1743 = vand.u32 %v1644, 4294901760
        %v1744 = vsub.f32 %v1644, %v1743
        %v1745 = vand.u32 %v1744, 4294901760
        %v1746 = vsub.f32 %v1744, %v1745
        %v1747 = vand.u32 %v1746, 4294901760
        %1748 = vmatpush1.msra.mxu0 %v1747
        %1749 = vmatprep.subr.mxu0 0.0
        %v1750 = vand.u32 %v1646, 4294901760
        %v1751 = vsub.f32 %v1646, %v1750
        %v1752 = vand.u32 %v1751, 4294901760
        %v1753 = vsub.f32 %v1751, %v1752
        %v1754 = vand.u32 %v1753, 4294901760
        %1755 = vmatpush1.msra.mxu0 %v1754
        %1756 = vmatprep.subr.mxu0 0.0
        %1757 = vmatpush1.msra.mxu0 0.0
        %1758 = vmatprep.subr.mxu0 0.0
        %1759 = vmatpush1.msra.mxu0 0.0
        %1760 = vmatprep.subr.mxu0 0.0
        %1761 = vmatpush1.msra.mxu0 0.0
        %1762 = vmatprep.subr.mxu0 0.0
        %1763 = vmatpush1.msra.mxu0 0.0
        %1764 = vmatprep.subr.mxu0 0.0
        %1765 = vmatpush1.msra.mxu0 0.0
        %1766 = vmatprep.subr.mxu0 0.0
        %1767 = vmatpush1.msra.mxu0 0.0
        %1768 = vmatprep.subr.mxu0 0.0
        %1769 = vmatpush1.msra.mxu0 0.0
        %1770 = vmatprep.subr.mxu0 0.0
        %1771 = vmatpush1.msra.mxu0 0.0
        %1772 = vmatprep.subr.mxu0 0.0
        %1773 = vmatpush1.msra.mxu0 0.0
        %1774 = vmatprep.subr.mxu0 0.0
        %1775 = vmatpush1.msra.mxu0 0.0
        %1776 = vmatprep.subr.mxu0 0.0
        %1777 = vmatpush1.msra.mxu0 0.0
        %1778 = vmatprep.subr.mxu0 0.0
        %1779 = vmatpush1.msra.mxu0 0.0
        %1780 = vmatprep.subr.mxu0 0.0
        %1781 = vmatpush1.msra.mxu0 0.0
        %1782 = vmatprep.subr.mxu0 0.0
        %1783 = vmatpush1.msra.mxu0 0.0
        %1784 = vmatprep.subr.mxu0 0.0
        %1785 = vmatpush1.msra.mxu0 0.0
        %1786 = vmatprep.subr.mxu0 0.0
        %1787 = vmatpush1.msra.mxu0 0.0
        %1788 = vmatprep.subr.mxu0 0.0
        %1789 = vmatpush1.msra.mxu0 0.0
        %1790 = vmatprep.subr.mxu0 0.0
        %1791 = vmatpush1.msra.mxu0 0.0
        %1792 = vmatprep.subr.mxu0 0.0
        %1793 = vmatpush1.msra.mxu0 0.0
        %1794 = vmatprep.subr.mxu0 0.0
        %1795 = vmatpush1.msra.mxu0 0.0
        %1796 = vmatprep.subr.mxu0 0.0
        %1797 = vmatpush1.msra.mxu0 0.0
        %1798 = vmatprep.subr.mxu0 0.0
        %1799 = vmatpush1.msra.mxu0 0.0
        %1800 = vmatprep.subr.mxu0 0.0
        %1801 = vmatpush1.msra.mxu0 0.0
        %1802 = vmatprep.subr.mxu0 0.0
        %1803 = vmatpush1.msra.mxu0 0.0
        %1804 = vmatprep.subr.mxu0 0.0
        %1805 = vmatpush1.msra.mxu0 0.0
        %1806 = vmatprep.subr.mxu0 0.0
        %1807 = vmatpush1.msra.mxu0 0.0
        %1808 = vmatprep.subr.mxu0 0.0
        %1809 = vmatpush1.msra.mxu0 0.0
        %1810 = vmatprep.subr.mxu0 0.0
        %1811 = vmatpush1.msra.mxu0 0.0
        %1812 = vmatprep.subr.mxu0 0.0
        %1813 = vmatpush1.msra.mxu0 0.0
        %1814 = vmatprep.subr.mxu0 0.0
        %1815 = vmatpush1.msra.mxu0 0.0
        %1816 = vmatprep.mubr.f32.mxu0 0.0
        %v1817 = vand.u32 %v1650, 4294901760
        %1818 = vmatmul.mubr.f32.gmra.mrb[0].mxu0 %v1817
        %v1819 = vpop.f32.mrb[0].mxu0
        %v1820 = vadd.f32 %v1729, %v1819
        %v1821 = vpop.f32.mrb[0].mxu0
        %1822 = vmatprep.mubr.f32.mxu0 0.0
        %v1823 = vand.u32 %v1653, 4294901760
        %1824 = vmatmul.mubr.f32.gmra.mrb[0].mxu0 %v1823
        %v1825 = vpop.f32.mrb[0].mxu0
        %v1826 = vadd.f32 %v1739, %v1825
        %v1827 = vpop.f32.mrb[0].mxu0
        %1828 = vdwg.mxu0
        %1829 = vmatprep.subr.mxu0 0.0
        %v1830 = vand.u32 %v1644, 4294901760
        %v1831 = vsub.f32 %v1644, %v1830
        %1832 = vmatpush1.msra.mxu0 %v1831
        %1833 = vmatprep.subr.mxu0 0.0
        %v1834 = vand.u32 %v1646, 4294901760
        %v1835 = vsub.f32 %v1646, %v1834
        %1836 = vmatpush1.msra.mxu0 %v1835
        %1837 = vmatprep.subr.mxu0 0.0
        %1838 = vmatpush1.msra.mxu0 0.0
        %1839 = vmatprep.subr.mxu0 0.0
        %1840 = vmatpush1.msra.mxu0 0.0
        %1841 = vmatprep.subr.mxu0 0.0
        %1842 = vmatpush1.msra.mxu0 0.0
        %1843 = vmatprep.subr.mxu0 0.0
        %1844 = vmatpush1.msra.mxu0 0.0
        %1845 = vmatprep.subr.mxu0 0.0
        %1846 = vmatpush1.msra.mxu0 0.0
        %1847 = vmatprep.subr.mxu0 0.0
        %1848 = vmatpush1.msra.mxu0 0.0
        %1849 = vmatprep.subr.mxu0 0.0
        %1850 = vmatpush1.msra.mxu0 0.0
        %1851 = vmatprep.subr.mxu0 0.0
        %1852 = vmatpush1.msra.mxu0 0.0
        %1853 = vmatprep.subr.mxu0 0.0
        %1854 = vmatpush1.msra.mxu0 0.0
        %1855 = vmatprep.subr.mxu0 0.0
        %1856 = vmatpush1.msra.mxu0 0.0
        %1857 = vmatprep.subr.mxu0 0.0
        %1858 = vmatpush1.msra.mxu0 0.0
        %1859 = vmatprep.subr.mxu0 0.0
        %1860 = vmatpush1.msra.mxu0 0.0
        %1861 = vmatprep.subr.mxu0 0.0
        %1862 = vmatpush1.msra.mxu0 0.0
        %1863 = vmatprep.subr.mxu0 0.0
        %1864 = vmatpush1.msra.mxu0 0.0
        %1865 = vmatprep.subr.mxu0 0.0
        %1866 = vmatpush1.msra.mxu0 0.0
        %1867 = vmatprep.subr.mxu0 0.0
        %1868 = vmatpush1.msra.mxu0 0.0
        %1869 = vmatprep.subr.mxu0 0.0
        %1870 = vmatpush1.msra.mxu0 0.0
        %1871 = vmatprep.subr.mxu0 0.0
        %1872 = vmatpush1.msra.mxu0 0.0
        %1873 = vmatprep.subr.mxu0 0.0
        %1874 = vmatpush1.msra.mxu0 0.0
        %1875 = vmatprep.subr.mxu0 0.0
        %1876 = vmatpush1.msra.mxu0 0.0
        %1877 = vmatprep.subr.mxu0 0.0
        %1878 = vmatpush1.msra.mxu0 0.0
        %1879 = vmatprep.subr.mxu0 0.0
        %1880 = vmatpush1.msra.mxu0 0.0
        %1881 = vmatprep.subr.mxu0 0.0
        %1882 = vmatpush1.msra.mxu0 0.0
        %1883 = vmatprep.subr.mxu0 0.0
        %1884 = vmatpush1.msra.mxu0 0.0
        %1885 = vmatprep.subr.mxu0 0.0
        %1886 = vmatpush1.msra.mxu0 0.0
        %1887 = vmatprep.subr.mxu0 0.0
        %1888 = vmatpush1.msra.mxu0 0.0
        %1889 = vmatprep.subr.mxu0 0.0
        %1890 = vmatpush1.msra.mxu0 0.0
        %1891 = vmatprep.subr.mxu0 0.0
        %1892 = vmatpush1.msra.mxu0 0.0
        %1893 = vmatprep.subr.mxu0 0.0
        %1894 = vmatpush1.msra.mxu0 0.0
        %1895 = vmatprep.subr.mxu0 0.0
        %1896 = vmatpush1.msra.mxu0 0.0
        %1897 = vmatprep.mubr.f32.mxu0 0.0
        %v1898 = vand.u32 %v1650, 4294901760
        %v1899 = vsub.f32 %v1650, %v1898
        %1900 = vmatmul.mubr.f32.gmra.mrb[0].mxu0 %v1899
        %v1901 = vpop.f32.mrb[0].mxu0
        %v1902 = vadd.f32 %v1820, %v1901
        %v1903 = vpop.f32.mrb[0].mxu0
        %1904 = vmatprep.mubr.f32.mxu0 0.0
        %v1905 = vand.u32 %v1653, 4294901760
        %v1906 = vsub.f32 %v1653, %v1905
        %1907 = vmatmul.mubr.f32.gmra.mrb[0].mxu0 %v1906
        %v1908 = vpop.f32.mrb[0].mxu0
        %v1909 = vadd.f32 %v1826, %v1908
        %v1910 = vpop.f32.mrb[0].mxu0
        %1911 = vdwg.mxu0
        %1912 = vmatprep.subr.mxu0 0.0
        %v1913 = vand.u32 %v1644, 4294901760
        %1914 = vmatpush1.msra.mxu0 %v1913
        %1915 = vmatprep.subr.mxu0 0.0
        %v1916 = vand.u32 %v1646, 4294901760
        %1917 = vmatpush1.msra.mxu0 %v1916
        %1918 = vmatprep.subr.mxu0 0.0
        %1919 = vmatpush1.msra.mxu0 0.0
        %1920 = vmatprep.subr.mxu0 0.0
        %1921 = vmatpush1.msra.mxu0 0.0
        %1922 = vmatprep.subr.mxu0 0.0
        %1923 = vmatpush1.msra.mxu0 0.0
        %1924 = vmatprep.subr.mxu0 0.0
        %1925 = vmatpush1.msra.mxu0 0.0
        %1926 = vmatprep.subr.mxu0 0.0
        %1927 = vmatpush1.msra.mxu0 0.0
        %1928 = vmatprep.subr.mxu0 0.0
        %1929 = vmatpush1.msra.mxu0 0.0
        %1930 = vmatprep.subr.mxu0 0.0
        %1931 = vmatpush1.msra.mxu0 0.0
        %1932 = vmatprep.subr.mxu0 0.0
        %1933 = vmatpush1.msra.mxu0 0.0
        %1934 = vmatprep.subr.mxu0 0.0
        %1935 = vmatpush1.msra.mxu0 0.0
        %1936 = vmatprep.subr.mxu0 0.0
        %1937 = vmatpush1.msra.mxu0 0.0
        %1938 = vmatprep.subr.mxu0 0.0
        %1939 = vmatpush1.msra.mxu0 0.0
        %1940 = vmatprep.subr.mxu0 0.0
        %1941 = vmatpush1.msra.mxu0 0.0
        %1942 = vmatprep.subr.mxu0 0.0
        %1943 = vmatpush1.msra.mxu0 0.0
        %1944 = vmatprep.subr.mxu0 0.0
        %1945 = vmatpush1.msra.mxu0 0.0
        %1946 = vmatprep.subr.mxu0 0.0
        %1947 = vmatpush1.msra.mxu0 0.0
        %1948 = vmatprep.subr.mxu0 0.0
        %1949 = vmatpush1.msra.mxu0 0.0
        %1950 = vmatprep.subr.mxu0 0.0
        %1951 = vmatpush1.msra.mxu0 0.0
        %1952 = vmatprep.subr.mxu0 0.0
        %1953 = vmatpush1.msra.mxu0 0.0
        %1954 = vmatprep.subr.mxu0 0.0
        %1955 = vmatpush1.msra.mxu0 0.0
        %1956 = vmatprep.subr.mxu0 0.0
        %1957 = vmatpush1.msra.mxu0 0.0
        %1958 = vmatprep.subr.mxu0 0.0
        %1959 = vmatpush1.msra.mxu0 0.0
        %1960 = vmatprep.subr.mxu0 0.0
        %1961 = vmatpush1.msra.mxu0 0.0
        %1962 = vmatprep.subr.mxu0 0.0
        %1963 = vmatpush1.msra.mxu0 0.0
        %1964 = vmatprep.subr.mxu0 0.0
        %1965 = vmatpush1.msra.mxu0 0.0
        %1966 = vmatprep.subr.mxu0 0.0
        %1967 = vmatpush1.msra.mxu0 0.0
        %1968 = vmatprep.subr.mxu0 0.0
        %1969 = vmatpush1.msra.mxu0 0.0
        %1970 = vmatprep.subr.mxu0 0.0
        %1971 = vmatpush1.msra.mxu0 0.0
        %1972 = vmatprep.subr.mxu0 0.0
        %1973 = vmatpush1.msra.mxu0 0.0
        %1974 = vmatprep.subr.mxu0 0.0
        %1975 = vmatpush1.msra.mxu0 0.0
        %1976 = vmatprep.subr.mxu0 0.0
        %1977 = vmatpush1.msra.mxu0 0.0
        %1978 = vmatprep.mubr.f32.mxu0 0.0
        %v1979 = vand.u32 %v1650, 4294901760
        %v1980 = vsub.f32 %v1650, %v1979
        %v1981 = vand.u32 %v1980, 4294901760
        %1982 = vmatmul.mubr.f32.gmra.mrb[0].mxu0 %v1981
        %v1983 = vpop.f32.mrb[0].mxu0
        %v1984 = vadd.f32 %v1902, %v1983
        %v1985 = vpop.f32.mrb[0].mxu0
        %1986 = vmatprep.mubr.f32.mxu0 0.0
        %v1987 = vand.u32 %v1653, 4294901760
        %v1988 = vsub.f32 %v1653, %v1987
        %v1989 = vand.u32 %v1988, 4294901760
        %1990 = vmatmul.mubr.f32.gmra.mrb[0].mxu0 %v1989
        %v1991 = vpop.f32.mrb[0].mxu0
        %v1992 = vadd.f32 %v1909, %v1991
        %v1993 = vpop.f32.mrb[0].mxu0
        %1994 = vdwg.mxu0
        %1995 = vmatprep.subr.mxu0 0.0
        %v1996 = vand.u32 %v1644, 4294901760
        %v1997 = vsub.f32 %v1644, %v1996
        %v1998 = vand.u32 %v1997, 4294901760
        %1999 = vmatpush1.msra.mxu0 %v1998
        %2000 = vmatprep.subr.mxu0 0.0
        %v2001 = vand.u32 %v1646, 4294901760
        %v2002 = vsub.f32 %v1646, %v2001
        %v2003 = vand.u32 %v2002, 4294901760
        %2004 = vmatpush1.msra.mxu0 %v2003
        %2005 = vmatprep.subr.mxu0 0.0
        %2006 = vmatpush1.msra.mxu0 0.0
        %2007 = vmatprep.subr.mxu0 0.0
        %2008 = vmatpush1.msra.mxu0 0.0
        %2009 = vmatprep.subr.mxu0 0.0
        %2010 = vmatpush1.msra.mxu0 0.0
        %2011 = vmatprep.subr.mxu0 0.0
        %2012 = vmatpush1.msra.mxu0 0.0
        %2013 = vmatprep.subr.mxu0 0.0
        %2014 = vmatpush1.msra.mxu0 0.0
        %2015 = vmatprep.subr.mxu0 0.0
        %2016 = vmatpush1.msra.mxu0 0.0
        %2017 = vmatprep.subr.mxu0 0.0
        %2018 = vmatpush1.msra.mxu0 0.0
        %2019 = vmatprep.subr.mxu0 0.0
        %2020 = vmatpush1.msra.mxu0 0.0
        %2021 = vmatprep.subr.mxu0 0.0
        %2022 = vmatpush1.msra.mxu0 0.0
        %2023 = vmatprep.subr.mxu0 0.0
        %2024 = vmatpush1.msra.mxu0 0.0
        %2025 = vmatprep.subr.mxu0 0.0
        %2026 = vmatpush1.msra.mxu0 0.0
        %2027 = vmatprep.subr.mxu0 0.0
        %2028 = vmatpush1.msra.mxu0 0.0
        %2029 = vmatprep.subr.mxu0 0.0
        %2030 = vmatpush1.msra.mxu0 0.0
        %2031 = vmatprep.subr.mxu0 0.0
        %2032 = vmatpush1.msra.mxu0 0.0
        %2033 = vmatprep.subr.mxu0 0.0
        %2034 = vmatpush1.msra.mxu0 0.0
        %2035 = vmatprep.subr.mxu0 0.0
        %2036 = vmatpush1.msra.mxu0 0.0
        %2037 = vmatprep.subr.mxu0 0.0
        %2038 = vmatpush1.msra.mxu0 0.0
        %2039 = vmatprep.subr.mxu0 0.0
        %2040 = vmatpush1.msra.mxu0 0.0
        %2041 = vmatprep.subr.mxu0 0.0
        %2042 = vmatpush1.msra.mxu0 0.0
        %2043 = vmatprep.subr.mxu0 0.0
        %2044 = vmatpush1.msra.mxu0 0.0
        %2045 = vmatprep.subr.mxu0 0.0
        %2046 = vmatpush1.msra.mxu0 0.0
        %2047 = vmatprep.subr.mxu0 0.0
        %2048 = vmatpush1.msra.mxu0 0.0
        %2049 = vmatprep.subr.mxu0 0.0
        %2050 = vmatpush1.msra.mxu0 0.0
        %2051 = vmatprep.subr.mxu0 0.0
        %2052 = vmatpush1.msra.mxu0 0.0
        %2053 = vmatprep.subr.mxu0 0.0
        %2054 = vmatpush1.msra.mxu0 0.0
        %2055 = vmatprep.subr.mxu0 0.0
        %2056 = vmatpush1.msra.mxu0 0.0
        %2057 = vmatprep.subr.mxu0 0.0
        %2058 = vmatpush1.msra.mxu0 0.0
        %2059 = vmatprep.subr.mxu0 0.0
        %2060 = vmatpush1.msra.mxu0 0.0
        %2061 = vmatprep.subr.mxu0 0.0
        %2062 = vmatpush1.msra.mxu0 0.0
        %2063 = vmatprep.subr.mxu0 0.0
        %2064 = vmatpush1.msra.mxu0 0.0
        %2065 = vmatprep.mubr.f32.mxu0 0.0
        %v2066 = vand.u32 %v1650, 4294901760
        %2067 = vmatmul.mubr.f32.gmra.mrb[0].mxu0 %v2066
        %v2068 = vpop.f32.mrb[0].mxu0
        %v2069 = vadd.f32 %v1984, %v2068
        %v2070 = vpop.f32.mrb[0].mxu0
        %2071 = vmatprep.mubr.f32.mxu0 0.0
        %v2072 = vand.u32 %v1653, 4294901760
        %2073 = vmatmul.mubr.f32.gmra.mrb[0].mxu0 %v2072
        %v2074 = vpop.f32.mrb[0].mxu0
        %v2075 = vadd.f32 %v1992, %v2074
        %v2076 = vpop.f32.mrb[0].mxu0
        %2077 = vdwg.mxu0
        %2078 = vmatprep.subr.mxu0 0.0
        %v2079 = vand.u32 %v1644, 4294901760
        %2080 = vmatpush1.msra.mxu0 %v2079
        %2081 = vmatprep.subr.mxu0 0.0
        %v2082 = vand.u32 %v1646, 4294901760
        %2083 = vmatpush1.msra.mxu0 %v2082
        %2084 = vmatprep.subr.mxu0 0.0
        %2085 = vmatpush1.msra.mxu0 0.0
        %2086 = vmatprep.subr.mxu0 0.0
        %2087 = vmatpush1.msra.mxu0 0.0
        %2088 = vmatprep.subr.mxu0 0.0
        %2089 = vmatpush1.msra.mxu0 0.0
        %2090 = vmatprep.subr.mxu0 0.0
        %2091 = vmatpush1.msra.mxu0 0.0
        %2092 = vmatprep.subr.mxu0 0.0
        %2093 = vmatpush1.msra.mxu0 0.0
        %2094 = vmatprep.subr.mxu0 0.0
        %2095 = vmatpush1.msra.mxu0 0.0
        %2096 = vmatprep.subr.mxu0 0.0
        %2097 = vmatpush1.msra.mxu0 0.0
        %2098 = vmatprep.subr.mxu0 0.0
        %2099 = vmatpush1.msra.mxu0 0.0
        %2100 = vmatprep.subr.mxu0 0.0
        %2101 = vmatpush1.msra.mxu0 0.0
        %2102 = vmatprep.subr.mxu0 0.0
        %2103 = vmatpush1.msra.mxu0 0.0
        %2104 = vmatprep.subr.mxu0 0.0
        %2105 = vmatpush1.msra.mxu0 0.0
        %2106 = vmatprep.subr.mxu0 0.0
        %2107 = vmatpush1.msra.mxu0 0.0
        %2108 = vmatprep.subr.mxu0 0.0
        %2109 = vmatpush1.msra.mxu0 0.0
        %2110 = vmatprep.subr.mxu0 0.0
        %2111 = vmatpush1.msra.mxu0 0.0
        %2112 = vmatprep.subr.mxu0 0.0
        %2113 = vmatpush1.msra.mxu0 0.0
        %2114 = vmatprep.subr.mxu0 0.0
        %2115 = vmatpush1.msra.mxu0 0.0
        %2116 = vmatprep.subr.mxu0 0.0
        %2117 = vmatpush1.msra.mxu0 0.0
        %2118 = vmatprep.subr.mxu0 0.0
        %2119 = vmatpush1.msra.mxu0 0.0
        %2120 = vmatprep.subr.mxu0 0.0
        %2121 = vmatpush1.msra.mxu0 0.0
        %2122 = vmatprep.subr.mxu0 0.0
        %2123 = vmatpush1.msra.mxu0 0.0
        %2124 = vmatprep.subr.mxu0 0.0
        %2125 = vmatpush1.msra.mxu0 0.0
        %2126 = vmatprep.subr.mxu0 0.0
        %2127 = vmatpush1.msra.mxu0 0.0
        %2128 = vmatprep.subr.mxu0 0.0
        %2129 = vmatpush1.msra.mxu0 0.0
        %2130 = vmatprep.subr.mxu0 0.0
        %2131 = vmatpush1.msra.mxu0 0.0
        %2132 = vmatprep.subr.mxu0 0.0
        %2133 = vmatpush1.msra.mxu0 0.0
        %2134 = vmatprep.subr.mxu0 0.0
        %2135 = vmatpush1.msra.mxu0 0.0
        %2136 = vmatprep.subr.mxu0 0.0
        %2137 = vmatpush1.msra.mxu0 0.0
        %2138 = vmatprep.subr.mxu0 0.0
        %2139 = vmatpush1.msra.mxu0 0.0
        %2140 = vmatprep.subr.mxu0 0.0
        %2141 = vmatpush1.msra.mxu0 0.0
        %2142 = vmatprep.subr.mxu0 0.0
        %2143 = vmatpush1.msra.mxu0 0.0
        %2144 = vmatprep.mubr.f32.mxu0 0.0
        %v2145 = vand.u32 %v1650, 4294901760
        %2146 = vmatmul.mubr.f32.gmra.mrb[0].mxu0 %v2145
        %v2147 = vpop.f32.mrb[0].mxu0
        %v2148 = vadd.f32 %v2069, %v2147
        %v2149 = vpop.f32.mrb[0].mxu0
        %2150 = vmatprep.mubr.f32.mxu0 0.0
        %v2151 = vand.u32 %v1653, 4294901760
        %2152 = vmatmul.mubr.f32.gmra.mrb[0].mxu0 %v2151
        %v2153 = vpop.f32.mrb[0].mxu0
        %v2154 = vadd.f32 %v2075, %v2153
        %v2155 = vpop.f32.mrb[0].mxu0
        %2156 = vdwg.mxu0
        %2157 = vrot.lane.b32.xlu0 %v1092, 120
        %v2158 = vpop.permute.xlu0 %2157
        %2159 = vrot.lane.b32.xlu0 %v1098, 120
        %v2160 = vpop.permute.xlu0 %2159
        %2161 = vrot.lane.b32.xlu0 %v1092, 88
        %v2162 = vpop.permute.xlu0 %2161
        %2163 = vrot.lane.b32.xlu0 %v1098, 88
        %v2164 = vpop.permute.xlu0 %2163
        %v2165 = vsel %vm1107, %v2158, 0
        %v2167 = vsel %vm1107, %v2160, 0
        %v2169 = vsel %vm1107, %v2162, 0
        %v2171 = vsel %vm1107, %v2164, 0
        %2173 = vmatprep.subr.mxu0 0.0
        %v2174 = vand.u32 %v2169, 4294901760
        %2175 = vmatpush1.xpose.msra.mxu0 %v2174
        %2176 = vmatprep.subr.mxu0 0.0
        %v2177 = vand.u32 %v2171, 4294901760
        %2178 = vmatpush1.xpose.msra.mxu0 %v2177
        %2179 = vmatprep.subr.mxu0 0.0
        %2180 = vmatpush1.xpose.msra.mxu0 0.0
        %2181 = vmatprep.subr.mxu0 0.0
        %2182 = vmatpush1.xpose.msra.mxu0 0.0
        %2183 = vmatprep.subr.mxu0 0.0
        %2184 = vmatpush1.xpose.msra.mxu0 0.0
        %2185 = vmatprep.subr.mxu0 0.0
        %2186 = vmatpush1.xpose.msra.mxu0 0.0
        %2187 = vmatprep.subr.mxu0 0.0
        %2188 = vmatpush1.xpose.msra.mxu0 0.0
        %2189 = vmatprep.subr.mxu0 0.0
        %2190 = vmatpush1.xpose.msra.mxu0 0.0
        %2191 = vmatprep.subr.mxu0 0.0
        %2192 = vmatpush1.xpose.msra.mxu0 0.0
        %2193 = vmatprep.subr.mxu0 0.0
        %2194 = vmatpush1.xpose.msra.mxu0 0.0
        %2195 = vmatprep.subr.mxu0 0.0
        %2196 = vmatpush1.xpose.msra.mxu0 0.0
        %2197 = vmatprep.subr.mxu0 0.0
        %2198 = vmatpush1.xpose.msra.mxu0 0.0
        %2199 = vmatprep.subr.mxu0 0.0
        %2200 = vmatpush1.xpose.msra.mxu0 0.0
        %2201 = vmatprep.subr.mxu0 0.0
        %2202 = vmatpush1.xpose.msra.mxu0 0.0
        %2203 = vmatprep.subr.mxu0 0.0
        %2204 = vmatpush1.xpose.msra.mxu0 0.0
        %2205 = vmatprep.subr.mxu0 0.0
        %2206 = vmatpush1.xpose.msra.mxu0 0.0
        %2207 = vmatprep.subr.mxu0 0.0
        %2208 = vmatpush1.xpose.msra.mxu0 0.0
        %2209 = vmatprep.subr.mxu0 0.0
        %2210 = vmatpush1.xpose.msra.mxu0 0.0
        %2211 = vmatprep.subr.mxu0 0.0
        %2212 = vmatpush1.xpose.msra.mxu0 0.0
        %2213 = vmatprep.subr.mxu0 0.0
        %2214 = vmatpush1.xpose.msra.mxu0 0.0
        %2215 = vmatprep.subr.mxu0 0.0
        %2216 = vmatpush1.xpose.msra.mxu0 0.0
        %2217 = vmatprep.subr.mxu0 0.0
        %2218 = vmatpush1.xpose.msra.mxu0 0.0
        %2219 = vmatprep.subr.mxu0 0.0
        %2220 = vmatpush1.xpose.msra.mxu0 0.0
        %2221 = vmatprep.subr.mxu0 0.0
        %2222 = vmatpush1.xpose.msra.mxu0 0.0
        %2223 = vmatprep.subr.mxu0 0.0
        %2224 = vmatpush1.xpose.msra.mxu0 0.0
        %2225 = vmatprep.subr.mxu0 0.0
        %2226 = vmatpush1.xpose.msra.mxu0 0.0
        %2227 = vmatprep.subr.mxu0 0.0
        %2228 = vmatpush1.xpose.msra.mxu0 0.0
        %2229 = vmatprep.subr.mxu0 0.0
        %2230 = vmatpush1.xpose.msra.mxu0 0.0
        %2231 = vmatprep.subr.mxu0 0.0
        %2232 = vmatpush1.xpose.msra.mxu0 0.0
        %2233 = vmatprep.subr.mxu0 0.0
        %2234 = vmatpush1.xpose.msra.mxu0 0.0
        %2235 = vmatprep.subr.mxu0 0.0
        %2236 = vmatpush1.xpose.msra.mxu0 0.0
        %2237 = vmatprep.subr.mxu0 0.0
        %2238 = vmatpush1.xpose.msra.mxu0 0.0
        %2239 = vmatprep.mubr.f32.mxu0 0.0
        %v2240 = vand.u32 %v2165, 4294901760
        %v2241 = vsub.f32 %v2165, %v2240
        %v2242 = vand.u32 %v2241, 4294901760
        %v2243 = vsub.f32 %v2241, %v2242
        %v2244 = vand.u32 %v2243, 4294901760
        %2245 = vmatmul.mubr.f32.gmra.mrb[0].mxu0 %v2244
        %v2246 = vpop.f32.mrb[0].mxu0
        %v2247 = vadd.f32 0.0, %v2246
        %v2248 = vpop.f32.mrb[0].mxu0
        %2249 = vmatprep.mubr.f32.mxu0 0.0
        %v2250 = vand.u32 %v2167, 4294901760
        %v2251 = vsub.f32 %v2167, %v2250
        %v2252 = vand.u32 %v2251, 4294901760
        %v2253 = vsub.f32 %v2251, %v2252
        %v2254 = vand.u32 %v2253, 4294901760
        %2255 = vmatmul.mubr.f32.gmra.mrb[0].mxu0 %v2254
        %v2256 = vpop.f32.mrb[0].mxu0
        %v2257 = vadd.f32 0.0, %v2256
        %v2258 = vpop.f32.mrb[0].mxu0
        %2259 = vdwg.mxu0
        %2260 = vmatprep.subr.mxu0 0.0
        %v2261 = vand.u32 %v2169, 4294901760
        %v2262 = vsub.f32 %v2169, %v2261
        %v2263 = vand.u32 %v2262, 4294901760
        %v2264 = vsub.f32 %v2262, %v2263
        %v2265 = vand.u32 %v2264, 4294901760
        %2266 = vmatpush1.xpose.msra.mxu0 %v2265
        %2267 = vmatprep.subr.mxu0 0.0
        %v2268 = vand.u32 %v2171, 4294901760
        %v2269 = vsub.f32 %v2171, %v2268
        %v2270 = vand.u32 %v2269, 4294901760
        %v2271 = vsub.f32 %v2269, %v2270
        %v2272 = vand.u32 %v2271, 4294901760
        %2273 = vmatpush1.xpose.msra.mxu0 %v2272
        %2274 = vmatprep.subr.mxu0 0.0
        %2275 = vmatpush1.xpose.msra.mxu0 0.0
        %2276 = vmatprep.subr.mxu0 0.0
        %2277 = vmatpush1.xpose.msra.mxu0 0.0
        %2278 = vmatprep.subr.mxu0 0.0
        %2279 = vmatpush1.xpose.msra.mxu0 0.0
        %2280 = vmatprep.subr.mxu0 0.0
        %2281 = vmatpush1.xpose.msra.mxu0 0.0
        %2282 = vmatprep.subr.mxu0 0.0
        %2283 = vmatpush1.xpose.msra.mxu0 0.0
        %2284 = vmatprep.subr.mxu0 0.0
        %2285 = vmatpush1.xpose.msra.mxu0 0.0
        %2286 = vmatprep.subr.mxu0 0.0
        %2287 = vmatpush1.xpose.msra.mxu0 0.0
        %2288 = vmatprep.subr.mxu0 0.0
        %2289 = vmatpush1.xpose.msra.mxu0 0.0
        %2290 = vmatprep.subr.mxu0 0.0
        %2291 = vmatpush1.xpose.msra.mxu0 0.0
        %2292 = vmatprep.subr.mxu0 0.0
        %2293 = vmatpush1.xpose.msra.mxu0 0.0
        %2294 = vmatprep.subr.mxu0 0.0
        %2295 = vmatpush1.xpose.msra.mxu0 0.0
        %2296 = vmatprep.subr.mxu0 0.0
        %2297 = vmatpush1.xpose.msra.mxu0 0.0
        %2298 = vmatprep.subr.mxu0 0.0
        %2299 = vmatpush1.xpose.msra.mxu0 0.0
        %2300 = vmatprep.subr.mxu0 0.0
        %2301 = vmatpush1.xpose.msra.mxu0 0.0
        %2302 = vmatprep.subr.mxu0 0.0
        %2303 = vmatpush1.xpose.msra.mxu0 0.0
        %2304 = vmatprep.subr.mxu0 0.0
        %2305 = vmatpush1.xpose.msra.mxu0 0.0
        %2306 = vmatprep.subr.mxu0 0.0
        %2307 = vmatpush1.xpose.msra.mxu0 0.0
        %2308 = vmatprep.subr.mxu0 0.0
        %2309 = vmatpush1.xpose.msra.mxu0 0.0
        %2310 = vmatprep.subr.mxu0 0.0
        %2311 = vmatpush1.xpose.msra.mxu0 0.0
        %2312 = vmatprep.subr.mxu0 0.0
        %2313 = vmatpush1.xpose.msra.mxu0 0.0
        %2314 = vmatprep.subr.mxu0 0.0
        %2315 = vmatpush1.xpose.msra.mxu0 0.0
        %2316 = vmatprep.subr.mxu0 0.0
        %2317 = vmatpush1.xpose.msra.mxu0 0.0
        %2318 = vmatprep.subr.mxu0 0.0
        %2319 = vmatpush1.xpose.msra.mxu0 0.0
        %2320 = vmatprep.subr.mxu0 0.0
        %2321 = vmatpush1.xpose.msra.mxu0 0.0
        %2322 = vmatprep.subr.mxu0 0.0
        %2323 = vmatpush1.xpose.msra.mxu0 0.0
        %2324 = vmatprep.subr.mxu0 0.0
        %2325 = vmatpush1.xpose.msra.mxu0 0.0
        %2326 = vmatprep.subr.mxu0 0.0
        %2327 = vmatpush1.xpose.msra.mxu0 0.0
        %2328 = vmatprep.subr.mxu0 0.0
        %2329 = vmatpush1.xpose.msra.mxu0 0.0
        %2330 = vmatprep.subr.mxu0 0.0
        %2331 = vmatpush1.xpose.msra.mxu0 0.0
        %2332 = vmatprep.subr.mxu0 0.0
        %2333 = vmatpush1.xpose.msra.mxu0 0.0
        %2334 = vmatprep.mubr.f32.mxu0 0.0
        %v2335 = vand.u32 %v2165, 4294901760
        %2336 = vmatmul.mubr.f32.gmra.mrb[0].mxu0 %v2335
        %v2337 = vpop.f32.mrb[0].mxu0
        %v2338 = vadd.f32 %v2247, %v2337
        %v2339 = vpop.f32.mrb[0].mxu0
        %2340 = vmatprep.mubr.f32.mxu0 0.0
        %v2341 = vand.u32 %v2167, 4294901760
        %2342 = vmatmul.mubr.f32.gmra.mrb[0].mxu0 %v2341
        %v2343 = vpop.f32.mrb[0].mxu0
        %v2344 = vadd.f32 %v2257, %v2343
        %v2345 = vpop.f32.mrb[0].mxu0
        %2346 = vdwg.mxu0
        %2347 = vmatprep.subr.mxu0 0.0
        %v2348 = vand.u32 %v2169, 4294901760
        %v2349 = vsub.f32 %v2169, %v2348
        %2350 = vmatpush1.xpose.msra.mxu0 %v2349
        %2351 = vmatprep.subr.mxu0 0.0
        %v2352 = vand.u32 %v2171, 4294901760
        %v2353 = vsub.f32 %v2171, %v2352
        %2354 = vmatpush1.xpose.msra.mxu0 %v2353
        %2355 = vmatprep.subr.mxu0 0.0
        %2356 = vmatpush1.xpose.msra.mxu0 0.0
        %2357 = vmatprep.subr.mxu0 0.0
        %2358 = vmatpush1.xpose.msra.mxu0 0.0
        %2359 = vmatprep.subr.mxu0 0.0
        %2360 = vmatpush1.xpose.msra.mxu0 0.0
        %2361 = vmatprep.subr.mxu0 0.0
        %2362 = vmatpush1.xpose.msra.mxu0 0.0
        %2363 = vmatprep.subr.mxu0 0.0
        %2364 = vmatpush1.xpose.msra.mxu0 0.0
        %2365 = vmatprep.subr.mxu0 0.0
        %2366 = vmatpush1.xpose.msra.mxu0 0.0
        %2367 = vmatprep.subr.mxu0 0.0
        %2368 = vmatpush1.xpose.msra.mxu0 0.0
        %2369 = vmatprep.subr.mxu0 0.0
        %2370 = vmatpush1.xpose.msra.mxu0 0.0
        %2371 = vmatprep.subr.mxu0 0.0
        %2372 = vmatpush1.xpose.msra.mxu0 0.0
        %2373 = vmatprep.subr.mxu0 0.0
        %2374 = vmatpush1.xpose.msra.mxu0 0.0
        %2375 = vmatprep.subr.mxu0 0.0
        %2376 = vmatpush1.xpose.msra.mxu0 0.0
        %2377 = vmatprep.subr.mxu0 0.0
        %2378 = vmatpush1.xpose.msra.mxu0 0.0
        %2379 = vmatprep.subr.mxu0 0.0
        %2380 = vmatpush1.xpose.msra.mxu0 0.0
        %2381 = vmatprep.subr.mxu0 0.0
        %2382 = vmatpush1.xpose.msra.mxu0 0.0
        %2383 = vmatprep.subr.mxu0 0.0
        %2384 = vmatpush1.xpose.msra.mxu0 0.0
        %2385 = vmatprep.subr.mxu0 0.0
        %2386 = vmatpush1.xpose.msra.mxu0 0.0
        %2387 = vmatprep.subr.mxu0 0.0
        %2388 = vmatpush1.xpose.msra.mxu0 0.0
        %2389 = vmatprep.subr.mxu0 0.0
        %2390 = vmatpush1.xpose.msra.mxu0 0.0
        %2391 = vmatprep.subr.mxu0 0.0
        %2392 = vmatpush1.xpose.msra.mxu0 0.0
        %2393 = vmatprep.subr.mxu0 0.0
        %2394 = vmatpush1.xpose.msra.mxu0 0.0
        %2395 = vmatprep.subr.mxu0 0.0
        %2396 = vmatpush1.xpose.msra.mxu0 0.0
        %2397 = vmatprep.subr.mxu0 0.0
        %2398 = vmatpush1.xpose.msra.mxu0 0.0
        %2399 = vmatprep.subr.mxu0 0.0
        %2400 = vmatpush1.xpose.msra.mxu0 0.0
        %2401 = vmatprep.subr.mxu0 0.0
        %2402 = vmatpush1.xpose.msra.mxu0 0.0
        %2403 = vmatprep.subr.mxu0 0.0
        %2404 = vmatpush1.xpose.msra.mxu0 0.0
        %2405 = vmatprep.subr.mxu0 0.0
        %2406 = vmatpush1.xpose.msra.mxu0 0.0
        %2407 = vmatprep.subr.mxu0 0.0
        %2408 = vmatpush1.xpose.msra.mxu0 0.0
        %2409 = vmatprep.subr.mxu0 0.0
        %2410 = vmatpush1.xpose.msra.mxu0 0.0
        %2411 = vmatprep.subr.mxu0 0.0
        %2412 = vmatpush1.xpose.msra.mxu0 0.0
        %2413 = vmatprep.subr.mxu0 0.0
        %2414 = vmatpush1.xpose.msra.mxu0 0.0
        %2415 = vmatprep.mubr.f32.mxu0 0.0
        %v2416 = vand.u32 %v2165, 4294901760
        %v2417 = vsub.f32 %v2165, %v2416
        %2418 = vmatmul.mubr.f32.gmra.mrb[0].mxu0 %v2417
        %v2419 = vpop.f32.mrb[0].mxu0
        %v2420 = vadd.f32 %v2338, %v2419
        %v2421 = vpop.f32.mrb[0].mxu0
        %2422 = vmatprep.mubr.f32.mxu0 0.0
        %v2423 = vand.u32 %v2167, 4294901760
        %v2424 = vsub.f32 %v2167, %v2423
        %2425 = vmatmul.mubr.f32.gmra.mrb[0].mxu0 %v2424
        %v2426 = vpop.f32.mrb[0].mxu0
        %v2427 = vadd.f32 %v2344, %v2426
        %v2428 = vpop.f32.mrb[0].mxu0
        %2429 = vdwg.mxu0
        %2430 = vmatprep.subr.mxu0 0.0
        %v2431 = vand.u32 %v2169, 4294901760
        %2432 = vmatpush1.xpose.msra.mxu0 %v2431
        %2433 = vmatprep.subr.mxu0 0.0
        %v2434 = vand.u32 %v2171, 4294901760
        %2435 = vmatpush1.xpose.msra.mxu0 %v2434
        %2436 = vmatprep.subr.mxu0 0.0
        %2437 = vmatpush1.xpose.msra.mxu0 0.0
        %2438 = vmatprep.subr.mxu0 0.0
        %2439 = vmatpush1.xpose.msra.mxu0 0.0
        %2440 = vmatprep.subr.mxu0 0.0
        %2441 = vmatpush1.xpose.msra.mxu0 0.0
        %2442 = vmatprep.subr.mxu0 0.0
        %2443 = vmatpush1.xpose.msra.mxu0 0.0
        %2444 = vmatprep.subr.mxu0 0.0
        %2445 = vmatpush1.xpose.msra.mxu0 0.0
        %2446 = vmatprep.subr.mxu0 0.0
        %2447 = vmatpush1.xpose.msra.mxu0 0.0
        %2448 = vmatprep.subr.mxu0 0.0
        %2449 = vmatpush1.xpose.msra.mxu0 0.0
        %2450 = vmatprep.subr.mxu0 0.0
        %2451 = vmatpush1.xpose.msra.mxu0 0.0
        %2452 = vmatprep.subr.mxu0 0.0
        %2453 = vmatpush1.xpose.msra.mxu0 0.0
        %2454 = vmatprep.subr.mxu0 0.0
        %2455 = vmatpush1.xpose.msra.mxu0 0.0
        %2456 = vmatprep.subr.mxu0 0.0
        %2457 = vmatpush1.xpose.msra.mxu0 0.0
        %2458 = vmatprep.subr.mxu0 0.0
        %2459 = vmatpush1.xpose.msra.mxu0 0.0
        %2460 = vmatprep.subr.mxu0 0.0
        %2461 = vmatpush1.xpose.msra.mxu0 0.0
        %2462 = vmatprep.subr.mxu0 0.0
        %2463 = vmatpush1.xpose.msra.mxu0 0.0
        %2464 = vmatprep.subr.mxu0 0.0
        %2465 = vmatpush1.xpose.msra.mxu0 0.0
        %2466 = vmatprep.subr.mxu0 0.0
        %2467 = vmatpush1.xpose.msra.mxu0 0.0
        %2468 = vmatprep.subr.mxu0 0.0
        %2469 = vmatpush1.xpose.msra.mxu0 0.0
        %2470 = vmatprep.subr.mxu0 0.0
        %2471 = vmatpush1.xpose.msra.mxu0 0.0
        %2472 = vmatprep.subr.mxu0 0.0
        %2473 = vmatpush1.xpose.msra.mxu0 0.0
        %2474 = vmatprep.subr.mxu0 0.0
        %2475 = vmatpush1.xpose.msra.mxu0 0.0
        %2476 = vmatprep.subr.mxu0 0.0
        %2477 = vmatpush1.xpose.msra.mxu0 0.0
        %2478 = vmatprep.subr.mxu0 0.0
        %2479 = vmatpush1.xpose.msra.mxu0 0.0
        %2480 = vmatprep.subr.mxu0 0.0
        %2481 = vmatpush1.xpose.msra.mxu0 0.0
        %2482 = vmatprep.subr.mxu0 0.0
        %2483 = vmatpush1.xpose.msra.mxu0 0.0
        %2484 = vmatprep.subr.mxu0 0.0
        %2485 = vmatpush1.xpose.msra.mxu0 0.0
        %2486 = vmatprep.subr.mxu0 0.0
        %2487 = vmatpush1.xpose.msra.mxu0 0.0
        %2488 = vmatprep.subr.mxu0 0.0
        %2489 = vmatpush1.xpose.msra.mxu0 0.0
        %2490 = vmatprep.subr.mxu0 0.0
        %2491 = vmatpush1.xpose.msra.mxu0 0.0
        %2492 = vmatprep.subr.mxu0 0.0
        %2493 = vmatpush1.xpose.msra.mxu0 0.0
        %2494 = vmatprep.subr.mxu0 0.0
        %2495 = vmatpush1.xpose.msra.mxu0 0.0
        %2496 = vmatprep.mubr.f32.mxu0 0.0
        %v2497 = vand.u32 %v2165, 4294901760
        %v2498 = vsub.f32 %v2165, %v2497
        %v2499 = vand.u32 %v2498, 4294901760
        %2500 = vmatmul.mubr.f32.gmra.mrb[0].mxu0 %v2499
        %v2501 = vpop.f32.mrb[0].mxu0
        %v2502 = vadd.f32 %v2420, %v2501
        %v2503 = vpop.f32.mrb[0].mxu0
        %2504 = vmatprep.mubr.f32.mxu0 0.0
        %v2505 = vand.u32 %v2167, 4294901760
        %v2506 = vsub.f32 %v2167, %v2505
        %v2507 = vand.u32 %v2506, 4294901760
        %2508 = vmatmul.mubr.f32.gmra.mrb[0].mxu0 %v2507
        %v2509 = vpop.f32.mrb[0].mxu0
        %v2510 = vadd.f32 %v2427, %v2509
        %v2511 = vpop.f32.mrb[0].mxu0
        %2512 = vdwg.mxu0
        %2513 = vmatprep.subr.mxu0 0.0
        %v2514 = vand.u32 %v2169, 4294901760
        %v2515 = vsub.f32 %v2169, %v2514
        %v2516 = vand.u32 %v2515, 4294901760
        %2517 = vmatpush1.xpose.msra.mxu0 %v2516
        %2518 = vmatprep.subr.mxu0 0.0
        %v2519 = vand.u32 %v2171, 4294901760
        %v2520 = vsub.f32 %v2171, %v2519
        %v2521 = vand.u32 %v2520, 4294901760
        %2522 = vmatpush1.xpose.msra.mxu0 %v2521
        %2523 = vmatprep.subr.mxu0 0.0
        %2524 = vmatpush1.xpose.msra.mxu0 0.0
        %2525 = vmatprep.subr.mxu0 0.0
        %2526 = vmatpush1.xpose.msra.mxu0 0.0
        %2527 = vmatprep.subr.mxu0 0.0
        %2528 = vmatpush1.xpose.msra.mxu0 0.0
        %2529 = vmatprep.subr.mxu0 0.0
        %2530 = vmatpush1.xpose.msra.mxu0 0.0
        %2531 = vmatprep.subr.mxu0 0.0
        %2532 = vmatpush1.xpose.msra.mxu0 0.0
        %2533 = vmatprep.subr.mxu0 0.0
        %2534 = vmatpush1.xpose.msra.mxu0 0.0
        %2535 = vmatprep.subr.mxu0 0.0
        %2536 = vmatpush1.xpose.msra.mxu0 0.0
        %2537 = vmatprep.subr.mxu0 0.0
        %2538 = vmatpush1.xpose.msra.mxu0 0.0
        %2539 = vmatprep.subr.mxu0 0.0
        %2540 = vmatpush1.xpose.msra.mxu0 0.0
        %2541 = vmatprep.subr.mxu0 0.0
        %2542 = vmatpush1.xpose.msra.mxu0 0.0
        %2543 = vmatprep.subr.mxu0 0.0
        %2544 = vmatpush1.xpose.msra.mxu0 0.0
        %2545 = vmatprep.subr.mxu0 0.0
        %2546 = vmatpush1.xpose.msra.mxu0 0.0
        %2547 = vmatprep.subr.mxu0 0.0
        %2548 = vmatpush1.xpose.msra.mxu0 0.0
        %2549 = vmatprep.subr.mxu0 0.0
        %2550 = vmatpush1.xpose.msra.mxu0 0.0
        %2551 = vmatprep.subr.mxu0 0.0
        %2552 = vmatpush1.xpose.msra.mxu0 0.0
        %2553 = vmatprep.subr.mxu0 0.0
        %2554 = vmatpush1.xpose.msra.mxu0 0.0
        %2555 = vmatprep.subr.mxu0 0.0
        %2556 = vmatpush1.xpose.msra.mxu0 0.0
        %2557 = vmatprep.subr.mxu0 0.0
        %2558 = vmatpush1.xpose.msra.mxu0 0.0
        %2559 = vmatprep.subr.mxu0 0.0
        %2560 = vmatpush1.xpose.msra.mxu0 0.0
        %2561 = vmatprep.subr.mxu0 0.0
        %2562 = vmatpush1.xpose.msra.mxu0 0.0
        %2563 = vmatprep.subr.mxu0 0.0
        %2564 = vmatpush1.xpose.msra.mxu0 0.0
        %2565 = vmatprep.subr.mxu0 0.0
        %2566 = vmatpush1.xpose.msra.mxu0 0.0
        %2567 = vmatprep.subr.mxu0 0.0
        %2568 = vmatpush1.xpose.msra.mxu0 0.0
        %2569 = vmatprep.subr.mxu0 0.0
        %2570 = vmatpush1.xpose.msra.mxu0 0.0
        %2571 = vmatprep.subr.mxu0 0.0
        %2572 = vmatpush1.xpose.msra.mxu0 0.0
        %2573 = vmatprep.subr.mxu0 0.0
        %2574 = vmatpush1.xpose.msra.mxu0 0.0
        %2575 = vmatprep.subr.mxu0 0.0
        %2576 = vmatpush1.xpose.msra.mxu0 0.0
        %2577 = vmatprep.subr.mxu0 0.0
        %2578 = vmatpush1.xpose.msra.mxu0 0.0
        %2579 = vmatprep.subr.mxu0 0.0
        %2580 = vmatpush1.xpose.msra.mxu0 0.0
        %2581 = vmatprep.subr.mxu0 0.0
        %2582 = vmatpush1.xpose.msra.mxu0 0.0
        %2583 = vmatprep.mubr.f32.mxu0 0.0
        %v2584 = vand.u32 %v2165, 4294901760
        %2585 = vmatmul.mubr.f32.gmra.mrb[0].mxu0 %v2584
        %v2586 = vpop.f32.mrb[0].mxu0
        %v2587 = vadd.f32 %v2502, %v2586
        %v2588 = vpop.f32.mrb[0].mxu0
        %2589 = vmatprep.mubr.f32.mxu0 0.0
        %v2590 = vand.u32 %v2167, 4294901760
        %2591 = vmatmul.mubr.f32.gmra.mrb[0].mxu0 %v2590
        %v2592 = vpop.f32.mrb[0].mxu0
        %v2593 = vadd.f32 %v2510, %v2592
        %v2594 = vpop.f32.mrb[0].mxu0
        %2595 = vdwg.mxu0
        %2596 = vmatprep.subr.mxu0 0.0
        %v2597 = vand.u32 %v2169, 4294901760
        %2598 = vmatpush1.xpose.msra.mxu0 %v2597
        %2599 = vmatprep.subr.mxu0 0.0
        %v2600 = vand.u32 %v2171, 4294901760
        %2601 = vmatpush1.xpose.msra.mxu0 %v2600
        %2602 = vmatprep.subr.mxu0 0.0
        %2603 = vmatpush1.xpose.msra.mxu0 0.0
        %2604 = vmatprep.subr.mxu0 0.0
        %2605 = vmatpush1.xpose.msra.mxu0 0.0
        %2606 = vmatprep.subr.mxu0 0.0
        %2607 = vmatpush1.xpose.msra.mxu0 0.0
        %2608 = vmatprep.subr.mxu0 0.0
        %2609 = vmatpush1.xpose.msra.mxu0 0.0
        %2610 = vmatprep.subr.mxu0 0.0
        %2611 = vmatpush1.xpose.msra.mxu0 0.0
        %2612 = vmatprep.subr.mxu0 0.0
        %2613 = vmatpush1.xpose.msra.mxu0 0.0
        %2614 = vmatprep.subr.mxu0 0.0
        %2615 = vmatpush1.xpose.msra.mxu0 0.0
        %2616 = vmatprep.subr.mxu0 0.0
        %2617 = vmatpush1.xpose.msra.mxu0 0.0
        %2618 = vmatprep.subr.mxu0 0.0
        %2619 = vmatpush1.xpose.msra.mxu0 0.0
        %2620 = vmatprep.subr.mxu0 0.0
        %2621 = vmatpush1.xpose.msra.mxu0 0.0
        %2622 = vmatprep.subr.mxu0 0.0
        %2623 = vmatpush1.xpose.msra.mxu0 0.0
        %2624 = vmatprep.subr.mxu0 0.0
        %2625 = vmatpush1.xpose.msra.mxu0 0.0
        %2626 = vmatprep.subr.mxu0 0.0
        %2627 = vmatpush1.xpose.msra.mxu0 0.0
        %2628 = vmatprep.subr.mxu0 0.0
        %2629 = vmatpush1.xpose.msra.mxu0 0.0
        %2630 = vmatprep.subr.mxu0 0.0
        %2631 = vmatpush1.xpose.msra.mxu0 0.0
        %2632 = vmatprep.subr.mxu0 0.0
        %2633 = vmatpush1.xpose.msra.mxu0 0.0
        %2634 = vmatprep.subr.mxu0 0.0
        %2635 = vmatpush1.xpose.msra.mxu0 0.0
        %2636 = vmatprep.subr.mxu0 0.0
        %2637 = vmatpush1.xpose.msra.mxu0 0.0
        %2638 = vmatprep.subr.mxu0 0.0
        %2639 = vmatpush1.xpose.msra.mxu0 0.0
        %2640 = vmatprep.subr.mxu0 0.0
        %2641 = vmatpush1.xpose.msra.mxu0 0.0
        %2642 = vmatprep.subr.mxu0 0.0
        %2643 = vmatpush1.xpose.msra.mxu0 0.0
        %2644 = vmatprep.subr.mxu0 0.0
        %2645 = vmatpush1.xpose.msra.mxu0 0.0
        %2646 = vmatprep.subr.mxu0 0.0
        %2647 = vmatpush1.xpose.msra.mxu0 0.0
        %2648 = vmatprep.subr.mxu0 0.0
        %2649 = vmatpush1.xpose.msra.mxu0 0.0
        %2650 = vmatprep.subr.mxu0 0.0
        %2651 = vmatpush1.xpose.msra.mxu0 0.0
        %2652 = vmatprep.subr.mxu0 0.0
        %2653 = vmatpush1.xpose.msra.mxu0 0.0
        %2654 = vmatprep.subr.mxu0 0.0
        %2655 = vmatpush1.xpose.msra.mxu0 0.0
        %2656 = vmatprep.subr.mxu0 0.0
        %2657 = vmatpush1.xpose.msra.mxu0 0.0
        %2658 = vmatprep.subr.mxu0 0.0
        %2659 = vmatpush1.xpose.msra.mxu0 0.0
        %2660 = vmatprep.subr.mxu0 0.0
        %2661 = vmatpush1.xpose.msra.mxu0 0.0
        %2662 = vmatprep.mubr.f32.mxu0 0.0
        %v2663 = vand.u32 %v2165, 4294901760
        %2664 = vmatmul.mubr.f32.gmra.mrb[0].mxu0 %v2663
        %v2665 = vpop.f32.mrb[0].mxu0
        %v2666 = vadd.f32 %v2587, %v2665
        %v2667 = vpop.f32.mrb[0].mxu0
        %2668 = vmatprep.mubr.f32.mxu0 0.0
        %v2669 = vand.u32 %v2167, 4294901760
        %2670 = vmatmul.mubr.f32.gmra.mrb[0].mxu0 %v2669
        %v2671 = vpop.f32.mrb[0].mxu0
        %v2672 = vadd.f32 %v2593, %v2671
        %v2673 = vpop.f32.mrb[0].mxu0
        %2674 = vdwg.mxu0
        %v2675 = vmul.f32 %v2666, 0.35355338
        %v2676 = vmul.f32 %v2672, 0.35355338
        %v2677 = vsel %vm1620, %v2675, -inf
        %2678 = vmax.xlane.f32.xlu0 %v2677
        %v2679 = vpop.xlane.xlu0 %2678
        %v2680 = vsel %vm1620, %v2676, -inf
        %2681 = vmax.xlane.f32.xlu0 %v2680
        %v2682 = vpop.xlane.xlu0 %2681
        %v2683 = vsub.f32 %v2675, %v2679
        %v2684 = vsub.f32 %v2676, %v2682
        %v2685 = vmul.f32 %v2683, 1.442695
        %v2686 = vpow.pop %v2685
        %v2687 = vmul.f32 %v2684, 1.442695
        %v2688 = vpow.pop %v2687
        %v2689 = vsel %vm1620, %v2686, 0.0
        %2690 = vadd.xlane.f32.xlu0 %v2689
        %v2691 = vpop.xlane.xlu0 %2690
        %v2692 = vsel %vm1620, %v2688, 0.0
        %2693 = vadd.xlane.f32.xlu0 %v2692
        %v2694 = vpop.xlane.xlu0 %2693
        %v2695 = vrcp.pop %v2691
        %v2696 = vmul.f32 %v2686, %v2695
        %v2697 = vrcp.pop %v2694
        %v2698 = vmul.f32 %v2688, %v2697
        %2699 = vrot.lane.b32.xlu0 %v1092, 56
        %v2700 = vpop.permute.xlu0 %2699
        %2701 = vrot.lane.b32.xlu0 %v1098, 56
        %v2702 = vpop.permute.xlu0 %2701
        %v2706 = vsel %vm1620, %v2696, 0
        %v2709 = vsel %vm1620, %v2698, 0
        %2711 = vmatprep.subr.mxu0 0.0
        %v2712 = vand.u32 %v2700, 4294901760
        %2713 = vmatpush1.msra.mxu0 %v2712
        %2714 = vmatprep.subr.mxu0 0.0
        %v2715 = vand.u32 %v2702, 4294901760
        %2716 = vmatpush1.msra.mxu0 %v2715
        %2717 = vmatprep.subr.mxu0 0.0
        %2718 = vmatpush1.msra.mxu0 0.0
        %2719 = vmatprep.subr.mxu0 0.0
        %2720 = vmatpush1.msra.mxu0 0.0
        %2721 = vmatprep.subr.mxu0 0.0
        %2722 = vmatpush1.msra.mxu0 0.0
        %2723 = vmatprep.subr.mxu0 0.0
        %2724 = vmatpush1.msra.mxu0 0.0
        %2725 = vmatprep.subr.mxu0 0.0
        %2726 = vmatpush1.msra.mxu0 0.0
        %2727 = vmatprep.subr.mxu0 0.0
        %2728 = vmatpush1.msra.mxu0 0.0
        %2729 = vmatprep.subr.mxu0 0.0
        %2730 = vmatpush1.msra.mxu0 0.0
        %2731 = vmatprep.subr.mxu0 0.0
        %2732 = vmatpush1.msra.mxu0 0.0
        %2733 = vmatprep.subr.mxu0 0.0
        %2734 = vmatpush1.msra.mxu0 0.0
        %2735 = vmatprep.subr.mxu0 0.0
        %2736 = vmatpush1.msra.mxu0 0.0
        %2737 = vmatprep.subr.mxu0 0.0
        %2738 = vmatpush1.msra.mxu0 0.0
        %2739 = vmatprep.subr.mxu0 0.0
        %2740 = vmatpush1.msra.mxu0 0.0
        %2741 = vmatprep.subr.mxu0 0.0
        %2742 = vmatpush1.msra.mxu0 0.0
        %2743 = vmatprep.subr.mxu0 0.0
        %2744 = vmatpush1.msra.mxu0 0.0
        %2745 = vmatprep.subr.mxu0 0.0
        %2746 = vmatpush1.msra.mxu0 0.0
        %2747 = vmatprep.subr.mxu0 0.0
        %2748 = vmatpush1.msra.mxu0 0.0
        %2749 = vmatprep.subr.mxu0 0.0
        %2750 = vmatpush1.msra.mxu0 0.0
        %2751 = vmatprep.subr.mxu0 0.0
        %2752 = vmatpush1.msra.mxu0 0.0
        %2753 = vmatprep.subr.mxu0 0.0
        %2754 = vmatpush1.msra.mxu0 0.0
        %2755 = vmatprep.subr.mxu0 0.0
        %2756 = vmatpush1.msra.mxu0 0.0
        %2757 = vmatprep.subr.mxu0 0.0
        %2758 = vmatpush1.msra.mxu0 0.0
        %2759 = vmatprep.subr.mxu0 0.0
        %2760 = vmatpush1.msra.mxu0 0.0
        %2761 = vmatprep.subr.mxu0 0.0
        %2762 = vmatpush1.msra.mxu0 0.0
        %2763 = vmatprep.subr.mxu0 0.0
        %2764 = vmatpush1.msra.mxu0 0.0
        %2765 = vmatprep.subr.mxu0 0.0
        %2766 = vmatpush1.msra.mxu0 0.0
        %2767 = vmatprep.subr.mxu0 0.0
        %2768 = vmatpush1.msra.mxu0 0.0
        %2769 = vmatprep.subr.mxu0 0.0
        %2770 = vmatpush1.msra.mxu0 0.0
        %2771 = vmatprep.subr.mxu0 0.0
        %2772 = vmatpush1.msra.mxu0 0.0
        %2773 = vmatprep.subr.mxu0 0.0
        %2774 = vmatpush1.msra.mxu0 0.0
        %2775 = vmatprep.subr.mxu0 0.0
        %2776 = vmatpush1.msra.mxu0 0.0
        %2777 = vmatprep.mubr.f32.mxu0 0.0
        %v2778 = vand.u32 %v2706, 4294901760
        %v2779 = vsub.f32 %v2706, %v2778
        %v2780 = vand.u32 %v2779, 4294901760
        %v2781 = vsub.f32 %v2779, %v2780
        %v2782 = vand.u32 %v2781, 4294901760
        %2783 = vmatmul.mubr.f32.gmra.mrb[0].mxu0 %v2782
        %v2784 = vpop.f32.mrb[0].mxu0
        %v2785 = vadd.f32 0.0, %v2784
        %v2786 = vpop.f32.mrb[0].mxu0
        %2787 = vmatprep.mubr.f32.mxu0 0.0
        %v2788 = vand.u32 %v2709, 4294901760
        %v2789 = vsub.f32 %v2709, %v2788
        %v2790 = vand.u32 %v2789, 4294901760
        %v2791 = vsub.f32 %v2789, %v2790
        %v2792 = vand.u32 %v2791, 4294901760
        %2793 = vmatmul.mubr.f32.gmra.mrb[0].mxu0 %v2792
        %v2794 = vpop.f32.mrb[0].mxu0
        %v2795 = vadd.f32 0.0, %v2794
        %v2796 = vpop.f32.mrb[0].mxu0
        %2797 = vdwg.mxu0
        %2798 = vmatprep.subr.mxu0 0.0
        %v2799 = vand.u32 %v2700, 4294901760
        %v2800 = vsub.f32 %v2700, %v2799
        %v2801 = vand.u32 %v2800, 4294901760
        %v2802 = vsub.f32 %v2800, %v2801
        %v2803 = vand.u32 %v2802, 4294901760
        %2804 = vmatpush1.msra.mxu0 %v2803
        %2805 = vmatprep.subr.mxu0 0.0
        %v2806 = vand.u32 %v2702, 4294901760
        %v2807 = vsub.f32 %v2702, %v2806
        %v2808 = vand.u32 %v2807, 4294901760
        %v2809 = vsub.f32 %v2807, %v2808
        %v2810 = vand.u32 %v2809, 4294901760
        %2811 = vmatpush1.msra.mxu0 %v2810
        %2812 = vmatprep.subr.mxu0 0.0
        %2813 = vmatpush1.msra.mxu0 0.0
        %2814 = vmatprep.subr.mxu0 0.0
        %2815 = vmatpush1.msra.mxu0 0.0
        %2816 = vmatprep.subr.mxu0 0.0
        %2817 = vmatpush1.msra.mxu0 0.0
        %2818 = vmatprep.subr.mxu0 0.0
        %2819 = vmatpush1.msra.mxu0 0.0
        %2820 = vmatprep.subr.mxu0 0.0
        %2821 = vmatpush1.msra.mxu0 0.0
        %2822 = vmatprep.subr.mxu0 0.0
        %2823 = vmatpush1.msra.mxu0 0.0
        %2824 = vmatprep.subr.mxu0 0.0
        %2825 = vmatpush1.msra.mxu0 0.0
        %2826 = vmatprep.subr.mxu0 0.0
        %2827 = vmatpush1.msra.mxu0 0.0
        %2828 = vmatprep.subr.mxu0 0.0
        %2829 = vmatpush1.msra.mxu0 0.0
        %2830 = vmatprep.subr.mxu0 0.0
        %2831 = vmatpush1.msra.mxu0 0.0
        %2832 = vmatprep.subr.mxu0 0.0
        %2833 = vmatpush1.msra.mxu0 0.0
        %2834 = vmatprep.subr.mxu0 0.0
        %2835 = vmatpush1.msra.mxu0 0.0
        %2836 = vmatprep.subr.mxu0 0.0
        %2837 = vmatpush1.msra.mxu0 0.0
        %2838 = vmatprep.subr.mxu0 0.0
        %2839 = vmatpush1.msra.mxu0 0.0
        %2840 = vmatprep.subr.mxu0 0.0
        %2841 = vmatpush1.msra.mxu0 0.0
        %2842 = vmatprep.subr.mxu0 0.0
        %2843 = vmatpush1.msra.mxu0 0.0
        %2844 = vmatprep.subr.mxu0 0.0
        %2845 = vmatpush1.msra.mxu0 0.0
        %2846 = vmatprep.subr.mxu0 0.0
        %2847 = vmatpush1.msra.mxu0 0.0
        %2848 = vmatprep.subr.mxu0 0.0
        %2849 = vmatpush1.msra.mxu0 0.0
        %2850 = vmatprep.subr.mxu0 0.0
        %2851 = vmatpush1.msra.mxu0 0.0
        %2852 = vmatprep.subr.mxu0 0.0
        %2853 = vmatpush1.msra.mxu0 0.0
        %2854 = vmatprep.subr.mxu0 0.0
        %2855 = vmatpush1.msra.mxu0 0.0
        %2856 = vmatprep.subr.mxu0 0.0
        %2857 = vmatpush1.msra.mxu0 0.0
        %2858 = vmatprep.subr.mxu0 0.0
        %2859 = vmatpush1.msra.mxu0 0.0
        %2860 = vmatprep.subr.mxu0 0.0
        %2861 = vmatpush1.msra.mxu0 0.0
        %2862 = vmatprep.subr.mxu0 0.0
        %2863 = vmatpush1.msra.mxu0 0.0
        %2864 = vmatprep.subr.mxu0 0.0
        %2865 = vmatpush1.msra.mxu0 0.0
        %2866 = vmatprep.subr.mxu0 0.0
        %2867 = vmatpush1.msra.mxu0 0.0
        %2868 = vmatprep.subr.mxu0 0.0
        %2869 = vmatpush1.msra.mxu0 0.0
        %2870 = vmatprep.subr.mxu0 0.0
        %2871 = vmatpush1.msra.mxu0 0.0
        %2872 = vmatprep.mubr.f32.mxu0 0.0
        %v2873 = vand.u32 %v2706, 4294901760
        %2874 = vmatmul.mubr.f32.gmra.mrb[0].mxu0 %v2873
        %v2875 = vpop.f32.mrb[0].mxu0
        %v2876 = vadd.f32 %v2785, %v2875
        %v2877 = vpop.f32.mrb[0].mxu0
        %2878 = vmatprep.mubr.f32.mxu0 0.0
        %v2879 = vand.u32 %v2709, 4294901760
        %2880 = vmatmul.mubr.f32.gmra.mrb[0].mxu0 %v2879
        %v2881 = vpop.f32.mrb[0].mxu0
        %v2882 = vadd.f32 %v2795, %v2881
        %v2883 = vpop.f32.mrb[0].mxu0
        %2884 = vdwg.mxu0
        %2885 = vmatprep.subr.mxu0 0.0
        %v2886 = vand.u32 %v2700, 4294901760
        %v2887 = vsub.f32 %v2700, %v2886
        %2888 = vmatpush1.msra.mxu0 %v2887
        %2889 = vmatprep.subr.mxu0 0.0
        %v2890 = vand.u32 %v2702, 4294901760
        %v2891 = vsub.f32 %v2702, %v2890
        %2892 = vmatpush1.msra.mxu0 %v2891
        %2893 = vmatprep.subr.mxu0 0.0
        %2894 = vmatpush1.msra.mxu0 0.0
        %2895 = vmatprep.subr.mxu0 0.0
        %2896 = vmatpush1.msra.mxu0 0.0
        %2897 = vmatprep.subr.mxu0 0.0
        %2898 = vmatpush1.msra.mxu0 0.0
        %2899 = vmatprep.subr.mxu0 0.0
        %2900 = vmatpush1.msra.mxu0 0.0
        %2901 = vmatprep.subr.mxu0 0.0
        %2902 = vmatpush1.msra.mxu0 0.0
        %2903 = vmatprep.subr.mxu0 0.0
        %2904 = vmatpush1.msra.mxu0 0.0
        %2905 = vmatprep.subr.mxu0 0.0
        %2906 = vmatpush1.msra.mxu0 0.0
        %2907 = vmatprep.subr.mxu0 0.0
        %2908 = vmatpush1.msra.mxu0 0.0
        %2909 = vmatprep.subr.mxu0 0.0
        %2910 = vmatpush1.msra.mxu0 0.0
        %2911 = vmatprep.subr.mxu0 0.0
        %2912 = vmatpush1.msra.mxu0 0.0
        %2913 = vmatprep.subr.mxu0 0.0
        %2914 = vmatpush1.msra.mxu0 0.0
        %2915 = vmatprep.subr.mxu0 0.0
        %2916 = vmatpush1.msra.mxu0 0.0
        %2917 = vmatprep.subr.mxu0 0.0
        %2918 = vmatpush1.msra.mxu0 0.0
        %2919 = vmatprep.subr.mxu0 0.0
        %2920 = vmatpush1.msra.mxu0 0.0
        %2921 = vmatprep.subr.mxu0 0.0
        %2922 = vmatpush1.msra.mxu0 0.0
        %2923 = vmatprep.subr.mxu0 0.0
        %2924 = vmatpush1.msra.mxu0 0.0
        %2925 = vmatprep.subr.mxu0 0.0
        %2926 = vmatpush1.msra.mxu0 0.0
        %2927 = vmatprep.subr.mxu0 0.0
        %2928 = vmatpush1.msra.mxu0 0.0
        %2929 = vmatprep.subr.mxu0 0.0
        %2930 = vmatpush1.msra.mxu0 0.0
        %2931 = vmatprep.subr.mxu0 0.0
        %2932 = vmatpush1.msra.mxu0 0.0
        %2933 = vmatprep.subr.mxu0 0.0
        %2934 = vmatpush1.msra.mxu0 0.0
        %2935 = vmatprep.subr.mxu0 0.0
        %2936 = vmatpush1.msra.mxu0 0.0
        %2937 = vmatprep.subr.mxu0 0.0
        %2938 = vmatpush1.msra.mxu0 0.0
        %2939 = vmatprep.subr.mxu0 0.0
        %2940 = vmatpush1.msra.mxu0 0.0
        %2941 = vmatprep.subr.mxu0 0.0
        %2942 = vmatpush1.msra.mxu0 0.0
        %2943 = vmatprep.subr.mxu0 0.0
        %2944 = vmatpush1.msra.mxu0 0.0
        %2945 = vmatprep.subr.mxu0 0.0
        %2946 = vmatpush1.msra.mxu0 0.0
        %2947 = vmatprep.subr.mxu0 0.0
        %2948 = vmatpush1.msra.mxu0 0.0
        %2949 = vmatprep.subr.mxu0 0.0
        %2950 = vmatpush1.msra.mxu0 0.0
        %2951 = vmatprep.subr.mxu0 0.0
        %2952 = vmatpush1.msra.mxu0 0.0
        %2953 = vmatprep.mubr.f32.mxu0 0.0
        %v2954 = vand.u32 %v2706, 4294901760
        %v2955 = vsub.f32 %v2706, %v2954
        %2956 = vmatmul.mubr.f32.gmra.mrb[0].mxu0 %v2955
        %v2957 = vpop.f32.mrb[0].mxu0
        %v2958 = vadd.f32 %v2876, %v2957
        %v2959 = vpop.f32.mrb[0].mxu0
        %2960 = vmatprep.mubr.f32.mxu0 0.0
        %v2961 = vand.u32 %v2709, 4294901760
        %v2962 = vsub.f32 %v2709, %v2961
        %2963 = vmatmul.mubr.f32.gmra.mrb[0].mxu0 %v2962
        %v2964 = vpop.f32.mrb[0].mxu0
        %v2965 = vadd.f32 %v2882, %v2964
        %v2966 = vpop.f32.mrb[0].mxu0
        %2967 = vdwg.mxu0
        %2968 = vmatprep.subr.mxu0 0.0
        %v2969 = vand.u32 %v2700, 4294901760
        %2970 = vmatpush1.msra.mxu0 %v2969
        %2971 = vmatprep.subr.mxu0 0.0
        %v2972 = vand.u32 %v2702, 4294901760
        %2973 = vmatpush1.msra.mxu0 %v2972
        %2974 = vmatprep.subr.mxu0 0.0
        %2975 = vmatpush1.msra.mxu0 0.0
        %2976 = vmatprep.subr.mxu0 0.0
        %2977 = vmatpush1.msra.mxu0 0.0
        %2978 = vmatprep.subr.mxu0 0.0
        %2979 = vmatpush1.msra.mxu0 0.0
        %2980 = vmatprep.subr.mxu0 0.0
        %2981 = vmatpush1.msra.mxu0 0.0
        %2982 = vmatprep.subr.mxu0 0.0
        %2983 = vmatpush1.msra.mxu0 0.0
        %2984 = vmatprep.subr.mxu0 0.0
        %2985 = vmatpush1.msra.mxu0 0.0
        %2986 = vmatprep.subr.mxu0 0.0
        %2987 = vmatpush1.msra.mxu0 0.0
        %2988 = vmatprep.subr.mxu0 0.0
        %2989 = vmatpush1.msra.mxu0 0.0
        %2990 = vmatprep.subr.mxu0 0.0
        %2991 = vmatpush1.msra.mxu0 0.0
        %2992 = vmatprep.subr.mxu0 0.0
        %2993 = vmatpush1.msra.mxu0 0.0
        %2994 = vmatprep.subr.mxu0 0.0
        %2995 = vmatpush1.msra.mxu0 0.0
        %2996 = vmatprep.subr.mxu0 0.0
        %2997 = vmatpush1.msra.mxu0 0.0
        %2998 = vmatprep.subr.mxu0 0.0
        %2999 = vmatpush1.msra.mxu0 0.0
        %3000 = vmatprep.subr.mxu0 0.0
        %3001 = vmatpush1.msra.mxu0 0.0
        %3002 = vmatprep.subr.mxu0 0.0
        %3003 = vmatpush1.msra.mxu0 0.0
        %3004 = vmatprep.subr.mxu0 0.0
        %3005 = vmatpush1.msra.mxu0 0.0
        %3006 = vmatprep.subr.mxu0 0.0
        %3007 = vmatpush1.msra.mxu0 0.0
        %3008 = vmatprep.subr.mxu0 0.0
        %3009 = vmatpush1.msra.mxu0 0.0
        %3010 = vmatprep.subr.mxu0 0.0
        %3011 = vmatpush1.msra.mxu0 0.0
        %3012 = vmatprep.subr.mxu0 0.0
        %3013 = vmatpush1.msra.mxu0 0.0
        %3014 = vmatprep.subr.mxu0 0.0
        %3015 = vmatpush1.msra.mxu0 0.0
        %3016 = vmatprep.subr.mxu0 0.0
        %3017 = vmatpush1.msra.mxu0 0.0
        %3018 = vmatprep.subr.mxu0 0.0
        %3019 = vmatpush1.msra.mxu0 0.0
        %3020 = vmatprep.subr.mxu0 0.0
        %3021 = vmatpush1.msra.mxu0 0.0
        %3022 = vmatprep.subr.mxu0 0.0
        %3023 = vmatpush1.msra.mxu0 0.0
        %3024 = vmatprep.subr.mxu0 0.0
        %3025 = vmatpush1.msra.mxu0 0.0
        %3026 = vmatprep.subr.mxu0 0.0
        %3027 = vmatpush1.msra.mxu0 0.0
        %3028 = vmatprep.subr.mxu0 0.0
        %3029 = vmatpush1.msra.mxu0 0.0
        %3030 = vmatprep.subr.mxu0 0.0
        %3031 = vmatpush1.msra.mxu0 0.0
        %3032 = vmatprep.subr.mxu0 0.0
        %3033 = vmatpush1.msra.mxu0 0.0
        %3034 = vmatprep.mubr.f32.mxu0 0.0
        %v3035 = vand.u32 %v2706, 4294901760
        %v3036 = vsub.f32 %v2706, %v3035
        %v3037 = vand.u32 %v3036, 4294901760
        %3038 = vmatmul.mubr.f32.gmra.mrb[0].mxu0 %v3037
        %v3039 = vpop.f32.mrb[0].mxu0
        %v3040 = vadd.f32 %v2958, %v3039
        %v3041 = vpop.f32.mrb[0].mxu0
        %3042 = vmatprep.mubr.f32.mxu0 0.0
        %v3043 = vand.u32 %v2709, 4294901760
        %v3044 = vsub.f32 %v2709, %v3043
        %v3045 = vand.u32 %v3044, 4294901760
        %3046 = vmatmul.mubr.f32.gmra.mrb[0].mxu0 %v3045
        %v3047 = vpop.f32.mrb[0].mxu0
        %v3048 = vadd.f32 %v2965, %v3047
        %v3049 = vpop.f32.mrb[0].mxu0
        %3050 = vdwg.mxu0
        %3051 = vmatprep.subr.mxu0 0.0
        %v3052 = vand.u32 %v2700, 4294901760
        %v3053 = vsub.f32 %v2700, %v3052
        %v3054 = vand.u32 %v3053, 4294901760
        %3055 = vmatpush1.msra.mxu0 %v3054
        %3056 = vmatprep.subr.mxu0 0.0
        %v3057 = vand.u32 %v2702, 4294901760
        %v3058 = vsub.f32 %v2702, %v3057
        %v3059 = vand.u32 %v3058, 4294901760
        %3060 = vmatpush1.msra.mxu0 %v3059
        %3061 = vmatprep.subr.mxu0 0.0
        %3062 = vmatpush1.msra.mxu0 0.0
        %3063 = vmatprep.subr.mxu0 0.0
        %3064 = vmatpush1.msra.mxu0 0.0
        %3065 = vmatprep.subr.mxu0 0.0
        %3066 = vmatpush1.msra.mxu0 0.0
        %3067 = vmatprep.subr.mxu0 0.0
        %3068 = vmatpush1.msra.mxu0 0.0
        %3069 = vmatprep.subr.mxu0 0.0
        %3070 = vmatpush1.msra.mxu0 0.0
        %3071 = vmatprep.subr.mxu0 0.0
        %3072 = vmatpush1.msra.mxu0 0.0
        %3073 = vmatprep.subr.mxu0 0.0
        %3074 = vmatpush1.msra.mxu0 0.0
        %3075 = vmatprep.subr.mxu0 0.0
        %3076 = vmatpush1.msra.mxu0 0.0
        %3077 = vmatprep.subr.mxu0 0.0
        %3078 = vmatpush1.msra.mxu0 0.0
        %3079 = vmatprep.subr.mxu0 0.0
        %3080 = vmatpush1.msra.mxu0 0.0
        %3081 = vmatprep.subr.mxu0 0.0
        %3082 = vmatpush1.msra.mxu0 0.0
        %3083 = vmatprep.subr.mxu0 0.0
        %3084 = vmatpush1.msra.mxu0 0.0
        %3085 = vmatprep.subr.mxu0 0.0
        %3086 = vmatpush1.msra.mxu0 0.0
        %3087 = vmatprep.subr.mxu0 0.0
        %3088 = vmatpush1.msra.mxu0 0.0
        %3089 = vmatprep.subr.mxu0 0.0
        %3090 = vmatpush1.msra.mxu0 0.0
        %3091 = vmatprep.subr.mxu0 0.0
        %3092 = vmatpush1.msra.mxu0 0.0
        %3093 = vmatprep.subr.mxu0 0.0
        %3094 = vmatpush1.msra.mxu0 0.0
        %3095 = vmatprep.subr.mxu0 0.0
        %3096 = vmatpush1.msra.mxu0 0.0
        %3097 = vmatprep.subr.mxu0 0.0
        %3098 = vmatpush1.msra.mxu0 0.0
        %3099 = vmatprep.subr.mxu0 0.0
        %3100 = vmatpush1.msra.mxu0 0.0
        %3101 = vmatprep.subr.mxu0 0.0
        %3102 = vmatpush1.msra.mxu0 0.0
        %3103 = vmatprep.subr.mxu0 0.0
        %3104 = vmatpush1.msra.mxu0 0.0
        %3105 = vmatprep.subr.mxu0 0.0
        %3106 = vmatpush1.msra.mxu0 0.0
        %3107 = vmatprep.subr.mxu0 0.0
        %3108 = vmatpush1.msra.mxu0 0.0
        %3109 = vmatprep.subr.mxu0 0.0
        %3110 = vmatpush1.msra.mxu0 0.0
        %3111 = vmatprep.subr.mxu0 0.0
        %3112 = vmatpush1.msra.mxu0 0.0
        %3113 = vmatprep.subr.mxu0 0.0
        %3114 = vmatpush1.msra.mxu0 0.0
        %3115 = vmatprep.subr.mxu0 0.0
        %3116 = vmatpush1.msra.mxu0 0.0
        %3117 = vmatprep.subr.mxu0 0.0
        %3118 = vmatpush1.msra.mxu0 0.0
        %3119 = vmatprep.subr.mxu0 0.0
        %3120 = vmatpush1.msra.mxu0 0.0
        %3121 = vmatprep.mubr.f32.mxu0 0.0
        %v3122 = vand.u32 %v2706, 4294901760
        %3123 = vmatmul.mubr.f32.gmra.mrb[0].mxu0 %v3122
        %v3124 = vpop.f32.mrb[0].mxu0
        %v3125 = vadd.f32 %v3040, %v3124
        %v3126 = vpop.f32.mrb[0].mxu0
        %3127 = vmatprep.mubr.f32.mxu0 0.0
        %v3128 = vand.u32 %v2709, 4294901760
        %3129 = vmatmul.mubr.f32.gmra.mrb[0].mxu0 %v3128
        %v3130 = vpop.f32.mrb[0].mxu0
        %v3131 = vadd.f32 %v3048, %v3130
        %v3132 = vpop.f32.mrb[0].mxu0
        %3133 = vdwg.mxu0
        %3134 = vmatprep.subr.mxu0 0.0
        %v3135 = vand.u32 %v2700, 4294901760
        %3136 = vmatpush1.msra.mxu0 %v3135
        %3137 = vmatprep.subr.mxu0 0.0
        %v3138 = vand.u32 %v2702, 4294901760
        %3139 = vmatpush1.msra.mxu0 %v3138
        %3140 = vmatprep.subr.mxu0 0.0
        %3141 = vmatpush1.msra.mxu0 0.0
        %3142 = vmatprep.subr.mxu0 0.0
        %3143 = vmatpush1.msra.mxu0 0.0
        %3144 = vmatprep.subr.mxu0 0.0
        %3145 = vmatpush1.msra.mxu0 0.0
        %3146 = vmatprep.subr.mxu0 0.0
        %3147 = vmatpush1.msra.mxu0 0.0
        %3148 = vmatprep.subr.mxu0 0.0
        %3149 = vmatpush1.msra.mxu0 0.0
        %3150 = vmatprep.subr.mxu0 0.0
        %3151 = vmatpush1.msra.mxu0 0.0
        %3152 = vmatprep.subr.mxu0 0.0
        %3153 = vmatpush1.msra.mxu0 0.0
        %3154 = vmatprep.subr.mxu0 0.0
        %3155 = vmatpush1.msra.mxu0 0.0
        %3156 = vmatprep.subr.mxu0 0.0
        %3157 = vmatpush1.msra.mxu0 0.0
        %3158 = vmatprep.subr.mxu0 0.0
        %3159 = vmatpush1.msra.mxu0 0.0
        %3160 = vmatprep.subr.mxu0 0.0
        %3161 = vmatpush1.msra.mxu0 0.0
        %3162 = vmatprep.subr.mxu0 0.0
        %3163 = vmatpush1.msra.mxu0 0.0
        %3164 = vmatprep.subr.mxu0 0.0
        %3165 = vmatpush1.msra.mxu0 0.0
        %3166 = vmatprep.subr.mxu0 0.0
        %3167 = vmatpush1.msra.mxu0 0.0
        %3168 = vmatprep.subr.mxu0 0.0
        %3169 = vmatpush1.msra.mxu0 0.0
        %3170 = vmatprep.subr.mxu0 0.0
        %3171 = vmatpush1.msra.mxu0 0.0
        %3172 = vmatprep.subr.mxu0 0.0
        %3173 = vmatpush1.msra.mxu0 0.0
        %3174 = vmatprep.subr.mxu0 0.0
        %3175 = vmatpush1.msra.mxu0 0.0
        %3176 = vmatprep.subr.mxu0 0.0
        %3177 = vmatpush1.msra.mxu0 0.0
        %3178 = vmatprep.subr.mxu0 0.0
        %3179 = vmatpush1.msra.mxu0 0.0
        %3180 = vmatprep.subr.mxu0 0.0
        %3181 = vmatpush1.msra.mxu0 0.0
        %3182 = vmatprep.subr.mxu0 0.0
        %3183 = vmatpush1.msra.mxu0 0.0
        %3184 = vmatprep.subr.mxu0 0.0
        %3185 = vmatpush1.msra.mxu0 0.0
        %3186 = vmatprep.subr.mxu0 0.0
        %3187 = vmatpush1.msra.mxu0 0.0
        %3188 = vmatprep.subr.mxu0 0.0
        %3189 = vmatpush1.msra.mxu0 0.0
        %3190 = vmatprep.subr.mxu0 0.0
        %3191 = vmatpush1.msra.mxu0 0.0
        %3192 = vmatprep.subr.mxu0 0.0
        %3193 = vmatpush1.msra.mxu0 0.0
        %3194 = vmatprep.subr.mxu0 0.0
        %3195 = vmatpush1.msra.mxu0 0.0
        %3196 = vmatprep.subr.mxu0 0.0
        %3197 = vmatpush1.msra.mxu0 0.0
        %3198 = vmatprep.subr.mxu0 0.0
        %3199 = vmatpush1.msra.mxu0 0.0
        %3200 = vmatprep.mubr.f32.mxu0 0.0
        %v3201 = vand.u32 %v2706, 4294901760
        %3202 = vmatmul.mubr.f32.gmra.mrb[0].mxu0 %v3201
        %v3203 = vpop.f32.mrb[0].mxu0
        %v3204 = vadd.f32 %v3125, %v3203
        %v3205 = vpop.f32.mrb[0].mxu0
        %3206 = vmatprep.mubr.f32.mxu0 0.0
        %v3207 = vand.u32 %v2709, 4294901760
        %3208 = vmatmul.mubr.f32.gmra.mrb[0].mxu0 %v3207
        %v3209 = vpop.f32.mrb[0].mxu0
        %v3210 = vadd.f32 %v3131, %v3209
        %v3211 = vpop.f32.mrb[0].mxu0
        %3212 = vdwg.mxu0
        %3213 = vrot.lane.b32.xlu0 %v1092, 112
        %v3214 = vpop.permute.xlu0 %3213
        %3215 = vrot.lane.b32.xlu0 %v1098, 112
        %v3216 = vpop.permute.xlu0 %3215
        %3217 = vrot.lane.b32.xlu0 %v1092, 80
        %v3218 = vpop.permute.xlu0 %3217
        %3219 = vrot.lane.b32.xlu0 %v1098, 80
        %v3220 = vpop.permute.xlu0 %3219
        %v3221 = vsel %vm1107, %v3214, 0
        %v3223 = vsel %vm1107, %v3216, 0
        %v3225 = vsel %vm1107, %v3218, 0
        %v3227 = vsel %vm1107, %v3220, 0
        %3229 = vmatprep.subr.mxu0 0.0
        %v3230 = vand.u32 %v3225, 4294901760
        %3231 = vmatpush1.xpose.msra.mxu0 %v3230
        %3232 = vmatprep.subr.mxu0 0.0
        %v3233 = vand.u32 %v3227, 4294901760
        %3234 = vmatpush1.xpose.msra.mxu0 %v3233
        %3235 = vmatprep.subr.mxu0 0.0
        %3236 = vmatpush1.xpose.msra.mxu0 0.0
        %3237 = vmatprep.subr.mxu0 0.0
        %3238 = vmatpush1.xpose.msra.mxu0 0.0
        %3239 = vmatprep.subr.mxu0 0.0
        %3240 = vmatpush1.xpose.msra.mxu0 0.0
        %3241 = vmatprep.subr.mxu0 0.0
        %3242 = vmatpush1.xpose.msra.mxu0 0.0
        %3243 = vmatprep.subr.mxu0 0.0
        %3244 = vmatpush1.xpose.msra.mxu0 0.0
        %3245 = vmatprep.subr.mxu0 0.0
        %3246 = vmatpush1.xpose.msra.mxu0 0.0
        %3247 = vmatprep.subr.mxu0 0.0
        %3248 = vmatpush1.xpose.msra.mxu0 0.0
        %3249 = vmatprep.subr.mxu0 0.0
        %3250 = vmatpush1.xpose.msra.mxu0 0.0
        %3251 = vmatprep.subr.mxu0 0.0
        %3252 = vmatpush1.xpose.msra.mxu0 0.0
        %3253 = vmatprep.subr.mxu0 0.0
        %3254 = vmatpush1.xpose.msra.mxu0 0.0
        %3255 = vmatprep.subr.mxu0 0.0
        %3256 = vmatpush1.xpose.msra.mxu0 0.0
        %3257 = vmatprep.subr.mxu0 0.0
        %3258 = vmatpush1.xpose.msra.mxu0 0.0
        %3259 = vmatprep.subr.mxu0 0.0
        %3260 = vmatpush1.xpose.msra.mxu0 0.0
        %3261 = vmatprep.subr.mxu0 0.0
        %3262 = vmatpush1.xpose.msra.mxu0 0.0
        %3263 = vmatprep.subr.mxu0 0.0
        %3264 = vmatpush1.xpose.msra.mxu0 0.0
        %3265 = vmatprep.subr.mxu0 0.0
        %3266 = vmatpush1.xpose.msra.mxu0 0.0
        %3267 = vmatprep.subr.mxu0 0.0
        %3268 = vmatpush1.xpose.msra.mxu0 0.0
        %3269 = vmatprep.subr.mxu0 0.0
        %3270 = vmatpush1.xpose.msra.mxu0 0.0
        %3271 = vmatprep.subr.mxu0 0.0
        %3272 = vmatpush1.xpose.msra.mxu0 0.0
        %3273 = vmatprep.subr.mxu0 0.0
        %3274 = vmatpush1.xpose.msra.mxu0 0.0
        %3275 = vmatprep.subr.mxu0 0.0
        %3276 = vmatpush1.xpose.msra.mxu0 0.0
        %3277 = vmatprep.subr.mxu0 0.0
        %3278 = vmatpush1.xpose.msra.mxu0 0.0
        %3279 = vmatprep.subr.mxu0 0.0
        %3280 = vmatpush1.xpose.msra.mxu0 0.0
        %3281 = vmatprep.subr.mxu0 0.0
        %3282 = vmatpush1.xpose.msra.mxu0 0.0
        %3283 = vmatprep.subr.mxu0 0.0
        %3284 = vmatpush1.xpose.msra.mxu0 0.0
        %3285 = vmatprep.subr.mxu0 0.0
        %3286 = vmatpush1.xpose.msra.mxu0 0.0
        %3287 = vmatprep.subr.mxu0 0.0
        %3288 = vmatpush1.xpose.msra.mxu0 0.0
        %3289 = vmatprep.subr.mxu0 0.0
        %3290 = vmatpush1.xpose.msra.mxu0 0.0
        %3291 = vmatprep.subr.mxu0 0.0
        %3292 = vmatpush1.xpose.msra.mxu0 0.0
        %3293 = vmatprep.subr.mxu0 0.0
        %3294 = vmatpush1.xpose.msra.mxu0 0.0
        %3295 = vmatprep.mubr.f32.mxu0 0.0
        %v3296 = vand.u32 %v3221, 4294901760
        %v3297 = vsub.f32 %v3221, %v3296
        %v3298 = vand.u32 %v3297, 4294901760
        %v3299 = vsub.f32 %v3297, %v3298
        %v3300 = vand.u32 %v3299, 4294901760
        %3301 = vmatmul.mubr.f32.gmra.mrb[0].mxu0 %v3300
        %v3302 = vpop.f32.mrb[0].mxu0
        %v3303 = vadd.f32 0.0, %v3302
        %v3304 = vpop.f32.mrb[0].mxu0
        %3305 = vmatprep.mubr.f32.mxu0 0.0
        %v3306 = vand.u32 %v3223, 4294901760
        %v3307 = vsub.f32 %v3223, %v3306
        %v3308 = vand.u32 %v3307, 4294901760
        %v3309 = vsub.f32 %v3307, %v3308
        %v3310 = vand.u32 %v3309, 4294901760
        %3311 = vmatmul.mubr.f32.gmra.mrb[0].mxu0 %v3310
        %v3312 = vpop.f32.mrb[0].mxu0
        %v3313 = vadd.f32 0.0, %v3312
        %v3314 = vpop.f32.mrb[0].mxu0
        %3315 = vdwg.mxu0
        %3316 = vmatprep.subr.mxu0 0.0
        %v3317 = vand.u32 %v3225, 4294901760
        %v3318 = vsub.f32 %v3225, %v3317
        %v3319 = vand.u32 %v3318, 4294901760
        %v3320 = vsub.f32 %v3318, %v3319
        %v3321 = vand.u32 %v3320, 4294901760
        %3322 = vmatpush1.xpose.msra.mxu0 %v3321
        %3323 = vmatprep.subr.mxu0 0.0
        %v3324 = vand.u32 %v3227, 4294901760
        %v3325 = vsub.f32 %v3227, %v3324
        %v3326 = vand.u32 %v3325, 4294901760
        %v3327 = vsub.f32 %v3325, %v3326
        %v3328 = vand.u32 %v3327, 4294901760
        %3329 = vmatpush1.xpose.msra.mxu0 %v3328
        %3330 = vmatprep.subr.mxu0 0.0
        %3331 = vmatpush1.xpose.msra.mxu0 0.0
        %3332 = vmatprep.subr.mxu0 0.0
        %3333 = vmatpush1.xpose.msra.mxu0 0.0
        %3334 = vmatprep.subr.mxu0 0.0
        %3335 = vmatpush1.xpose.msra.mxu0 0.0
        %3336 = vmatprep.subr.mxu0 0.0
        %3337 = vmatpush1.xpose.msra.mxu0 0.0
        %3338 = vmatprep.subr.mxu0 0.0
        %3339 = vmatpush1.xpose.msra.mxu0 0.0
        %3340 = vmatprep.subr.mxu0 0.0
        %3341 = vmatpush1.xpose.msra.mxu0 0.0
        %3342 = vmatprep.subr.mxu0 0.0
        %3343 = vmatpush1.xpose.msra.mxu0 0.0
        %3344 = vmatprep.subr.mxu0 0.0
        %3345 = vmatpush1.xpose.msra.mxu0 0.0
        %3346 = vmatprep.subr.mxu0 0.0
        %3347 = vmatpush1.xpose.msra.mxu0 0.0
        %3348 = vmatprep.subr.mxu0 0.0
        %3349 = vmatpush1.xpose.msra.mxu0 0.0
        %3350 = vmatprep.subr.mxu0 0.0
        %3351 = vmatpush1.xpose.msra.mxu0 0.0
        %3352 = vmatprep.subr.mxu0 0.0
        %3353 = vmatpush1.xpose.msra.mxu0 0.0
        %3354 = vmatprep.subr.mxu0 0.0
        %3355 = vmatpush1.xpose.msra.mxu0 0.0
        %3356 = vmatprep.subr.mxu0 0.0
        %3357 = vmatpush1.xpose.msra.mxu0 0.0
        %3358 = vmatprep.subr.mxu0 0.0
        %3359 = vmatpush1.xpose.msra.mxu0 0.0
        %3360 = vmatprep.subr.mxu0 0.0
        %3361 = vmatpush1.xpose.msra.mxu0 0.0
        %3362 = vmatprep.subr.mxu0 0.0
        %3363 = vmatpush1.xpose.msra.mxu0 0.0
        %3364 = vmatprep.subr.mxu0 0.0
        %3365 = vmatpush1.xpose.msra.mxu0 0.0
        %3366 = vmatprep.subr.mxu0 0.0
        %3367 = vmatpush1.xpose.msra.mxu0 0.0
        %3368 = vmatprep.subr.mxu0 0.0
        %3369 = vmatpush1.xpose.msra.mxu0 0.0
        %3370 = vmatprep.subr.mxu0 0.0
        %3371 = vmatpush1.xpose.msra.mxu0 0.0
        %3372 = vmatprep.subr.mxu0 0.0
        %3373 = vmatpush1.xpose.msra.mxu0 0.0
        %3374 = vmatprep.subr.mxu0 0.0
        %3375 = vmatpush1.xpose.msra.mxu0 0.0
        %3376 = vmatprep.subr.mxu0 0.0
        %3377 = vmatpush1.xpose.msra.mxu0 0.0
        %3378 = vmatprep.subr.mxu0 0.0
        %3379 = vmatpush1.xpose.msra.mxu0 0.0
        %3380 = vmatprep.subr.mxu0 0.0
        %3381 = vmatpush1.xpose.msra.mxu0 0.0
        %3382 = vmatprep.subr.mxu0 0.0
        %3383 = vmatpush1.xpose.msra.mxu0 0.0
        %3384 = vmatprep.subr.mxu0 0.0
        %3385 = vmatpush1.xpose.msra.mxu0 0.0
        %3386 = vmatprep.subr.mxu0 0.0
        %3387 = vmatpush1.xpose.msra.mxu0 0.0
        %3388 = vmatprep.subr.mxu0 0.0
        %3389 = vmatpush1.xpose.msra.mxu0 0.0
        %3390 = vmatprep.mubr.f32.mxu0 0.0
        %v3391 = vand.u32 %v3221, 4294901760
        %3392 = vmatmul.mubr.f32.gmra.mrb[0].mxu0 %v3391
        %v3393 = vpop.f32.mrb[0].mxu0
        %v3394 = vadd.f32 %v3303, %v3393
        %v3395 = vpop.f32.mrb[0].mxu0
        %3396 = vmatprep.mubr.f32.mxu0 0.0
        %v3397 = vand.u32 %v3223, 4294901760
        %3398 = vmatmul.mubr.f32.gmra.mrb[0].mxu0 %v3397
        %v3399 = vpop.f32.mrb[0].mxu0
        %v3400 = vadd.f32 %v3313, %v3399
        %v3401 = vpop.f32.mrb[0].mxu0
        %3402 = vdwg.mxu0
        %3403 = vmatprep.subr.mxu0 0.0
        %v3404 = vand.u32 %v3225, 4294901760
        %v3405 = vsub.f32 %v3225, %v3404
        %3406 = vmatpush1.xpose.msra.mxu0 %v3405
        %3407 = vmatprep.subr.mxu0 0.0
        %v3408 = vand.u32 %v3227, 4294901760
        %v3409 = vsub.f32 %v3227, %v3408
        %3410 = vmatpush1.xpose.msra.mxu0 %v3409
        %3411 = vmatprep.subr.mxu0 0.0
        %3412 = vmatpush1.xpose.msra.mxu0 0.0
        %3413 = vmatprep.subr.mxu0 0.0
        %3414 = vmatpush1.xpose.msra.mxu0 0.0
        %3415 = vmatprep.subr.mxu0 0.0
        %3416 = vmatpush1.xpose.msra.mxu0 0.0
        %3417 = vmatprep.subr.mxu0 0.0
        %3418 = vmatpush1.xpose.msra.mxu0 0.0
        %3419 = vmatprep.subr.mxu0 0.0
        %3420 = vmatpush1.xpose.msra.mxu0 0.0
        %3421 = vmatprep.subr.mxu0 0.0
        %3422 = vmatpush1.xpose.msra.mxu0 0.0
        %3423 = vmatprep.subr.mxu0 0.0
        %3424 = vmatpush1.xpose.msra.mxu0 0.0
        %3425 = vmatprep.subr.mxu0 0.0
        %3426 = vmatpush1.xpose.msra.mxu0 0.0
        %3427 = vmatprep.subr.mxu0 0.0
        %3428 = vmatpush1.xpose.msra.mxu0 0.0
        %3429 = vmatprep.subr.mxu0 0.0
        %3430 = vmatpush1.xpose.msra.mxu0 0.0
        %3431 = vmatprep.subr.mxu0 0.0
        %3432 = vmatpush1.xpose.msra.mxu0 0.0
        %3433 = vmatprep.subr.mxu0 0.0
        %3434 = vmatpush1.xpose.msra.mxu0 0.0
        %3435 = vmatprep.subr.mxu0 0.0
        %3436 = vmatpush1.xpose.msra.mxu0 0.0
        %3437 = vmatprep.subr.mxu0 0.0
        %3438 = vmatpush1.xpose.msra.mxu0 0.0
        %3439 = vmatprep.subr.mxu0 0.0
        %3440 = vmatpush1.xpose.msra.mxu0 0.0
        %3441 = vmatprep.subr.mxu0 0.0
        %3442 = vmatpush1.xpose.msra.mxu0 0.0
        %3443 = vmatprep.subr.mxu0 0.0
        %3444 = vmatpush1.xpose.msra.mxu0 0.0
        %3445 = vmatprep.subr.mxu0 0.0
        %3446 = vmatpush1.xpose.msra.mxu0 0.0
        %3447 = vmatprep.subr.mxu0 0.0
        %3448 = vmatpush1.xpose.msra.mxu0 0.0
        %3449 = vmatprep.subr.mxu0 0.0
        %3450 = vmatpush1.xpose.msra.mxu0 0.0
        %3451 = vmatprep.subr.mxu0 0.0
        %3452 = vmatpush1.xpose.msra.mxu0 0.0
        %3453 = vmatprep.subr.mxu0 0.0
        %3454 = vmatpush1.xpose.msra.mxu0 0.0
        %3455 = vmatprep.subr.mxu0 0.0
        %3456 = vmatpush1.xpose.msra.mxu0 0.0
        %3457 = vmatprep.subr.mxu0 0.0
        %3458 = vmatpush1.xpose.msra.mxu0 0.0
        %3459 = vmatprep.subr.mxu0 0.0
        %3460 = vmatpush1.xpose.msra.mxu0 0.0
        %3461 = vmatprep.subr.mxu0 0.0
        %3462 = vmatpush1.xpose.msra.mxu0 0.0
        %3463 = vmatprep.subr.mxu0 0.0
        %3464 = vmatpush1.xpose.msra.mxu0 0.0
        %3465 = vmatprep.subr.mxu0 0.0
        %3466 = vmatpush1.xpose.msra.mxu0 0.0
        %3467 = vmatprep.subr.mxu0 0.0
        %3468 = vmatpush1.xpose.msra.mxu0 0.0
        %3469 = vmatprep.subr.mxu0 0.0
        %3470 = vmatpush1.xpose.msra.mxu0 0.0
        %3471 = vmatprep.mubr.f32.mxu0 0.0
        %v3472 = vand.u32 %v3221, 4294901760
        %v3473 = vsub.f32 %v3221, %v3472
        %3474 = vmatmul.mubr.f32.gmra.mrb[0].mxu0 %v3473
        %v3475 = vpop.f32.mrb[0].mxu0
        %v3476 = vadd.f32 %v3394, %v3475
        %v3477 = vpop.f32.mrb[0].mxu0
        %3478 = vmatprep.mubr.f32.mxu0 0.0
        %v3479 = vand.u32 %v3223, 4294901760
        %v3480 = vsub.f32 %v3223, %v3479
        %3481 = vmatmul.mubr.f32.gmra.mrb[0].mxu0 %v3480
        %v3482 = vpop.f32.mrb[0].mxu0
        %v3483 = vadd.f32 %v3400, %v3482
        %v3484 = vpop.f32.mrb[0].mxu0
        %3485 = vdwg.mxu0
        %3486 = vmatprep.subr.mxu0 0.0
        %v3487 = vand.u32 %v3225, 4294901760
        %3488 = vmatpush1.xpose.msra.mxu0 %v3487
        %3489 = vmatprep.subr.mxu0 0.0
        %v3490 = vand.u32 %v3227, 4294901760
        %3491 = vmatpush1.xpose.msra.mxu0 %v3490
        %3492 = vmatprep.subr.mxu0 0.0
        %3493 = vmatpush1.xpose.msra.mxu0 0.0
        %3494 = vmatprep.subr.mxu0 0.0
        %3495 = vmatpush1.xpose.msra.mxu0 0.0
        %3496 = vmatprep.subr.mxu0 0.0
        %3497 = vmatpush1.xpose.msra.mxu0 0.0
        %3498 = vmatprep.subr.mxu0 0.0
        %3499 = vmatpush1.xpose.msra.mxu0 0.0
        %3500 = vmatprep.subr.mxu0 0.0
        %3501 = vmatpush1.xpose.msra.mxu0 0.0
        %3502 = vmatprep.subr.mxu0 0.0
        %3503 = vmatpush1.xpose.msra.mxu0 0.0
        %3504 = vmatprep.subr.mxu0 0.0
        %3505 = vmatpush1.xpose.msra.mxu0 0.0
        %3506 = vmatprep.subr.mxu0 0.0
        %3507 = vmatpush1.xpose.msra.mxu0 0.0
        %3508 = vmatprep.subr.mxu0 0.0
        %3509 = vmatpush1.xpose.msra.mxu0 0.0
        %3510 = vmatprep.subr.mxu0 0.0
        %3511 = vmatpush1.xpose.msra.mxu0 0.0
        %3512 = vmatprep.subr.mxu0 0.0
        %3513 = vmatpush1.xpose.msra.mxu0 0.0
        %3514 = vmatprep.subr.mxu0 0.0
        %3515 = vmatpush1.xpose.msra.mxu0 0.0
        %3516 = vmatprep.subr.mxu0 0.0
        %3517 = vmatpush1.xpose.msra.mxu0 0.0
        %3518 = vmatprep.subr.mxu0 0.0
        %3519 = vmatpush1.xpose.msra.mxu0 0.0
        %3520 = vmatprep.subr.mxu0 0.0
        %3521 = vmatpush1.xpose.msra.mxu0 0.0
        %3522 = vmatprep.subr.mxu0 0.0
        %3523 = vmatpush1.xpose.msra.mxu0 0.0
        %3524 = vmatprep.subr.mxu0 0.0
        %3525 = vmatpush1.xpose.msra.mxu0 0.0
        %3526 = vmatprep.subr.mxu0 0.0
        %3527 = vmatpush1.xpose.msra.mxu0 0.0
        %3528 = vmatprep.subr.mxu0 0.0
        %3529 = vmatpush1.xpose.msra.mxu0 0.0
        %3530 = vmatprep.subr.mxu0 0.0
        %3531 = vmatpush1.xpose.msra.mxu0 0.0
        %3532 = vmatprep.subr.mxu0 0.0
        %3533 = vmatpush1.xpose.msra.mxu0 0.0
        %3534 = vmatprep.subr.mxu0 0.0
        %3535 = vmatpush1.xpose.msra.mxu0 0.0
        %3536 = vmatprep.subr.mxu0 0.0
        %3537 = vmatpush1.xpose.msra.mxu0 0.0
        %3538 = vmatprep.subr.mxu0 0.0
        %3539 = vmatpush1.xpose.msra.mxu0 0.0
        %3540 = vmatprep.subr.mxu0 0.0
        %3541 = vmatpush1.xpose.msra.mxu0 0.0
        %3542 = vmatprep.subr.mxu0 0.0
        %3543 = vmatpush1.xpose.msra.mxu0 0.0
        %3544 = vmatprep.subr.mxu0 0.0
        %3545 = vmatpush1.xpose.msra.mxu0 0.0
        %3546 = vmatprep.subr.mxu0 0.0
        %3547 = vmatpush1.xpose.msra.mxu0 0.0
        %3548 = vmatprep.subr.mxu0 0.0
        %3549 = vmatpush1.xpose.msra.mxu0 0.0
        %3550 = vmatprep.subr.mxu0 0.0
        %3551 = vmatpush1.xpose.msra.mxu0 0.0
        %3552 = vmatprep.mubr.f32.mxu0 0.0
        %v3553 = vand.u32 %v3221, 4294901760
        %v3554 = vsub.f32 %v3221, %v3553
        %v3555 = vand.u32 %v3554, 4294901760
        %3556 = vmatmul.mubr.f32.gmra.mrb[0].mxu0 %v3555
        %v3557 = vpop.f32.mrb[0].mxu0
        %v3558 = vadd.f32 %v3476, %v3557
        %v3559 = vpop.f32.mrb[0].mxu0
        %3560 = vmatprep.mubr.f32.mxu0 0.0
        %v3561 = vand.u32 %v3223, 4294901760
        %v3562 = vsub.f32 %v3223, %v3561
        %v3563 = vand.u32 %v3562, 4294901760
        %3564 = vmatmul.mubr.f32.gmra.mrb[0].mxu0 %v3563
        %v3565 = vpop.f32.mrb[0].mxu0
        %v3566 = vadd.f32 %v3483, %v3565
        %v3567 = vpop.f32.mrb[0].mxu0
        %3568 = vdwg.mxu0
        %3569 = vmatprep.subr.mxu0 0.0
        %v3570 = vand.u32 %v3225, 4294901760
        %v3571 = vsub.f32 %v3225, %v3570
        %v3572 = vand.u32 %v3571, 4294901760
        %3573 = vmatpush1.xpose.msra.mxu0 %v3572
        %3574 = vmatprep.subr.mxu0 0.0
        %v3575 = vand.u32 %v3227, 4294901760
        %v3576 = vsub.f32 %v3227, %v3575
        %v3577 = vand.u32 %v3576, 4294901760
        %3578 = vmatpush1.xpose.msra.mxu0 %v3577
        %3579 = vmatprep.subr.mxu0 0.0
        %3580 = vmatpush1.xpose.msra.mxu0 0.0
        %3581 = vmatprep.subr.mxu0 0.0
        %3582 = vmatpush1.xpose.msra.mxu0 0.0
        %3583 = vmatprep.subr.mxu0 0.0
        %3584 = vmatpush1.xpose.msra.mxu0 0.0
        %3585 = vmatprep.subr.mxu0 0.0
        %3586 = vmatpush1.xpose.msra.mxu0 0.0
        %3587 = vmatprep.subr.mxu0 0.0
        %3588 = vmatpush1.xpose.msra.mxu0 0.0
        %3589 = vmatprep.subr.mxu0 0.0
        %3590 = vmatpush1.xpose.msra.mxu0 0.0
        %3591 = vmatprep.subr.mxu0 0.0
        %3592 = vmatpush1.xpose.msra.mxu0 0.0
        %3593 = vmatprep.subr.mxu0 0.0
        %3594 = vmatpush1.xpose.msra.mxu0 0.0
        %3595 = vmatprep.subr.mxu0 0.0
        %3596 = vmatpush1.xpose.msra.mxu0 0.0
        %3597 = vmatprep.subr.mxu0 0.0
        %3598 = vmatpush1.xpose.msra.mxu0 0.0
        %3599 = vmatprep.subr.mxu0 0.0
        %3600 = vmatpush1.xpose.msra.mxu0 0.0
        %3601 = vmatprep.subr.mxu0 0.0
        %3602 = vmatpush1.xpose.msra.mxu0 0.0
        %3603 = vmatprep.subr.mxu0 0.0
        %3604 = vmatpush1.xpose.msra.mxu0 0.0
        %3605 = vmatprep.subr.mxu0 0.0
        %3606 = vmatpush1.xpose.msra.mxu0 0.0
        %3607 = vmatprep.subr.mxu0 0.0
        %3608 = vmatpush1.xpose.msra.mxu0 0.0
        %3609 = vmatprep.subr.mxu0 0.0
        %3610 = vmatpush1.xpose.msra.mxu0 0.0
        %3611 = vmatprep.subr.mxu0 0.0
        %3612 = vmatpush1.xpose.msra.mxu0 0.0
        %3613 = vmatprep.subr.mxu0 0.0
        %3614 = vmatpush1.xpose.msra.mxu0 0.0
        %3615 = vmatprep.subr.mxu0 0.0
        %3616 = vmatpush1.xpose.msra.mxu0 0.0
        %3617 = vmatprep.subr.mxu0 0.0
        %3618 = vmatpush1.xpose.msra.mxu0 0.0
        %3619 = vmatprep.subr.mxu0 0.0
        %3620 = vmatpush1.xpose.msra.mxu0 0.0
        %3621 = vmatprep.subr.mxu0 0.0
        %3622 = vmatpush1.xpose.msra.mxu0 0.0
        %3623 = vmatprep.subr.mxu0 0.0
        %3624 = vmatpush1.xpose.msra.mxu0 0.0
        %3625 = vmatprep.subr.mxu0 0.0
        %3626 = vmatpush1.xpose.msra.mxu0 0.0
        %3627 = vmatprep.subr.mxu0 0.0
        %3628 = vmatpush1.xpose.msra.mxu0 0.0
        %3629 = vmatprep.subr.mxu0 0.0
        %3630 = vmatpush1.xpose.msra.mxu0 0.0
        %3631 = vmatprep.subr.mxu0 0.0
        %3632 = vmatpush1.xpose.msra.mxu0 0.0
        %3633 = vmatprep.subr.mxu0 0.0
        %3634 = vmatpush1.xpose.msra.mxu0 0.0
        %3635 = vmatprep.subr.mxu0 0.0
        %3636 = vmatpush1.xpose.msra.mxu0 0.0
        %3637 = vmatprep.subr.mxu0 0.0
        %3638 = vmatpush1.xpose.msra.mxu0 0.0
        %3639 = vmatprep.mubr.f32.mxu0 0.0
        %v3640 = vand.u32 %v3221, 4294901760
        %3641 = vmatmul.mubr.f32.gmra.mrb[0].mxu0 %v3640
        %v3642 = vpop.f32.mrb[0].mxu0
        %v3643 = vadd.f32 %v3558, %v3642
        %v3644 = vpop.f32.mrb[0].mxu0
        %3645 = vmatprep.mubr.f32.mxu0 0.0
        %v3646 = vand.u32 %v3223, 4294901760
        %3647 = vmatmul.mubr.f32.gmra.mrb[0].mxu0 %v3646
        %v3648 = vpop.f32.mrb[0].mxu0
        %v3649 = vadd.f32 %v3566, %v3648
        %v3650 = vpop.f32.mrb[0].mxu0
        %3651 = vdwg.mxu0
        %3652 = vmatprep.subr.mxu0 0.0
        %v3653 = vand.u32 %v3225, 4294901760
        %3654 = vmatpush1.xpose.msra.mxu0 %v3653
        %3655 = vmatprep.subr.mxu0 0.0
        %v3656 = vand.u32 %v3227, 4294901760
        %3657 = vmatpush1.xpose.msra.mxu0 %v3656
        %3658 = vmatprep.subr.mxu0 0.0
        %3659 = vmatpush1.xpose.msra.mxu0 0.0
        %3660 = vmatprep.subr.mxu0 0.0
        %3661 = vmatpush1.xpose.msra.mxu0 0.0
        %3662 = vmatprep.subr.mxu0 0.0
        %3663 = vmatpush1.xpose.msra.mxu0 0.0
        %3664 = vmatprep.subr.mxu0 0.0
        %3665 = vmatpush1.xpose.msra.mxu0 0.0
        %3666 = vmatprep.subr.mxu0 0.0
        %3667 = vmatpush1.xpose.msra.mxu0 0.0
        %3668 = vmatprep.subr.mxu0 0.0
        %3669 = vmatpush1.xpose.msra.mxu0 0.0
        %3670 = vmatprep.subr.mxu0 0.0
        %3671 = vmatpush1.xpose.msra.mxu0 0.0
        %3672 = vmatprep.subr.mxu0 0.0
        %3673 = vmatpush1.xpose.msra.mxu0 0.0
        %3674 = vmatprep.subr.mxu0 0.0
        %3675 = vmatpush1.xpose.msra.mxu0 0.0
        %3676 = vmatprep.subr.mxu0 0.0
        %3677 = vmatpush1.xpose.msra.mxu0 0.0
        %3678 = vmatprep.subr.mxu0 0.0
        %3679 = vmatpush1.xpose.msra.mxu0 0.0
        %3680 = vmatprep.subr.mxu0 0.0
        %3681 = vmatpush1.xpose.msra.mxu0 0.0
        %3682 = vmatprep.subr.mxu0 0.0
        %3683 = vmatpush1.xpose.msra.mxu0 0.0
        %3684 = vmatprep.subr.mxu0 0.0
        %3685 = vmatpush1.xpose.msra.mxu0 0.0
        %3686 = vmatprep.subr.mxu0 0.0
        %3687 = vmatpush1.xpose.msra.mxu0 0.0
        %3688 = vmatprep.subr.mxu0 0.0
        %3689 = vmatpush1.xpose.msra.mxu0 0.0
        %3690 = vmatprep.subr.mxu0 0.0
        %3691 = vmatpush1.xpose.msra.mxu0 0.0
        %3692 = vmatprep.subr.mxu0 0.0
        %3693 = vmatpush1.xpose.msra.mxu0 0.0
        %3694 = vmatprep.subr.mxu0 0.0
        %3695 = vmatpush1.xpose.msra.mxu0 0.0
        %3696 = vmatprep.subr.mxu0 0.0
        %3697 = vmatpush1.xpose.msra.mxu0 0.0
        %3698 = vmatprep.subr.mxu0 0.0
        %3699 = vmatpush1.xpose.msra.mxu0 0.0
        %3700 = vmatprep.subr.mxu0 0.0
        %3701 = vmatpush1.xpose.msra.mxu0 0.0
        %3702 = vmatprep.subr.mxu0 0.0
        %3703 = vmatpush1.xpose.msra.mxu0 0.0
        %3704 = vmatprep.subr.mxu0 0.0
        %3705 = vmatpush1.xpose.msra.mxu0 0.0
        %3706 = vmatprep.subr.mxu0 0.0
        %3707 = vmatpush1.xpose.msra.mxu0 0.0
        %3708 = vmatprep.subr.mxu0 0.0
        %3709 = vmatpush1.xpose.msra.mxu0 0.0
        %3710 = vmatprep.subr.mxu0 0.0
        %3711 = vmatpush1.xpose.msra.mxu0 0.0
        %3712 = vmatprep.subr.mxu0 0.0
        %3713 = vmatpush1.xpose.msra.mxu0 0.0
        %3714 = vmatprep.subr.mxu0 0.0
        %3715 = vmatpush1.xpose.msra.mxu0 0.0
        %3716 = vmatprep.subr.mxu0 0.0
        %3717 = vmatpush1.xpose.msra.mxu0 0.0
        %3718 = vmatprep.mubr.f32.mxu0 0.0
        %v3719 = vand.u32 %v3221, 4294901760
        %3720 = vmatmul.mubr.f32.gmra.mrb[0].mxu0 %v3719
        %v3721 = vpop.f32.mrb[0].mxu0
        %v3722 = vadd.f32 %v3643, %v3721
        %v3723 = vpop.f32.mrb[0].mxu0
        %3724 = vmatprep.mubr.f32.mxu0 0.0
        %v3725 = vand.u32 %v3223, 4294901760
        %3726 = vmatmul.mubr.f32.gmra.mrb[0].mxu0 %v3725
        %v3727 = vpop.f32.mrb[0].mxu0
        %v3728 = vadd.f32 %v3649, %v3727
        %v3729 = vpop.f32.mrb[0].mxu0
        %3730 = vdwg.mxu0
        %v3731 = vmul.f32 %v3722, 0.35355338
        %v3732 = vmul.f32 %v3728, 0.35355338
        %v3733 = vsel %vm1620, %v3731, -inf
        %3734 = vmax.xlane.f32.xlu0 %v3733
        %v3735 = vpop.xlane.xlu0 %3734
        %v3736 = vsel %vm1620, %v3732, -inf
        %3737 = vmax.xlane.f32.xlu0 %v3736
        %v3738 = vpop.xlane.xlu0 %3737
        %v3739 = vsub.f32 %v3731, %v3735
        %v3740 = vsub.f32 %v3732, %v3738
        %v3741 = vmul.f32 %v3739, 1.442695
        %v3742 = vpow.pop %v3741
        %v3743 = vmul.f32 %v3740, 1.442695
        %v3744 = vpow.pop %v3743
        %v3745 = vsel %vm1620, %v3742, 0.0
        %3746 = vadd.xlane.f32.xlu0 %v3745
        %v3747 = vpop.xlane.xlu0 %3746
        %v3748 = vsel %vm1620, %v3744, 0.0
        %3749 = vadd.xlane.f32.xlu0 %v3748
        %v3750 = vpop.xlane.xlu0 %3749
        %v3751 = vrcp.pop %v3747
        %v3752 = vmul.f32 %v3742, %v3751
        %v3753 = vrcp.pop %v3750
        %v3754 = vmul.f32 %v3744, %v3753
        %3755 = vrot.lane.b32.xlu0 %v1092, 48
        %v3756 = vpop.permute.xlu0 %3755
        %3757 = vrot.lane.b32.xlu0 %v1098, 48
        %v3758 = vpop.permute.xlu0 %3757
        %v3762 = vsel %vm1620, %v3752, 0
        %v3765 = vsel %vm1620, %v3754, 0
        %3767 = vmatprep.subr.mxu0 0.0
        %v3768 = vand.u32 %v3756, 4294901760
        %3769 = vmatpush1.msra.mxu0 %v3768
        %3770 = vmatprep.subr.mxu0 0.0
        %v3771 = vand.u32 %v3758, 4294901760
        %3772 = vmatpush1.msra.mxu0 %v3771
        %3773 = vmatprep.subr.mxu0 0.0
        %3774 = vmatpush1.msra.mxu0 0.0
        %3775 = vmatprep.subr.mxu0 0.0
        %3776 = vmatpush1.msra.mxu0 0.0
        %3777 = vmatprep.subr.mxu0 0.0
        %3778 = vmatpush1.msra.mxu0 0.0
        %3779 = vmatprep.subr.mxu0 0.0
        %3780 = vmatpush1.msra.mxu0 0.0
        %3781 = vmatprep.subr.mxu0 0.0
        %3782 = vmatpush1.msra.mxu0 0.0
        %3783 = vmatprep.subr.mxu0 0.0
        %3784 = vmatpush1.msra.mxu0 0.0
        %3785 = vmatprep.subr.mxu0 0.0
        %3786 = vmatpush1.msra.mxu0 0.0
        %3787 = vmatprep.subr.mxu0 0.0
        %3788 = vmatpush1.msra.mxu0 0.0
        %3789 = vmatprep.subr.mxu0 0.0
        %3790 = vmatpush1.msra.mxu0 0.0
        %3791 = vmatprep.subr.mxu0 0.0
        %3792 = vmatpush1.msra.mxu0 0.0
        %3793 = vmatprep.subr.mxu0 0.0
        %3794 = vmatpush1.msra.mxu0 0.0
        %3795 = vmatprep.subr.mxu0 0.0
        %3796 = vmatpush1.msra.mxu0 0.0
        %3797 = vmatprep.subr.mxu0 0.0
        %3798 = vmatpush1.msra.mxu0 0.0
        %3799 = vmatprep.subr.mxu0 0.0
        %3800 = vmatpush1.msra.mxu0 0.0
        %3801 = vmatprep.subr.mxu0 0.0
        %3802 = vmatpush1.msra.mxu0 0.0
        %3803 = vmatprep.subr.mxu0 0.0
        %3804 = vmatpush1.msra.mxu0 0.0
        %3805 = vmatprep.subr.mxu0 0.0
        %3806 = vmatpush1.msra.mxu0 0.0
        %3807 = vmatprep.subr.mxu0 0.0
        %3808 = vmatpush1.msra.mxu0 0.0
        %3809 = vmatprep.subr.mxu0 0.0
        %3810 = vmatpush1.msra.mxu0 0.0
        %3811 = vmatprep.subr.mxu0 0.0
        %3812 = vmatpush1.msra.mxu0 0.0
        %3813 = vmatprep.subr.mxu0 0.0
        %3814 = vmatpush1.msra.mxu0 0.0
        %3815 = vmatprep.subr.mxu0 0.0
        %3816 = vmatpush1.msra.mxu0 0.0
        %3817 = vmatprep.subr.mxu0 0.0
        %3818 = vmatpush1.msra.mxu0 0.0
        %3819 = vmatprep.subr.mxu0 0.0
        %3820 = vmatpush1.msra.mxu0 0.0
        %3821 = vmatprep.subr.mxu0 0.0
        %3822 = vmatpush1.msra.mxu0 0.0
        %3823 = vmatprep.subr.mxu0 0.0
        %3824 = vmatpush1.msra.mxu0 0.0
        %3825 = vmatprep.subr.mxu0 0.0
        %3826 = vmatpush1.msra.mxu0 0.0
        %3827 = vmatprep.subr.mxu0 0.0
        %3828 = vmatpush1.msra.mxu0 0.0
        %3829 = vmatprep.subr.mxu0 0.0
        %3830 = vmatpush1.msra.mxu0 0.0
        %3831 = vmatprep.subr.mxu0 0.0
        %3832 = vmatpush1.msra.mxu0 0.0
        %3833 = vmatprep.mubr.f32.mxu0 0.0
        %v3834 = vand.u32 %v3762, 4294901760
        %v3835 = vsub.f32 %v3762, %v3834
        %v3836 = vand.u32 %v3835, 4294901760
        %v3837 = vsub.f32 %v3835, %v3836
        %v3838 = vand.u32 %v3837, 4294901760
        %3839 = vmatmul.mubr.f32.gmra.mrb[0].mxu0 %v3838
        %v3840 = vpop.f32.mrb[0].mxu0
        %v3841 = vadd.f32 0.0, %v3840
        %v3842 = vpop.f32.mrb[0].mxu0
        %3843 = vmatprep.mubr.f32.mxu0 0.0
        %v3844 = vand.u32 %v3765, 4294901760
        %v3845 = vsub.f32 %v3765, %v3844
        %v3846 = vand.u32 %v3845, 4294901760
        %v3847 = vsub.f32 %v3845, %v3846
        %v3848 = vand.u32 %v3847, 4294901760
        %3849 = vmatmul.mubr.f32.gmra.mrb[0].mxu0 %v3848
        %v3850 = vpop.f32.mrb[0].mxu0
        %v3851 = vadd.f32 0.0, %v3850
        %v3852 = vpop.f32.mrb[0].mxu0
        %3853 = vdwg.mxu0
        %3854 = vmatprep.subr.mxu0 0.0
        %v3855 = vand.u32 %v3756, 4294901760
        %v3856 = vsub.f32 %v3756, %v3855
        %v3857 = vand.u32 %v3856, 4294901760
        %v3858 = vsub.f32 %v3856, %v3857
        %v3859 = vand.u32 %v3858, 4294901760
        %3860 = vmatpush1.msra.mxu0 %v3859
        %3861 = vmatprep.subr.mxu0 0.0
        %v3862 = vand.u32 %v3758, 4294901760
        %v3863 = vsub.f32 %v3758, %v3862
        %v3864 = vand.u32 %v3863, 4294901760
        %v3865 = vsub.f32 %v3863, %v3864
        %v3866 = vand.u32 %v3865, 4294901760
        %3867 = vmatpush1.msra.mxu0 %v3866
        %3868 = vmatprep.subr.mxu0 0.0
        %3869 = vmatpush1.msra.mxu0 0.0
        %3870 = vmatprep.subr.mxu0 0.0
        %3871 = vmatpush1.msra.mxu0 0.0
        %3872 = vmatprep.subr.mxu0 0.0
        %3873 = vmatpush1.msra.mxu0 0.0
        %3874 = vmatprep.subr.mxu0 0.0
        %3875 = vmatpush1.msra.mxu0 0.0
        %3876 = vmatprep.subr.mxu0 0.0
        %3877 = vmatpush1.msra.mxu0 0.0
        %3878 = vmatprep.subr.mxu0 0.0
        %3879 = vmatpush1.msra.mxu0 0.0
        %3880 = vmatprep.subr.mxu0 0.0
        %3881 = vmatpush1.msra.mxu0 0.0
        %3882 = vmatprep.subr.mxu0 0.0
        %3883 = vmatpush1.msra.mxu0 0.0
        %3884 = vmatprep.subr.mxu0 0.0
        %3885 = vmatpush1.msra.mxu0 0.0
        %3886 = vmatprep.subr.mxu0 0.0
        %3887 = vmatpush1.msra.mxu0 0.0
        %3888 = vmatprep.subr.mxu0 0.0
        %3889 = vmatpush1.msra.mxu0 0.0
        %3890 = vmatprep.subr.mxu0 0.0
        %3891 = vmatpush1.msra.mxu0 0.0
        %3892 = vmatprep.subr.mxu0 0.0
        %3893 = vmatpush1.msra.mxu0 0.0
        %3894 = vmatprep.subr.mxu0 0.0
        %3895 = vmatpush1.msra.mxu0 0.0
        %3896 = vmatprep.subr.mxu0 0.0
        %3897 = vmatpush1.msra.mxu0 0.0
        %3898 = vmatprep.subr.mxu0 0.0
        %3899 = vmatpush1.msra.mxu0 0.0
        %3900 = vmatprep.subr.mxu0 0.0
        %3901 = vmatpush1.msra.mxu0 0.0
        %3902 = vmatprep.subr.mxu0 0.0
        %3903 = vmatpush1.msra.mxu0 0.0
        %3904 = vmatprep.subr.mxu0 0.0
        %3905 = vmatpush1.msra.mxu0 0.0
        %3906 = vmatprep.subr.mxu0 0.0
        %3907 = vmatpush1.msra.mxu0 0.0
        %3908 = vmatprep.subr.mxu0 0.0
        %3909 = vmatpush1.msra.mxu0 0.0
        %3910 = vmatprep.subr.mxu0 0.0
        %3911 = vmatpush1.msra.mxu0 0.0
        %3912 = vmatprep.subr.mxu0 0.0
        %3913 = vmatpush1.msra.mxu0 0.0
        %3914 = vmatprep.subr.mxu0 0.0
        %3915 = vmatpush1.msra.mxu0 0.0
        %3916 = vmatprep.subr.mxu0 0.0
        %3917 = vmatpush1.msra.mxu0 0.0
        %3918 = vmatprep.subr.mxu0 0.0
        %3919 = vmatpush1.msra.mxu0 0.0
        %3920 = vmatprep.subr.mxu0 0.0
        %3921 = vmatpush1.msra.mxu0 0.0
        %3922 = vmatprep.subr.mxu0 0.0
        %3923 = vmatpush1.msra.mxu0 0.0
        %3924 = vmatprep.subr.mxu0 0.0
        %3925 = vmatpush1.msra.mxu0 0.0
        %3926 = vmatprep.subr.mxu0 0.0
        %3927 = vmatpush1.msra.mxu0 0.0
        %3928 = vmatprep.mubr.f32.mxu0 0.0
        %v3929 = vand.u32 %v3762, 4294901760
        %3930 = vmatmul.mubr.f32.gmra.mrb[0].mxu0 %v3929
        %v3931 = vpop.f32.mrb[0].mxu0
        %v3932 = vadd.f32 %v3841, %v3931
        %v3933 = vpop.f32.mrb[0].mxu0
        %3934 = vmatprep.mubr.f32.mxu0 0.0
        %v3935 = vand.u32 %v3765, 4294901760
        %3936 = vmatmul.mubr.f32.gmra.mrb[0].mxu0 %v3935
        %v3937 = vpop.f32.mrb[0].mxu0
        %v3938 = vadd.f32 %v3851, %v3937
        %v3939 = vpop.f32.mrb[0].mxu0
        %3940 = vdwg.mxu0
        %3941 = vmatprep.subr.mxu0 0.0
        %v3942 = vand.u32 %v3756, 4294901760
        %v3943 = vsub.f32 %v3756, %v3942
        %3944 = vmatpush1.msra.mxu0 %v3943
        %3945 = vmatprep.subr.mxu0 0.0
        %v3946 = vand.u32 %v3758, 4294901760
        %v3947 = vsub.f32 %v3758, %v3946
        %3948 = vmatpush1.msra.mxu0 %v3947
        %3949 = vmatprep.subr.mxu0 0.0
        %3950 = vmatpush1.msra.mxu0 0.0
        %3951 = vmatprep.subr.mxu0 0.0
        %3952 = vmatpush1.msra.mxu0 0.0
        %3953 = vmatprep.subr.mxu0 0.0
        %3954 = vmatpush1.msra.mxu0 0.0
        %3955 = vmatprep.subr.mxu0 0.0
        %3956 = vmatpush1.msra.mxu0 0.0
        %3957 = vmatprep.subr.mxu0 0.0
        %3958 = vmatpush1.msra.mxu0 0.0
        %3959 = vmatprep.subr.mxu0 0.0
        %3960 = vmatpush1.msra.mxu0 0.0
        %3961 = vmatprep.subr.mxu0 0.0
        %3962 = vmatpush1.msra.mxu0 0.0
        %3963 = vmatprep.subr.mxu0 0.0
        %3964 = vmatpush1.msra.mxu0 0.0
        %3965 = vmatprep.subr.mxu0 0.0
        %3966 = vmatpush1.msra.mxu0 0.0
        %3967 = vmatprep.subr.mxu0 0.0
        %3968 = vmatpush1.msra.mxu0 0.0
        %3969 = vmatprep.subr.mxu0 0.0
        %3970 = vmatpush1.msra.mxu0 0.0
        %3971 = vmatprep.subr.mxu0 0.0
        %3972 = vmatpush1.msra.mxu0 0.0
        %3973 = vmatprep.subr.mxu0 0.0
        %3974 = vmatpush1.msra.mxu0 0.0
        %3975 = vmatprep.subr.mxu0 0.0
        %3976 = vmatpush1.msra.mxu0 0.0
        %3977 = vmatprep.subr.mxu0 0.0
        %3978 = vmatpush1.msra.mxu0 0.0
        %3979 = vmatprep.subr.mxu0 0.0
        %3980 = vmatpush1.msra.mxu0 0.0
        %3981 = vmatprep.subr.mxu0 0.0
        %3982 = vmatpush1.msra.mxu0 0.0
        %3983 = vmatprep.subr.mxu0 0.0
        %3984 = vmatpush1.msra.mxu0 0.0
        %3985 = vmatprep.subr.mxu0 0.0
        %3986 = vmatpush1.msra.mxu0 0.0
        %3987 = vmatprep.subr.mxu0 0.0
        %3988 = vmatpush1.msra.mxu0 0.0
        %3989 = vmatprep.subr.mxu0 0.0
        %3990 = vmatpush1.msra.mxu0 0.0
        %3991 = vmatprep.subr.mxu0 0.0
        %3992 = vmatpush1.msra.mxu0 0.0
        %3993 = vmatprep.subr.mxu0 0.0
        %3994 = vmatpush1.msra.mxu0 0.0
        %3995 = vmatprep.subr.mxu0 0.0
        %3996 = vmatpush1.msra.mxu0 0.0
        %3997 = vmatprep.subr.mxu0 0.0
        %3998 = vmatpush1.msra.mxu0 0.0
        %3999 = vmatprep.subr.mxu0 0.0
        %4000 = vmatpush1.msra.mxu0 0.0
        %4001 = vmatprep.subr.mxu0 0.0
        %4002 = vmatpush1.msra.mxu0 0.0
        %4003 = vmatprep.subr.mxu0 0.0
        %4004 = vmatpush1.msra.mxu0 0.0
        %4005 = vmatprep.subr.mxu0 0.0
        %4006 = vmatpush1.msra.mxu0 0.0
        %4007 = vmatprep.subr.mxu0 0.0
        %4008 = vmatpush1.msra.mxu0 0.0
        %4009 = vmatprep.mubr.f32.mxu0 0.0
        %v4010 = vand.u32 %v3762, 4294901760
        %v4011 = vsub.f32 %v3762, %v4010
        %4012 = vmatmul.mubr.f32.gmra.mrb[0].mxu0 %v4011
        %v4013 = vpop.f32.mrb[0].mxu0
        %v4014 = vadd.f32 %v3932, %v4013
        %v4015 = vpop.f32.mrb[0].mxu0
        %4016 = vmatprep.mubr.f32.mxu0 0.0
        %v4017 = vand.u32 %v3765, 4294901760
        %v4018 = vsub.f32 %v3765, %v4017
        %4019 = vmatmul.mubr.f32.gmra.mrb[0].mxu0 %v4018
        %v4020 = vpop.f32.mrb[0].mxu0
        %v4021 = vadd.f32 %v3938, %v4020
        %v4022 = vpop.f32.mrb[0].mxu0
        %4023 = vdwg.mxu0
        %4024 = vmatprep.subr.mxu0 0.0
        %v4025 = vand.u32 %v3756, 4294901760
        %4026 = vmatpush1.msra.mxu0 %v4025
        %4027 = vmatprep.subr.mxu0 0.0
        %v4028 = vand.u32 %v3758, 4294901760
        %4029 = vmatpush1.msra.mxu0 %v4028
        %4030 = vmatprep.subr.mxu0 0.0
        %4031 = vmatpush1.msra.mxu0 0.0
        %4032 = vmatprep.subr.mxu0 0.0
        %4033 = vmatpush1.msra.mxu0 0.0
        %4034 = vmatprep.subr.mxu0 0.0
        %4035 = vmatpush1.msra.mxu0 0.0
        %4036 = vmatprep.subr.mxu0 0.0
        %4037 = vmatpush1.msra.mxu0 0.0
        %4038 = vmatprep.subr.mxu0 0.0
        %4039 = vmatpush1.msra.mxu0 0.0
        %4040 = vmatprep.subr.mxu0 0.0
        %4041 = vmatpush1.msra.mxu0 0.0
        %4042 = vmatprep.subr.mxu0 0.0
        %4043 = vmatpush1.msra.mxu0 0.0
        %4044 = vmatprep.subr.mxu0 0.0
        %4045 = vmatpush1.msra.mxu0 0.0
        %4046 = vmatprep.subr.mxu0 0.0
        %4047 = vmatpush1.msra.mxu0 0.0
        %4048 = vmatprep.subr.mxu0 0.0
        %4049 = vmatpush1.msra.mxu0 0.0
        %4050 = vmatprep.subr.mxu0 0.0
        %4051 = vmatpush1.msra.mxu0 0.0
        %4052 = vmatprep.subr.mxu0 0.0
        %4053 = vmatpush1.msra.mxu0 0.0
        %4054 = vmatprep.subr.mxu0 0.0
        %4055 = vmatpush1.msra.mxu0 0.0
        %4056 = vmatprep.subr.mxu0 0.0
        %4057 = vmatpush1.msra.mxu0 0.0
        %4058 = vmatprep.subr.mxu0 0.0
        %4059 = vmatpush1.msra.mxu0 0.0
        %4060 = vmatprep.subr.mxu0 0.0
        %4061 = vmatpush1.msra.mxu0 0.0
        %4062 = vmatprep.subr.mxu0 0.0
        %4063 = vmatpush1.msra.mxu0 0.0
        %4064 = vmatprep.subr.mxu0 0.0
        %4065 = vmatpush1.msra.mxu0 0.0
        %4066 = vmatprep.subr.mxu0 0.0
        %4067 = vmatpush1.msra.mxu0 0.0
        %4068 = vmatprep.subr.mxu0 0.0
        %4069 = vmatpush1.msra.mxu0 0.0
        %4070 = vmatprep.subr.mxu0 0.0
        %4071 = vmatpush1.msra.mxu0 0.0
        %4072 = vmatprep.subr.mxu0 0.0
        %4073 = vmatpush1.msra.mxu0 0.0
        %4074 = vmatprep.subr.mxu0 0.0
        %4075 = vmatpush1.msra.mxu0 0.0
        %4076 = vmatprep.subr.mxu0 0.0
        %4077 = vmatpush1.msra.mxu0 0.0
        %4078 = vmatprep.subr.mxu0 0.0
        %4079 = vmatpush1.msra.mxu0 0.0
        %4080 = vmatprep.subr.mxu0 0.0
        %4081 = vmatpush1.msra.mxu0 0.0
        %4082 = vmatprep.subr.mxu0 0.0
        %4083 = vmatpush1.msra.mxu0 0.0
        %4084 = vmatprep.subr.mxu0 0.0
        %4085 = vmatpush1.msra.mxu0 0.0
        %4086 = vmatprep.subr.mxu0 0.0
        %4087 = vmatpush1.msra.mxu0 0.0
        %4088 = vmatprep.subr.mxu0 0.0
        %4089 = vmatpush1.msra.mxu0 0.0
        %4090 = vmatprep.mubr.f32.mxu0 0.0
        %v4091 = vand.u32 %v3762, 4294901760
        %v4092 = vsub.f32 %v3762, %v4091
        %v4093 = vand.u32 %v4092, 4294901760
        %4094 = vmatmul.mubr.f32.gmra.mrb[0].mxu0 %v4093
        %v4095 = vpop.f32.mrb[0].mxu0
        %v4096 = vadd.f32 %v4014, %v4095
        %v4097 = vpop.f32.mrb[0].mxu0
        %4098 = vmatprep.mubr.f32.mxu0 0.0
        %v4099 = vand.u32 %v3765, 4294901760
        %v4100 = vsub.f32 %v3765, %v4099
        %v4101 = vand.u32 %v4100, 4294901760
        %4102 = vmatmul.mubr.f32.gmra.mrb[0].mxu0 %v4101
        %v4103 = vpop.f32.mrb[0].mxu0
        %v4104 = vadd.f32 %v4021, %v4103
        %v4105 = vpop.f32.mrb[0].mxu0
        %4106 = vdwg.mxu0
        %4107 = vmatprep.subr.mxu0 0.0
        %v4108 = vand.u32 %v3756, 4294901760
        %v4109 = vsub.f32 %v3756, %v4108
        %v4110 = vand.u32 %v4109, 4294901760
        %4111 = vmatpush1.msra.mxu0 %v4110
        %4112 = vmatprep.subr.mxu0 0.0
        %v4113 = vand.u32 %v3758, 4294901760
        %v4114 = vsub.f32 %v3758, %v4113
        %v4115 = vand.u32 %v4114, 4294901760
        %4116 = vmatpush1.msra.mxu0 %v4115
        %4117 = vmatprep.subr.mxu0 0.0
        %4118 = vmatpush1.msra.mxu0 0.0
        %4119 = vmatprep.subr.mxu0 0.0
        %4120 = vmatpush1.msra.mxu0 0.0
        %4121 = vmatprep.subr.mxu0 0.0
        %4122 = vmatpush1.msra.mxu0 0.0
        %4123 = vmatprep.subr.mxu0 0.0
        %4124 = vmatpush1.msra.mxu0 0.0
        %4125 = vmatprep.subr.mxu0 0.0
        %4126 = vmatpush1.msra.mxu0 0.0
        %4127 = vmatprep.subr.mxu0 0.0
        %4128 = vmatpush1.msra.mxu0 0.0
        %4129 = vmatprep.subr.mxu0 0.0
        %4130 = vmatpush1.msra.mxu0 0.0
        %4131 = vmatprep.subr.mxu0 0.0
        %4132 = vmatpush1.msra.mxu0 0.0
        %4133 = vmatprep.subr.mxu0 0.0
        %4134 = vmatpush1.msra.mxu0 0.0
        %4135 = vmatprep.subr.mxu0 0.0
        %4136 = vmatpush1.msra.mxu0 0.0
        %4137 = vmatprep.subr.mxu0 0.0
        %4138 = vmatpush1.msra.mxu0 0.0
        %4139 = vmatprep.subr.mxu0 0.0
        %4140 = vmatpush1.msra.mxu0 0.0
        %4141 = vmatprep.subr.mxu0 0.0
        %4142 = vmatpush1.msra.mxu0 0.0
        %4143 = vmatprep.subr.mxu0 0.0
        %4144 = vmatpush1.msra.mxu0 0.0
        %4145 = vmatprep.subr.mxu0 0.0
        %4146 = vmatpush1.msra.mxu0 0.0
        %4147 = vmatprep.subr.mxu0 0.0
        %4148 = vmatpush1.msra.mxu0 0.0
        %4149 = vmatprep.subr.mxu0 0.0
        %4150 = vmatpush1.msra.mxu0 0.0
        %4151 = vmatprep.subr.mxu0 0.0
        %4152 = vmatpush1.msra.mxu0 0.0
        %4153 = vmatprep.subr.mxu0 0.0
        %4154 = vmatpush1.msra.mxu0 0.0
        %4155 = vmatprep.subr.mxu0 0.0
        %4156 = vmatpush1.msra.mxu0 0.0
        %4157 = vmatprep.subr.mxu0 0.0
        %4158 = vmatpush1.msra.mxu0 0.0
        %4159 = vmatprep.subr.mxu0 0.0
        %4160 = vmatpush1.msra.mxu0 0.0
        %4161 = vmatprep.subr.mxu0 0.0
        %4162 = vmatpush1.msra.mxu0 0.0
        %4163 = vmatprep.subr.mxu0 0.0
        %4164 = vmatpush1.msra.mxu0 0.0
        %4165 = vmatprep.subr.mxu0 0.0
        %4166 = vmatpush1.msra.mxu0 0.0
        %4167 = vmatprep.subr.mxu0 0.0
        %4168 = vmatpush1.msra.mxu0 0.0
        %4169 = vmatprep.subr.mxu0 0.0
        %4170 = vmatpush1.msra.mxu0 0.0
        %4171 = vmatprep.subr.mxu0 0.0
        %4172 = vmatpush1.msra.mxu0 0.0
        %4173 = vmatprep.subr.mxu0 0.0
        %4174 = vmatpush1.msra.mxu0 0.0
        %4175 = vmatprep.subr.mxu0 0.0
        %4176 = vmatpush1.msra.mxu0 0.0
        %4177 = vmatprep.mubr.f32.mxu0 0.0
        %v4178 = vand.u32 %v3762, 4294901760
        %4179 = vmatmul.mubr.f32.gmra.mrb[0].mxu0 %v4178
        %v4180 = vpop.f32.mrb[0].mxu0
        %v4181 = vadd.f32 %v4096, %v4180
        %v4182 = vpop.f32.mrb[0].mxu0
        %4183 = vmatprep.mubr.f32.mxu0 0.0
        %v4184 = vand.u32 %v3765, 4294901760
        %4185 = vmatmul.mubr.f32.gmra.mrb[0].mxu0 %v4184
        %v4186 = vpop.f32.mrb[0].mxu0
        %v4187 = vadd.f32 %v4104, %v4186
        %v4188 = vpop.f32.mrb[0].mxu0
        %4189 = vdwg.mxu0
        %4190 = vmatprep.subr.mxu0 0.0
        %v4191 = vand.u32 %v3756, 4294901760
        %4192 = vmatpush1.msra.mxu0 %v4191
        %4193 = vmatprep.subr.mxu0 0.0
        %v4194 = vand.u32 %v3758, 4294901760
        %4195 = vmatpush1.msra.mxu0 %v4194
        %4196 = vmatprep.subr.mxu0 0.0
        %4197 = vmatpush1.msra.mxu0 0.0
        %4198 = vmatprep.subr.mxu0 0.0
        %4199 = vmatpush1.msra.mxu0 0.0
        %4200 = vmatprep.subr.mxu0 0.0
        %4201 = vmatpush1.msra.mxu0 0.0
        %4202 = vmatprep.subr.mxu0 0.0
        %4203 = vmatpush1.msra.mxu0 0.0
        %4204 = vmatprep.subr.mxu0 0.0
        %4205 = vmatpush1.msra.mxu0 0.0
        %4206 = vmatprep.subr.mxu0 0.0
        %4207 = vmatpush1.msra.mxu0 0.0
        %4208 = vmatprep.subr.mxu0 0.0
        %4209 = vmatpush1.msra.mxu0 0.0
        %4210 = vmatprep.subr.mxu0 0.0
        %4211 = vmatpush1.msra.mxu0 0.0
        %4212 = vmatprep.subr.mxu0 0.0
        %4213 = vmatpush1.msra.mxu0 0.0
        %4214 = vmatprep.subr.mxu0 0.0
        %4215 = vmatpush1.msra.mxu0 0.0
        %4216 = vmatprep.subr.mxu0 0.0
        %4217 = vmatpush1.msra.mxu0 0.0
        %4218 = vmatprep.subr.mxu0 0.0
        %4219 = vmatpush1.msra.mxu0 0.0
        %4220 = vmatprep.subr.mxu0 0.0
        %4221 = vmatpush1.msra.mxu0 0.0
        %4222 = vmatprep.subr.mxu0 0.0
        %4223 = vmatpush1.msra.mxu0 0.0
        %4224 = vmatprep.subr.mxu0 0.0
        %4225 = vmatpush1.msra.mxu0 0.0
        %4226 = vmatprep.subr.mxu0 0.0
        %4227 = vmatpush1.msra.mxu0 0.0
        %4228 = vmatprep.subr.mxu0 0.0
        %4229 = vmatpush1.msra.mxu0 0.0
        %4230 = vmatprep.subr.mxu0 0.0
        %4231 = vmatpush1.msra.mxu0 0.0
        %4232 = vmatprep.subr.mxu0 0.0
        %4233 = vmatpush1.msra.mxu0 0.0
        %4234 = vmatprep.subr.mxu0 0.0
        %4235 = vmatpush1.msra.mxu0 0.0
        %4236 = vmatprep.subr.mxu0 0.0
        %4237 = vmatpush1.msra.mxu0 0.0
        %4238 = vmatprep.subr.mxu0 0.0
        %4239 = vmatpush1.msra.mxu0 0.0
        %4240 = vmatprep.subr.mxu0 0.0
        %4241 = vmatpush1.msra.mxu0 0.0
        %4242 = vmatprep.subr.mxu0 0.0
        %4243 = vmatpush1.msra.mxu0 0.0
        %4244 = vmatprep.subr.mxu0 0.0
        %4245 = vmatpush1.msra.mxu0 0.0
        %4246 = vmatprep.subr.mxu0 0.0
        %4247 = vmatpush1.msra.mxu0 0.0
        %4248 = vmatprep.subr.mxu0 0.0
        %4249 = vmatpush1.msra.mxu0 0.0
        %4250 = vmatprep.subr.mxu0 0.0
        %4251 = vmatpush1.msra.mxu0 0.0
        %4252 = vmatprep.subr.mxu0 0.0
        %4253 = vmatpush1.msra.mxu0 0.0
        %4254 = vmatprep.subr.mxu0 0.0
        %4255 = vmatpush1.msra.mxu0 0.0
        %4256 = vmatprep.mubr.f32.mxu0 0.0
        %v4257 = vand.u32 %v3762, 4294901760
        %4258 = vmatmul.mubr.f32.gmra.mrb[0].mxu0 %v4257
        %v4259 = vpop.f32.mrb[0].mxu0
        %v4260 = vadd.f32 %v4181, %v4259
        %v4261 = vpop.f32.mrb[0].mxu0
        %4262 = vmatprep.mubr.f32.mxu0 0.0
        %v4263 = vand.u32 %v3765, 4294901760
        %4264 = vmatmul.mubr.f32.gmra.mrb[0].mxu0 %v4263
        %v4265 = vpop.f32.mrb[0].mxu0
        %v4266 = vadd.f32 %v4187, %v4265
        %v4267 = vpop.f32.mrb[0].mxu0
        %4268 = vdwg.mxu0
        %4269 = vrot.lane.b32.xlu0 %v1092, 104
        %v4270 = vpop.permute.xlu0 %4269
        %4271 = vrot.lane.b32.xlu0 %v1098, 104
        %v4272 = vpop.permute.xlu0 %4271
        %4273 = vrot.lane.b32.xlu0 %v1092, 72
        %v4274 = vpop.permute.xlu0 %4273
        %4275 = vrot.lane.b32.xlu0 %v1098, 72
        %v4276 = vpop.permute.xlu0 %4275
        %v4277 = vsel %vm1107, %v4270, 0
        %v4279 = vsel %vm1107, %v4272, 0
        %v4281 = vsel %vm1107, %v4274, 0
        %v4283 = vsel %vm1107, %v4276, 0
        %4285 = vmatprep.subr.mxu0 0.0
        %v4286 = vand.u32 %v4281, 4294901760
        %4287 = vmatpush1.xpose.msra.mxu0 %v4286
        %4288 = vmatprep.subr.mxu0 0.0
        %v4289 = vand.u32 %v4283, 4294901760
        %4290 = vmatpush1.xpose.msra.mxu0 %v4289
        %4291 = vmatprep.subr.mxu0 0.0
        %4292 = vmatpush1.xpose.msra.mxu0 0.0
        %4293 = vmatprep.subr.mxu0 0.0
        %4294 = vmatpush1.xpose.msra.mxu0 0.0
        %4295 = vmatprep.subr.mxu0 0.0
        %4296 = vmatpush1.xpose.msra.mxu0 0.0
        %4297 = vmatprep.subr.mxu0 0.0
        %4298 = vmatpush1.xpose.msra.mxu0 0.0
        %4299 = vmatprep.subr.mxu0 0.0
        %4300 = vmatpush1.xpose.msra.mxu0 0.0
        %4301 = vmatprep.subr.mxu0 0.0
        %4302 = vmatpush1.xpose.msra.mxu0 0.0
        %4303 = vmatprep.subr.mxu0 0.0
        %4304 = vmatpush1.xpose.msra.mxu0 0.0
        %4305 = vmatprep.subr.mxu0 0.0
        %4306 = vmatpush1.xpose.msra.mxu0 0.0
        %4307 = vmatprep.subr.mxu0 0.0
        %4308 = vmatpush1.xpose.msra.mxu0 0.0
        %4309 = vmatprep.subr.mxu0 0.0
        %4310 = vmatpush1.xpose.msra.mxu0 0.0
        %4311 = vmatprep.subr.mxu0 0.0
        %4312 = vmatpush1.xpose.msra.mxu0 0.0
        %4313 = vmatprep.subr.mxu0 0.0
        %4314 = vmatpush1.xpose.msra.mxu0 0.0
        %4315 = vmatprep.subr.mxu0 0.0
        %4316 = vmatpush1.xpose.msra.mxu0 0.0
        %4317 = vmatprep.subr.mxu0 0.0
        %4318 = vmatpush1.xpose.msra.mxu0 0.0
        %4319 = vmatprep.subr.mxu0 0.0
        %4320 = vmatpush1.xpose.msra.mxu0 0.0
        %4321 = vmatprep.subr.mxu0 0.0
        %4322 = vmatpush1.xpose.msra.mxu0 0.0
        %4323 = vmatprep.subr.mxu0 0.0
        %4324 = vmatpush1.xpose.msra.mxu0 0.0
        %4325 = vmatprep.subr.mxu0 0.0
        %4326 = vmatpush1.xpose.msra.mxu0 0.0
        %4327 = vmatprep.subr.mxu0 0.0
        %4328 = vmatpush1.xpose.msra.mxu0 0.0
        %4329 = vmatprep.subr.mxu0 0.0
        %4330 = vmatpush1.xpose.msra.mxu0 0.0
        %4331 = vmatprep.subr.mxu0 0.0
        %4332 = vmatpush1.xpose.msra.mxu0 0.0
        %4333 = vmatprep.subr.mxu0 0.0
        %4334 = vmatpush1.xpose.msra.mxu0 0.0
        %4335 = vmatprep.subr.mxu0 0.0
        %4336 = vmatpush1.xpose.msra.mxu0 0.0
        %4337 = vmatprep.subr.mxu0 0.0
        %4338 = vmatpush1.xpose.msra.mxu0 0.0
        %4339 = vmatprep.subr.mxu0 0.0
        %4340 = vmatpush1.xpose.msra.mxu0 0.0
        %4341 = vmatprep.subr.mxu0 0.0
        %4342 = vmatpush1.xpose.msra.mxu0 0.0
        %4343 = vmatprep.subr.mxu0 0.0
        %4344 = vmatpush1.xpose.msra.mxu0 0.0
        %4345 = vmatprep.subr.mxu0 0.0
        %4346 = vmatpush1.xpose.msra.mxu0 0.0
        %4347 = vmatprep.subr.mxu0 0.0
        %4348 = vmatpush1.xpose.msra.mxu0 0.0
        %4349 = vmatprep.subr.mxu0 0.0
        %4350 = vmatpush1.xpose.msra.mxu0 0.0
        %4351 = vmatprep.mubr.f32.mxu0 0.0
        %v4352 = vand.u32 %v4277, 4294901760
        %v4353 = vsub.f32 %v4277, %v4352
        %v4354 = vand.u32 %v4353, 4294901760
        %v4355 = vsub.f32 %v4353, %v4354
        %v4356 = vand.u32 %v4355, 4294901760
        %4357 = vmatmul.mubr.f32.gmra.mrb[0].mxu0 %v4356
        %v4358 = vpop.f32.mrb[0].mxu0
        %v4359 = vadd.f32 0.0, %v4358
        %v4360 = vpop.f32.mrb[0].mxu0
        %4361 = vmatprep.mubr.f32.mxu0 0.0
        %v4362 = vand.u32 %v4279, 4294901760
        %v4363 = vsub.f32 %v4279, %v4362
        %v4364 = vand.u32 %v4363, 4294901760
        %v4365 = vsub.f32 %v4363, %v4364
        %v4366 = vand.u32 %v4365, 4294901760
        %4367 = vmatmul.mubr.f32.gmra.mrb[0].mxu0 %v4366
        %v4368 = vpop.f32.mrb[0].mxu0
        %v4369 = vadd.f32 0.0, %v4368
        %v4370 = vpop.f32.mrb[0].mxu0
        %4371 = vdwg.mxu0
        %4372 = vmatprep.subr.mxu0 0.0
        %v4373 = vand.u32 %v4281, 4294901760
        %v4374 = vsub.f32 %v4281, %v4373
        %v4375 = vand.u32 %v4374, 4294901760
        %v4376 = vsub.f32 %v4374, %v4375
        %v4377 = vand.u32 %v4376, 4294901760
        %4378 = vmatpush1.xpose.msra.mxu0 %v4377
        %4379 = vmatprep.subr.mxu0 0.0
        %v4380 = vand.u32 %v4283, 4294901760
        %v4381 = vsub.f32 %v4283, %v4380
        %v4382 = vand.u32 %v4381, 4294901760
        %v4383 = vsub.f32 %v4381, %v4382
        %v4384 = vand.u32 %v4383, 4294901760
        %4385 = vmatpush1.xpose.msra.mxu0 %v4384
        %4386 = vmatprep.subr.mxu0 0.0
        %4387 = vmatpush1.xpose.msra.mxu0 0.0
        %4388 = vmatprep.subr.mxu0 0.0
        %4389 = vmatpush1.xpose.msra.mxu0 0.0
        %4390 = vmatprep.subr.mxu0 0.0
        %4391 = vmatpush1.xpose.msra.mxu0 0.0
        %4392 = vmatprep.subr.mxu0 0.0
        %4393 = vmatpush1.xpose.msra.mxu0 0.0
        %4394 = vmatprep.subr.mxu0 0.0
        %4395 = vmatpush1.xpose.msra.mxu0 0.0
        %4396 = vmatprep.subr.mxu0 0.0
        %4397 = vmatpush1.xpose.msra.mxu0 0.0
        %4398 = vmatprep.subr.mxu0 0.0
        %4399 = vmatpush1.xpose.msra.mxu0 0.0
        %4400 = vmatprep.subr.mxu0 0.0
        %4401 = vmatpush1.xpose.msra.mxu0 0.0
        %4402 = vmatprep.subr.mxu0 0.0
        %4403 = vmatpush1.xpose.msra.mxu0 0.0
        %4404 = vmatprep.subr.mxu0 0.0
        %4405 = vmatpush1.xpose.msra.mxu0 0.0
        %4406 = vmatprep.subr.mxu0 0.0
        %4407 = vmatpush1.xpose.msra.mxu0 0.0
        %4408 = vmatprep.subr.mxu0 0.0
        %4409 = vmatpush1.xpose.msra.mxu0 0.0
        %4410 = vmatprep.subr.mxu0 0.0
        %4411 = vmatpush1.xpose.msra.mxu0 0.0
        %4412 = vmatprep.subr.mxu0 0.0
        %4413 = vmatpush1.xpose.msra.mxu0 0.0
        %4414 = vmatprep.subr.mxu0 0.0
        %4415 = vmatpush1.xpose.msra.mxu0 0.0
        %4416 = vmatprep.subr.mxu0 0.0
        %4417 = vmatpush1.xpose.msra.mxu0 0.0
        %4418 = vmatprep.subr.mxu0 0.0
        %4419 = vmatpush1.xpose.msra.mxu0 0.0
        %4420 = vmatprep.subr.mxu0 0.0
        %4421 = vmatpush1.xpose.msra.mxu0 0.0
        %4422 = vmatprep.subr.mxu0 0.0
        %4423 = vmatpush1.xpose.msra.mxu0 0.0
        %4424 = vmatprep.subr.mxu0 0.0
        %4425 = vmatpush1.xpose.msra.mxu0 0.0
        %4426 = vmatprep.subr.mxu0 0.0
        %4427 = vmatpush1.xpose.msra.mxu0 0.0
        %4428 = vmatprep.subr.mxu0 0.0
        %4429 = vmatpush1.xpose.msra.mxu0 0.0
        %4430 = vmatprep.subr.mxu0 0.0
        %4431 = vmatpush1.xpose.msra.mxu0 0.0
        %4432 = vmatprep.subr.mxu0 0.0
        %4433 = vmatpush1.xpose.msra.mxu0 0.0
        %4434 = vmatprep.subr.mxu0 0.0
        %4435 = vmatpush1.xpose.msra.mxu0 0.0
        %4436 = vmatprep.subr.mxu0 0.0
        %4437 = vmatpush1.xpose.msra.mxu0 0.0
        %4438 = vmatprep.subr.mxu0 0.0
        %4439 = vmatpush1.xpose.msra.mxu0 0.0
        %4440 = vmatprep.subr.mxu0 0.0
        %4441 = vmatpush1.xpose.msra.mxu0 0.0
        %4442 = vmatprep.subr.mxu0 0.0
        %4443 = vmatpush1.xpose.msra.mxu0 0.0
        %4444 = vmatprep.subr.mxu0 0.0
        %4445 = vmatpush1.xpose.msra.mxu0 0.0
        %4446 = vmatprep.mubr.f32.mxu0 0.0
        %v4447 = vand.u32 %v4277, 4294901760
        %4448 = vmatmul.mubr.f32.gmra.mrb[0].mxu0 %v4447
        %v4449 = vpop.f32.mrb[0].mxu0
        %v4450 = vadd.f32 %v4359, %v4449
        %v4451 = vpop.f32.mrb[0].mxu0
        %4452 = vmatprep.mubr.f32.mxu0 0.0
        %v4453 = vand.u32 %v4279, 4294901760
        %4454 = vmatmul.mubr.f32.gmra.mrb[0].mxu0 %v4453
        %v4455 = vpop.f32.mrb[0].mxu0
        %v4456 = vadd.f32 %v4369, %v4455
        %v4457 = vpop.f32.mrb[0].mxu0
        %4458 = vdwg.mxu0
        %4459 = vmatprep.subr.mxu0 0.0
        %v4460 = vand.u32 %v4281, 4294901760
        %v4461 = vsub.f32 %v4281, %v4460
        %4462 = vmatpush1.xpose.msra.mxu0 %v4461
        %4463 = vmatprep.subr.mxu0 0.0
        %v4464 = vand.u32 %v4283, 4294901760
        %v4465 = vsub.f32 %v4283, %v4464
        %4466 = vmatpush1.xpose.msra.mxu0 %v4465
        %4467 = vmatprep.subr.mxu0 0.0
        %4468 = vmatpush1.xpose.msra.mxu0 0.0
        %4469 = vmatprep.subr.mxu0 0.0
        %4470 = vmatpush1.xpose.msra.mxu0 0.0
        %4471 = vmatprep.subr.mxu0 0.0
        %4472 = vmatpush1.xpose.msra.mxu0 0.0
        %4473 = vmatprep.subr.mxu0 0.0
        %4474 = vmatpush1.xpose.msra.mxu0 0.0
        %4475 = vmatprep.subr.mxu0 0.0
        %4476 = vmatpush1.xpose.msra.mxu0 0.0
        %4477 = vmatprep.subr.mxu0 0.0
        %4478 = vmatpush1.xpose.msra.mxu0 0.0
        %4479 = vmatprep.subr.mxu0 0.0
        %4480 = vmatpush1.xpose.msra.mxu0 0.0
        %4481 = vmatprep.subr.mxu0 0.0
        %4482 = vmatpush1.xpose.msra.mxu0 0.0
        %4483 = vmatprep.subr.mxu0 0.0
        %4484 = vmatpush1.xpose.msra.mxu0 0.0
        %4485 = vmatprep.subr.mxu0 0.0
        %4486 = vmatpush1.xpose.msra.mxu0 0.0
        %4487 = vmatprep.subr.mxu0 0.0
        %4488 = vmatpush1.xpose.msra.mxu0 0.0
        %4489 = vmatprep.subr.mxu0 0.0
        %4490 = vmatpush1.xpose.msra.mxu0 0.0
        %4491 = vmatprep.subr.mxu0 0.0
        %4492 = vmatpush1.xpose.msra.mxu0 0.0
        %4493 = vmatprep.subr.mxu0 0.0
        %4494 = vmatpush1.xpose.msra.mxu0 0.0
        %4495 = vmatprep.subr.mxu0 0.0
        %4496 = vmatpush1.xpose.msra.mxu0 0.0
        %4497 = vmatprep.subr.mxu0 0.0
        %4498 = vmatpush1.xpose.msra.mxu0 0.0
        %4499 = vmatprep.subr.mxu0 0.0
        %4500 = vmatpush1.xpose.msra.mxu0 0.0
        %4501 = vmatprep.subr.mxu0 0.0
        %4502 = vmatpush1.xpose.msra.mxu0 0.0
        %4503 = vmatprep.subr.mxu0 0.0
        %4504 = vmatpush1.xpose.msra.mxu0 0.0
        %4505 = vmatprep.subr.mxu0 0.0
        %4506 = vmatpush1.xpose.msra.mxu0 0.0
        %4507 = vmatprep.subr.mxu0 0.0
        %4508 = vmatpush1.xpose.msra.mxu0 0.0
        %4509 = vmatprep.subr.mxu0 0.0
        %4510 = vmatpush1.xpose.msra.mxu0 0.0
        %4511 = vmatprep.subr.mxu0 0.0
        %4512 = vmatpush1.xpose.msra.mxu0 0.0
        %4513 = vmatprep.subr.mxu0 0.0
        %4514 = vmatpush1.xpose.msra.mxu0 0.0
        %4515 = vmatprep.subr.mxu0 0.0
        %4516 = vmatpush1.xpose.msra.mxu0 0.0
        %4517 = vmatprep.subr.mxu0 0.0
        %4518 = vmatpush1.xpose.msra.mxu0 0.0
        %4519 = vmatprep.subr.mxu0 0.0
        %4520 = vmatpush1.xpose.msra.mxu0 0.0
        %4521 = vmatprep.subr.mxu0 0.0
        %4522 = vmatpush1.xpose.msra.mxu0 0.0
        %4523 = vmatprep.subr.mxu0 0.0
        %4524 = vmatpush1.xpose.msra.mxu0 0.0
        %4525 = vmatprep.subr.mxu0 0.0
        %4526 = vmatpush1.xpose.msra.mxu0 0.0
        %4527 = vmatprep.mubr.f32.mxu0 0.0
        %v4528 = vand.u32 %v4277, 4294901760
        %v4529 = vsub.f32 %v4277, %v4528
        %4530 = vmatmul.mubr.f32.gmra.mrb[0].mxu0 %v4529
        %v4531 = vpop.f32.mrb[0].mxu0
        %v4532 = vadd.f32 %v4450, %v4531
        %v4533 = vpop.f32.mrb[0].mxu0
        %4534 = vmatprep.mubr.f32.mxu0 0.0
        %v4535 = vand.u32 %v4279, 4294901760
        %v4536 = vsub.f32 %v4279, %v4535
        %4537 = vmatmul.mubr.f32.gmra.mrb[0].mxu0 %v4536
        %v4538 = vpop.f32.mrb[0].mxu0
        %v4539 = vadd.f32 %v4456, %v4538
        %v4540 = vpop.f32.mrb[0].mxu0
        %4541 = vdwg.mxu0
        %4542 = vmatprep.subr.mxu0 0.0
        %v4543 = vand.u32 %v4281, 4294901760
        %4544 = vmatpush1.xpose.msra.mxu0 %v4543
        %4545 = vmatprep.subr.mxu0 0.0
        %v4546 = vand.u32 %v4283, 4294901760
        %4547 = vmatpush1.xpose.msra.mxu0 %v4546
        %4548 = vmatprep.subr.mxu0 0.0
        %4549 = vmatpush1.xpose.msra.mxu0 0.0
        %4550 = vmatprep.subr.mxu0 0.0
        %4551 = vmatpush1.xpose.msra.mxu0 0.0
        %4552 = vmatprep.subr.mxu0 0.0
        %4553 = vmatpush1.xpose.msra.mxu0 0.0
        %4554 = vmatprep.subr.mxu0 0.0
        %4555 = vmatpush1.xpose.msra.mxu0 0.0
        %4556 = vmatprep.subr.mxu0 0.0
        %4557 = vmatpush1.xpose.msra.mxu0 0.0
        %4558 = vmatprep.subr.mxu0 0.0
        %4559 = vmatpush1.xpose.msra.mxu0 0.0
        %4560 = vmatprep.subr.mxu0 0.0
        %4561 = vmatpush1.xpose.msra.mxu0 0.0
        %4562 = vmatprep.subr.mxu0 0.0
        %4563 = vmatpush1.xpose.msra.mxu0 0.0
        %4564 = vmatprep.subr.mxu0 0.0
        %4565 = vmatpush1.xpose.msra.mxu0 0.0
        %4566 = vmatprep.subr.mxu0 0.0
        %4567 = vmatpush1.xpose.msra.mxu0 0.0
        %4568 = vmatprep.subr.mxu0 0.0
        %4569 = vmatpush1.xpose.msra.mxu0 0.0
        %4570 = vmatprep.subr.mxu0 0.0
        %4571 = vmatpush1.xpose.msra.mxu0 0.0
        %4572 = vmatprep.subr.mxu0 0.0
        %4573 = vmatpush1.xpose.msra.mxu0 0.0
        %4574 = vmatprep.subr.mxu0 0.0
        %4575 = vmatpush1.xpose.msra.mxu0 0.0
        %4576 = vmatprep.subr.mxu0 0.0
        %4577 = vmatpush1.xpose.msra.mxu0 0.0
        %4578 = vmatprep.subr.mxu0 0.0
        %4579 = vmatpush1.xpose.msra.mxu0 0.0
        %4580 = vmatprep.subr.mxu0 0.0
        %4581 = vmatpush1.xpose.msra.mxu0 0.0
        %4582 = vmatprep.subr.mxu0 0.0
        %4583 = vmatpush1.xpose.msra.mxu0 0.0
        %4584 = vmatprep.subr.mxu0 0.0
        %4585 = vmatpush1.xpose.msra.mxu0 0.0
        %4586 = vmatprep.subr.mxu0 0.0
        %4587 = vmatpush1.xpose.msra.mxu0 0.0
        %4588 = vmatprep.subr.mxu0 0.0
        %4589 = vmatpush1.xpose.msra.mxu0 0.0
        %4590 = vmatprep.subr.mxu0 0.0
        %4591 = vmatpush1.xpose.msra.mxu0 0.0
        %4592 = vmatprep.subr.mxu0 0.0
        %4593 = vmatpush1.xpose.msra.mxu0 0.0
        %4594 = vmatprep.subr.mxu0 0.0
        %4595 = vmatpush1.xpose.msra.mxu0 0.0
        %4596 = vmatprep.subr.mxu0 0.0
        %4597 = vmatpush1.xpose.msra.mxu0 0.0
        %4598 = vmatprep.subr.mxu0 0.0
        %4599 = vmatpush1.xpose.msra.mxu0 0.0
        %4600 = vmatprep.subr.mxu0 0.0
        %4601 = vmatpush1.xpose.msra.mxu0 0.0
        %4602 = vmatprep.subr.mxu0 0.0
        %4603 = vmatpush1.xpose.msra.mxu0 0.0
        %4604 = vmatprep.subr.mxu0 0.0
        %4605 = vmatpush1.xpose.msra.mxu0 0.0
        %4606 = vmatprep.subr.mxu0 0.0
        %4607 = vmatpush1.xpose.msra.mxu0 0.0
        %4608 = vmatprep.mubr.f32.mxu0 0.0
        %v4609 = vand.u32 %v4277, 4294901760
        %v4610 = vsub.f32 %v4277, %v4609
        %v4611 = vand.u32 %v4610, 4294901760
        %4612 = vmatmul.mubr.f32.gmra.mrb[0].mxu0 %v4611
        %v4613 = vpop.f32.mrb[0].mxu0
        %v4614 = vadd.f32 %v4532, %v4613
        %v4615 = vpop.f32.mrb[0].mxu0
        %4616 = vmatprep.mubr.f32.mxu0 0.0
        %v4617 = vand.u32 %v4279, 4294901760
        %v4618 = vsub.f32 %v4279, %v4617
        %v4619 = vand.u32 %v4618, 4294901760
        %4620 = vmatmul.mubr.f32.gmra.mrb[0].mxu0 %v4619
        %v4621 = vpop.f32.mrb[0].mxu0
        %v4622 = vadd.f32 %v4539, %v4621
        %v4623 = vpop.f32.mrb[0].mxu0
        %4624 = vdwg.mxu0
        %4625 = vmatprep.subr.mxu0 0.0
        %v4626 = vand.u32 %v4281, 4294901760
        %v4627 = vsub.f32 %v4281, %v4626
        %v4628 = vand.u32 %v4627, 4294901760
        %4629 = vmatpush1.xpose.msra.mxu0 %v4628
        %4630 = vmatprep.subr.mxu0 0.0
        %v4631 = vand.u32 %v4283, 4294901760
        %v4632 = vsub.f32 %v4283, %v4631
        %v4633 = vand.u32 %v4632, 4294901760
        %4634 = vmatpush1.xpose.msra.mxu0 %v4633
        %4635 = vmatprep.subr.mxu0 0.0
        %4636 = vmatpush1.xpose.msra.mxu0 0.0
        %4637 = vmatprep.subr.mxu0 0.0
        %4638 = vmatpush1.xpose.msra.mxu0 0.0
        %4639 = vmatprep.subr.mxu0 0.0
        %4640 = vmatpush1.xpose.msra.mxu0 0.0
        %4641 = vmatprep.subr.mxu0 0.0
        %4642 = vmatpush1.xpose.msra.mxu0 0.0
        %4643 = vmatprep.subr.mxu0 0.0
        %4644 = vmatpush1.xpose.msra.mxu0 0.0
        %4645 = vmatprep.subr.mxu0 0.0
        %4646 = vmatpush1.xpose.msra.mxu0 0.0
        %4647 = vmatprep.subr.mxu0 0.0
        %4648 = vmatpush1.xpose.msra.mxu0 0.0
        %4649 = vmatprep.subr.mxu0 0.0
        %4650 = vmatpush1.xpose.msra.mxu0 0.0
        %4651 = vmatprep.subr.mxu0 0.0
        %4652 = vmatpush1.xpose.msra.mxu0 0.0
        %4653 = vmatprep.subr.mxu0 0.0
        %4654 = vmatpush1.xpose.msra.mxu0 0.0
        %4655 = vmatprep.subr.mxu0 0.0
        %4656 = vmatpush1.xpose.msra.mxu0 0.0
        %4657 = vmatprep.subr.mxu0 0.0
        %4658 = vmatpush1.xpose.msra.mxu0 0.0
        %4659 = vmatprep.subr.mxu0 0.0
        %4660 = vmatpush1.xpose.msra.mxu0 0.0
        %4661 = vmatprep.subr.mxu0 0.0
        %4662 = vmatpush1.xpose.msra.mxu0 0.0
        %4663 = vmatprep.subr.mxu0 0.0
        %4664 = vmatpush1.xpose.msra.mxu0 0.0
        %4665 = vmatprep.subr.mxu0 0.0
        %4666 = vmatpush1.xpose.msra.mxu0 0.0
        %4667 = vmatprep.subr.mxu0 0.0
        %4668 = vmatpush1.xpose.msra.mxu0 0.0
        %4669 = vmatprep.subr.mxu0 0.0
        %4670 = vmatpush1.xpose.msra.mxu0 0.0
        %4671 = vmatprep.subr.mxu0 0.0
        %4672 = vmatpush1.xpose.msra.mxu0 0.0
        %4673 = vmatprep.subr.mxu0 0.0
        %4674 = vmatpush1.xpose.msra.mxu0 0.0
        %4675 = vmatprep.subr.mxu0 0.0
        %4676 = vmatpush1.xpose.msra.mxu0 0.0
        %4677 = vmatprep.subr.mxu0 0.0
        %4678 = vmatpush1.xpose.msra.mxu0 0.0
        %4679 = vmatprep.subr.mxu0 0.0
        %4680 = vmatpush1.xpose.msra.mxu0 0.0
        %4681 = vmatprep.subr.mxu0 0.0
        %4682 = vmatpush1.xpose.msra.mxu0 0.0
        %4683 = vmatprep.subr.mxu0 0.0
        %4684 = vmatpush1.xpose.msra.mxu0 0.0
        %4685 = vmatprep.subr.mxu0 0.0
        %4686 = vmatpush1.xpose.msra.mxu0 0.0
        %4687 = vmatprep.subr.mxu0 0.0
        %4688 = vmatpush1.xpose.msra.mxu0 0.0
        %4689 = vmatprep.subr.mxu0 0.0
        %4690 = vmatpush1.xpose.msra.mxu0 0.0
        %4691 = vmatprep.subr.mxu0 0.0
        %4692 = vmatpush1.xpose.msra.mxu0 0.0
        %4693 = vmatprep.subr.mxu0 0.0
        %4694 = vmatpush1.xpose.msra.mxu0 0.0
        %4695 = vmatprep.mubr.f32.mxu0 0.0
        %v4696 = vand.u32 %v4277, 4294901760
        %4697 = vmatmul.mubr.f32.gmra.mrb[0].mxu0 %v4696
        %v4698 = vpop.f32.mrb[0].mxu0
        %v4699 = vadd.f32 %v4614, %v4698
        %v4700 = vpop.f32.mrb[0].mxu0
        %4701 = vmatprep.mubr.f32.mxu0 0.0
        %v4702 = vand.u32 %v4279, 4294901760
        %4703 = vmatmul.mubr.f32.gmra.mrb[0].mxu0 %v4702
        %v4704 = vpop.f32.mrb[0].mxu0
        %v4705 = vadd.f32 %v4622, %v4704
        %v4706 = vpop.f32.mrb[0].mxu0
        %4707 = vdwg.mxu0
        %4708 = vmatprep.subr.mxu0 0.0
        %v4709 = vand.u32 %v4281, 4294901760
        %4710 = vmatpush1.xpose.msra.mxu0 %v4709
        %4711 = vmatprep.subr.mxu0 0.0
        %v4712 = vand.u32 %v4283, 4294901760
        %4713 = vmatpush1.xpose.msra.mxu0 %v4712
        %4714 = vmatprep.subr.mxu0 0.0
        %4715 = vmatpush1.xpose.msra.mxu0 0.0
        %4716 = vmatprep.subr.mxu0 0.0
        %4717 = vmatpush1.xpose.msra.mxu0 0.0
        %4718 = vmatprep.subr.mxu0 0.0
        %4719 = vmatpush1.xpose.msra.mxu0 0.0
        %4720 = vmatprep.subr.mxu0 0.0
        %4721 = vmatpush1.xpose.msra.mxu0 0.0
        %4722 = vmatprep.subr.mxu0 0.0
        %4723 = vmatpush1.xpose.msra.mxu0 0.0
        %4724 = vmatprep.subr.mxu0 0.0
        %4725 = vmatpush1.xpose.msra.mxu0 0.0
        %4726 = vmatprep.subr.mxu0 0.0
        %4727 = vmatpush1.xpose.msra.mxu0 0.0
        %4728 = vmatprep.subr.mxu0 0.0
        %4729 = vmatpush1.xpose.msra.mxu0 0.0
        %4730 = vmatprep.subr.mxu0 0.0
        %4731 = vmatpush1.xpose.msra.mxu0 0.0
        %4732 = vmatprep.subr.mxu0 0.0
        %4733 = vmatpush1.xpose.msra.mxu0 0.0
        %4734 = vmatprep.subr.mxu0 0.0
        %4735 = vmatpush1.xpose.msra.mxu0 0.0
        %4736 = vmatprep.subr.mxu0 0.0
        %4737 = vmatpush1.xpose.msra.mxu0 0.0
        %4738 = vmatprep.subr.mxu0 0.0
        %4739 = vmatpush1.xpose.msra.mxu0 0.0
        %4740 = vmatprep.subr.mxu0 0.0
        %4741 = vmatpush1.xpose.msra.mxu0 0.0
        %4742 = vmatprep.subr.mxu0 0.0
        %4743 = vmatpush1.xpose.msra.mxu0 0.0
        %4744 = vmatprep.subr.mxu0 0.0
        %4745 = vmatpush1.xpose.msra.mxu0 0.0
        %4746 = vmatprep.subr.mxu0 0.0
        %4747 = vmatpush1.xpose.msra.mxu0 0.0
        %4748 = vmatprep.subr.mxu0 0.0
        %4749 = vmatpush1.xpose.msra.mxu0 0.0
        %4750 = vmatprep.subr.mxu0 0.0
        %4751 = vmatpush1.xpose.msra.mxu0 0.0
        %4752 = vmatprep.subr.mxu0 0.0
        %4753 = vmatpush1.xpose.msra.mxu0 0.0
        %4754 = vmatprep.subr.mxu0 0.0
        %4755 = vmatpush1.xpose.msra.mxu0 0.0
        %4756 = vmatprep.subr.mxu0 0.0
        %4757 = vmatpush1.xpose.msra.mxu0 0.0
        %4758 = vmatprep.subr.mxu0 0.0
        %4759 = vmatpush1.xpose.msra.mxu0 0.0
        %4760 = vmatprep.subr.mxu0 0.0
        %4761 = vmatpush1.xpose.msra.mxu0 0.0
        %4762 = vmatprep.subr.mxu0 0.0
        %4763 = vmatpush1.xpose.msra.mxu0 0.0
        %4764 = vmatprep.subr.mxu0 0.0
        %4765 = vmatpush1.xpose.msra.mxu0 0.0
        %4766 = vmatprep.subr.mxu0 0.0
        %4767 = vmatpush1.xpose.msra.mxu0 0.0
        %4768 = vmatprep.subr.mxu0 0.0
        %4769 = vmatpush1.xpose.msra.mxu0 0.0
        %4770 = vmatprep.subr.mxu0 0.0
        %4771 = vmatpush1.xpose.msra.mxu0 0.0
        %4772 = vmatprep.subr.mxu0 0.0
        %4773 = vmatpush1.xpose.msra.mxu0 0.0
        %4774 = vmatprep.mubr.f32.mxu0 0.0
        %v4775 = vand.u32 %v4277, 4294901760
        %4776 = vmatmul.mubr.f32.gmra.mrb[0].mxu0 %v4775
        %v4777 = vpop.f32.mrb[0].mxu0
        %v4778 = vadd.f32 %v4699, %v4777
        %v4779 = vpop.f32.mrb[0].mxu0
        %4780 = vmatprep.mubr.f32.mxu0 0.0
        %v4781 = vand.u32 %v4279, 4294901760
        %4782 = vmatmul.mubr.f32.gmra.mrb[0].mxu0 %v4781
        %v4783 = vpop.f32.mrb[0].mxu0
        %v4784 = vadd.f32 %v4705, %v4783
        %v4785 = vpop.f32.mrb[0].mxu0
        %4786 = vdwg.mxu0
        %v4787 = vmul.f32 %v4778, 0.35355338
        %v4788 = vmul.f32 %v4784, 0.35355338
        %v4789 = vsel %vm1620, %v4787, -inf
        %4790 = vmax.xlane.f32.xlu0 %v4789
        %v4791 = vpop.xlane.xlu0 %4790
        %v4792 = vsel %vm1620, %v4788, -inf
        %4793 = vmax.xlane.f32.xlu0 %v4792
        %v4794 = vpop.xlane.xlu0 %4793
        %v4795 = vsub.f32 %v4787, %v4791
        %v4796 = vsub.f32 %v4788, %v4794
        %v4797 = vmul.f32 %v4795, 1.442695
        %v4798 = vpow.pop %v4797
        %v4799 = vmul.f32 %v4796, 1.442695
        %v4800 = vpow.pop %v4799
        %v4801 = vsel %vm1620, %v4798, 0.0
        %4802 = vadd.xlane.f32.xlu0 %v4801
        %v4803 = vpop.xlane.xlu0 %4802
        %v4804 = vsel %vm1620, %v4800, 0.0
        %4805 = vadd.xlane.f32.xlu0 %v4804
        %v4806 = vpop.xlane.xlu0 %4805
        %v4807 = vrcp.pop %v4803
        %v4808 = vmul.f32 %v4798, %v4807
        %v4809 = vrcp.pop %v4806
        %v4810 = vmul.f32 %v4800, %v4809
        %4811 = vrot.lane.b32.xlu0 %v1092, 40
        %v4812 = vpop.permute.xlu0 %4811
        %4813 = vrot.lane.b32.xlu0 %v1098, 40
        %v4814 = vpop.permute.xlu0 %4813
        %v4818 = vsel %vm1620, %v4808, 0
        %v4821 = vsel %vm1620, %v4810, 0
        %4823 = vmatprep.subr.mxu0 0.0
        %v4824 = vand.u32 %v4812, 4294901760
        %4825 = vmatpush1.msra.mxu0 %v4824
        %4826 = vmatprep.subr.mxu0 0.0
        %v4827 = vand.u32 %v4814, 4294901760
        %4828 = vmatpush1.msra.mxu0 %v4827
        %4829 = vmatprep.subr.mxu0 0.0
        %4830 = vmatpush1.msra.mxu0 0.0
        %4831 = vmatprep.subr.mxu0 0.0
        %4832 = vmatpush1.msra.mxu0 0.0
        %4833 = vmatprep.subr.mxu0 0.0
        %4834 = vmatpush1.msra.mxu0 0.0
        %4835 = vmatprep.subr.mxu0 0.0
        %4836 = vmatpush1.msra.mxu0 0.0
        %4837 = vmatprep.subr.mxu0 0.0
        %4838 = vmatpush1.msra.mxu0 0.0
        %4839 = vmatprep.subr.mxu0 0.0
        %4840 = vmatpush1.msra.mxu0 0.0
        %4841 = vmatprep.subr.mxu0 0.0
        %4842 = vmatpush1.msra.mxu0 0.0
        %4843 = vmatprep.subr.mxu0 0.0
        %4844 = vmatpush1.msra.mxu0 0.0
        %4845 = vmatprep.subr.mxu0 0.0
        %4846 = vmatpush1.msra.mxu0 0.0
        %4847 = vmatprep.subr.mxu0 0.0
        %4848 = vmatpush1.msra.mxu0 0.0
        %4849 = vmatprep.subr.mxu0 0.0
        %4850 = vmatpush1.msra.mxu0 0.0
        %4851 = vmatprep.subr.mxu0 0.0
        %4852 = vmatpush1.msra.mxu0 0.0
        %4853 = vmatprep.subr.mxu0 0.0
        %4854 = vmatpush1.msra.mxu0 0.0
        %4855 = vmatprep.subr.mxu0 0.0
        %4856 = vmatpush1.msra.mxu0 0.0
        %4857 = vmatprep.subr.mxu0 0.0
        %4858 = vmatpush1.msra.mxu0 0.0
        %4859 = vmatprep.subr.mxu0 0.0
        %4860 = vmatpush1.msra.mxu0 0.0
        %4861 = vmatprep.subr.mxu0 0.0
        %4862 = vmatpush1.msra.mxu0 0.0
        %4863 = vmatprep.subr.mxu0 0.0
        %4864 = vmatpush1.msra.mxu0 0.0
        %4865 = vmatprep.subr.mxu0 0.0
        %4866 = vmatpush1.msra.mxu0 0.0
        %4867 = vmatprep.subr.mxu0 0.0
        %4868 = vmatpush1.msra.mxu0 0.0
        %4869 = vmatprep.subr.mxu0 0.0
        %4870 = vmatpush1.msra.mxu0 0.0
        %4871 = vmatprep.subr.mxu0 0.0
        %4872 = vmatpush1.msra.mxu0 0.0
        %4873 = vmatprep.subr.mxu0 0.0
        %4874 = vmatpush1.msra.mxu0 0.0
        %4875 = vmatprep.subr.mxu0 0.0
        %4876 = vmatpush1.msra.mxu0 0.0
        %4877 = vmatprep.subr.mxu0 0.0
        %4878 = vmatpush1.msra.mxu0 0.0
        %4879 = vmatprep.subr.mxu0 0.0
        %4880 = vmatpush1.msra.mxu0 0.0
        %4881 = vmatprep.subr.mxu0 0.0
        %4882 = vmatpush1.msra.mxu0 0.0
        %4883 = vmatprep.subr.mxu0 0.0
        %4884 = vmatpush1.msra.mxu0 0.0
        %4885 = vmatprep.subr.mxu0 0.0
        %4886 = vmatpush1.msra.mxu0 0.0
        %4887 = vmatprep.subr.mxu0 0.0
        %4888 = vmatpush1.msra.mxu0 0.0
        %4889 = vmatprep.mubr.f32.mxu0 0.0
        %v4890 = vand.u32 %v4818, 4294901760
        %v4891 = vsub.f32 %v4818, %v4890
        %v4892 = vand.u32 %v4891, 4294901760
        %v4893 = vsub.f32 %v4891, %v4892
        %v4894 = vand.u32 %v4893, 4294901760
        %4895 = vmatmul.mubr.f32.gmra.mrb[0].mxu0 %v4894
        %v4896 = vpop.f32.mrb[0].mxu0
        %v4897 = vadd.f32 0.0, %v4896
        %v4898 = vpop.f32.mrb[0].mxu0
        %4899 = vmatprep.mubr.f32.mxu0 0.0
        %v4900 = vand.u32 %v4821, 4294901760
        %v4901 = vsub.f32 %v4821, %v4900
        %v4902 = vand.u32 %v4901, 4294901760
        %v4903 = vsub.f32 %v4901, %v4902
        %v4904 = vand.u32 %v4903, 4294901760
        %4905 = vmatmul.mubr.f32.gmra.mrb[0].mxu0 %v4904
        %v4906 = vpop.f32.mrb[0].mxu0
        %v4907 = vadd.f32 0.0, %v4906
        %v4908 = vpop.f32.mrb[0].mxu0
        %4909 = vdwg.mxu0
        %4910 = vmatprep.subr.mxu0 0.0
        %v4911 = vand.u32 %v4812, 4294901760
        %v4912 = vsub.f32 %v4812, %v4911
        %v4913 = vand.u32 %v4912, 4294901760
        %v4914 = vsub.f32 %v4912, %v4913
        %v4915 = vand.u32 %v4914, 4294901760
        %4916 = vmatpush1.msra.mxu0 %v4915
        %4917 = vmatprep.subr.mxu0 0.0
        %v4918 = vand.u32 %v4814, 4294901760
        %v4919 = vsub.f32 %v4814, %v4918
        %v4920 = vand.u32 %v4919, 4294901760
        %v4921 = vsub.f32 %v4919, %v4920
        %v4922 = vand.u32 %v4921, 4294901760
        %4923 = vmatpush1.msra.mxu0 %v4922
        %4924 = vmatprep.subr.mxu0 0.0
        %4925 = vmatpush1.msra.mxu0 0.0
        %4926 = vmatprep.subr.mxu0 0.0
        %4927 = vmatpush1.msra.mxu0 0.0
        %4928 = vmatprep.subr.mxu0 0.0
        %4929 = vmatpush1.msra.mxu0 0.0
        %4930 = vmatprep.subr.mxu0 0.0
        %4931 = vmatpush1.msra.mxu0 0.0
        %4932 = vmatprep.subr.mxu0 0.0
        %4933 = vmatpush1.msra.mxu0 0.0
        %4934 = vmatprep.subr.mxu0 0.0
        %4935 = vmatpush1.msra.mxu0 0.0
        %4936 = vmatprep.subr.mxu0 0.0
        %4937 = vmatpush1.msra.mxu0 0.0
        %4938 = vmatprep.subr.mxu0 0.0
        %4939 = vmatpush1.msra.mxu0 0.0
        %4940 = vmatprep.subr.mxu0 0.0
        %4941 = vmatpush1.msra.mxu0 0.0
        %4942 = vmatprep.subr.mxu0 0.0
        %4943 = vmatpush1.msra.mxu0 0.0
        %4944 = vmatprep.subr.mxu0 0.0
        %4945 = vmatpush1.msra.mxu0 0.0
        %4946 = vmatprep.subr.mxu0 0.0
        %4947 = vmatpush1.msra.mxu0 0.0
        %4948 = vmatprep.subr.mxu0 0.0
        %4949 = vmatpush1.msra.mxu0 0.0
        %4950 = vmatprep.subr.mxu0 0.0
        %4951 = vmatpush1.msra.mxu0 0.0
        %4952 = vmatprep.subr.mxu0 0.0
        %4953 = vmatpush1.msra.mxu0 0.0
        %4954 = vmatprep.subr.mxu0 0.0
        %4955 = vmatpush1.msra.mxu0 0.0
        %4956 = vmatprep.subr.mxu0 0.0
        %4957 = vmatpush1.msra.mxu0 0.0
        %4958 = vmatprep.subr.mxu0 0.0
        %4959 = vmatpush1.msra.mxu0 0.0
        %4960 = vmatprep.subr.mxu0 0.0
        %4961 = vmatpush1.msra.mxu0 0.0
        %4962 = vmatprep.subr.mxu0 0.0
        %4963 = vmatpush1.msra.mxu0 0.0
        %4964 = vmatprep.subr.mxu0 0.0
        %4965 = vmatpush1.msra.mxu0 0.0
        %4966 = vmatprep.subr.mxu0 0.0
        %4967 = vmatpush1.msra.mxu0 0.0
        %4968 = vmatprep.subr.mxu0 0.0
        %4969 = vmatpush1.msra.mxu0 0.0
        %4970 = vmatprep.subr.mxu0 0.0
        %4971 = vmatpush1.msra.mxu0 0.0
        %4972 = vmatprep.subr.mxu0 0.0
        %4973 = vmatpush1.msra.mxu0 0.0
        %4974 = vmatprep.subr.mxu0 0.0
        %4975 = vmatpush1.msra.mxu0 0.0
        %4976 = vmatprep.subr.mxu0 0.0
        %4977 = vmatpush1.msra.mxu0 0.0
        %4978 = vmatprep.subr.mxu0 0.0
        %4979 = vmatpush1.msra.mxu0 0.0
        %4980 = vmatprep.subr.mxu0 0.0
        %4981 = vmatpush1.msra.mxu0 0.0
        %4982 = vmatprep.subr.mxu0 0.0
        %4983 = vmatpush1.msra.mxu0 0.0
        %4984 = vmatprep.mubr.f32.mxu0 0.0
        %v4985 = vand.u32 %v4818, 4294901760
        %4986 = vmatmul.mubr.f32.gmra.mrb[0].mxu0 %v4985
        %v4987 = vpop.f32.mrb[0].mxu0
        %v4988 = vadd.f32 %v4897, %v4987
        %v4989 = vpop.f32.mrb[0].mxu0
        %4990 = vmatprep.mubr.f32.mxu0 0.0
        %v4991 = vand.u32 %v4821, 4294901760
        %4992 = vmatmul.mubr.f32.gmra.mrb[0].mxu0 %v4991
        %v4993 = vpop.f32.mrb[0].mxu0
        %v4994 = vadd.f32 %v4907, %v4993
        %v4995 = vpop.f32.mrb[0].mxu0
        %4996 = vdwg.mxu0
        %4997 = vmatprep.subr.mxu0 0.0
        %v4998 = vand.u32 %v4812, 4294901760
        %v4999 = vsub.f32 %v4812, %v4998
        %5000 = vmatpush1.msra.mxu0 %v4999
        %5001 = vmatprep.subr.mxu0 0.0
        %v5002 = vand.u32 %v4814, 4294901760
        %v5003 = vsub.f32 %v4814, %v5002
        %5004 = vmatpush1.msra.mxu0 %v5003
        %5005 = vmatprep.subr.mxu0 0.0
        %5006 = vmatpush1.msra.mxu0 0.0
        %5007 = vmatprep.subr.mxu0 0.0
        %5008 = vmatpush1.msra.mxu0 0.0
        %5009 = vmatprep.subr.mxu0 0.0
        %5010 = vmatpush1.msra.mxu0 0.0
        %5011 = vmatprep.subr.mxu0 0.0
        %5012 = vmatpush1.msra.mxu0 0.0
        %5013 = vmatprep.subr.mxu0 0.0
        %5014 = vmatpush1.msra.mxu0 0.0
        %5015 = vmatprep.subr.mxu0 0.0
        %5016 = vmatpush1.msra.mxu0 0.0
        %5017 = vmatprep.subr.mxu0 0.0
        %5018 = vmatpush1.msra.mxu0 0.0
        %5019 = vmatprep.subr.mxu0 0.0
        %5020 = vmatpush1.msra.mxu0 0.0
        %5021 = vmatprep.subr.mxu0 0.0
        %5022 = vmatpush1.msra.mxu0 0.0
        %5023 = vmatprep.subr.mxu0 0.0
        %5024 = vmatpush1.msra.mxu0 0.0
        %5025 = vmatprep.subr.mxu0 0.0
        %5026 = vmatpush1.msra.mxu0 0.0
        %5027 = vmatprep.subr.mxu0 0.0
        %5028 = vmatpush1.msra.mxu0 0.0
        %5029 = vmatprep.subr.mxu0 0.0
        %5030 = vmatpush1.msra.mxu0 0.0
        %5031 = vmatprep.subr.mxu0 0.0
        %5032 = vmatpush1.msra.mxu0 0.0
        %5033 = vmatprep.subr.mxu0 0.0
        %5034 = vmatpush1.msra.mxu0 0.0
        %5035 = vmatprep.subr.mxu0 0.0
        %5036 = vmatpush1.msra.mxu0 0.0
        %5037 = vmatprep.subr.mxu0 0.0
        %5038 = vmatpush1.msra.mxu0 0.0
        %5039 = vmatprep.subr.mxu0 0.0
        %5040 = vmatpush1.msra.mxu0 0.0
        %5041 = vmatprep.subr.mxu0 0.0
        %5042 = vmatpush1.msra.mxu0 0.0
        %5043 = vmatprep.subr.mxu0 0.0
        %5044 = vmatpush1.msra.mxu0 0.0
        %5045 = vmatprep.subr.mxu0 0.0
        %5046 = vmatpush1.msra.mxu0 0.0
        %5047 = vmatprep.subr.mxu0 0.0
        %5048 = vmatpush1.msra.mxu0 0.0
        %5049 = vmatprep.subr.mxu0 0.0
        %5050 = vmatpush1.msra.mxu0 0.0
        %5051 = vmatprep.subr.mxu0 0.0
        %5052 = vmatpush1.msra.mxu0 0.0
        %5053 = vmatprep.subr.mxu0 0.0
        %5054 = vmatpush1.msra.mxu0 0.0
        %5055 = vmatprep.subr.mxu0 0.0
        %5056 = vmatpush1.msra.mxu0 0.0
        %5057 = vmatprep.subr.mxu0 0.0
        %5058 = vmatpush1.msra.mxu0 0.0
        %5059 = vmatprep.subr.mxu0 0.0
        %5060 = vmatpush1.msra.mxu0 0.0
        %5061 = vmatprep.subr.mxu0 0.0
        %5062 = vmatpush1.msra.mxu0 0.0
        %5063 = vmatprep.subr.mxu0 0.0
        %5064 = vmatpush1.msra.mxu0 0.0
        %5065 = vmatprep.mubr.f32.mxu0 0.0
        %v5066 = vand.u32 %v4818, 4294901760
        %v5067 = vsub.f32 %v4818, %v5066
        %5068 = vmatmul.mubr.f32.gmra.mrb[0].mxu0 %v5067
        %v5069 = vpop.f32.mrb[0].mxu0
        %v5070 = vadd.f32 %v4988, %v5069
        %v5071 = vpop.f32.mrb[0].mxu0
        %5072 = vmatprep.mubr.f32.mxu0 0.0
        %v5073 = vand.u32 %v4821, 4294901760
        %v5074 = vsub.f32 %v4821, %v5073
        %5075 = vmatmul.mubr.f32.gmra.mrb[0].mxu0 %v5074
        %v5076 = vpop.f32.mrb[0].mxu0
        %v5077 = vadd.f32 %v4994, %v5076
        %v5078 = vpop.f32.mrb[0].mxu0
        %5079 = vdwg.mxu0
        %5080 = vmatprep.subr.mxu0 0.0
        %v5081 = vand.u32 %v4812, 4294901760
        %5082 = vmatpush1.msra.mxu0 %v5081
        %5083 = vmatprep.subr.mxu0 0.0
        %v5084 = vand.u32 %v4814, 4294901760
        %5085 = vmatpush1.msra.mxu0 %v5084
        %5086 = vmatprep.subr.mxu0 0.0
        %5087 = vmatpush1.msra.mxu0 0.0
        %5088 = vmatprep.subr.mxu0 0.0
        %5089 = vmatpush1.msra.mxu0 0.0
        %5090 = vmatprep.subr.mxu0 0.0
        %5091 = vmatpush1.msra.mxu0 0.0
        %5092 = vmatprep.subr.mxu0 0.0
        %5093 = vmatpush1.msra.mxu0 0.0
        %5094 = vmatprep.subr.mxu0 0.0
        %5095 = vmatpush1.msra.mxu0 0.0
        %5096 = vmatprep.subr.mxu0 0.0
        %5097 = vmatpush1.msra.mxu0 0.0
        %5098 = vmatprep.subr.mxu0 0.0
        %5099 = vmatpush1.msra.mxu0 0.0
        %5100 = vmatprep.subr.mxu0 0.0
        %5101 = vmatpush1.msra.mxu0 0.0
        %5102 = vmatprep.subr.mxu0 0.0
        %5103 = vmatpush1.msra.mxu0 0.0
        %5104 = vmatprep.subr.mxu0 0.0
        %5105 = vmatpush1.msra.mxu0 0.0
        %5106 = vmatprep.subr.mxu0 0.0
        %5107 = vmatpush1.msra.mxu0 0.0
        %5108 = vmatprep.subr.mxu0 0.0
        %5109 = vmatpush1.msra.mxu0 0.0
        %5110 = vmatprep.subr.mxu0 0.0
        %5111 = vmatpush1.msra.mxu0 0.0
        %5112 = vmatprep.subr.mxu0 0.0
        %5113 = vmatpush1.msra.mxu0 0.0
        %5114 = vmatprep.subr.mxu0 0.0
        %5115 = vmatpush1.msra.mxu0 0.0
        %5116 = vmatprep.subr.mxu0 0.0
        %5117 = vmatpush1.msra.mxu0 0.0
        %5118 = vmatprep.subr.mxu0 0.0
        %5119 = vmatpush1.msra.mxu0 0.0
        %5120 = vmatprep.subr.mxu0 0.0
        %5121 = vmatpush1.msra.mxu0 0.0
        %5122 = vmatprep.subr.mxu0 0.0
        %5123 = vmatpush1.msra.mxu0 0.0
        %5124 = vmatprep.subr.mxu0 0.0
        %5125 = vmatpush1.msra.mxu0 0.0
        %5126 = vmatprep.subr.mxu0 0.0
        %5127 = vmatpush1.msra.mxu0 0.0
        %5128 = vmatprep.subr.mxu0 0.0
        %5129 = vmatpush1.msra.mxu0 0.0
        %5130 = vmatprep.subr.mxu0 0.0
        %5131 = vmatpush1.msra.mxu0 0.0
        %5132 = vmatprep.subr.mxu0 0.0
        %5133 = vmatpush1.msra.mxu0 0.0
        %5134 = vmatprep.subr.mxu0 0.0
        %5135 = vmatpush1.msra.mxu0 0.0
        %5136 = vmatprep.subr.mxu0 0.0
        %5137 = vmatpush1.msra.mxu0 0.0
        %5138 = vmatprep.subr.mxu0 0.0
        %5139 = vmatpush1.msra.mxu0 0.0
        %5140 = vmatprep.subr.mxu0 0.0
        %5141 = vmatpush1.msra.mxu0 0.0
        %5142 = vmatprep.subr.mxu0 0.0
        %5143 = vmatpush1.msra.mxu0 0.0
        %5144 = vmatprep.subr.mxu0 0.0
        %5145 = vmatpush1.msra.mxu0 0.0
        %5146 = vmatprep.mubr.f32.mxu0 0.0
        %v5147 = vand.u32 %v4818, 4294901760
        %v5148 = vsub.f32 %v4818, %v5147
        %v5149 = vand.u32 %v5148, 4294901760
        %5150 = vmatmul.mubr.f32.gmra.mrb[0].mxu0 %v5149
        %v5151 = vpop.f32.mrb[0].mxu0
        %v5152 = vadd.f32 %v5070, %v5151
        %v5153 = vpop.f32.mrb[0].mxu0
        %5154 = vmatprep.mubr.f32.mxu0 0.0
        %v5155 = vand.u32 %v4821, 4294901760
        %v5156 = vsub.f32 %v4821, %v5155
        %v5157 = vand.u32 %v5156, 4294901760
        %5158 = vmatmul.mubr.f32.gmra.mrb[0].mxu0 %v5157
        %v5159 = vpop.f32.mrb[0].mxu0
        %v5160 = vadd.f32 %v5077, %v5159
        %v5161 = vpop.f32.mrb[0].mxu0
        %5162 = vdwg.mxu0
        %5163 = vmatprep.subr.mxu0 0.0
        %v5164 = vand.u32 %v4812, 4294901760
        %v5165 = vsub.f32 %v4812, %v5164
        %v5166 = vand.u32 %v5165, 4294901760
        %5167 = vmatpush1.msra.mxu0 %v5166
        %5168 = vmatprep.subr.mxu0 0.0
        %v5169 = vand.u32 %v4814, 4294901760
        %v5170 = vsub.f32 %v4814, %v5169
        %v5171 = vand.u32 %v5170, 4294901760
        %5172 = vmatpush1.msra.mxu0 %v5171
        %5173 = vmatprep.subr.mxu0 0.0
        %5174 = vmatpush1.msra.mxu0 0.0
        %5175 = vmatprep.subr.mxu0 0.0
        %5176 = vmatpush1.msra.mxu0 0.0
        %5177 = vmatprep.subr.mxu0 0.0
        %5178 = vmatpush1.msra.mxu0 0.0
        %5179 = vmatprep.subr.mxu0 0.0
        %5180 = vmatpush1.msra.mxu0 0.0
        %5181 = vmatprep.subr.mxu0 0.0
        %5182 = vmatpush1.msra.mxu0 0.0
        %5183 = vmatprep.subr.mxu0 0.0
        %5184 = vmatpush1.msra.mxu0 0.0
        %5185 = vmatprep.subr.mxu0 0.0
        %5186 = vmatpush1.msra.mxu0 0.0
        %5187 = vmatprep.subr.mxu0 0.0
        %5188 = vmatpush1.msra.mxu0 0.0
        %5189 = vmatprep.subr.mxu0 0.0
        %5190 = vmatpush1.msra.mxu0 0.0
        %5191 = vmatprep.subr.mxu0 0.0
        %5192 = vmatpush1.msra.mxu0 0.0
        %5193 = vmatprep.subr.mxu0 0.0
        %5194 = vmatpush1.msra.mxu0 0.0
        %5195 = vmatprep.subr.mxu0 0.0
        %5196 = vmatpush1.msra.mxu0 0.0
        %5197 = vmatprep.subr.mxu0 0.0
        %5198 = vmatpush1.msra.mxu0 0.0
        %5199 = vmatprep.subr.mxu0 0.0
        %5200 = vmatpush1.msra.mxu0 0.0
        %5201 = vmatprep.subr.mxu0 0.0
        %5202 = vmatpush1.msra.mxu0 0.0
        %5203 = vmatprep.subr.mxu0 0.0
        %5204 = vmatpush1.msra.mxu0 0.0
        %5205 = vmatprep.subr.mxu0 0.0
        %5206 = vmatpush1.msra.mxu0 0.0
        %5207 = vmatprep.subr.mxu0 0.0
        %5208 = vmatpush1.msra.mxu0 0.0
        %5209 = vmatprep.subr.mxu0 0.0
        %5210 = vmatpush1.msra.mxu0 0.0
        %5211 = vmatprep.subr.mxu0 0.0
        %5212 = vmatpush1.msra.mxu0 0.0
        %5213 = vmatprep.subr.mxu0 0.0
        %5214 = vmatpush1.msra.mxu0 0.0
        %5215 = vmatprep.subr.mxu0 0.0
        %5216 = vmatpush1.msra.mxu0 0.0
        %5217 = vmatprep.subr.mxu0 0.0
        %5218 = vmatpush1.msra.mxu0 0.0
        %5219 = vmatprep.subr.mxu0 0.0
        %5220 = vmatpush1.msra.mxu0 0.0
        %5221 = vmatprep.subr.mxu0 0.0
        %5222 = vmatpush1.msra.mxu0 0.0
        %5223 = vmatprep.subr.mxu0 0.0
        %5224 = vmatpush1.msra.mxu0 0.0
        %5225 = vmatprep.subr.mxu0 0.0
        %5226 = vmatpush1.msra.mxu0 0.0
        %5227 = vmatprep.subr.mxu0 0.0
        %5228 = vmatpush1.msra.mxu0 0.0
        %5229 = vmatprep.subr.mxu0 0.0
        %5230 = vmatpush1.msra.mxu0 0.0
        %5231 = vmatprep.subr.mxu0 0.0
        %5232 = vmatpush1.msra.mxu0 0.0
        %5233 = vmatprep.mubr.f32.mxu0 0.0
        %v5234 = vand.u32 %v4818, 4294901760
        %5235 = vmatmul.mubr.f32.gmra.mrb[0].mxu0 %v5234
        %v5236 = vpop.f32.mrb[0].mxu0
        %v5237 = vadd.f32 %v5152, %v5236
        %v5238 = vpop.f32.mrb[0].mxu0
        %5239 = vmatprep.mubr.f32.mxu0 0.0
        %v5240 = vand.u32 %v4821, 4294901760
        %5241 = vmatmul.mubr.f32.gmra.mrb[0].mxu0 %v5240
        %v5242 = vpop.f32.mrb[0].mxu0
        %v5243 = vadd.f32 %v5160, %v5242
        %v5244 = vpop.f32.mrb[0].mxu0
        %5245 = vdwg.mxu0
        %5246 = vmatprep.subr.mxu0 0.0
        %v5247 = vand.u32 %v4812, 4294901760
        %5248 = vmatpush1.msra.mxu0 %v5247
        %5249 = vmatprep.subr.mxu0 0.0
        %v5250 = vand.u32 %v4814, 4294901760
        %5251 = vmatpush1.msra.mxu0 %v5250
        %5252 = vmatprep.subr.mxu0 0.0
        %5253 = vmatpush1.msra.mxu0 0.0
        %5254 = vmatprep.subr.mxu0 0.0
        %5255 = vmatpush1.msra.mxu0 0.0
        %5256 = vmatprep.subr.mxu0 0.0
        %5257 = vmatpush1.msra.mxu0 0.0
        %5258 = vmatprep.subr.mxu0 0.0
        %5259 = vmatpush1.msra.mxu0 0.0
        %5260 = vmatprep.subr.mxu0 0.0
        %5261 = vmatpush1.msra.mxu0 0.0
        %5262 = vmatprep.subr.mxu0 0.0
        %5263 = vmatpush1.msra.mxu0 0.0
        %5264 = vmatprep.subr.mxu0 0.0
        %5265 = vmatpush1.msra.mxu0 0.0
        %5266 = vmatprep.subr.mxu0 0.0
        %5267 = vmatpush1.msra.mxu0 0.0
        %5268 = vmatprep.subr.mxu0 0.0
        %5269 = vmatpush1.msra.mxu0 0.0
        %5270 = vmatprep.subr.mxu0 0.0
        %5271 = vmatpush1.msra.mxu0 0.0
        %5272 = vmatprep.subr.mxu0 0.0
        %5273 = vmatpush1.msra.mxu0 0.0
        %5274 = vmatprep.subr.mxu0 0.0
        %5275 = vmatpush1.msra.mxu0 0.0
        %5276 = vmatprep.subr.mxu0 0.0
        %5277 = vmatpush1.msra.mxu0 0.0
        %5278 = vmatprep.subr.mxu0 0.0
        %5279 = vmatpush1.msra.mxu0 0.0
        %5280 = vmatprep.subr.mxu0 0.0
        %5281 = vmatpush1.msra.mxu0 0.0
        %5282 = vmatprep.subr.mxu0 0.0
        %5283 = vmatpush1.msra.mxu0 0.0
        %5284 = vmatprep.subr.mxu0 0.0
        %5285 = vmatpush1.msra.mxu0 0.0
        %5286 = vmatprep.subr.mxu0 0.0
        %5287 = vmatpush1.msra.mxu0 0.0
        %5288 = vmatprep.subr.mxu0 0.0
        %5289 = vmatpush1.msra.mxu0 0.0
        %5290 = vmatprep.subr.mxu0 0.0
        %5291 = vmatpush1.msra.mxu0 0.0
        %5292 = vmatprep.subr.mxu0 0.0
        %5293 = vmatpush1.msra.mxu0 0.0
        %5294 = vmatprep.subr.mxu0 0.0
        %5295 = vmatpush1.msra.mxu0 0.0
        %5296 = vmatprep.subr.mxu0 0.0
        %5297 = vmatpush1.msra.mxu0 0.0
        %5298 = vmatprep.subr.mxu0 0.0
        %5299 = vmatpush1.msra.mxu0 0.0
        %5300 = vmatprep.subr.mxu0 0.0
        %5301 = vmatpush1.msra.mxu0 0.0
        %5302 = vmatprep.subr.mxu0 0.0
        %5303 = vmatpush1.msra.mxu0 0.0
        %5304 = vmatprep.subr.mxu0 0.0
        %5305 = vmatpush1.msra.mxu0 0.0
        %5306 = vmatprep.subr.mxu0 0.0
        %5307 = vmatpush1.msra.mxu0 0.0
        %5308 = vmatprep.subr.mxu0 0.0
        %5309 = vmatpush1.msra.mxu0 0.0
        %5310 = vmatprep.subr.mxu0 0.0
        %5311 = vmatpush1.msra.mxu0 0.0
        %5312 = vmatprep.mubr.f32.mxu0 0.0
        %v5313 = vand.u32 %v4818, 4294901760
        %5314 = vmatmul.mubr.f32.gmra.mrb[0].mxu0 %v5313
        %v5315 = vpop.f32.mrb[0].mxu0
        %v5316 = vadd.f32 %v5237, %v5315
        %v5317 = vpop.f32.mrb[0].mxu0
        %5318 = vmatprep.mubr.f32.mxu0 0.0
        %v5319 = vand.u32 %v4821, 4294901760
        %5320 = vmatmul.mubr.f32.gmra.mrb[0].mxu0 %v5319
        %v5321 = vpop.f32.mrb[0].mxu0
        %v5322 = vadd.f32 %v5243, %v5321
        %v5323 = vpop.f32.mrb[0].mxu0
        %5324 = vdwg.mxu0
        %5327 = vrot.lane.b32.xlu0 %v3204, 8
        %v5328 = vpop.permute.xlu0 %5327
        %5329 = vrot.lane.b32.xlu0 %v3210, 8
        %v5330 = vpop.permute.xlu0 %5329
        %5335 = vrot.lane.b32.xlu0 %v4260, 16
        %v5336 = vpop.permute.xlu0 %5335
        %5337 = vrot.lane.b32.xlu0 %v4266, 16
        %v5338 = vpop.permute.xlu0 %5337
        %5343 = vrot.lane.b32.xlu0 %v5316, 24
        %v5344 = vpop.permute.xlu0 %5343
        %5345 = vrot.lane.b32.xlu0 %v5322, 24
        %v5346 = vpop.permute.xlu0 %5345
        %v5349 = vsel %vm1107, %v2148, %v5328
        %v5350 = vsel %vm1107, %v2154, %v5330
        %v5351 = vsel %vm1620, %v5349, %v5336
        %v5352 = vsel %vm1620, %v5350, %v5338
        %vm5353 = vcmask 195584
        %v5354 = vsel %vm5353, %v5351, %v5344
        %v5355 = vsel %vm5353, %v5352, %v5346
        %v5356 = vld [vmem:[%s3] sm:$0xff]
        %v5357 = vld [vmem:[%s3 + $0x8] sm:$0xff]
        %v5358 = vld [vmem:[%s3 + $0x10] sm:$0xff]
        %v5359 = vld [vmem:[%s3 + $0x18] sm:$0xff]
        %v5360 = vld [vmem:[%s4] sm:$0x1]
        %v5362 = vlaneseq
        %v5363 = vshrl.u32 %v5362, 7
        %v5364 = vsub.s32 0, %v5363
        %v5365 = vrot.slane %v5360, %v5364
        %v5368 = vsel %vm566, %v5354, 0
        %v5371 = vsel %vm566, %v5355, 0
        %5373 = vmatprep.subr.mxu0 0.0
        %v5374 = vand.u32 %v5356, 4294901760
        %5375 = vmatpush1.msra.mxu0 %v5374
        %5376 = vmatprep.subr.mxu0 0.0
        %v5377 = vand.u32 %v5357, 4294901760
        %5378 = vmatpush1.msra.mxu0 %v5377
        %5379 = vmatprep.subr.mxu0 0.0
        %v5380 = vand.u32 %v5358, 4294901760
        %5381 = vmatpush1.msra.mxu0 %v5380
        %5382 = vmatprep.subr.mxu0 0.0
        %v5383 = vand.u32 %v5359, 4294901760
        %5384 = vmatpush1.msra.mxu0 %v5383
        %5385 = vmatprep.subr.mxu0 0.0
        %5386 = vmatpush1.msra.mxu0 0.0
        %5387 = vmatprep.subr.mxu0 0.0
        %5388 = vmatpush1.msra.mxu0 0.0
        %5389 = vmatprep.subr.mxu0 0.0
        %5390 = vmatpush1.msra.mxu0 0.0
        %5391 = vmatprep.subr.mxu0 0.0
        %5392 = vmatpush1.msra.mxu0 0.0
        %5393 = vmatprep.subr.mxu0 0.0
        %5394 = vmatpush1.msra.mxu0 0.0
        %5395 = vmatprep.subr.mxu0 0.0
        %5396 = vmatpush1.msra.mxu0 0.0
        %5397 = vmatprep.subr.mxu0 0.0
        %5398 = vmatpush1.msra.mxu0 0.0
        %5399 = vmatprep.subr.mxu0 0.0
        %5400 = vmatpush1.msra.mxu0 0.0
        %5401 = vmatprep.subr.mxu0 0.0
        %5402 = vmatpush1.msra.mxu0 0.0
        %5403 = vmatprep.subr.mxu0 0.0
        %5404 = vmatpush1.msra.mxu0 0.0
        %5405 = vmatprep.subr.mxu0 0.0
        %5406 = vmatpush1.msra.mxu0 0.0
        %5407 = vmatprep.subr.mxu0 0.0
        %5408 = vmatpush1.msra.mxu0 0.0
        %5409 = vmatprep.subr.mxu0 0.0
        %5410 = vmatpush1.msra.mxu0 0.0
        %5411 = vmatprep.subr.mxu0 0.0
        %5412 = vmatpush1.msra.mxu0 0.0
        %5413 = vmatprep.subr.mxu0 0.0
        %5414 = vmatpush1.msra.mxu0 0.0
        %5415 = vmatprep.subr.mxu0 0.0
        %5416 = vmatpush1.msra.mxu0 0.0
        %5417 = vmatprep.subr.mxu0 0.0
        %5418 = vmatpush1.msra.mxu0 0.0
        %5419 = vmatprep.subr.mxu0 0.0
        %5420 = vmatpush1.msra.mxu0 0.0
        %5421 = vmatprep.subr.mxu0 0.0
        %5422 = vmatpush1.msra.mxu0 0.0
        %5423 = vmatprep.subr.mxu0 0.0
        %5424 = vmatpush1.msra.mxu0 0.0
        %5425 = vmatprep.subr.mxu0 0.0
        %5426 = vmatpush1.msra.mxu0 0.0
        %5427 = vmatprep.subr.mxu0 0.0
        %5428 = vmatpush1.msra.mxu0 0.0
        %5429 = vmatprep.subr.mxu0 0.0
        %5430 = vmatpush1.msra.mxu0 0.0
        %5431 = vmatprep.subr.mxu0 0.0
        %5432 = vmatpush1.msra.mxu0 0.0
        %5433 = vmatprep.subr.mxu0 0.0
        %5434 = vmatpush1.msra.mxu0 0.0
        %5435 = vmatprep.subr.mxu0 0.0
        %5436 = vmatpush1.msra.mxu0 0.0
        %5437 = vmatprep.subr.mxu0 0.0
        %5438 = vmatpush1.msra.mxu0 0.0
        %5439 = vmatprep.subr.mxu0 0.0
        %5440 = vmatpush1.msra.mxu0 0.0
        %5441 = vmatprep.mubr.f32.mxu0 0.0
        %v5442 = vand.u32 %v5368, 4294901760
        %v5443 = vsub.f32 %v5368, %v5442
        %v5444 = vand.u32 %v5443, 4294901760
        %v5445 = vsub.f32 %v5443, %v5444
        %v5446 = vand.u32 %v5445, 4294901760
        %5447 = vmatmul.mubr.f32.gmra.mrb[0].mxu0 %v5446
        %v5448 = vpop.f32.mrb[0].mxu0
        %v5449 = vadd.f32 %v5365, %v5448
        %v5450 = vpop.f32.mrb[0].mxu0
        %5451 = vmatprep.mubr.f32.mxu0 0.0
        %v5452 = vand.u32 %v5371, 4294901760
        %v5453 = vsub.f32 %v5371, %v5452
        %v5454 = vand.u32 %v5453, 4294901760
        %v5455 = vsub.f32 %v5453, %v5454
        %v5456 = vand.u32 %v5455, 4294901760
        %5457 = vmatmul.mubr.f32.gmra.mrb[0].mxu0 %v5456
        %v5458 = vpop.f32.mrb[0].mxu0
        %v5459 = vadd.f32 %v5365, %v5458
        %v5460 = vpop.f32.mrb[0].mxu0
        %5461 = vdwg.mxu0
        %5462 = vmatprep.subr.mxu0 0.0
        %v5463 = vand.u32 %v5356, 4294901760
        %v5464 = vsub.f32 %v5356, %v5463
        %v5465 = vand.u32 %v5464, 4294901760
        %v5466 = vsub.f32 %v5464, %v5465
        %v5467 = vand.u32 %v5466, 4294901760
        %5468 = vmatpush1.msra.mxu0 %v5467
        %5469 = vmatprep.subr.mxu0 0.0
        %v5470 = vand.u32 %v5357, 4294901760
        %v5471 = vsub.f32 %v5357, %v5470
        %v5472 = vand.u32 %v5471, 4294901760
        %v5473 = vsub.f32 %v5471, %v5472
        %v5474 = vand.u32 %v5473, 4294901760
        %5475 = vmatpush1.msra.mxu0 %v5474
        %5476 = vmatprep.subr.mxu0 0.0
        %v5477 = vand.u32 %v5358, 4294901760
        %v5478 = vsub.f32 %v5358, %v5477
        %v5479 = vand.u32 %v5478, 4294901760
        %v5480 = vsub.f32 %v5478, %v5479
        %v5481 = vand.u32 %v5480, 4294901760
        %5482 = vmatpush1.msra.mxu0 %v5481
        %5483 = vmatprep.subr.mxu0 0.0
        %v5484 = vand.u32 %v5359, 4294901760
        %v5485 = vsub.f32 %v5359, %v5484
        %v5486 = vand.u32 %v5485, 4294901760
        %v5487 = vsub.f32 %v5485, %v5486
        %v5488 = vand.u32 %v5487, 4294901760
        %5489 = vmatpush1.msra.mxu0 %v5488
        %5490 = vmatprep.subr.mxu0 0.0
        %5491 = vmatpush1.msra.mxu0 0.0
        %5492 = vmatprep.subr.mxu0 0.0
        %5493 = vmatpush1.msra.mxu0 0.0
        %5494 = vmatprep.subr.mxu0 0.0
        %5495 = vmatpush1.msra.mxu0 0.0
        %5496 = vmatprep.subr.mxu0 0.0
        %5497 = vmatpush1.msra.mxu0 0.0
        %5498 = vmatprep.subr.mxu0 0.0
        %5499 = vmatpush1.msra.mxu0 0.0
        %5500 = vmatprep.subr.mxu0 0.0
        %5501 = vmatpush1.msra.mxu0 0.0
        %5502 = vmatprep.subr.mxu0 0.0
        %5503 = vmatpush1.msra.mxu0 0.0
        %5504 = vmatprep.subr.mxu0 0.0
        %5505 = vmatpush1.msra.mxu0 0.0
        %5506 = vmatprep.subr.mxu0 0.0
        %5507 = vmatpush1.msra.mxu0 0.0
        %5508 = vmatprep.subr.mxu0 0.0
        %5509 = vmatpush1.msra.mxu0 0.0
        %5510 = vmatprep.subr.mxu0 0.0
        %5511 = vmatpush1.msra.mxu0 0.0
        %5512 = vmatprep.subr.mxu0 0.0
        %5513 = vmatpush1.msra.mxu0 0.0
        %5514 = vmatprep.subr.mxu0 0.0
        %5515 = vmatpush1.msra.mxu0 0.0
        %5516 = vmatprep.subr.mxu0 0.0
        %5517 = vmatpush1.msra.mxu0 0.0
        %5518 = vmatprep.subr.mxu0 0.0
        %5519 = vmatpush1.msra.mxu0 0.0
        %5520 = vmatprep.subr.mxu0 0.0
        %5521 = vmatpush1.msra.mxu0 0.0
        %5522 = vmatprep.subr.mxu0 0.0
        %5523 = vmatpush1.msra.mxu0 0.0
        %5524 = vmatprep.subr.mxu0 0.0
        %5525 = vmatpush1.msra.mxu0 0.0
        %5526 = vmatprep.subr.mxu0 0.0
        %5527 = vmatpush1.msra.mxu0 0.0
        %5528 = vmatprep.subr.mxu0 0.0
        %5529 = vmatpush1.msra.mxu0 0.0
        %5530 = vmatprep.subr.mxu0 0.0
        %5531 = vmatpush1.msra.mxu0 0.0
        %5532 = vmatprep.subr.mxu0 0.0
        %5533 = vmatpush1.msra.mxu0 0.0
        %5534 = vmatprep.subr.mxu0 0.0
        %5535 = vmatpush1.msra.mxu0 0.0
        %5536 = vmatprep.subr.mxu0 0.0
        %5537 = vmatpush1.msra.mxu0 0.0
        %5538 = vmatprep.subr.mxu0 0.0
        %5539 = vmatpush1.msra.mxu0 0.0
        %5540 = vmatprep.subr.mxu0 0.0
        %5541 = vmatpush1.msra.mxu0 0.0
        %5542 = vmatprep.subr.mxu0 0.0
        %5543 = vmatpush1.msra.mxu0 0.0
        %5544 = vmatprep.subr.mxu0 0.0
        %5545 = vmatpush1.msra.mxu0 0.0
        %5546 = vmatprep.mubr.f32.mxu0 0.0
        %v5547 = vand.u32 %v5368, 4294901760
        %5548 = vmatmul.mubr.f32.gmra.mrb[0].mxu0 %v5547
        %v5549 = vpop.f32.mrb[0].mxu0
        %v5550 = vadd.f32 %v5449, %v5549
        %v5551 = vpop.f32.mrb[0].mxu0
        %5552 = vmatprep.mubr.f32.mxu0 0.0
        %v5553 = vand.u32 %v5371, 4294901760
        %5554 = vmatmul.mubr.f32.gmra.mrb[0].mxu0 %v5553
        %v5555 = vpop.f32.mrb[0].mxu0
        %v5556 = vadd.f32 %v5459, %v5555
        %v5557 = vpop.f32.mrb[0].mxu0
        %5558 = vdwg.mxu0
        %5559 = vmatprep.subr.mxu0 0.0
        %v5560 = vand.u32 %v5356, 4294901760
        %v5561 = vsub.f32 %v5356, %v5560
        %5562 = vmatpush1.msra.mxu0 %v5561
        %5563 = vmatprep.subr.mxu0 0.0
        %v5564 = vand.u32 %v5357, 4294901760
        %v5565 = vsub.f32 %v5357, %v5564
        %5566 = vmatpush1.msra.mxu0 %v5565
        %5567 = vmatprep.subr.mxu0 0.0
        %v5568 = vand.u32 %v5358, 4294901760
        %v5569 = vsub.f32 %v5358, %v5568
        %5570 = vmatpush1.msra.mxu0 %v5569
        %5571 = vmatprep.subr.mxu0 0.0
        %v5572 = vand.u32 %v5359, 4294901760
        %v5573 = vsub.f32 %v5359, %v5572
        %5574 = vmatpush1.msra.mxu0 %v5573
        %5575 = vmatprep.subr.mxu0 0.0
        %5576 = vmatpush1.msra.mxu0 0.0
        %5577 = vmatprep.subr.mxu0 0.0
        %5578 = vmatpush1.msra.mxu0 0.0
        %5579 = vmatprep.subr.mxu0 0.0
        %5580 = vmatpush1.msra.mxu0 0.0
        %5581 = vmatprep.subr.mxu0 0.0
        %5582 = vmatpush1.msra.mxu0 0.0
        %5583 = vmatprep.subr.mxu0 0.0
        %5584 = vmatpush1.msra.mxu0 0.0
        %5585 = vmatprep.subr.mxu0 0.0
        %5586 = vmatpush1.msra.mxu0 0.0
        %5587 = vmatprep.subr.mxu0 0.0
        %5588 = vmatpush1.msra.mxu0 0.0
        %5589 = vmatprep.subr.mxu0 0.0
        %5590 = vmatpush1.msra.mxu0 0.0
        %5591 = vmatprep.subr.mxu0 0.0
        %5592 = vmatpush1.msra.mxu0 0.0
        %5593 = vmatprep.subr.mxu0 0.0
        %5594 = vmatpush1.msra.mxu0 0.0
        %5595 = vmatprep.subr.mxu0 0.0
        %5596 = vmatpush1.msra.mxu0 0.0
        %5597 = vmatprep.subr.mxu0 0.0
        %5598 = vmatpush1.msra.mxu0 0.0
        %5599 = vmatprep.subr.mxu0 0.0
        %5600 = vmatpush1.msra.mxu0 0.0
        %5601 = vmatprep.subr.mxu0 0.0
        %5602 = vmatpush1.msra.mxu0 0.0
        %5603 = vmatprep.subr.mxu0 0.0
        %5604 = vmatpush1.msra.mxu0 0.0
        %5605 = vmatprep.subr.mxu0 0.0
        %5606 = vmatpush1.msra.mxu0 0.0
        %5607 = vmatprep.subr.mxu0 0.0
        %5608 = vmatpush1.msra.mxu0 0.0
        %5609 = vmatprep.subr.mxu0 0.0
        %5610 = vmatpush1.msra.mxu0 0.0
        %5611 = vmatprep.subr.mxu0 0.0
        %5612 = vmatpush1.msra.mxu0 0.0
        %5613 = vmatprep.subr.mxu0 0.0
        %5614 = vmatpush1.msra.mxu0 0.0
        %5615 = vmatprep.subr.mxu0 0.0
        %5616 = vmatpush1.msra.mxu0 0.0
        %5617 = vmatprep.subr.mxu0 0.0
        %5618 = vmatpush1.msra.mxu0 0.0
        %5619 = vmatprep.subr.mxu0 0.0
        %5620 = vmatpush1.msra.mxu0 0.0
        %5621 = vmatprep.subr.mxu0 0.0
        %5622 = vmatpush1.msra.mxu0 0.0
        %5623 = vmatprep.subr.mxu0 0.0
        %5624 = vmatpush1.msra.mxu0 0.0
        %5625 = vmatprep.subr.mxu0 0.0
        %5626 = vmatpush1.msra.mxu0 0.0
        %5627 = vmatprep.subr.mxu0 0.0
        %5628 = vmatpush1.msra.mxu0 0.0
        %5629 = vmatprep.subr.mxu0 0.0
        %5630 = vmatpush1.msra.mxu0 0.0
        %5631 = vmatprep.mubr.f32.mxu0 0.0
        %v5632 = vand.u32 %v5368, 4294901760
        %v5633 = vsub.f32 %v5368, %v5632
        %5634 = vmatmul.mubr.f32.gmra.mrb[0].mxu0 %v5633
        %v5635 = vpop.f32.mrb[0].mxu0
        %v5636 = vadd.f32 %v5550, %v5635
        %v5637 = vpop.f32.mrb[0].mxu0
        %5638 = vmatprep.mubr.f32.mxu0 0.0
        %v5639 = vand.u32 %v5371, 4294901760
        %v5640 = vsub.f32 %v5371, %v5639
        %5641 = vmatmul.mubr.f32.gmra.mrb[0].mxu0 %v5640
        %v5642 = vpop.f32.mrb[0].mxu0
        %v5643 = vadd.f32 %v5556, %v5642
        %v5644 = vpop.f32.mrb[0].mxu0
        %5645 = vdwg.mxu0
        %5646 = vmatprep.subr.mxu0 0.0
        %v5647 = vand.u32 %v5356, 4294901760
        %5648 = vmatpush1.msra.mxu0 %v5647
        %5649 = vmatprep.subr.mxu0 0.0
        %v5650 = vand.u32 %v5357, 4294901760
        %5651 = vmatpush1.msra.mxu0 %v5650
        %5652 = vmatprep.subr.mxu0 0.0
        %v5653 = vand.u32 %v5358, 4294901760
        %5654 = vmatpush1.msra.mxu0 %v5653
        %5655 = vmatprep.subr.mxu0 0.0
        %v5656 = vand.u32 %v5359, 4294901760
        %5657 = vmatpush1.msra.mxu0 %v5656
        %5658 = vmatprep.subr.mxu0 0.0
        %5659 = vmatpush1.msra.mxu0 0.0
        %5660 = vmatprep.subr.mxu0 0.0
        %5661 = vmatpush1.msra.mxu0 0.0
        %5662 = vmatprep.subr.mxu0 0.0
        %5663 = vmatpush1.msra.mxu0 0.0
        %5664 = vmatprep.subr.mxu0 0.0
        %5665 = vmatpush1.msra.mxu0 0.0
        %5666 = vmatprep.subr.mxu0 0.0
        %5667 = vmatpush1.msra.mxu0 0.0
        %5668 = vmatprep.subr.mxu0 0.0
        %5669 = vmatpush1.msra.mxu0 0.0
        %5670 = vmatprep.subr.mxu0 0.0
        %5671 = vmatpush1.msra.mxu0 0.0
        %5672 = vmatprep.subr.mxu0 0.0
        %5673 = vmatpush1.msra.mxu0 0.0
        %5674 = vmatprep.subr.mxu0 0.0
        %5675 = vmatpush1.msra.mxu0 0.0
        %5676 = vmatprep.subr.mxu0 0.0
        %5677 = vmatpush1.msra.mxu0 0.0
        %5678 = vmatprep.subr.mxu0 0.0
        %5679 = vmatpush1.msra.mxu0 0.0
        %5680 = vmatprep.subr.mxu0 0.0
        %5681 = vmatpush1.msra.mxu0 0.0
        %5682 = vmatprep.subr.mxu0 0.0
        %5683 = vmatpush1.msra.mxu0 0.0
        %5684 = vmatprep.subr.mxu0 0.0
        %5685 = vmatpush1.msra.mxu0 0.0
        %5686 = vmatprep.subr.mxu0 0.0
        %5687 = vmatpush1.msra.mxu0 0.0
        %5688 = vmatprep.subr.mxu0 0.0
        %5689 = vmatpush1.msra.mxu0 0.0
        %5690 = vmatprep.subr.mxu0 0.0
        %5691 = vmatpush1.msra.mxu0 0.0
        %5692 = vmatprep.subr.mxu0 0.0
        %5693 = vmatpush1.msra.mxu0 0.0
        %5694 = vmatprep.subr.mxu0 0.0
        %5695 = vmatpush1.msra.mxu0 0.0
        %5696 = vmatprep.subr.mxu0 0.0
        %5697 = vmatpush1.msra.mxu0 0.0
        %5698 = vmatprep.subr.mxu0 0.0
        %5699 = vmatpush1.msra.mxu0 0.0
        %5700 = vmatprep.subr.mxu0 0.0
        %5701 = vmatpush1.msra.mxu0 0.0
        %5702 = vmatprep.subr.mxu0 0.0
        %5703 = vmatpush1.msra.mxu0 0.0
        %5704 = vmatprep.subr.mxu0 0.0
        %5705 = vmatpush1.msra.mxu0 0.0
        %5706 = vmatprep.subr.mxu0 0.0
        %5707 = vmatpush1.msra.mxu0 0.0
        %5708 = vmatprep.subr.mxu0 0.0
        %5709 = vmatpush1.msra.mxu0 0.0
        %5710 = vmatprep.subr.mxu0 0.0
        %5711 = vmatpush1.msra.mxu0 0.0
        %5712 = vmatprep.subr.mxu0 0.0
        %5713 = vmatpush1.msra.mxu0 0.0
        %5714 = vmatprep.mubr.f32.mxu0 0.0
        %v5715 = vand.u32 %v5368, 4294901760
        %v5716 = vsub.f32 %v5368, %v5715
        %v5717 = vand.u32 %v5716, 4294901760
        %5718 = vmatmul.mubr.f32.gmra.mrb[0].mxu0 %v5717
        %v5719 = vpop.f32.mrb[0].mxu0
        %v5720 = vadd.f32 %v5636, %v5719
        %v5721 = vpop.f32.mrb[0].mxu0
        %5722 = vmatprep.mubr.f32.mxu0 0.0
        %v5723 = vand.u32 %v5371, 4294901760
        %v5724 = vsub.f32 %v5371, %v5723
        %v5725 = vand.u32 %v5724, 4294901760
        %5726 = vmatmul.mubr.f32.gmra.mrb[0].mxu0 %v5725
        %v5727 = vpop.f32.mrb[0].mxu0
        %v5728 = vadd.f32 %v5643, %v5727
        %v5729 = vpop.f32.mrb[0].mxu0
        %5730 = vdwg.mxu0
        %5731 = vmatprep.subr.mxu0 0.0
        %v5732 = vand.u32 %v5356, 4294901760
        %v5733 = vsub.f32 %v5356, %v5732
        %v5734 = vand.u32 %v5733, 4294901760
        %5735 = vmatpush1.msra.mxu0 %v5734
        %5736 = vmatprep.subr.mxu0 0.0
        %v5737 = vand.u32 %v5357, 4294901760
        %v5738 = vsub.f32 %v5357, %v5737
        %v5739 = vand.u32 %v5738, 4294901760
        %5740 = vmatpush1.msra.mxu0 %v5739
        %5741 = vmatprep.subr.mxu0 0.0
        %v5742 = vand.u32 %v5358, 4294901760
        %v5743 = vsub.f32 %v5358, %v5742
        %v5744 = vand.u32 %v5743, 4294901760
        %5745 = vmatpush1.msra.mxu0 %v5744
        %5746 = vmatprep.subr.mxu0 0.0
        %v5747 = vand.u32 %v5359, 4294901760
        %v5748 = vsub.f32 %v5359, %v5747
        %v5749 = vand.u32 %v5748, 4294901760
        %5750 = vmatpush1.msra.mxu0 %v5749
        %5751 = vmatprep.subr.mxu0 0.0
        %5752 = vmatpush1.msra.mxu0 0.0
        %5753 = vmatprep.subr.mxu0 0.0
        %5754 = vmatpush1.msra.mxu0 0.0
        %5755 = vmatprep.subr.mxu0 0.0
        %5756 = vmatpush1.msra.mxu0 0.0
        %5757 = vmatprep.subr.mxu0 0.0
        %5758 = vmatpush1.msra.mxu0 0.0
        %5759 = vmatprep.subr.mxu0 0.0
        %5760 = vmatpush1.msra.mxu0 0.0
        %5761 = vmatprep.subr.mxu0 0.0
        %5762 = vmatpush1.msra.mxu0 0.0
        %5763 = vmatprep.subr.mxu0 0.0
        %5764 = vmatpush1.msra.mxu0 0.0
        %5765 = vmatprep.subr.mxu0 0.0
        %5766 = vmatpush1.msra.mxu0 0.0
        %5767 = vmatprep.subr.mxu0 0.0
        %5768 = vmatpush1.msra.mxu0 0.0
        %5769 = vmatprep.subr.mxu0 0.0
        %5770 = vmatpush1.msra.mxu0 0.0
        %5771 = vmatprep.subr.mxu0 0.0
        %5772 = vmatpush1.msra.mxu0 0.0
        %5773 = vmatprep.subr.mxu0 0.0
        %5774 = vmatpush1.msra.mxu0 0.0
        %5775 = vmatprep.subr.mxu0 0.0
        %5776 = vmatpush1.msra.mxu0 0.0
        %5777 = vmatprep.subr.mxu0 0.0
        %5778 = vmatpush1.msra.mxu0 0.0
        %5779 = vmatprep.subr.mxu0 0.0
        %5780 = vmatpush1.msra.mxu0 0.0
        %5781 = vmatprep.subr.mxu0 0.0
        %5782 = vmatpush1.msra.mxu0 0.0
        %5783 = vmatprep.subr.mxu0 0.0
        %5784 = vmatpush1.msra.mxu0 0.0
        %5785 = vmatprep.subr.mxu0 0.0
        %5786 = vmatpush1.msra.mxu0 0.0
        %5787 = vmatprep.subr.mxu0 0.0
        %5788 = vmatpush1.msra.mxu0 0.0
        %5789 = vmatprep.subr.mxu0 0.0
        %5790 = vmatpush1.msra.mxu0 0.0
        %5791 = vmatprep.subr.mxu0 0.0
        %5792 = vmatpush1.msra.mxu0 0.0
        %5793 = vmatprep.subr.mxu0 0.0
        %5794 = vmatpush1.msra.mxu0 0.0
        %5795 = vmatprep.subr.mxu0 0.0
        %5796 = vmatpush1.msra.mxu0 0.0
        %5797 = vmatprep.subr.mxu0 0.0
        %5798 = vmatpush1.msra.mxu0 0.0
        %5799 = vmatprep.subr.mxu0 0.0
        %5800 = vmatpush1.msra.mxu0 0.0
        %5801 = vmatprep.subr.mxu0 0.0
        %5802 = vmatpush1.msra.mxu0 0.0
        %5803 = vmatprep.subr.mxu0 0.0
        %5804 = vmatpush1.msra.mxu0 0.0
        %5805 = vmatprep.subr.mxu0 0.0
        %5806 = vmatpush1.msra.mxu0 0.0
        %5807 = vmatprep.mubr.f32.mxu0 0.0
        %v5808 = vand.u32 %v5368, 4294901760
        %5809 = vmatmul.mubr.f32.gmra.mrb[0].mxu0 %v5808
        %v5810 = vpop.f32.mrb[0].mxu0
        %v5811 = vadd.f32 %v5720, %v5810
        %v5812 = vpop.f32.mrb[0].mxu0
        %5813 = vmatprep.mubr.f32.mxu0 0.0
        %v5814 = vand.u32 %v5371, 4294901760
        %5815 = vmatmul.mubr.f32.gmra.mrb[0].mxu0 %v5814
        %v5816 = vpop.f32.mrb[0].mxu0
        %v5817 = vadd.f32 %v5728, %v5816
        %v5818 = vpop.f32.mrb[0].mxu0
        %5819 = vdwg.mxu0
        %5820 = vmatprep.subr.mxu0 0.0
        %v5821 = vand.u32 %v5356, 4294901760
        %5822 = vmatpush1.msra.mxu0 %v5821
        %5823 = vmatprep.subr.mxu0 0.0
        %v5824 = vand.u32 %v5357, 4294901760
        %5825 = vmatpush1.msra.mxu0 %v5824
        %5826 = vmatprep.subr.mxu0 0.0
        %v5827 = vand.u32 %v5358, 4294901760
        %5828 = vmatpush1.msra.mxu0 %v5827
        %5829 = vmatprep.subr.mxu0 0.0
        %v5830 = vand.u32 %v5359, 4294901760
        %5831 = vmatpush1.msra.mxu0 %v5830
        %5832 = vmatprep.subr.mxu0 0.0
        %5833 = vmatpush1.msra.mxu0 0.0
        %5834 = vmatprep.subr.mxu0 0.0
        %5835 = vmatpush1.msra.mxu0 0.0
        %5836 = vmatprep.subr.mxu0 0.0
        %5837 = vmatpush1.msra.mxu0 0.0
        %5838 = vmatprep.subr.mxu0 0.0
        %5839 = vmatpush1.msra.mxu0 0.0
        %5840 = vmatprep.subr.mxu0 0.0
        %5841 = vmatpush1.msra.mxu0 0.0
        %5842 = vmatprep.subr.mxu0 0.0
        %5843 = vmatpush1.msra.mxu0 0.0
        %5844 = vmatprep.subr.mxu0 0.0
        %5845 = vmatpush1.msra.mxu0 0.0
        %5846 = vmatprep.subr.mxu0 0.0
        %5847 = vmatpush1.msra.mxu0 0.0
        %5848 = vmatprep.subr.mxu0 0.0
        %5849 = vmatpush1.msra.mxu0 0.0
        %5850 = vmatprep.subr.mxu0 0.0
        %5851 = vmatpush1.msra.mxu0 0.0
        %5852 = vmatprep.subr.mxu0 0.0
        %5853 = vmatpush1.msra.mxu0 0.0
        %5854 = vmatprep.subr.mxu0 0.0
        %5855 = vmatpush1.msra.mxu0 0.0
        %5856 = vmatprep.subr.mxu0 0.0
        %5857 = vmatpush1.msra.mxu0 0.0
        %5858 = vmatprep.subr.mxu0 0.0
        %5859 = vmatpush1.msra.mxu0 0.0
        %5860 = vmatprep.subr.mxu0 0.0
        %5861 = vmatpush1.msra.mxu0 0.0
        %5862 = vmatprep.subr.mxu0 0.0
        %5863 = vmatpush1.msra.mxu0 0.0
        %5864 = vmatprep.subr.mxu0 0.0
        %5865 = vmatpush1.msra.mxu0 0.0
        %5866 = vmatprep.subr.mxu0 0.0
        %5867 = vmatpush1.msra.mxu0 0.0
        %5868 = vmatprep.subr.mxu0 0.0
        %5869 = vmatpush1.msra.mxu0 0.0
        %5870 = vmatprep.subr.mxu0 0.0
        %5871 = vmatpush1.msra.mxu0 0.0
        %5872 = vmatprep.subr.mxu0 0.0
        %5873 = vmatpush1.msra.mxu0 0.0
        %5874 = vmatprep.subr.mxu0 0.0
        %5875 = vmatpush1.msra.mxu0 0.0
        %5876 = vmatprep.subr.mxu0 0.0
        %5877 = vmatpush1.msra.mxu0 0.0
        %5878 = vmatprep.subr.mxu0 0.0
        %5879 = vmatpush1.msra.mxu0 0.0
        %5880 = vmatprep.subr.mxu0 0.0
        %5881 = vmatpush1.msra.mxu0 0.0
        %5882 = vmatprep.subr.mxu0 0.0
        %5883 = vmatpush1.msra.mxu0 0.0
        %5884 = vmatprep.subr.mxu0 0.0
        %5885 = vmatpush1.msra.mxu0 0.0
        %5886 = vmatprep.subr.mxu0 0.0
        %5887 = vmatpush1.msra.mxu0 0.0
        %5888 = vmatprep.mubr.f32.mxu0 0.0
        %v5889 = vand.u32 %v5368, 4294901760
        %5890 = vmatmul.mubr.f32.gmra.mrb[0].mxu0 %v5889
        %v5891 = vpop.f32.mrb[0].mxu0
        %v5892 = vadd.f32 %v5811, %v5891
        %v5893 = vpop.f32.mrb[0].mxu0
        %5894 = vmatprep.mubr.f32.mxu0 0.0
        %v5895 = vand.u32 %v5371, 4294901760
        %5896 = vmatmul.mubr.f32.gmra.mrb[0].mxu0 %v5895
        %v5897 = vpop.f32.mrb[0].mxu0
        %v5898 = vadd.f32 %v5817, %v5897
        %v5899 = vpop.f32.mrb[0].mxu0
        %5900 = vdwg.mxu0
        %v5901 = vadd.f32 %v553, %v5892
        %v5902 = vadd.f32 %v554, %v5898
        %v5903 = vld [vmem:[#allocation2] sm:$0x1]
        %v5904 = vld [vmem:[#allocation5] sm:$0x1]
        %v5905 = vsel %vm566, %v5901, 0.0
        %5906 = vadd.xlane.f32.xlu0 %v5905
        %v5907 = vpop.xlane.xlu0 %5906
        %v5908 = vsel %vm566, %v5902, 0.0
        %5909 = vadd.xlane.f32.xlu0 %v5908
        %v5910 = vpop.xlane.xlu0 %5909
        %v5911 = vrcp.pop 32.0
        %v5912 = vmul.f32 %v5907, %v5911
        %v5913 = vmul.f32 %v5910, %v5911
        %v5914 = vsub.f32 %v5901, %v5912
        %v5915 = vsub.f32 %v5902, %v5913
        %v5916 = vmul.f32 %v5914, %v5914
        %v5917 = vmul.f32 %v5915, %v5915
        %v5918 = vsel %vm566, %v5916, 0.0
        %5919 = vadd.xlane.f32.xlu0 %v5918
        %v5920 = vpop.xlane.xlu0 %5919
        %v5921 = vsel %vm566, %v5917, 0.0
        %5922 = vadd.xlane.f32.xlu0 %v5921
        %v5923 = vpop.xlane.xlu0 %5922
        %v5924 = vmul.f32 %v5920, %v5911
        %v5925 = vmul.f32 %v5923, %v5911
        %v5926 = vadd.f32 %v5924, 1e-05
        %v5927 = vadd.f32 %v5925, 1e-05
        %v5928 = vrsqrt.pop %v5926
        %v5929 = vrsqrt.pop %v5927
        %v5930 = vmul.f32 %v5914, %v5928
        %v5931 = vmul.f32 %v5915, %v5929
        %v5933 = vlaneseq
        %v5934 = vshrl.u32 %v5933, 7
        %v5935 = vsub.s32 0, %v5934
        %v5936 = vrot.slane %v5903, %v5935
        %v5938 = vmul.f32 %v5930, %v5936
        %v5939 = vmul.f32 %v5931, %v5936
        %v5941 = vlaneseq
        %v5942 = vshrl.u32 %v5941, 7
        %v5943 = vsub.s32 0, %v5942
        %v5944 = vrot.slane %v5904, %v5943
        %v5946 = vadd.f32 %v5938, %v5944
        %v5947 = vadd.f32 %v5939, %v5944
        %v5948 = vld [vmem:[%s7] sm:$0xff]
        %v5949 = vld [vmem:[%s7 + $0x8] sm:$0xff]
        %v5950 = vld [vmem:[%s7 + $0x10] sm:$0xff]
        %v5951 = vld [vmem:[%s7 + $0x18] sm:$0xff]
        %v5952 = vld [vmem:[#allocation7] sm:$0x1]
        %v5954 = vlaneseq
        %v5955 = vshrl.u32 %v5954, 7
        %v5956 = vsub.s32 0, %v5955
        %v5957 = vrot.slane %v5952, %v5956
        %v5960 = vsel %vm566, %v5946, 0
        %v5963 = vsel %vm566, %v5947, 0
        %5965 = vmatprep.subr.mxu0 0.0
        %v5966 = vand.u32 %v5948, 4294901760
        %5967 = vmatpush1.msra.mxu0 %v5966
        %5968 = vmatprep.subr.mxu0 0.0
        %v5969 = vand.u32 %v5949, 4294901760
        %5970 = vmatpush1.msra.mxu0 %v5969
        %5971 = vmatprep.subr.mxu0 0.0
        %v5972 = vand.u32 %v5950, 4294901760
        %5973 = vmatpush1.msra.mxu0 %v5972
        %5974 = vmatprep.subr.mxu0 0.0
        %v5975 = vand.u32 %v5951, 4294901760
        %5976 = vmatpush1.msra.mxu0 %v5975
        %5977 = vmatprep.subr.mxu0 0.0
        %5978 = vmatpush1.msra.mxu0 0.0
        %5979 = vmatprep.subr.mxu0 0.0
        %5980 = vmatpush1.msra.mxu0 0.0
        %5981 = vmatprep.subr.mxu0 0.0
        %5982 = vmatpush1.msra.mxu0 0.0
        %5983 = vmatprep.subr.mxu0 0.0
        %5984 = vmatpush1.msra.mxu0 0.0
        %5985 = vmatprep.subr.mxu0 0.0
        %5986 = vmatpush1.msra.mxu0 0.0
        %5987 = vmatprep.subr.mxu0 0.0
        %5988 = vmatpush1.msra.mxu0 0.0
        %5989 = vmatprep.subr.mxu0 0.0
        %5990 = vmatpush1.msra.mxu0 0.0
        %5991 = vmatprep.subr.mxu0 0.0
        %5992 = vmatpush1.msra.mxu0 0.0
        %5993 = vmatprep.subr.mxu0 0.0
        %5994 = vmatpush1.msra.mxu0 0.0
        %5995 = vmatprep.subr.mxu0 0.0
        %5996 = vmatpush1.msra.mxu0 0.0
        %5997 = vmatprep.subr.mxu0 0.0
        %5998 = vmatpush1.msra.mxu0 0.0
        %5999 = vmatprep.subr.mxu0 0.0
        %6000 = vmatpush1.msra.mxu0 0.0
        %6001 = vmatprep.subr.mxu0 0.0
        %6002 = vmatpush1.msra.mxu0 0.0
        %6003 = vmatprep.subr.mxu0 0.0
        %6004 = vmatpush1.msra.mxu0 0.0
        %6005 = vmatprep.subr.mxu0 0.0
        %6006 = vmatpush1.msra.mxu0 0.0
        %6007 = vmatprep.subr.mxu0 0.0
        %6008 = vmatpush1.msra.mxu0 0.0
        %6009 = vmatprep.subr.mxu0 0.0
        %6010 = vmatpush1.msra.mxu0 0.0
        %6011 = vmatprep.subr.mxu0 0.0
        %6012 = vmatpush1.msra.mxu0 0.0
        %6013 = vmatprep.subr.mxu0 0.0
        %6014 = vmatpush1.msra.mxu0 0.0
        %6015 = vmatprep.subr.mxu0 0.0
        %6016 = vmatpush1.msra.mxu0 0.0
        %6017 = vmatprep.subr.mxu0 0.0
        %6018 = vmatpush1.msra.mxu0 0.0
        %6019 = vmatprep.subr.mxu0 0.0
        %6020 = vmatpush1.msra.mxu0 0.0
        %6021 = vmatprep.subr.mxu0 0.0
        %6022 = vmatpush1.msra.mxu0 0.0
        %6023 = vmatprep.subr.mxu0 0.0
        %6024 = vmatpush1.msra.mxu0 0.0
        %6025 = vmatprep.subr.mxu0 0.0
        %6026 = vmatpush1.msra.mxu0 0.0
        %6027 = vmatprep.subr.mxu0 0.0
        %6028 = vmatpush1.msra.mxu0 0.0
        %6029 = vmatprep.subr.mxu0 0.0
        %6030 = vmatpush1.msra.mxu0 0.0
        %6031 = vmatprep.subr.mxu0 0.0
        %6032 = vmatpush1.msra.mxu0 0.0
        %6033 = vmatprep.mubr.f32.mxu0 0.0
        %v6034 = vand.u32 %v5960, 4294901760
        %v6035 = vsub.f32 %v5960, %v6034
        %v6036 = vand.u32 %v6035, 4294901760
        %v6037 = vsub.f32 %v6035, %v6036
        %v6038 = vand.u32 %v6037, 4294901760
        %6039 = vmatmul.mubr.f32.gmra.mrb[0].mxu0 %v6038
        %v6040 = vpop.f32.mrb[0].mxu0
        %v6041 = vadd.f32 %v5957, %v6040
        %v6042 = vpop.f32.mrb[0].mxu0
        %6043 = vmatprep.mubr.f32.mxu0 0.0
        %v6044 = vand.u32 %v5963, 4294901760
        %v6045 = vsub.f32 %v5963, %v6044
        %v6046 = vand.u32 %v6045, 4294901760
        %v6047 = vsub.f32 %v6045, %v6046
        %v6048 = vand.u32 %v6047, 4294901760
        %6049 = vmatmul.mubr.f32.gmra.mrb[0].mxu0 %v6048
        %v6050 = vpop.f32.mrb[0].mxu0
        %v6051 = vadd.f32 %v5957, %v6050
        %v6052 = vpop.f32.mrb[0].mxu0
        %6053 = vdwg.mxu0
        %6054 = vmatprep.subr.mxu0 0.0
        %v6055 = vand.u32 %v5948, 4294901760
        %v6056 = vsub.f32 %v5948, %v6055
        %v6057 = vand.u32 %v6056, 4294901760
        %v6058 = vsub.f32 %v6056, %v6057
        %v6059 = vand.u32 %v6058, 4294901760
        %6060 = vmatpush1.msra.mxu0 %v6059
        %6061 = vmatprep.subr.mxu0 0.0
        %v6062 = vand.u32 %v5949, 4294901760
        %v6063 = vsub.f32 %v5949, %v6062
        %v6064 = vand.u32 %v6063, 4294901760
        %v6065 = vsub.f32 %v6063, %v6064
        %v6066 = vand.u32 %v6065, 4294901760
        %6067 = vmatpush1.msra.mxu0 %v6066
        %6068 = vmatprep.subr.mxu0 0.0
        %v6069 = vand.u32 %v5950, 4294901760
        %v6070 = vsub.f32 %v5950, %v6069
        %v6071 = vand.u32 %v6070, 4294901760
        %v6072 = vsub.f32 %v6070, %v6071
        %v6073 = vand.u32 %v6072, 4294901760
        %6074 = vmatpush1.msra.mxu0 %v6073
        %6075 = vmatprep.subr.mxu0 0.0
        %v6076 = vand.u32 %v5951, 4294901760
        %v6077 = vsub.f32 %v5951, %v6076
        %v6078 = vand.u32 %v6077, 4294901760
        %v6079 = vsub.f32 %v6077, %v6078
        %v6080 = vand.u32 %v6079, 4294901760
        %6081 = vmatpush1.msra.mxu0 %v6080
        %6082 = vmatprep.subr.mxu0 0.0
        %6083 = vmatpush1.msra.mxu0 0.0
        %6084 = vmatprep.subr.mxu0 0.0
        %6085 = vmatpush1.msra.mxu0 0.0
        %6086 = vmatprep.subr.mxu0 0.0
        %6087 = vmatpush1.msra.mxu0 0.0
        %6088 = vmatprep.subr.mxu0 0.0
        %6089 = vmatpush1.msra.mxu0 0.0
        %6090 = vmatprep.subr.mxu0 0.0
        %6091 = vmatpush1.msra.mxu0 0.0
        %6092 = vmatprep.subr.mxu0 0.0
        %6093 = vmatpush1.msra.mxu0 0.0
        %6094 = vmatprep.subr.mxu0 0.0
        %6095 = vmatpush1.msra.mxu0 0.0
        %6096 = vmatprep.subr.mxu0 0.0
        %6097 = vmatpush1.msra.mxu0 0.0
        %6098 = vmatprep.subr.mxu0 0.0
        %6099 = vmatpush1.msra.mxu0 0.0
        %6100 = vmatprep.subr.mxu0 0.0
        %6101 = vmatpush1.msra.mxu0 0.0
        %6102 = vmatprep.subr.mxu0 0.0
        %6103 = vmatpush1.msra.mxu0 0.0
        %6104 = vmatprep.subr.mxu0 0.0
        %6105 = vmatpush1.msra.mxu0 0.0
        %6106 = vmatprep.subr.mxu0 0.0
        %6107 = vmatpush1.msra.mxu0 0.0
        %6108 = vmatprep.subr.mxu0 0.0
        %6109 = vmatpush1.msra.mxu0 0.0
        %6110 = vmatprep.subr.mxu0 0.0
        %6111 = vmatpush1.msra.mxu0 0.0
        %6112 = vmatprep.subr.mxu0 0.0
        %6113 = vmatpush1.msra.mxu0 0.0
        %6114 = vmatprep.subr.mxu0 0.0
        %6115 = vmatpush1.msra.mxu0 0.0
        %6116 = vmatprep.subr.mxu0 0.0
        %6117 = vmatpush1.msra.mxu0 0.0
        %6118 = vmatprep.subr.mxu0 0.0
        %6119 = vmatpush1.msra.mxu0 0.0
        %6120 = vmatprep.subr.mxu0 0.0
        %6121 = vmatpush1.msra.mxu0 0.0
        %6122 = vmatprep.subr.mxu0 0.0
        %6123 = vmatpush1.msra.mxu0 0.0
        %6124 = vmatprep.subr.mxu0 0.0
        %6125 = vmatpush1.msra.mxu0 0.0
        %6126 = vmatprep.subr.mxu0 0.0
        %6127 = vmatpush1.msra.mxu0 0.0
        %6128 = vmatprep.subr.mxu0 0.0
        %6129 = vmatpush1.msra.mxu0 0.0
        %6130 = vmatprep.subr.mxu0 0.0
        %6131 = vmatpush1.msra.mxu0 0.0
        %6132 = vmatprep.subr.mxu0 0.0
        %6133 = vmatpush1.msra.mxu0 0.0
        %6134 = vmatprep.subr.mxu0 0.0
        %6135 = vmatpush1.msra.mxu0 0.0
        %6136 = vmatprep.subr.mxu0 0.0
        %6137 = vmatpush1.msra.mxu0 0.0
        %6138 = vmatprep.mubr.f32.mxu0 0.0
        %v6139 = vand.u32 %v5960, 4294901760
        %6140 = vmatmul.mubr.f32.gmra.mrb[0].mxu0 %v6139
        %v6141 = vpop.f32.mrb[0].mxu0
        %v6142 = vadd.f32 %v6041, %v6141
        %v6143 = vpop.f32.mrb[0].mxu0
        %6144 = vmatprep.mubr.f32.mxu0 0.0
        %v6145 = vand.u32 %v5963, 4294901760
        %6146 = vmatmul.mubr.f32.gmra.mrb[0].mxu0 %v6145
        %v6147 = vpop.f32.mrb[0].mxu0
        %v6148 = vadd.f32 %v6051, %v6147
        %v6149 = vpop.f32.mrb[0].mxu0
        %6150 = vdwg.mxu0
        %6151 = vmatprep.subr.mxu0 0.0
        %v6152 = vand.u32 %v5948, 4294901760
        %v6153 = vsub.f32 %v5948, %v6152
        %6154 = vmatpush1.msra.mxu0 %v6153
        %6155 = vmatprep.subr.mxu0 0.0
        %v6156 = vand.u32 %v5949, 4294901760
        %v6157 = vsub.f32 %v5949, %v6156
        %6158 = vmatpush1.msra.mxu0 %v6157
        %6159 = vmatprep.subr.mxu0 0.0
        %v6160 = vand.u32 %v5950, 4294901760
        %v6161 = vsub.f32 %v5950, %v6160
        %6162 = vmatpush1.msra.mxu0 %v6161
        %6163 = vmatprep.subr.mxu0 0.0
        %v6164 = vand.u32 %v5951, 4294901760
        %v6165 = vsub.f32 %v5951, %v6164
        %6166 = vmatpush1.msra.mxu0 %v6165
        %6167 = vmatprep.subr.mxu0 0.0
        %6168 = vmatpush1.msra.mxu0 0.0
        %6169 = vmatprep.subr.mxu0 0.0
        %6170 = vmatpush1.msra.mxu0 0.0
        %6171 = vmatprep.subr.mxu0 0.0
        %6172 = vmatpush1.msra.mxu0 0.0
        %6173 = vmatprep.subr.mxu0 0.0
        %6174 = vmatpush1.msra.mxu0 0.0
        %6175 = vmatprep.subr.mxu0 0.0
        %6176 = vmatpush1.msra.mxu0 0.0
        %6177 = vmatprep.subr.mxu0 0.0
        %6178 = vmatpush1.msra.mxu0 0.0
        %6179 = vmatprep.subr.mxu0 0.0
        %6180 = vmatpush1.msra.mxu0 0.0
        %6181 = vmatprep.subr.mxu0 0.0
        %6182 = vmatpush1.msra.mxu0 0.0
        %6183 = vmatprep.subr.mxu0 0.0
        %6184 = vmatpush1.msra.mxu0 0.0
        %6185 = vmatprep.subr.mxu0 0.0
        %6186 = vmatpush1.msra.mxu0 0.0
        %6187 = vmatprep.subr.mxu0 0.0
        %6188 = vmatpush1.msra.mxu0 0.0
        %6189 = vmatprep.subr.mxu0 0.0
        %6190 = vmatpush1.msra.mxu0 0.0
        %6191 = vmatprep.subr.mxu0 0.0
        %6192 = vmatpush1.msra.mxu0 0.0
        %6193 = vmatprep.subr.mxu0 0.0
        %6194 = vmatpush1.msra.mxu0 0.0
        %6195 = vmatprep.subr.mxu0 0.0
        %6196 = vmatpush1.msra.mxu0 0.0
        %6197 = vmatprep.subr.mxu0 0.0
        %6198 = vmatpush1.msra.mxu0 0.0
        %6199 = vmatprep.subr.mxu0 0.0
        %6200 = vmatpush1.msra.mxu0 0.0
        %6201 = vmatprep.subr.mxu0 0.0
        %6202 = vmatpush1.msra.mxu0 0.0
        %6203 = vmatprep.subr.mxu0 0.0
        %6204 = vmatpush1.msra.mxu0 0.0
        %6205 = vmatprep.subr.mxu0 0.0
        %6206 = vmatpush1.msra.mxu0 0.0
        %6207 = vmatprep.subr.mxu0 0.0
        %6208 = vmatpush1.msra.mxu0 0.0
        %6209 = vmatprep.subr.mxu0 0.0
        %6210 = vmatpush1.msra.mxu0 0.0
        %6211 = vmatprep.subr.mxu0 0.0
        %6212 = vmatpush1.msra.mxu0 0.0
        %6213 = vmatprep.subr.mxu0 0.0
        %6214 = vmatpush1.msra.mxu0 0.0
        %6215 = vmatprep.subr.mxu0 0.0
        %6216 = vmatpush1.msra.mxu0 0.0
        %6217 = vmatprep.subr.mxu0 0.0
        %6218 = vmatpush1.msra.mxu0 0.0
        %6219 = vmatprep.subr.mxu0 0.0
        %6220 = vmatpush1.msra.mxu0 0.0
        %6221 = vmatprep.subr.mxu0 0.0
        %6222 = vmatpush1.msra.mxu0 0.0
        %6223 = vmatprep.mubr.f32.mxu0 0.0
        %v6224 = vand.u32 %v5960, 4294901760
        %v6225 = vsub.f32 %v5960, %v6224
        %6226 = vmatmul.mubr.f32.gmra.mrb[0].mxu0 %v6225
        %v6227 = vpop.f32.mrb[0].mxu0
        %v6228 = vadd.f32 %v6142, %v6227
        %v6229 = vpop.f32.mrb[0].mxu0
        %6230 = vmatprep.mubr.f32.mxu0 0.0
        %v6231 = vand.u32 %v5963, 4294901760
        %v6232 = vsub.f32 %v5963, %v6231
        %6233 = vmatmul.mubr.f32.gmra.mrb[0].mxu0 %v6232
        %v6234 = vpop.f32.mrb[0].mxu0
        %v6235 = vadd.f32 %v6148, %v6234
        %v6236 = vpop.f32.mrb[0].mxu0
        %6237 = vdwg.mxu0
        %6238 = vmatprep.subr.mxu0 0.0
        %v6239 = vand.u32 %v5948, 4294901760
        %6240 = vmatpush1.msra.mxu0 %v6239
        %6241 = vmatprep.subr.mxu0 0.0
        %v6242 = vand.u32 %v5949, 4294901760
        %6243 = vmatpush1.msra.mxu0 %v6242
        %6244 = vmatprep.subr.mxu0 0.0
        %v6245 = vand.u32 %v5950, 4294901760
        %6246 = vmatpush1.msra.mxu0 %v6245
        %6247 = vmatprep.subr.mxu0 0.0
        %v6248 = vand.u32 %v5951, 4294901760
        %6249 = vmatpush1.msra.mxu0 %v6248
        %6250 = vmatprep.subr.mxu0 0.0
        %6251 = vmatpush1.msra.mxu0 0.0
        %6252 = vmatprep.subr.mxu0 0.0
        %6253 = vmatpush1.msra.mxu0 0.0
        %6254 = vmatprep.subr.mxu0 0.0
        %6255 = vmatpush1.msra.mxu0 0.0
        %6256 = vmatprep.subr.mxu0 0.0
        %6257 = vmatpush1.msra.mxu0 0.0
        %6258 = vmatprep.subr.mxu0 0.0
        %6259 = vmatpush1.msra.mxu0 0.0
        %6260 = vmatprep.subr.mxu0 0.0
        %6261 = vmatpush1.msra.mxu0 0.0
        %6262 = vmatprep.subr.mxu0 0.0
        %6263 = vmatpush1.msra.mxu0 0.0
        %6264 = vmatprep.subr.mxu0 0.0
        %6265 = vmatpush1.msra.mxu0 0.0
        %6266 = vmatprep.subr.mxu0 0.0
        %6267 = vmatpush1.msra.mxu0 0.0
        %6268 = vmatprep.subr.mxu0 0.0
        %6269 = vmatpush1.msra.mxu0 0.0
        %6270 = vmatprep.subr.mxu0 0.0
        %6271 = vmatpush1.msra.mxu0 0.0
        %6272 = vmatprep.subr.mxu0 0.0
        %6273 = vmatpush1.msra.mxu0 0.0
        %6274 = vmatprep.subr.mxu0 0.0
        %6275 = vmatpush1.msra.mxu0 0.0
        %6276 = vmatprep.subr.mxu0 0.0
        %6277 = vmatpush1.msra.mxu0 0.0
        %6278 = vmatprep.subr.mxu0 0.0
        %6279 = vmatpush1.msra.mxu0 0.0
        %6280 = vmatprep.subr.mxu0 0.0
        %6281 = vmatpush1.msra.mxu0 0.0
        %6282 = vmatprep.subr.mxu0 0.0
        %6283 = vmatpush1.msra.mxu0 0.0
        %6284 = vmatprep.subr.mxu0 0.0
        %6285 = vmatpush1.msra.mxu0 0.0
        %6286 = vmatprep.subr.mxu0 0.0
        %6287 = vmatpush1.msra.mxu0 0.0
        %6288 = vmatprep.subr.mxu0 0.0
        %6289 = vmatpush1.msra.mxu0 0.0
        %6290 = vmatprep.subr.mxu0 0.0
        %6291 = vmatpush1.msra.mxu0 0.0
        %6292 = vmatprep.subr.mxu0 0.0
        %6293 = vmatpush1.msra.mxu0 0.0
        %6294 = vmatprep.subr.mxu0 0.0
        %6295 = vmatpush1.msra.mxu0 0.0
        %6296 = vmatprep.subr.mxu0 0.0
        %6297 = vmatpush1.msra.mxu0 0.0
        %6298 = vmatprep.subr.mxu0 0.0
        %6299 = vmatpush1.msra.mxu0 0.0
        %6300 = vmatprep.subr.mxu0 0.0
        %6301 = vmatpush1.msra.mxu0 0.0
        %6302 = vmatprep.subr.mxu0 0.0
        %6303 = vmatpush1.msra.mxu0 0.0
        %6304 = vmatprep.subr.mxu0 0.0
        %6305 = vmatpush1.msra.mxu0 0.0
        %6306 = vmatprep.mubr.f32.mxu0 0.0
        %v6307 = vand.u32 %v5960, 4294901760
        %v6308 = vsub.f32 %v5960, %v6307
        %v6309 = vand.u32 %v6308, 4294901760
        %6310 = vmatmul.mubr.f32.gmra.mrb[0].mxu0 %v6309
        %v6311 = vpop.f32.mrb[0].mxu0
        %v6312 = vadd.f32 %v6228, %v6311
        %v6313 = vpop.f32.mrb[0].mxu0
        %6314 = vmatprep.mubr.f32.mxu0 0.0
        %v6315 = vand.u32 %v5963, 4294901760
        %v6316 = vsub.f32 %v5963, %v6315
        %v6317 = vand.u32 %v6316, 4294901760
        %6318 = vmatmul.mubr.f32.gmra.mrb[0].mxu0 %v6317
        %v6319 = vpop.f32.mrb[0].mxu0
        %v6320 = vadd.f32 %v6235, %v6319
        %v6321 = vpop.f32.mrb[0].mxu0
        %6322 = vdwg.mxu0
        %6323 = vmatprep.subr.mxu0 0.0
        %v6324 = vand.u32 %v5948, 4294901760
        %v6325 = vsub.f32 %v5948, %v6324
        %v6326 = vand.u32 %v6325, 4294901760
        %6327 = vmatpush1.msra.mxu0 %v6326
        %6328 = vmatprep.subr.mxu0 0.0
        %v6329 = vand.u32 %v5949, 4294901760
        %v6330 = vsub.f32 %v5949, %v6329
        %v6331 = vand.u32 %v6330, 4294901760
        %6332 = vmatpush1.msra.mxu0 %v6331
        %6333 = vmatprep.subr.mxu0 0.0
        %v6334 = vand.u32 %v5950, 4294901760
        %v6335 = vsub.f32 %v5950, %v6334
        %v6336 = vand.u32 %v6335, 4294901760
        %6337 = vmatpush1.msra.mxu0 %v6336
        %6338 = vmatprep.subr.mxu0 0.0
        %v6339 = vand.u32 %v5951, 4294901760
        %v6340 = vsub.f32 %v5951, %v6339
        %v6341 = vand.u32 %v6340, 4294901760
        %6342 = vmatpush1.msra.mxu0 %v6341
        %6343 = vmatprep.subr.mxu0 0.0
        %6344 = vmatpush1.msra.mxu0 0.0
        %6345 = vmatprep.subr.mxu0 0.0
        %6346 = vmatpush1.msra.mxu0 0.0
        %6347 = vmatprep.subr.mxu0 0.0
        %6348 = vmatpush1.msra.mxu0 0.0
        %6349 = vmatprep.subr.mxu0 0.0
        %6350 = vmatpush1.msra.mxu0 0.0
        %6351 = vmatprep.subr.mxu0 0.0
        %6352 = vmatpush1.msra.mxu0 0.0
        %6353 = vmatprep.subr.mxu0 0.0
        %6354 = vmatpush1.msra.mxu0 0.0
        %6355 = vmatprep.subr.mxu0 0.0
        %6356 = vmatpush1.msra.mxu0 0.0
        %6357 = vmatprep.subr.mxu0 0.0
        %6358 = vmatpush1.msra.mxu0 0.0
        %6359 = vmatprep.subr.mxu0 0.0
        %6360 = vmatpush1.msra.mxu0 0.0
        %6361 = vmatprep.subr.mxu0 0.0
        %6362 = vmatpush1.msra.mxu0 0.0
        %6363 = vmatprep.subr.mxu0 0.0
        %6364 = vmatpush1.msra.mxu0 0.0
        %6365 = vmatprep.subr.mxu0 0.0
        %6366 = vmatpush1.msra.mxu0 0.0
        %6367 = vmatprep.subr.mxu0 0.0
        %6368 = vmatpush1.msra.mxu0 0.0
        %6369 = vmatprep.subr.mxu0 0.0
        %6370 = vmatpush1.msra.mxu0 0.0
        %6371 = vmatprep.subr.mxu0 0.0
        %6372 = vmatpush1.msra.mxu0 0.0
        %6373 = vmatprep.subr.mxu0 0.0
        %6374 = vmatpush1.msra.mxu0 0.0
        %6375 = vmatprep.subr.mxu0 0.0
        %6376 = vmatpush1.msra.mxu0 0.0
        %6377 = vmatprep.subr.mxu0 0.0
        %6378 = vmatpush1.msra.mxu0 0.0
        %6379 = vmatprep.subr.mxu0 0.0
        %6380 = vmatpush1.msra.mxu0 0.0
        %6381 = vmatprep.subr.mxu0 0.0
        %6382 = vmatpush1.msra.mxu0 0.0
        %6383 = vmatprep.subr.mxu0 0.0
        %6384 = vmatpush1.msra.mxu0 0.0
        %6385 = vmatprep.subr.mxu0 0.0
        %6386 = vmatpush1.msra.mxu0 0.0
        %6387 = vmatprep.subr.mxu0 0.0
        %6388 = vmatpush1.msra.mxu0 0.0
        %6389 = vmatprep.subr.mxu0 0.0
        %6390 = vmatpush1.msra.mxu0 0.0
        %6391 = vmatprep.subr.mxu0 0.0
        %6392 = vmatpush1.msra.mxu0 0.0
        %6393 = vmatprep.subr.mxu0 0.0
        %6394 = vmatpush1.msra.mxu0 0.0
        %6395 = vmatprep.subr.mxu0 0.0
        %6396 = vmatpush1.msra.mxu0 0.0
        %6397 = vmatprep.subr.mxu0 0.0
        %6398 = vmatpush1.msra.mxu0 0.0
        %6399 = vmatprep.mubr.f32.mxu0 0.0
        %v6400 = vand.u32 %v5960, 4294901760
        %6401 = vmatmul.mubr.f32.gmra.mrb[0].mxu0 %v6400
        %v6402 = vpop.f32.mrb[0].mxu0
        %v6403 = vadd.f32 %v6312, %v6402
        %v6404 = vpop.f32.mrb[0].mxu0
        %6405 = vmatprep.mubr.f32.mxu0 0.0
        %v6406 = vand.u32 %v5963, 4294901760
        %6407 = vmatmul.mubr.f32.gmra.mrb[0].mxu0 %v6406
        %v6408 = vpop.f32.mrb[0].mxu0
        %v6409 = vadd.f32 %v6320, %v6408
        %v6410 = vpop.f32.mrb[0].mxu0
        %6411 = vdwg.mxu0
        %6412 = vmatprep.subr.mxu0 0.0
        %v6413 = vand.u32 %v5948, 4294901760
        %6414 = vmatpush1.msra.mxu0 %v6413
        %6415 = vmatprep.subr.mxu0 0.0
        %v6416 = vand.u32 %v5949, 4294901760
        %6417 = vmatpush1.msra.mxu0 %v6416
        %6418 = vmatprep.subr.mxu0 0.0
        %v6419 = vand.u32 %v5950, 4294901760
        %6420 = vmatpush1.msra.mxu0 %v6419
        %6421 = vmatprep.subr.mxu0 0.0
        %v6422 = vand.u32 %v5951, 4294901760
        %6423 = vmatpush1.msra.mxu0 %v6422
        %6424 = vmatprep.subr.mxu0 0.0
        %6425 = vmatpush1.msra.mxu0 0.0
        %6426 = vmatprep.subr.mxu0 0.0
        %6427 = vmatpush1.msra.mxu0 0.0
        %6428 = vmatprep.subr.mxu0 0.0
        %6429 = vmatpush1.msra.mxu0 0.0
        %6430 = vmatprep.subr.mxu0 0.0
        %6431 = vmatpush1.msra.mxu0 0.0
        %6432 = vmatprep.subr.mxu0 0.0
        %6433 = vmatpush1.msra.mxu0 0.0
        %6434 = vmatprep.subr.mxu0 0.0
        %6435 = vmatpush1.msra.mxu0 0.0
        %6436 = vmatprep.subr.mxu0 0.0
        %6437 = vmatpush1.msra.mxu0 0.0
        %6438 = vmatprep.subr.mxu0 0.0
        %6439 = vmatpush1.msra.mxu0 0.0
        %6440 = vmatprep.subr.mxu0 0.0
        %6441 = vmatpush1.msra.mxu0 0.0
        %6442 = vmatprep.subr.mxu0 0.0
        %6443 = vmatpush1.msra.mxu0 0.0
        %6444 = vmatprep.subr.mxu0 0.0
        %6445 = vmatpush1.msra.mxu0 0.0
        %6446 = vmatprep.subr.mxu0 0.0
        %6447 = vmatpush1.msra.mxu0 0.0
        %6448 = vmatprep.subr.mxu0 0.0
        %6449 = vmatpush1.msra.mxu0 0.0
        %6450 = vmatprep.subr.mxu0 0.0
        %6451 = vmatpush1.msra.mxu0 0.0
        %6452 = vmatprep.subr.mxu0 0.0
        %6453 = vmatpush1.msra.mxu0 0.0
        %6454 = vmatprep.subr.mxu0 0.0
        %6455 = vmatpush1.msra.mxu0 0.0
        %6456 = vmatprep.subr.mxu0 0.0
        %6457 = vmatpush1.msra.mxu0 0.0
        %6458 = vmatprep.subr.mxu0 0.0
        %6459 = vmatpush1.msra.mxu0 0.0
        %6460 = vmatprep.subr.mxu0 0.0
        %6461 = vmatpush1.msra.mxu0 0.0
        %6462 = vmatprep.subr.mxu0 0.0
        %6463 = vmatpush1.msra.mxu0 0.0
        %6464 = vmatprep.subr.mxu0 0.0
        %6465 = vmatpush1.msra.mxu0 0.0
        %6466 = vmatprep.subr.mxu0 0.0
        %6467 = vmatpush1.msra.mxu0 0.0
        %6468 = vmatprep.subr.mxu0 0.0
        %6469 = vmatpush1.msra.mxu0 0.0
        %6470 = vmatprep.subr.mxu0 0.0
        %6471 = vmatpush1.msra.mxu0 0.0
        %6472 = vmatprep.subr.mxu0 0.0
        %6473 = vmatpush1.msra.mxu0 0.0
        %6474 = vmatprep.subr.mxu0 0.0
        %6475 = vmatpush1.msra.mxu0 0.0
        %6476 = vmatprep.subr.mxu0 0.0
        %6477 = vmatpush1.msra.mxu0 0.0
        %6478 = vmatprep.subr.mxu0 0.0
        %6479 = vmatpush1.msra.mxu0 0.0
        %6480 = vmatprep.mubr.f32.mxu0 0.0
        %v6481 = vand.u32 %v5960, 4294901760
        %6482 = vmatmul.mubr.f32.gmra.mrb[0].mxu0 %v6481
        %v6483 = vpop.f32.mrb[0].mxu0
        %v6484 = vadd.f32 %v6403, %v6483
        %v6485 = vpop.f32.mrb[0].mxu0
        %6486 = vmatprep.mubr.f32.mxu0 0.0
        %v6487 = vand.u32 %v5963, 4294901760
        %6488 = vmatmul.mubr.f32.gmra.mrb[0].mxu0 %v6487
        %v6489 = vpop.f32.mrb[0].mxu0
        %v6490 = vadd.f32 %v6409, %v6489
        %v6491 = vpop.f32.mrb[0].mxu0
        %6492 = vdwg.mxu0
        %v6493 = vmax.f32 %v6484, 0.0
        %v6494 = vmax.f32 %v6490, 0.0
        %v6495 = vld [vmem:[%s9] sm:$0xff]
        %v6496 = vld [vmem:[%s9 + $0x8] sm:$0xff]
        %v6497 = vld [vmem:[%s9 + $0x10] sm:$0xff]
        %v6498 = vld [vmem:[%s9 + $0x18] sm:$0xff]
        %v6499 = vld [vmem:[%s9 + $0x20] sm:$0xff]
        %v6500 = vld [vmem:[%s9 + $0x28] sm:$0xff]
        %v6501 = vld [vmem:[%s9 + $0x30] sm:$0xff]
        %v6502 = vld [vmem:[%s9 + $0x38] sm:$0xff]
        %v6503 = vld [vmem:[%s9 + $0x40] sm:$0xff]
        %v6504 = vld [vmem:[%s9 + $0x48] sm:$0xff]
        %v6505 = vld [vmem:[%s9 + $0x50] sm:$0xff]
        %v6506 = vld [vmem:[%s9 + $0x58] sm:$0xff]
        %v6507 = vld [vmem:[%s9 + $0x60] sm:$0xff]
        %v6508 = vld [vmem:[%s9 + $0x68] sm:$0xff]
        %v6509 = vld [vmem:[%s9 + $0x70] sm:$0xff]
        %v6510 = vld [vmem:[%s9 + $0x78] sm:$0xff]
        %v6511 = vld [vmem:[%s10] sm:$0x1]
        %v6513 = vlaneseq
        %v6514 = vshrl.u32 %v6513, 7
        %v6515 = vsub.s32 0, %v6514
        %v6516 = vrot.slane %v6511, %v6515
        %6518 = vmatprep.subr.mxu0 0.0
        %v6519 = vand.u32 %v6495, 4294901760
        %6520 = vmatpush1.msra.mxu0 %v6519
        %6521 = vmatprep.subr.mxu0 0.0
        %v6522 = vand.u32 %v6496, 4294901760
        %6523 = vmatpush1.msra.mxu0 %v6522
        %6524 = vmatprep.subr.mxu0 0.0
        %v6525 = vand.u32 %v6497, 4294901760
        %6526 = vmatpush1.msra.mxu0 %v6525
        %6527 = vmatprep.subr.mxu0 0.0
        %v6528 = vand.u32 %v6498, 4294901760
        %6529 = vmatpush1.msra.mxu0 %v6528
        %6530 = vmatprep.subr.mxu0 0.0
        %v6531 = vand.u32 %v6499, 4294901760
        %6532 = vmatpush1.msra.mxu0 %v6531
        %6533 = vmatprep.subr.mxu0 0.0
        %v6534 = vand.u32 %v6500, 4294901760
        %6535 = vmatpush1.msra.mxu0 %v6534
        %6536 = vmatprep.subr.mxu0 0.0
        %v6537 = vand.u32 %v6501, 4294901760
        %6538 = vmatpush1.msra.mxu0 %v6537
        %6539 = vmatprep.subr.mxu0 0.0
        %v6540 = vand.u32 %v6502, 4294901760
        %6541 = vmatpush1.msra.mxu0 %v6540
        %6542 = vmatprep.subr.mxu0 0.0
        %v6543 = vand.u32 %v6503, 4294901760
        %6544 = vmatpush1.msra.mxu0 %v6543
        %6545 = vmatprep.subr.mxu0 0.0
        %v6546 = vand.u32 %v6504, 4294901760
        %6547 = vmatpush1.msra.mxu0 %v6546
        %6548 = vmatprep.subr.mxu0 0.0
        %v6549 = vand.u32 %v6505, 4294901760
        %6550 = vmatpush1.msra.mxu0 %v6549
        %6551 = vmatprep.subr.mxu0 0.0
        %v6552 = vand.u32 %v6506, 4294901760
        %6553 = vmatpush1.msra.mxu0 %v6552
        %6554 = vmatprep.subr.mxu0 0.0
        %v6555 = vand.u32 %v6507, 4294901760
        %6556 = vmatpush1.msra.mxu0 %v6555
        %6557 = vmatprep.subr.mxu0 0.0
        %v6558 = vand.u32 %v6508, 4294901760
        %6559 = vmatpush1.msra.mxu0 %v6558
        %6560 = vmatprep.subr.mxu0 0.0
        %v6561 = vand.u32 %v6509, 4294901760
        %6562 = vmatpush1.msra.mxu0 %v6561
        %6563 = vmatprep.subr.mxu0 0.0
        %v6564 = vand.u32 %v6510, 4294901760
        %6565 = vmatpush1.msra.mxu0 %v6564
        %6566 = vmatprep.subr.mxu0 0.0
        %6567 = vmatpush1.msra.mxu0 0.0
        %6568 = vmatprep.subr.mxu0 0.0
        %6569 = vmatpush1.msra.mxu0 0.0
        %6570 = vmatprep.subr.mxu0 0.0
        %6571 = vmatpush1.msra.mxu0 0.0
        %6572 = vmatprep.subr.mxu0 0.0
        %6573 = vmatpush1.msra.mxu0 0.0
        %6574 = vmatprep.subr.mxu0 0.0
        %6575 = vmatpush1.msra.mxu0 0.0
        %6576 = vmatprep.subr.mxu0 0.0
        %6577 = vmatpush1.msra.mxu0 0.0
        %6578 = vmatprep.subr.mxu0 0.0
        %6579 = vmatpush1.msra.mxu0 0.0
        %6580 = vmatprep.subr.mxu0 0.0
        %6581 = vmatpush1.msra.mxu0 0.0
        %6582 = vmatprep.subr.mxu0 0.0
        %6583 = vmatpush1.msra.mxu0 0.0
        %6584 = vmatprep.subr.mxu0 0.0
        %6585 = vmatpush1.msra.mxu0 0.0
        %6586 = vmatprep.subr.mxu0 0.0
        %6587 = vmatpush1.msra.mxu0 0.0
        %6588 = vmatprep.subr.mxu0 0.0
        %6589 = vmatpush1.msra.mxu0 0.0
        %6590 = vmatprep.subr.mxu0 0.0
        %6591 = vmatpush1.msra.mxu0 0.0
        %6592 = vmatprep.subr.mxu0 0.0
        %6593 = vmatpush1.msra.mxu0 0.0
        %6594 = vmatprep.subr.mxu0 0.0
        %6595 = vmatpush1.msra.mxu0 0.0
        %6596 = vmatprep.subr.mxu0 0.0
        %6597 = vmatpush1.msra.mxu0 0.0
        %6598 = vmatprep.mubr.f32.mxu0 0.0
        %v6599 = vand.u32 %v6493, 4294901760
        %v6600 = vsub.f32 %v6493, %v6599
        %v6601 = vand.u32 %v6600, 4294901760
        %v6602 = vsub.f32 %v6600, %v6601
        %v6603 = vand.u32 %v6602, 4294901760
        %6604 = vmatmul.mubr.f32.gmra.mrb[0].mxu0 %v6603
        %v6605 = vpop.f32.mrb[0].mxu0
        %v6606 = vadd.f32 %v6516, %v6605
        %v6607 = vpop.f32.mrb[0].mxu0
        %6608 = vmatprep.mubr.f32.mxu0 0.0
        %v6609 = vand.u32 %v6494, 4294901760
        %v6610 = vsub.f32 %v6494, %v6609
        %v6611 = vand.u32 %v6610, 4294901760
        %v6612 = vsub.f32 %v6610, %v6611
        %v6613 = vand.u32 %v6612, 4294901760
        %6614 = vmatmul.mubr.f32.gmra.mrb[0].mxu0 %v6613
        %v6615 = vpop.f32.mrb[0].mxu0
        %v6616 = vadd.f32 %v6516, %v6615
        %v6617 = vpop.f32.mrb[0].mxu0
        %6618 = vdwg.mxu0
        %6619 = vmatprep.subr.mxu0 0.0
        %v6620 = vand.u32 %v6495, 4294901760
        %v6621 = vsub.f32 %v6495, %v6620
        %v6622 = vand.u32 %v6621, 4294901760
        %v6623 = vsub.f32 %v6621, %v6622
        %v6624 = vand.u32 %v6623, 4294901760
        %6625 = vmatpush1.msra.mxu0 %v6624
        %6626 = vmatprep.subr.mxu0 0.0
        %v6627 = vand.u32 %v6496, 4294901760
        %v6628 = vsub.f32 %v6496, %v6627
        %v6629 = vand.u32 %v6628, 4294901760
        %v6630 = vsub.f32 %v6628, %v6629
        %v6631 = vand.u32 %v6630, 4294901760
        %6632 = vmatpush1.msra.mxu0 %v6631
        %6633 = vmatprep.subr.mxu0 0.0
        %v6634 = vand.u32 %v6497, 4294901760
        %v6635 = vsub.f32 %v6497, %v6634
        %v6636 = vand.u32 %v6635, 4294901760
        %v6637 = vsub.f32 %v6635, %v6636
        %v6638 = vand.u32 %v6637, 4294901760
        %6639 = vmatpush1.msra.mxu0 %v6638
        %6640 = vmatprep.subr.mxu0 0.0
        %v6641 = vand.u32 %v6498, 4294901760
        %v6642 = vsub.f32 %v6498, %v6641
        %v6643 = vand.u32 %v6642, 4294901760
        %v6644 = vsub.f32 %v6642, %v6643
        %v6645 = vand.u32 %v6644, 4294901760
        %6646 = vmatpush1.msra.mxu0 %v6645
        %6647 = vmatprep.subr.mxu0 0.0
        %v6648 = vand.u32 %v6499, 4294901760
        %v6649 = vsub.f32 %v6499, %v6648
        %v6650 = vand.u32 %v6649, 4294901760
        %v6651 = vsub.f32 %v6649, %v6650
        %v6652 = vand.u32 %v6651, 4294901760
        %6653 = vmatpush1.msra.mxu0 %v6652
        %6654 = vmatprep.subr.mxu0 0.0
        %v6655 = vand.u32 %v6500, 4294901760
        %v6656 = vsub.f32 %v6500, %v6655
        %v6657 = vand.u32 %v6656, 4294901760
        %v6658 = vsub.f32 %v6656, %v6657
        %v6659 = vand.u32 %v6658, 4294901760
        %6660 = vmatpush1.msra.mxu0 %v6659
        %6661 = vmatprep.subr.mxu0 0.0
        %v6662 = vand.u32 %v6501, 4294901760
        %v6663 = vsub.f32 %v6501, %v6662
        %v6664 = vand.u32 %v6663, 4294901760
        %v6665 = vsub.f32 %v6663, %v6664
        %v6666 = vand.u32 %v6665, 4294901760
        %6667 = vmatpush1.msra.mxu0 %v6666
        %6668 = vmatprep.subr.mxu0 0.0
        %v6669 = vand.u32 %v6502, 4294901760
        %v6670 = vsub.f32 %v6502, %v6669
        %v6671 = vand.u32 %v6670, 4294901760
        %v6672 = vsub.f32 %v6670, %v6671
        %v6673 = vand.u32 %v6672, 4294901760
        %6674 = vmatpush1.msra.mxu0 %v6673
        %6675 = vmatprep.subr.mxu0 0.0
        %v6676 = vand.u32 %v6503, 4294901760
        %v6677 = vsub.f32 %v6503, %v6676
        %v6678 = vand.u32 %v6677, 4294901760
        %v6679 = vsub.f32 %v6677, %v6678
        %v6680 = vand.u32 %v6679, 4294901760
        %6681 = vmatpush1.msra.mxu0 %v6680
        %6682 = vmatprep.subr.mxu0 0.0
        %v6683 = vand.u32 %v6504, 4294901760
        %v6684 = vsub.f32 %v6504, %v6683
        %v6685 = vand.u32 %v6684, 4294901760
        %v6686 = vsub.f32 %v6684, %v6685
        %v6687 = vand.u32 %v6686, 4294901760
        %6688 = vmatpush1.msra.mxu0 %v6687
        %6689 = vmatprep.subr.mxu0 0.0
        %v6690 = vand.u32 %v6505, 4294901760
        %v6691 = vsub.f32 %v6505, %v6690
        %v6692 = vand.u32 %v6691, 4294901760
        %v6693 = vsub.f32 %v6691, %v6692
        %v6694 = vand.u32 %v6693, 4294901760
        %6695 = vmatpush1.msra.mxu0 %v6694
        %6696 = vmatprep.subr.mxu0 0.0
        %v6697 = vand.u32 %v6506, 4294901760
        %v6698 = vsub.f32 %v6506, %v6697
        %v6699 = vand.u32 %v6698, 4294901760
        %v6700 = vsub.f32 %v6698, %v6699
        %v6701 = vand.u32 %v6700, 4294901760
        %6702 = vmatpush1.msra.mxu0 %v6701
        %6703 = vmatprep.subr.mxu0 0.0
        %v6704 = vand.u32 %v6507, 4294901760
        %v6705 = vsub.f32 %v6507, %v6704
        %v6706 = vand.u32 %v6705, 4294901760
        %v6707 = vsub.f32 %v6705, %v6706
        %v6708 = vand.u32 %v6707, 4294901760
        %6709 = vmatpush1.msra.mxu0 %v6708
        %6710 = vmatprep.subr.mxu0 0.0
        %v6711 = vand.u32 %v6508, 4294901760
        %v6712 = vsub.f32 %v6508, %v6711
        %v6713 = vand.u32 %v6712, 4294901760
        %v6714 = vsub.f32 %v6712, %v6713
        %v6715 = vand.u32 %v6714, 4294901760
        %6716 = vmatpush1.msra.mxu0 %v6715
        %6717 = vmatprep.subr.mxu0 0.0
        %v6718 = vand.u32 %v6509, 4294901760
        %v6719 = vsub.f32 %v6509, %v6718
        %v6720 = vand.u32 %v6719, 4294901760
        %v6721 = vsub.f32 %v6719, %v6720
        %v6722 = vand.u32 %v6721, 4294901760
        %6723 = vmatpush1.msra.mxu0 %v6722
        %6724 = vmatprep.subr.mxu0 0.0
        %v6725 = vand.u32 %v6510, 4294901760
        %v6726 = vsub.f32 %v6510, %v6725
        %v6727 = vand.u32 %v6726, 4294901760
        %v6728 = vsub.f32 %v6726, %v6727
        %v6729 = vand.u32 %v6728, 4294901760
        %6730 = vmatpush1.msra.mxu0 %v6729
        %6731 = vmatprep.subr.mxu0 0.0
        %6732 = vmatpush1.msra.mxu0 0.0
        %6733 = vmatprep.subr.mxu0 0.0
        %6734 = vmatpush1.msra.mxu0 0.0
        %6735 = vmatprep.subr.mxu0 0.0
        %6736 = vmatpush1.msra.mxu0 0.0
        %6737 = vmatprep.subr.mxu0 0.0
        %6738 = vmatpush1.msra.mxu0 0.0
        %6739 = vmatprep.subr.mxu0 0.0
        %6740 = vmatpush1.msra.mxu0 0.0
        %6741 = vmatprep.subr.mxu0 0.0
        %6742 = vmatpush1.msra.mxu0 0.0
        %6743 = vmatprep.subr.mxu0 0.0
        %6744 = vmatpush1.msra.mxu0 0.0
        %6745 = vmatprep.subr.mxu0 0.0
        %6746 = vmatpush1.msra.mxu0 0.0
        %6747 = vmatprep.subr.mxu0 0.0
        %6748 = vmatpush1.msra.mxu0 0.0
        %6749 = vmatprep.subr.mxu0 0.0
        %6750 = vmatpush1.msra.mxu0 0.0
        %6751 = vmatprep.subr.mxu0 0.0
        %6752 = vmatpush1.msra.mxu0 0.0
        %6753 = vmatprep.subr.mxu0 0.0
        %6754 = vmatpush1.msra.mxu0 0.0
        %6755 = vmatprep.subr.mxu0 0.0
        %6756 = vmatpush1.msra.mxu0 0.0
        %6757 = vmatprep.subr.mxu0 0.0
        %6758 = vmatpush1.msra.mxu0 0.0
        %6759 = vmatprep.subr.mxu0 0.0
        %6760 = vmatpush1.msra.mxu0 0.0
        %6761 = vmatprep.subr.mxu0 0.0
        %6762 = vmatpush1.msra.mxu0 0.0
        %6763 = vmatprep.mubr.f32.mxu0 0.0
        %v6764 = vand.u32 %v6493, 4294901760
        %6765 = vmatmul.mubr.f32.gmra.mrb[0].mxu0 %v6764
        %v6766 = vpop.f32.mrb[0].mxu0
        %v6767 = vadd.f32 %v6606, %v6766
        %v6768 = vpop.f32.mrb[0].mxu0
        %6769 = vmatprep.mubr.f32.mxu0 0.0
        %v6770 = vand.u32 %v6494, 4294901760
        %6771 = vmatmul.mubr.f32.gmra.mrb[0].mxu0 %v6770
        %v6772 = vpop.f32.mrb[0].mxu0
        %v6773 = vadd.f32 %v6616, %v6772
        %v6774 = vpop.f32.mrb[0].mxu0
        %6775 = vdwg.mxu0
        %6776 = vmatprep.subr.mxu0 0.0
        %v6777 = vand.u32 %v6495, 4294901760
        %v6778 = vsub.f32 %v6495, %v6777
        %6779 = vmatpush1.msra.mxu0 %v6778
        %6780 = vmatprep.subr.mxu0 0.0
        %v6781 = vand.u32 %v6496, 4294901760
        %v6782 = vsub.f32 %v6496, %v6781
        %6783 = vmatpush1.msra.mxu0 %v6782
        %6784 = vmatprep.subr.mxu0 0.0
        %v6785 = vand.u32 %v6497, 4294901760
        %v6786 = vsub.f32 %v6497, %v6785
        %6787 = vmatpush1.msra.mxu0 %v6786
        %6788 = vmatprep.subr.mxu0 0.0
        %v6789 = vand.u32 %v6498, 4294901760
        %v6790 = vsub.f32 %v6498, %v6789
        %6791 = vmatpush1.msra.mxu0 %v6790
        %6792 = vmatprep.subr.mxu0 0.0
        %v6793 = vand.u32 %v6499, 4294901760
        %v6794 = vsub.f32 %v6499, %v6793
        %6795 = vmatpush1.msra.mxu0 %v6794
        %6796 = vmatprep.subr.mxu0 0.0
        %v6797 = vand.u32 %v6500, 4294901760
        %v6798 = vsub.f32 %v6500, %v6797
        %6799 = vmatpush1.msra.mxu0 %v6798
        %6800 = vmatprep.subr.mxu0 0.0
        %v6801 = vand.u32 %v6501, 4294901760
        %v6802 = vsub.f32 %v6501, %v6801
        %6803 = vmatpush1.msra.mxu0 %v6802
        %6804 = vmatprep.subr.mxu0 0.0
        %v6805 = vand.u32 %v6502, 4294901760
        %v6806 = vsub.f32 %v6502, %v6805
        %6807 = vmatpush1.msra.mxu0 %v6806
        %6808 = vmatprep.subr.mxu0 0.0
        %v6809 = vand.u32 %v6503, 4294901760
        %v6810 = vsub.f32 %v6503, %v6809
        %6811 = vmatpush1.msra.mxu0 %v6810
        %6812 = vmatprep.subr.mxu0 0.0
        %v6813 = vand.u32 %v6504, 4294901760
        %v6814 = vsub.f32 %v6504, %v6813
        %6815 = vmatpush1.msra.mxu0 %v6814
        %6816 = vmatprep.subr.mxu0 0.0
        %v6817 = vand.u32 %v6505, 4294901760
        %v6818 = vsub.f32 %v6505, %v6817
        %6819 = vmatpush1.msra.mxu0 %v6818
        %6820 = vmatprep.subr.mxu0 0.0
        %v6821 = vand.u32 %v6506, 4294901760
        %v6822 = vsub.f32 %v6506, %v6821
        %6823 = vmatpush1.msra.mxu0 %v6822
        %6824 = vmatprep.subr.mxu0 0.0
        %v6825 = vand.u32 %v6507, 4294901760
        %v6826 = vsub.f32 %v6507, %v6825
        %6827 = vmatpush1.msra.mxu0 %v6826
        %6828 = vmatprep.subr.mxu0 0.0
        %v6829 = vand.u32 %v6508, 4294901760
        %v6830 = vsub.f32 %v6508, %v6829
        %6831 = vmatpush1.msra.mxu0 %v6830
        %6832 = vmatprep.subr.mxu0 0.0
        %v6833 = vand.u32 %v6509, 4294901760
        %v6834 = vsub.f32 %v6509, %v6833
        %6835 = vmatpush1.msra.mxu0 %v6834
        %6836 = vmatprep.subr.mxu0 0.0
        %v6837 = vand.u32 %v6510, 4294901760
        %v6838 = vsub.f32 %v6510, %v6837
        %6839 = vmatpush1.msra.mxu0 %v6838
        %6840 = vmatprep.subr.mxu0 0.0
        %6841 = vmatpush1.msra.mxu0 0.0
        %6842 = vmatprep.subr.mxu0 0.0
        %6843 = vmatpush1.msra.mxu0 0.0
        %6844 = vmatprep.subr.mxu0 0.0
        %6845 = vmatpush1.msra.mxu0 0.0
        %6846 = vmatprep.subr.mxu0 0.0
        %6847 = vmatpush1.msra.mxu0 0.0
        %6848 = vmatprep.subr.mxu0 0.0
        %6849 = vmatpush1.msra.mxu0 0.0
        %6850 = vmatprep.subr.mxu0 0.0
        %6851 = vmatpush1.msra.mxu0 0.0
        %6852 = vmatprep.subr.mxu0 0.0
        %6853 = vmatpush1.msra.mxu0 0.0
        %6854 = vmatprep.subr.mxu0 0.0
        %6855 = vmatpush1.msra.mxu0 0.0
        %6856 = vmatprep.subr.mxu0 0.0
        %6857 = vmatpush1.msra.mxu0 0.0
        %6858 = vmatprep.subr.mxu0 0.0
        %6859 = vmatpush1.msra.mxu0 0.0
        %6860 = vmatprep.subr.mxu0 0.0
        %6861 = vmatpush1.msra.mxu0 0.0
        %6862 = vmatprep.subr.mxu0 0.0
        %6863 = vmatpush1.msra.mxu0 0.0
        %6864 = vmatprep.subr.mxu0 0.0
        %6865 = vmatpush1.msra.mxu0 0.0
        %6866 = vmatprep.subr.mxu0 0.0
        %6867 = vmatpush1.msra.mxu0 0.0
        %6868 = vmatprep.subr.mxu0 0.0
        %6869 = vmatpush1.msra.mxu0 0.0
        %6870 = vmatprep.subr.mxu0 0.0
        %6871 = vmatpush1.msra.mxu0 0.0
        %6872 = vmatprep.mubr.f32.mxu0 0.0
        %v6873 = vand.u32 %v6493, 4294901760
        %v6874 = vsub.f32 %v6493, %v6873
        %6875 = vmatmul.mubr.f32.gmra.mrb[0].mxu0 %v6874
        %v6876 = vpop.f32.mrb[0].mxu0
        %v6877 = vadd.f32 %v6767, %v6876
        %v6878 = vpop.f32.mrb[0].mxu0
        %6879 = vmatprep.mubr.f32.mxu0 0.0
        %v6880 = vand.u32 %v6494, 4294901760
        %v6881 = vsub.f32 %v6494, %v6880
        %6882 = vmatmul.mubr.f32.gmra.mrb[0].mxu0 %v6881
        %v6883 = vpop.f32.mrb[0].mxu0
        %v6884 = vadd.f32 %v6773, %v6883
        %v6885 = vpop.f32.mrb[0].mxu0
        %6886 = vdwg.mxu0
        %6887 = vmatprep.subr.mxu0 0.0
        %v6888 = vand.u32 %v6495, 4294901760
        %6889 = vmatpush1.msra.mxu0 %v6888
        %6890 = vmatprep.subr.mxu0 0.0
        %v6891 = vand.u32 %v6496, 4294901760
        %6892 = vmatpush1.msra.mxu0 %v6891
        %6893 = vmatprep.subr.mxu0 0.0
        %v6894 = vand.u32 %v6497, 4294901760
        %6895 = vmatpush1.msra.mxu0 %v6894
        %6896 = vmatprep.subr.mxu0 0.0
        %v6897 = vand.u32 %v6498, 4294901760
        %6898 = vmatpush1.msra.mxu0 %v6897
        %6899 = vmatprep.subr.mxu0 0.0
        %v6900 = vand.u32 %v6499, 4294901760
        %6901 = vmatpush1.msra.mxu0 %v6900
        %6902 = vmatprep.subr.mxu0 0.0
        %v6903 = vand.u32 %v6500, 4294901760
        %6904 = vmatpush1.msra.mxu0 %v6903
        %6905 = vmatprep.subr.mxu0 0.0
        %v6906 = vand.u32 %v6501, 4294901760
        %6907 = vmatpush1.msra.mxu0 %v6906
        %6908 = vmatprep.subr.mxu0 0.0
        %v6909 = vand.u32 %v6502, 4294901760
        %6910 = vmatpush1.msra.mxu0 %v6909
        %6911 = vmatprep.subr.mxu0 0.0
        %v6912 = vand.u32 %v6503, 4294901760
        %6913 = vmatpush1.msra.mxu0 %v6912
        %6914 = vmatprep.subr.mxu0 0.0
        %v6915 = vand.u32 %v6504, 4294901760
        %6916 = vmatpush1.msra.mxu0 %v6915
        %6917 = vmatprep.subr.mxu0 0.0
        %v6918 = vand.u32 %v6505, 4294901760
        %6919 = vmatpush1.msra.mxu0 %v6918
        %6920 = vmatprep.subr.mxu0 0.0
        %v6921 = vand.u32 %v6506, 4294901760
        %6922 = vmatpush1.msra.mxu0 %v6921
        %6923 = vmatprep.subr.mxu0 0.0
        %v6924 = vand.u32 %v6507, 4294901760
        %6925 = vmatpush1.msra.mxu0 %v6924
        %6926 = vmatprep.subr.mxu0 0.0
        %v6927 = vand.u32 %v6508, 4294901760
        %6928 = vmatpush1.msra.mxu0 %v6927
        %6929 = vmatprep.subr.mxu0 0.0
        %v6930 = vand.u32 %v6509, 4294901760
        %6931 = vmatpush1.msra.mxu0 %v6930
        %6932 = vmatprep.subr.mxu0 0.0
        %v6933 = vand.u32 %v6510, 4294901760
        %6934 = vmatpush1.msra.mxu0 %v6933
        %6935 = vmatprep.subr.mxu0 0.0
        %6936 = vmatpush1.msra.mxu0 0.0
        %6937 = vmatprep.subr.mxu0 0.0
        %6938 = vmatpush1.msra.mxu0 0.0
        %6939 = vmatprep.subr.mxu0 0.0
        %6940 = vmatpush1.msra.mxu0 0.0
        %6941 = vmatprep.subr.mxu0 0.0
        %6942 = vmatpush1.msra.mxu0 0.0
        %6943 = vmatprep.subr.mxu0 0.0
        %6944 = vmatpush1.msra.mxu0 0.0
        %6945 = vmatprep.subr.mxu0 0.0
        %6946 = vmatpush1.msra.mxu0 0.0
        %6947 = vmatprep.subr.mxu0 0.0
        %6948 = vmatpush1.msra.mxu0 0.0
        %6949 = vmatprep.subr.mxu0 0.0
        %6950 = vmatpush1.msra.mxu0 0.0
        %6951 = vmatprep.subr.mxu0 0.0
        %6952 = vmatpush1.msra.mxu0 0.0
        %6953 = vmatprep.subr.mxu0 0.0
        %6954 = vmatpush1.msra.mxu0 0.0
        %6955 = vmatprep.subr.mxu0 0.0
        %6956 = vmatpush1.msra.mxu0 0.0
        %6957 = vmatprep.subr.mxu0 0.0
        %6958 = vmatpush1.msra.mxu0 0.0
        %6959 = vmatprep.subr.mxu0 0.0
        %6960 = vmatpush1.msra.mxu0 0.0
        %6961 = vmatprep.subr.mxu0 0.0
        %6962 = vmatpush1.msra.mxu0 0.0
        %6963 = vmatprep.subr.mxu0 0.0
        %6964 = vmatpush1.msra.mxu0 0.0
        %6965 = vmatprep.subr.mxu0 0.0
        %6966 = vmatpush1.msra.mxu0 0.0
        %6967 = vmatprep.mubr.f32.mxu0 0.0
        %v6968 = vand.u32 %v6493, 4294901760
        %v6969 = vsub.f32 %v6493, %v6968
        %v6970 = vand.u32 %v6969, 4294901760
        %6971 = vmatmul.mubr.f32.gmra.mrb[0].mxu0 %v6970
        %v6972 = vpop.f32.mrb[0].mxu0
        %v6973 = vadd.f32 %v6877, %v6972
        %v6974 = vpop.f32.mrb[0].mxu0
        %6975 = vmatprep.mubr.f32.mxu0 0.0
        %v6976 = vand.u32 %v6494, 4294901760
        %v6977 = vsub.f32 %v6494, %v6976
        %v6978 = vand.u32 %v6977, 4294901760
        %6979 = vmatmul.mubr.f32.gmra.mrb[0].mxu0 %v6978
        %v6980 = vpop.f32.mrb[0].mxu0
        %v6981 = vadd.f32 %v6884, %v6980
        %v6982 = vpop.f32.mrb[0].mxu0
        %6983 = vdwg.mxu0
        %6984 = vmatprep.subr.mxu0 0.0
        %v6985 = vand.u32 %v6495, 4294901760
        %v6986 = vsub.f32 %v6495, %v6985
        %v6987 = vand.u32 %v6986, 4294901760
        %6988 = vmatpush1.msra.mxu0 %v6987
        %6989 = vmatprep.subr.mxu0 0.0
        %v6990 = vand.u32 %v6496, 4294901760
        %v6991 = vsub.f32 %v6496, %v6990
        %v6992 = vand.u32 %v6991, 4294901760
        %6993 = vmatpush1.msra.mxu0 %v6992
        %6994 = vmatprep.subr.mxu0 0.0
        %v6995 = vand.u32 %v6497, 4294901760
        %v6996 = vsub.f32 %v6497, %v6995
        %v6997 = vand.u32 %v6996, 4294901760
        %6998 = vmatpush1.msra.mxu0 %v6997
        %6999 = vmatprep.subr.mxu0 0.0
        %v7000 = vand.u32 %v6498, 4294901760
        %v7001 = vsub.f32 %v6498, %v7000
        %v7002 = vand.u32 %v7001, 4294901760
        %7003 = vmatpush1.msra.mxu0 %v7002
        %7004 = vmatprep.subr.mxu0 0.0
        %v7005 = vand.u32 %v6499, 4294901760
        %v7006 = vsub.f32 %v6499, %v7005
        %v7007 = vand.u32 %v7006, 4294901760
        %7008 = vmatpush1.msra.mxu0 %v7007
        %7009 = vmatprep.subr.mxu0 0.0
        %v7010 = vand.u32 %v6500, 4294901760
        %v7011 = vsub.f32 %v6500, %v7010
        %v7012 = vand.u32 %v7011, 4294901760
        %7013 = vmatpush1.msra.mxu0 %v7012
        %7014 = vmatprep.subr.mxu0 0.0
        %v7015 = vand.u32 %v6501, 4294901760
        %v7016 = vsub.f32 %v6501, %v7015
        %v7017 = vand.u32 %v7016, 4294901760
        %7018 = vmatpush1.msra.mxu0 %v7017
        %7019 = vmatprep.subr.mxu0 0.0
        %v7020 = vand.u32 %v6502, 4294901760
        %v7021 = vsub.f32 %v6502, %v7020
        %v7022 = vand.u32 %v7021, 4294901760
        %7023 = vmatpush1.msra.mxu0 %v7022
        %7024 = vmatprep.subr.mxu0 0.0
        %v7025 = vand.u32 %v6503, 4294901760
        %v7026 = vsub.f32 %v6503, %v7025
        %v7027 = vand.u32 %v7026, 4294901760
        %7028 = vmatpush1.msra.mxu0 %v7027
        %7029 = vmatprep.subr.mxu0 0.0
        %v7030 = vand.u32 %v6504, 4294901760
        %v7031 = vsub.f32 %v6504, %v7030
        %v7032 = vand.u32 %v7031, 4294901760
        %7033 = vmatpush1.msra.mxu0 %v7032
        %7034 = vmatprep.subr.mxu0 0.0
        %v7035 = vand.u32 %v6505, 4294901760
        %v7036 = vsub.f32 %v6505, %v7035
        %v7037 = vand.u32 %v7036, 4294901760
        %7038 = vmatpush1.msra.mxu0 %v7037
        %7039 = vmatprep.subr.mxu0 0.0
        %v7040 = vand.u32 %v6506, 4294901760
        %v7041 = vsub.f32 %v6506, %v7040
        %v7042 = vand.u32 %v7041, 4294901760
        %7043 = vmatpush1.msra.mxu0 %v7042
        %7044 = vmatprep.subr.mxu0 0.0
        %v7045 = vand.u32 %v6507, 4294901760
        %v7046 = vsub.f32 %v6507, %v7045
        %v7047 = vand.u32 %v7046, 4294901760
        %7048 = vmatpush1.msra.mxu0 %v7047
        %7049 = vmatprep.subr.mxu0 0.0
        %v7050 = vand.u32 %v6508, 4294901760
        %v7051 = vsub.f32 %v6508, %v7050
        %v7052 = vand.u32 %v7051, 4294901760
        %7053 = vmatpush1.msra.mxu0 %v7052
        %7054 = vmatprep.subr.mxu0 0.0
        %v7055 = vand.u32 %v6509, 4294901760
        %v7056 = vsub.f32 %v6509, %v7055
        %v7057 = vand.u32 %v7056, 4294901760
        %7058 = vmatpush1.msra.mxu0 %v7057
        %7059 = vmatprep.subr.mxu0 0.0
        %v7060 = vand.u32 %v6510, 4294901760
        %v7061 = vsub.f32 %v6510, %v7060
        %v7062 = vand.u32 %v7061, 4294901760
        %7063 = vmatpush1.msra.mxu0 %v7062
        %7064 = vmatprep.subr.mxu0 0.0
        %7065 = vmatpush1.msra.mxu0 0.0
        %7066 = vmatprep.subr.mxu0 0.0
        %7067 = vmatpush1.msra.mxu0 0.0
        %7068 = vmatprep.subr.mxu0 0.0
        %7069 = vmatpush1.msra.mxu0 0.0
        %7070 = vmatprep.subr.mxu0 0.0
        %7071 = vmatpush1.msra.mxu0 0.0
        %7072 = vmatprep.subr.mxu0 0.0
        %7073 = vmatpush1.msra.mxu0 0.0
        %7074 = vmatprep.subr.mxu0 0.0
        %7075 = vmatpush1.msra.mxu0 0.0
        %7076 = vmatprep.subr.mxu0 0.0
        %7077 = vmatpush1.msra.mxu0 0.0
        %7078 = vmatprep.subr.mxu0 0.0
        %7079 = vmatpush1.msra.mxu0 0.0
        %7080 = vmatprep.subr.mxu0 0.0
        %7081 = vmatpush1.msra.mxu0 0.0
        %7082 = vmatprep.subr.mxu0 0.0
        %7083 = vmatpush1.msra.mxu0 0.0
        %7084 = vmatprep.subr.mxu0 0.0
        %7085 = vmatpush1.msra.mxu0 0.0
        %7086 = vmatprep.subr.mxu0 0.0
        %7087 = vmatpush1.msra.mxu0 0.0
        %7088 = vmatprep.subr.mxu0 0.0
        %7089 = vmatpush1.msra.mxu0 0.0
        %7090 = vmatprep.subr.mxu0 0.0
        %7091 = vmatpush1.msra.mxu0 0.0
        %7092 = vmatprep.subr.mxu0 0.0
        %7093 = vmatpush1.msra.mxu0 0.0
        %7094 = vmatprep.subr.mxu0 0.0
        %7095 = vmatpush1.msra.mxu0 0.0
        %7096 = vmatprep.mubr.f32.mxu0 0.0
        %v7097 = vand.u32 %v6493, 4294901760
        %7098 = vmatmul.mubr.f32.gmra.mrb[0].mxu0 %v7097
        %v7099 = vpop.f32.mrb[0].mxu0
        %v7100 = vadd.f32 %v6973, %v7099
        %v7101 = vpop.f32.mrb[0].mxu0
        %7102 = vmatprep.mubr.f32.mxu0 0.0
        %v7103 = vand.u32 %v6494, 4294901760
        %7104 = vmatmul.mubr.f32.gmra.mrb[0].mxu0 %v7103
        %v7105 = vpop.f32.mrb[0].mxu0
        %v7106 = vadd.f32 %v6981, %v7105
        %v7107 = vpop.f32.mrb[0].mxu0
        %7108 = vdwg.mxu0
        %7109 = vmatprep.subr.mxu0 0.0
        %v7110 = vand.u32 %v6495, 4294901760
        %7111 = vmatpush1.msra.mxu0 %v7110
        %7112 = vmatprep.subr.mxu0 0.0
        %v7113 = vand.u32 %v6496, 4294901760
        %7114 = vmatpush1.msra.mxu0 %v7113
        %7115 = vmatprep.subr.mxu0 0.0
        %v7116 = vand.u32 %v6497, 4294901760
        %7117 = vmatpush1.msra.mxu0 %v7116
        %7118 = vmatprep.subr.mxu0 0.0
        %v7119 = vand.u32 %v6498, 4294901760
        %7120 = vmatpush1.msra.mxu0 %v7119
        %7121 = vmatprep.subr.mxu0 0.0
        %v7122 = vand.u32 %v6499, 4294901760
        %7123 = vmatpush1.msra.mxu0 %v7122
        %7124 = vmatprep.subr.mxu0 0.0
        %v7125 = vand.u32 %v6500, 4294901760
        %7126 = vmatpush1.msra.mxu0 %v7125
        %7127 = vmatprep.subr.mxu0 0.0
        %v7128 = vand.u32 %v6501, 4294901760
        %7129 = vmatpush1.msra.mxu0 %v7128
        %7130 = vmatprep.subr.mxu0 0.0
        %v7131 = vand.u32 %v6502, 4294901760
        %7132 = vmatpush1.msra.mxu0 %v7131
        %7133 = vmatprep.subr.mxu0 0.0
        %v7134 = vand.u32 %v6503, 4294901760
        %7135 = vmatpush1.msra.mxu0 %v7134
        %7136 = vmatprep.subr.mxu0 0.0
        %v7137 = vand.u32 %v6504, 4294901760
        %7138 = vmatpush1.msra.mxu0 %v7137
        %7139 = vmatprep.subr.mxu0 0.0
        %v7140 = vand.u32 %v6505, 4294901760
        %7141 = vmatpush1.msra.mxu0 %v7140
        %7142 = vmatprep.subr.mxu0 0.0
        %v7143 = vand.u32 %v6506, 4294901760
        %7144 = vmatpush1.msra.mxu0 %v7143
        %7145 = vmatprep.subr.mxu0 0.0
        %v7146 = vand.u32 %v6507, 4294901760
        %7147 = vmatpush1.msra.mxu0 %v7146
        %7148 = vmatprep.subr.mxu0 0.0
        %v7149 = vand.u32 %v6508, 4294901760
        %7150 = vmatpush1.msra.mxu0 %v7149
        %7151 = vmatprep.subr.mxu0 0.0
        %v7152 = vand.u32 %v6509, 4294901760
        %7153 = vmatpush1.msra.mxu0 %v7152
        %7154 = vmatprep.subr.mxu0 0.0
        %v7155 = vand.u32 %v6510, 4294901760
        %7156 = vmatpush1.msra.mxu0 %v7155
        %7157 = vmatprep.subr.mxu0 0.0
        %7158 = vmatpush1.msra.mxu0 0.0
        %7159 = vmatprep.subr.mxu0 0.0
        %7160 = vmatpush1.msra.mxu0 0.0
        %7161 = vmatprep.subr.mxu0 0.0
        %7162 = vmatpush1.msra.mxu0 0.0
        %7163 = vmatprep.subr.mxu0 0.0
        %7164 = vmatpush1.msra.mxu0 0.0
        %7165 = vmatprep.subr.mxu0 0.0
        %7166 = vmatpush1.msra.mxu0 0.0
        %7167 = vmatprep.subr.mxu0 0.0
        %7168 = vmatpush1.msra.mxu0 0.0
        %7169 = vmatprep.subr.mxu0 0.0
        %7170 = vmatpush1.msra.mxu0 0.0
        %7171 = vmatprep.subr.mxu0 0.0
        %7172 = vmatpush1.msra.mxu0 0.0
        %7173 = vmatprep.subr.mxu0 0.0
        %7174 = vmatpush1.msra.mxu0 0.0
        %7175 = vmatprep.subr.mxu0 0.0
        %7176 = vmatpush1.msra.mxu0 0.0
        %7177 = vmatprep.subr.mxu0 0.0
        %7178 = vmatpush1.msra.mxu0 0.0
        %7179 = vmatprep.subr.mxu0 0.0
        %7180 = vmatpush1.msra.mxu0 0.0
        %7181 = vmatprep.subr.mxu0 0.0
        %7182 = vmatpush1.msra.mxu0 0.0
        %7183 = vmatprep.subr.mxu0 0.0
        %7184 = vmatpush1.msra.mxu0 0.0
        %7185 = vmatprep.subr.mxu0 0.0
        %7186 = vmatpush1.msra.mxu0 0.0
        %7187 = vmatprep.subr.mxu0 0.0
        %7188 = vmatpush1.msra.mxu0 0.0
        %7189 = vmatprep.mubr.f32.mxu0 0.0
        %v7190 = vand.u32 %v6493, 4294901760
        %7191 = vmatmul.mubr.f32.gmra.mrb[0].mxu0 %v7190
        %v7192 = vpop.f32.mrb[0].mxu0
        %v7193 = vadd.f32 %v7100, %v7192
        %v7194 = vpop.f32.mrb[0].mxu0
        %7195 = vmatprep.mubr.f32.mxu0 0.0
        %v7196 = vand.u32 %v6494, 4294901760
        %7197 = vmatmul.mubr.f32.gmra.mrb[0].mxu0 %v7196
        %v7198 = vpop.f32.mrb[0].mxu0
        %v7199 = vadd.f32 %v7106, %v7198
        %v7200 = vpop.f32.mrb[0].mxu0
        %7201 = vdwg.mxu0
        %v7202 = vadd.f32 %v5946, %v7193
        %v7203 = vadd.f32 %v5947, %v7199
        %v7204 = vld [vmem:[%s11] sm:$0x1]
        %v7205 = vld [vmem:[%s12] sm:$0x1]
        %v7206 = vsel %vm566, %v7202, 0.0
        %7207 = vadd.xlane.f32.xlu0 %v7206
        %v7208 = vpop.xlane.xlu0 %7207
        %v7209 = vsel %vm566, %v7203, 0.0
        %7210 = vadd.xlane.f32.xlu0 %v7209
        %v7211 = vpop.xlane.xlu0 %7210
        %v7212 = vmul.f32 %v7208, %v5911
        %v7213 = vmul.f32 %v7211, %v5911
        %v7214 = vsub.f32 %v7202, %v7212
        %v7215 = vsub.f32 %v7203, %v7213
        %v7216 = vmul.f32 %v7214, %v7214
        %v7217 = vmul.f32 %v7215, %v7215
        %v7218 = vsel %vm566, %v7216, 0.0
        %7219 = vadd.xlane.f32.xlu0 %v7218
        %v7220 = vpop.xlane.xlu0 %7219
        %v7221 = vsel %vm566, %v7217, 0.0
        %7222 = vadd.xlane.f32.xlu0 %v7221
        %v7223 = vpop.xlane.xlu0 %7222
        %v7224 = vmul.f32 %v7220, %v5911
        %v7225 = vmul.f32 %v7223, %v5911
        %v7226 = vadd.f32 %v7224, 1e-05
        %v7227 = vadd.f32 %v7225, 1e-05
        %v7228 = vrsqrt.pop %v7226
        %v7229 = vrsqrt.pop %v7227
        %v7230 = vmul.f32 %v7214, %v7228
        %v7231 = vmul.f32 %v7215, %v7229
        %v7233 = vlaneseq
        %v7234 = vshrl.u32 %v7233, 7
        %v7235 = vsub.s32 0, %v7234
        %v7236 = vrot.slane %v7204, %v7235
        %v7238 = vmul.f32 %v7230, %v7236
        %v7239 = vmul.f32 %v7231, %v7236
        %v7241 = vlaneseq
        %v7242 = vshrl.u32 %v7241, 7
        %v7243 = vsub.s32 0, %v7242
        %v7244 = vrot.slane %v7205, %v7243
        %v7246 = vadd.f32 %v7238, %v7244
        %v7247 = vadd.f32 %v7239, %v7244
        %v7248 = vld [vmem:[%s13] sm:$0xff]
        %v7249 = vld [vmem:[%s13 + $0x8] sm:$0xff]
        %v7250 = vld [vmem:[%s13 + $0x10] sm:$0xff]
        %v7251 = vld [vmem:[%s13 + $0x18] sm:$0xff]
        %v7252 = vld [vmem:[%s14] sm:$0x1]
        %v7254 = vlaneseq
        %v7255 = vshrl.u32 %v7254, 7
        %v7256 = vsub.s32 0, %v7255
        %v7257 = vrot.slane %v7252, %v7256
        %v7260 = vsel %vm566, %v7246, 0
        %v7263 = vsel %vm566, %v7247, 0
        %7265 = vmatprep.subr.mxu0 0.0
        %v7266 = vand.u32 %v7248, 4294901760
        %7267 = vmatpush1.msra.mxu0 %v7266
        %7268 = vmatprep.subr.mxu0 0.0
        %v7269 = vand.u32 %v7249, 4294901760
        %7270 = vmatpush1.msra.mxu0 %v7269
        %7271 = vmatprep.subr.mxu0 0.0
        %v7272 = vand.u32 %v7250, 4294901760
        %7273 = vmatpush1.msra.mxu0 %v7272
        %7274 = vmatprep.subr.mxu0 0.0
        %v7275 = vand.u32 %v7251, 4294901760
        %7276 = vmatpush1.msra.mxu0 %v7275
        %7277 = vmatprep.subr.mxu0 0.0
        %7278 = vmatpush1.msra.mxu0 0.0
        %7279 = vmatprep.subr.mxu0 0.0
        %7280 = vmatpush1.msra.mxu0 0.0
        %7281 = vmatprep.subr.mxu0 0.0
        %7282 = vmatpush1.msra.mxu0 0.0
        %7283 = vmatprep.subr.mxu0 0.0
        %7284 = vmatpush1.msra.mxu0 0.0
        %7285 = vmatprep.subr.mxu0 0.0
        %7286 = vmatpush1.msra.mxu0 0.0
        %7287 = vmatprep.subr.mxu0 0.0
        %7288 = vmatpush1.msra.mxu0 0.0
        %7289 = vmatprep.subr.mxu0 0.0
        %7290 = vmatpush1.msra.mxu0 0.0
        %7291 = vmatprep.subr.mxu0 0.0
        %7292 = vmatpush1.msra.mxu0 0.0
        %7293 = vmatprep.subr.mxu0 0.0
        %7294 = vmatpush1.msra.mxu0 0.0
        %7295 = vmatprep.subr.mxu0 0.0
        %7296 = vmatpush1.msra.mxu0 0.0
        %7297 = vmatprep.subr.mxu0 0.0
        %7298 = vmatpush1.msra.mxu0 0.0
        %7299 = vmatprep.subr.mxu0 0.0
        %7300 = vmatpush1.msra.mxu0 0.0
        %7301 = vmatprep.subr.mxu0 0.0
        %7302 = vmatpush1.msra.mxu0 0.0
        %7303 = vmatprep.subr.mxu0 0.0
        %7304 = vmatpush1.msra.mxu0 0.0
        %7305 = vmatprep.subr.mxu0 0.0
        %7306 = vmatpush1.msra.mxu0 0.0
        %7307 = vmatprep.subr.mxu0 0.0
        %7308 = vmatpush1.msra.mxu0 0.0
        %7309 = vmatprep.subr.mxu0 0.0
        %7310 = vmatpush1.msra.mxu0 0.0
        %7311 = vmatprep.subr.mxu0 0.0
        %7312 = vmatpush1.msra.mxu0 0.0
        %7313 = vmatprep.subr.mxu0 0.0
        %7314 = vmatpush1.msra.mxu0 0.0
        %7315 = vmatprep.subr.mxu0 0.0
        %7316 = vmatpush1.msra.mxu0 0.0
        %7317 = vmatprep.subr.mxu0 0.0
        %7318 = vmatpush1.msra.mxu0 0.0
        %7319 = vmatprep.subr.mxu0 0.0
        %7320 = vmatpush1.msra.mxu0 0.0
        %7321 = vmatprep.subr.mxu0 0.0
        %7322 = vmatpush1.msra.mxu0 0.0
        %7323 = vmatprep.subr.mxu0 0.0
        %7324 = vmatpush1.msra.mxu0 0.0
        %7325 = vmatprep.subr.mxu0 0.0
        %7326 = vmatpush1.msra.mxu0 0.0
        %7327 = vmatprep.subr.mxu0 0.0
        %7328 = vmatpush1.msra.mxu0 0.0
        %7329 = vmatprep.subr.mxu0 0.0
        %7330 = vmatpush1.msra.mxu0 0.0
        %7331 = vmatprep.subr.mxu0 0.0
        %7332 = vmatpush1.msra.mxu0 0.0
        %7333 = vmatprep.mubr.f32.mxu0 0.0
        %v7334 = vand.u32 %v7260, 4294901760
        %v7335 = vsub.f32 %v7260, %v7334
        %v7336 = vand.u32 %v7335, 4294901760
        %v7337 = vsub.f32 %v7335, %v7336
        %v7338 = vand.u32 %v7337, 4294901760
        %7339 = vmatmul.mubr.f32.gmra.mrb[0].mxu0 %v7338
        %v7340 = vpop.f32.mrb[0].mxu0
        %v7341 = vadd.f32 %v7257, %v7340
        %v7342 = vpop.f32.mrb[0].mxu0
        %7343 = vmatprep.mubr.f32.mxu0 0.0
        %v7344 = vand.u32 %v7263, 4294901760
        %v7345 = vsub.f32 %v7263, %v7344
        %v7346 = vand.u32 %v7345, 4294901760
        %v7347 = vsub.f32 %v7345, %v7346
        %v7348 = vand.u32 %v7347, 4294901760
        %7349 = vmatmul.mubr.f32.gmra.mrb[0].mxu0 %v7348
        %v7350 = vpop.f32.mrb[0].mxu0
        %v7351 = vadd.f32 %v7257, %v7350
        %v7352 = vpop.f32.mrb[0].mxu0
        %7353 = vdwg.mxu0
        %7354 = vmatprep.subr.mxu0 0.0
        %v7355 = vand.u32 %v7248, 4294901760
        %v7356 = vsub.f32 %v7248, %v7355
        %v7357 = vand.u32 %v7356, 4294901760
        %v7358 = vsub.f32 %v7356, %v7357
        %v7359 = vand.u32 %v7358, 4294901760
        %7360 = vmatpush1.msra.mxu0 %v7359
        %7361 = vmatprep.subr.mxu0 0.0
        %v7362 = vand.u32 %v7249, 4294901760
        %v7363 = vsub.f32 %v7249, %v7362
        %v7364 = vand.u32 %v7363, 4294901760
        %v7365 = vsub.f32 %v7363, %v7364
        %v7366 = vand.u32 %v7365, 4294901760
        %7367 = vmatpush1.msra.mxu0 %v7366
        %7368 = vmatprep.subr.mxu0 0.0
        %v7369 = vand.u32 %v7250, 4294901760
        %v7370 = vsub.f32 %v7250, %v7369
        %v7371 = vand.u32 %v7370, 4294901760
        %v7372 = vsub.f32 %v7370, %v7371
        %v7373 = vand.u32 %v7372, 4294901760
        %7374 = vmatpush1.msra.mxu0 %v7373
        %7375 = vmatprep.subr.mxu0 0.0
        %v7376 = vand.u32 %v7251, 4294901760
        %v7377 = vsub.f32 %v7251, %v7376
        %v7378 = vand.u32 %v7377, 4294901760
        %v7379 = vsub.f32 %v7377, %v7378
        %v7380 = vand.u32 %v7379, 4294901760
        %7381 = vmatpush1.msra.mxu0 %v7380
        %7382 = vmatprep.subr.mxu0 0.0
        %7383 = vmatpush1.msra.mxu0 0.0
        %7384 = vmatprep.subr.mxu0 0.0
        %7385 = vmatpush1.msra.mxu0 0.0
        %7386 = vmatprep.subr.mxu0 0.0
        %7387 = vmatpush1.msra.mxu0 0.0
        %7388 = vmatprep.subr.mxu0 0.0
        %7389 = vmatpush1.msra.mxu0 0.0
        %7390 = vmatprep.subr.mxu0 0.0
        %7391 = vmatpush1.msra.mxu0 0.0
        %7392 = vmatprep.subr.mxu0 0.0
        %7393 = vmatpush1.msra.mxu0 0.0
        %7394 = vmatprep.subr.mxu0 0.0
        %7395 = vmatpush1.msra.mxu0 0.0
        %7396 = vmatprep.subr.mxu0 0.0
        %7397 = vmatpush1.msra.mxu0 0.0
        %7398 = vmatprep.subr.mxu0 0.0
        %7399 = vmatpush1.msra.mxu0 0.0
        %7400 = vmatprep.subr.mxu0 0.0
        %7401 = vmatpush1.msra.mxu0 0.0
        %7402 = vmatprep.subr.mxu0 0.0
        %7403 = vmatpush1.msra.mxu0 0.0
        %7404 = vmatprep.subr.mxu0 0.0
        %7405 = vmatpush1.msra.mxu0 0.0
        %7406 = vmatprep.subr.mxu0 0.0
        %7407 = vmatpush1.msra.mxu0 0.0
        %7408 = vmatprep.subr.mxu0 0.0
        %7409 = vmatpush1.msra.mxu0 0.0
        %7410 = vmatprep.subr.mxu0 0.0
        %7411 = vmatpush1.msra.mxu0 0.0
        %7412 = vmatprep.subr.mxu0 0.0
        %7413 = vmatpush1.msra.mxu0 0.0
        %7414 = vmatprep.subr.mxu0 0.0
        %7415 = vmatpush1.msra.mxu0 0.0
        %7416 = vmatprep.subr.mxu0 0.0
        %7417 = vmatpush1.msra.mxu0 0.0
        %7418 = vmatprep.subr.mxu0 0.0
        %7419 = vmatpush1.msra.mxu0 0.0
        %7420 = vmatprep.subr.mxu0 0.0
        %7421 = vmatpush1.msra.mxu0 0.0
        %7422 = vmatprep.subr.mxu0 0.0
        %7423 = vmatpush1.msra.mxu0 0.0
        %7424 = vmatprep.subr.mxu0 0.0
        %7425 = vmatpush1.msra.mxu0 0.0
        %7426 = vmatprep.subr.mxu0 0.0
        %7427 = vmatpush1.msra.mxu0 0.0
        %7428 = vmatprep.subr.mxu0 0.0
        %7429 = vmatpush1.msra.mxu0 0.0
        %7430 = vmatprep.subr.mxu0 0.0
        %7431 = vmatpush1.msra.mxu0 0.0
        %7432 = vmatprep.subr.mxu0 0.0
        %7433 = vmatpush1.msra.mxu0 0.0
        %7434 = vmatprep.subr.mxu0 0.0
        %7435 = vmatpush1.msra.mxu0 0.0
        %7436 = vmatprep.subr.mxu0 0.0
        %7437 = vmatpush1.msra.mxu0 0.0
        %7438 = vmatprep.mubr.f32.mxu0 0.0
        %v7439 = vand.u32 %v7260, 4294901760
        %7440 = vmatmul.mubr.f32.gmra.mrb[0].mxu0 %v7439
        %v7441 = vpop.f32.mrb[0].mxu0
        %v7442 = vadd.f32 %v7341, %v7441
        %v7443 = vpop.f32.mrb[0].mxu0
        %7444 = vmatprep.mubr.f32.mxu0 0.0
        %v7445 = vand.u32 %v7263, 4294901760
        %7446 = vmatmul.mubr.f32.gmra.mrb[0].mxu0 %v7445
        %v7447 = vpop.f32.mrb[0].mxu0
        %v7448 = vadd.f32 %v7351, %v7447
        %v7449 = vpop.f32.mrb[0].mxu0
        %7450 = vdwg.mxu0
        %7451 = vmatprep.subr.mxu0 0.0
        %v7452 = vand.u32 %v7248, 4294901760
        %v7453 = vsub.f32 %v7248, %v7452
        %7454 = vmatpush1.msra.mxu0 %v7453
        %7455 = vmatprep.subr.mxu0 0.0
        %v7456 = vand.u32 %v7249, 4294901760
        %v7457 = vsub.f32 %v7249, %v7456
        %7458 = vmatpush1.msra.mxu0 %v7457
        %7459 = vmatprep.subr.mxu0 0.0
        %v7460 = vand.u32 %v7250, 4294901760
        %v7461 = vsub.f32 %v7250, %v7460
        %7462 = vmatpush1.msra.mxu0 %v7461
        %7463 = vmatprep.subr.mxu0 0.0
        %v7464 = vand.u32 %v7251, 4294901760
        %v7465 = vsub.f32 %v7251, %v7464
        %7466 = vmatpush1.msra.mxu0 %v7465
        %7467 = vmatprep.subr.mxu0 0.0
        %7468 = vmatpush1.msra.mxu0 0.0
        %7469 = vmatprep.subr.mxu0 0.0
        %7470 = vmatpush1.msra.mxu0 0.0
        %7471 = vmatprep.subr.mxu0 0.0
        %7472 = vmatpush1.msra.mxu0 0.0
        %7473 = vmatprep.subr.mxu0 0.0
        %7474 = vmatpush1.msra.mxu0 0.0
        %7475 = vmatprep.subr.mxu0 0.0
        %7476 = vmatpush1.msra.mxu0 0.0
        %7477 = vmatprep.subr.mxu0 0.0
        %7478 = vmatpush1.msra.mxu0 0.0
        %7479 = vmatprep.subr.mxu0 0.0
        %7480 = vmatpush1.msra.mxu0 0.0
        %7481 = vmatprep.subr.mxu0 0.0
        %7482 = vmatpush1.msra.mxu0 0.0
        %7483 = vmatprep.subr.mxu0 0.0
        %7484 = vmatpush1.msra.mxu0 0.0
        %7485 = vmatprep.subr.mxu0 0.0
        %7486 = vmatpush1.msra.mxu0 0.0
        %7487 = vmatprep.subr.mxu0 0.0
        %7488 = vmatpush1.msra.mxu0 0.0
        %7489 = vmatprep.subr.mxu0 0.0
        %7490 = vmatpush1.msra.mxu0 0.0
        %7491 = vmatprep.subr.mxu0 0.0
        %7492 = vmatpush1.msra.mxu0 0.0
        %7493 = vmatprep.subr.mxu0 0.0
        %7494 = vmatpush1.msra.mxu0 0.0
        %7495 = vmatprep.subr.mxu0 0.0
        %7496 = vmatpush1.msra.mxu0 0.0
        %7497 = vmatprep.subr.mxu0 0.0
        %7498 = vmatpush1.msra.mxu0 0.0
        %7499 = vmatprep.subr.mxu0 0.0
        %7500 = vmatpush1.msra.mxu0 0.0
        %7501 = vmatprep.subr.mxu0 0.0
        %7502 = vmatpush1.msra.mxu0 0.0
        %7503 = vmatprep.subr.mxu0 0.0
        %7504 = vmatpush1.msra.mxu0 0.0
        %7505 = vmatprep.subr.mxu0 0.0
        %7506 = vmatpush1.msra.mxu0 0.0
        %7507 = vmatprep.subr.mxu0 0.0
        %7508 = vmatpush1.msra.mxu0 0.0
        %7509 = vmatprep.subr.mxu0 0.0
        %7510 = vmatpush1.msra.mxu0 0.0
        %7511 = vmatprep.subr.mxu0 0.0
        %7512 = vmatpush1.msra.mxu0 0.0
        %7513 = vmatprep.subr.mxu0 0.0
        %7514 = vmatpush1.msra.mxu0 0.0
        %7515 = vmatprep.subr.mxu0 0.0
        %7516 = vmatpush1.msra.mxu0 0.0
        %7517 = vmatprep.subr.mxu0 0.0
        %7518 = vmatpush1.msra.mxu0 0.0
        %7519 = vmatprep.subr.mxu0 0.0
        %7520 = vmatpush1.msra.mxu0 0.0
        %7521 = vmatprep.subr.mxu0 0.0
        %7522 = vmatpush1.msra.mxu0 0.0
        %7523 = vmatprep.mubr.f32.mxu0 0.0
        %v7524 = vand.u32 %v7260, 4294901760
        %v7525 = vsub.f32 %v7260, %v7524
        %7526 = vmatmul.mubr.f32.gmra.mrb[0].mxu0 %v7525
        %v7527 = vpop.f32.mrb[0].mxu0
        %v7528 = vadd.f32 %v7442, %v7527
        %v7529 = vpop.f32.mrb[0].mxu0
        %7530 = vmatprep.mubr.f32.mxu0 0.0
        %v7531 = vand.u32 %v7263, 4294901760
        %v7532 = vsub.f32 %v7263, %v7531
        %7533 = vmatmul.mubr.f32.gmra.mrb[0].mxu0 %v7532
        %v7534 = vpop.f32.mrb[0].mxu0
        %v7535 = vadd.f32 %v7448, %v7534
        %v7536 = vpop.f32.mrb[0].mxu0
        %7537 = vdwg.mxu0
        %7538 = vmatprep.subr.mxu0 0.0
        %v7539 = vand.u32 %v7248, 4294901760
        %7540 = vmatpush1.msra.mxu0 %v7539
        %7541 = vmatprep.subr.mxu0 0.0
        %v7542 = vand.u32 %v7249, 4294901760
        %7543 = vmatpush1.msra.mxu0 %v7542
        %7544 = vmatprep.subr.mxu0 0.0
        %v7545 = vand.u32 %v7250, 4294901760
        %7546 = vmatpush1.msra.mxu0 %v7545
        %7547 = vmatprep.subr.mxu0 0.0
        %v7548 = vand.u32 %v7251, 4294901760
        %7549 = vmatpush1.msra.mxu0 %v7548
        %7550 = vmatprep.subr.mxu0 0.0
        %7551 = vmatpush1.msra.mxu0 0.0
        %7552 = vmatprep.subr.mxu0 0.0
        %7553 = vmatpush1.msra.mxu0 0.0
        %7554 = vmatprep.subr.mxu0 0.0
        %7555 = vmatpush1.msra.mxu0 0.0
        %7556 = vmatprep.subr.mxu0 0.0
        %7557 = vmatpush1.msra.mxu0 0.0
        %7558 = vmatprep.subr.mxu0 0.0
        %7559 = vmatpush1.msra.mxu0 0.0
        %7560 = vmatprep.subr.mxu0 0.0
        %7561 = vmatpush1.msra.mxu0 0.0
        %7562 = vmatprep.subr.mxu0 0.0
        %7563 = vmatpush1.msra.mxu0 0.0
        %7564 = vmatprep.subr.mxu0 0.0
        %7565 = vmatpush1.msra.mxu0 0.0
        %7566 = vmatprep.subr.mxu0 0.0
        %7567 = vmatpush1.msra.mxu0 0.0
        %7568 = vmatprep.subr.mxu0 0.0
        %7569 = vmatpush1.msra.mxu0 0.0
        %7570 = vmatprep.subr.mxu0 0.0
        %7571 = vmatpush1.msra.mxu0 0.0
        %7572 = vmatprep.subr.mxu0 0.0
        %7573 = vmatpush1.msra.mxu0 0.0
        %7574 = vmatprep.subr.mxu0 0.0
        %7575 = vmatpush1.msra.mxu0 0.0
        %7576 = vmatprep.subr.mxu0 0.0
        %7577 = vmatpush1.msra.mxu0 0.0
        %7578 = vmatprep.subr.mxu0 0.0
        %7579 = vmatpush1.msra.mxu0 0.0
        %7580 = vmatprep.subr.mxu0 0.0
        %7581 = vmatpush1.msra.mxu0 0.0
        %7582 = vmatprep.subr.mxu0 0.0
        %7583 = vmatpush1.msra.mxu0 0.0
        %7584 = vmatprep.subr.mxu0 0.0
        %7585 = vmatpush1.msra.mxu0 0.0
        %7586 = vmatprep.subr.mxu0 0.0
        %7587 = vmatpush1.msra.mxu0 0.0
        %7588 = vmatprep.subr.mxu0 0.0
        %7589 = vmatpush1.msra.mxu0 0.0
        %7590 = vmatprep.subr.mxu0 0.0
        %7591 = vmatpush1.msra.mxu0 0.0
        %7592 = vmatprep.subr.mxu0 0.0
        %7593 = vmatpush1.msra.mxu0 0.0
        %7594 = vmatprep.subr.mxu0 0.0
        %7595 = vmatpush1.msra.mxu0 0.0
        %7596 = vmatprep.subr.mxu0 0.0
        %7597 = vmatpush1.msra.mxu0 0.0
        %7598 = vmatprep.subr.mxu0 0.0
        %7599 = vmatpush1.msra.mxu0 0.0
        %7600 = vmatprep.subr.mxu0 0.0
        %7601 = vmatpush1.msra.mxu0 0.0
        %7602 = vmatprep.subr.mxu0 0.0
        %7603 = vmatpush1.msra.mxu0 0.0
        %7604 = vmatprep.subr.mxu0 0.0
        %7605 = vmatpush1.msra.mxu0 0.0
        %7606 = vmatprep.mubr.f32.mxu0 0.0
        %v7607 = vand.u32 %v7260, 4294901760
        %v7608 = vsub.f32 %v7260, %v7607
        %v7609 = vand.u32 %v7608, 4294901760
        %7610 = vmatmul.mubr.f32.gmra.mrb[0].mxu0 %v7609
        %v7611 = vpop.f32.mrb[0].mxu0
        %v7612 = vadd.f32 %v7528, %v7611
        %v7613 = vpop.f32.mrb[0].mxu0
        %7614 = vmatprep.mubr.f32.mxu0 0.0
        %v7615 = vand.u32 %v7263, 4294901760
        %v7616 = vsub.f32 %v7263, %v7615
        %v7617 = vand.u32 %v7616, 4294901760
        %7618 = vmatmul.mubr.f32.gmra.mrb[0].mxu0 %v7617
        %v7619 = vpop.f32.mrb[0].mxu0
        %v7620 = vadd.f32 %v7535, %v7619
        %v7621 = vpop.f32.mrb[0].mxu0
        %7622 = vdwg.mxu0
        %7623 = vmatprep.subr.mxu0 0.0
        %v7624 = vand.u32 %v7248, 4294901760
        %v7625 = vsub.f32 %v7248, %v7624
        %v7626 = vand.u32 %v7625, 4294901760
        %7627 = vmatpush1.msra.mxu0 %v7626
        %7628 = vmatprep.subr.mxu0 0.0
        %v7629 = vand.u32 %v7249, 4294901760
        %v7630 = vsub.f32 %v7249, %v7629
        %v7631 = vand.u32 %v7630, 4294901760
        %7632 = vmatpush1.msra.mxu0 %v7631
        %7633 = vmatprep.subr.mxu0 0.0
        %v7634 = vand.u32 %v7250, 4294901760
        %v7635 = vsub.f32 %v7250, %v7634
        %v7636 = vand.u32 %v7635, 4294901760
        %7637 = vmatpush1.msra.mxu0 %v7636
        %7638 = vmatprep.subr.mxu0 0.0
        %v7639 = vand.u32 %v7251, 4294901760
        %v7640 = vsub.f32 %v7251, %v7639
        %v7641 = vand.u32 %v7640, 4294901760
        %7642 = vmatpush1.msra.mxu0 %v7641
        %7643 = vmatprep.subr.mxu0 0.0
        %7644 = vmatpush1.msra.mxu0 0.0
        %7645 = vmatprep.subr.mxu0 0.0
        %7646 = vmatpush1.msra.mxu0 0.0
        %7647 = vmatprep.subr.mxu0 0.0
        %7648 = vmatpush1.msra.mxu0 0.0
        %7649 = vmatprep.subr.mxu0 0.0
        %7650 = vmatpush1.msra.mxu0 0.0
        %7651 = vmatprep.subr.mxu0 0.0
        %7652 = vmatpush1.msra.mxu0 0.0
        %7653 = vmatprep.subr.mxu0 0.0
        %7654 = vmatpush1.msra.mxu0 0.0
        %7655 = vmatprep.subr.mxu0 0.0
        %7656 = vmatpush1.msra.mxu0 0.0
        %7657 = vmatprep.subr.mxu0 0.0
        %7658 = vmatpush1.msra.mxu0 0.0
        %7659 = vmatprep.subr.mxu0 0.0
        %7660 = vmatpush1.msra.mxu0 0.0
        %7661 = vmatprep.subr.mxu0 0.0
        %7662 = vmatpush1.msra.mxu0 0.0
        %7663 = vmatprep.subr.mxu0 0.0
        %7664 = vmatpush1.msra.mxu0 0.0
        %7665 = vmatprep.subr.mxu0 0.0
        %7666 = vmatpush1.msra.mxu0 0.0
        %7667 = vmatprep.subr.mxu0 0.0
        %7668 = vmatpush1.msra.mxu0 0.0
        %7669 = vmatprep.subr.mxu0 0.0
        %7670 = vmatpush1.msra.mxu0 0.0
        %7671 = vmatprep.subr.mxu0 0.0
        %7672 = vmatpush1.msra.mxu0 0.0
        %7673 = vmatprep.subr.mxu0 0.0
        %7674 = vmatpush1.msra.mxu0 0.0
        %7675 = vmatprep.subr.mxu0 0.0
        %7676 = vmatpush1.msra.mxu0 0.0
        %7677 = vmatprep.subr.mxu0 0.0
        %7678 = vmatpush1.msra.mxu0 0.0
        %7679 = vmatprep.subr.mxu0 0.0
        %7680 = vmatpush1.msra.mxu0 0.0
        %7681 = vmatprep.subr.mxu0 0.0
        %7682 = vmatpush1.msra.mxu0 0.0
        %7683 = vmatprep.subr.mxu0 0.0
        %7684 = vmatpush1.msra.mxu0 0.0
        %7685 = vmatprep.subr.mxu0 0.0
        %7686 = vmatpush1.msra.mxu0 0.0
        %7687 = vmatprep.subr.mxu0 0.0
        %7688 = vmatpush1.msra.mxu0 0.0
        %7689 = vmatprep.subr.mxu0 0.0
        %7690 = vmatpush1.msra.mxu0 0.0
        %7691 = vmatprep.subr.mxu0 0.0
        %7692 = vmatpush1.msra.mxu0 0.0
        %7693 = vmatprep.subr.mxu0 0.0
        %7694 = vmatpush1.msra.mxu0 0.0
        %7695 = vmatprep.subr.mxu0 0.0
        %7696 = vmatpush1.msra.mxu0 0.0
        %7697 = vmatprep.subr.mxu0 0.0
        %7698 = vmatpush1.msra.mxu0 0.0
        %7699 = vmatprep.mubr.f32.mxu0 0.0
        %v7700 = vand.u32 %v7260, 4294901760
        %7701 = vmatmul.mubr.f32.gmra.mrb[0].mxu0 %v7700
        %v7702 = vpop.f32.mrb[0].mxu0
        %v7703 = vadd.f32 %v7612, %v7702
        %v7704 = vpop.f32.mrb[0].mxu0
        %7705 = vmatprep.mubr.f32.mxu0 0.0
        %v7706 = vand.u32 %v7263, 4294901760
        %7707 = vmatmul.mubr.f32.gmra.mrb[0].mxu0 %v7706
        %v7708 = vpop.f32.mrb[0].mxu0
        %v7709 = vadd.f32 %v7620, %v7708
        %v7710 = vpop.f32.mrb[0].mxu0
        %7711 = vdwg.mxu0
        %7712 = vmatprep.subr.mxu0 0.0
        %v7713 = vand.u32 %v7248, 4294901760
        %7714 = vmatpush1.msra.mxu0 %v7713
        %7715 = vmatprep.subr.mxu0 0.0
        %v7716 = vand.u32 %v7249, 4294901760
        %7717 = vmatpush1.msra.mxu0 %v7716
        %7718 = vmatprep.subr.mxu0 0.0
        %v7719 = vand.u32 %v7250, 4294901760
        %7720 = vmatpush1.msra.mxu0 %v7719
        %7721 = vmatprep.subr.mxu0 0.0
        %v7722 = vand.u32 %v7251, 4294901760
        %7723 = vmatpush1.msra.mxu0 %v7722
        %7724 = vmatprep.subr.mxu0 0.0
        %7725 = vmatpush1.msra.mxu0 0.0
        %7726 = vmatprep.subr.mxu0 0.0
        %7727 = vmatpush1.msra.mxu0 0.0
        %7728 = vmatprep.subr.mxu0 0.0
        %7729 = vmatpush1.msra.mxu0 0.0
        %7730 = vmatprep.subr.mxu0 0.0
        %7731 = vmatpush1.msra.mxu0 0.0
        %7732 = vmatprep.subr.mxu0 0.0
        %7733 = vmatpush1.msra.mxu0 0.0
        %7734 = vmatprep.subr.mxu0 0.0
        %7735 = vmatpush1.msra.mxu0 0.0
        %7736 = vmatprep.subr.mxu0 0.0
        %7737 = vmatpush1.msra.mxu0 0.0
        %7738 = vmatprep.subr.mxu0 0.0
        %7739 = vmatpush1.msra.mxu0 0.0
        %7740 = vmatprep.subr.mxu0 0.0
        %7741 = vmatpush1.msra.mxu0 0.0
        %7742 = vmatprep.subr.mxu0 0.0
        %7743 = vmatpush1.msra.mxu0 0.0
        %7744 = vmatprep.subr.mxu0 0.0
        %7745 = vmatpush1.msra.mxu0 0.0
        %7746 = vmatprep.subr.mxu0 0.0
        %7747 = vmatpush1.msra.mxu0 0.0
        %7748 = vmatprep.subr.mxu0 0.0
        %7749 = vmatpush1.msra.mxu0 0.0
        %7750 = vmatprep.subr.mxu0 0.0
        %7751 = vmatpush1.msra.mxu0 0.0
        %7752 = vmatprep.subr.mxu0 0.0
        %7753 = vmatpush1.msra.mxu0 0.0
        %7754 = vmatprep.subr.mxu0 0.0
        %7755 = vmatpush1.msra.mxu0 0.0
        %7756 = vmatprep.subr.mxu0 0.0
        %7757 = vmatpush1.msra.mxu0 0.0
        %7758 = vmatprep.subr.mxu0 0.0
        %7759 = vmatpush1.msra.mxu0 0.0
        %7760 = vmatprep.subr.mxu0 0.0
        %7761 = vmatpush1.msra.mxu0 0.0
        %7762 = vmatprep.subr.mxu0 0.0
        %7763 = vmatpush1.msra.mxu0 0.0
        %7764 = vmatprep.subr.mxu0 0.0
        %7765 = vmatpush1.msra.mxu0 0.0
        %7766 = vmatprep.subr.mxu0 0.0
        %7767 = vmatpush1.msra.mxu0 0.0
        %7768 = vmatprep.subr.mxu0 0.0
        %7769 = vmatpush1.msra.mxu0 0.0
        %7770 = vmatprep.subr.mxu0 0.0
        %7771 = vmatpush1.msra.mxu0 0.0
        %7772 = vmatprep.subr.mxu0 0.0
        %7773 = vmatpush1.msra.mxu0 0.0
        %7774 = vmatprep.subr.mxu0 0.0
        %7775 = vmatpush1.msra.mxu0 0.0
        %7776 = vmatprep.subr.mxu0 0.0
        %7777 = vmatpush1.msra.mxu0 0.0
        %7778 = vmatprep.subr.mxu0 0.0
        %7779 = vmatpush1.msra.mxu0 0.0
        %7780 = vmatprep.mubr.f32.mxu0 0.0
        %v7781 = vand.u32 %v7260, 4294901760
        %7782 = vmatmul.mubr.f32.gmra.mrb[0].mxu0 %v7781
        %v7783 = vpop.f32.mrb[0].mxu0
        %v7784 = vadd.f32 %v7703, %v7783
        %v7785 = vpop.f32.mrb[0].mxu0
        %7786 = vmatprep.mubr.f32.mxu0 0.0
        %v7787 = vand.u32 %v7263, 4294901760
        %7788 = vmatmul.mubr.f32.gmra.mrb[0].mxu0 %v7787
        %v7789 = vpop.f32.mrb[0].mxu0
        %v7790 = vadd.f32 %v7709, %v7789
        %v7791 = vpop.f32.mrb[0].mxu0
        %7792 = vdwg.mxu0
        %7793 = vst.msk [vmem:[%s525] sm:$0xff] %vm566, %v7784
        %7794 = vst.msk [vmem:[%s525 + $0x8] sm:$0xff] %vm566, %v7790
        %s7795 = sand.u32 %s359, 1
        %s7796 = scalar_lea.sflag [#allocation4], %s7795
        %s7797 = sand.u32 %s359, 1
        %s7798 = smul.addr %s7797, 16
        %s7799 = scalar_lea.vmem [#allocation8], %s7798
        // Predicated region
        $region93: #{tpu_custom_call.1} parent=79 // pred_check
          %p7800 = pneg %p369
        $region94: #{tpu_custom_call.1} parent=79 // pred_check_branch
          %7802 = sbr.rel (%p7800) target = $region96
        $region95: #{tpu_custom_call.1} parent=79 // pred_region
          %s7804 = ssub.s32 256, 256
          %7805 = vsyncadd %s7796, %s7804
          %s7806 = smul.addr %s31, 2
          %s7807 = smul.addr %s7806, 128
          %s7808 = scalar_lea.hbm %s15, %s7807
          %s7809 = sshll.u32 %s7799, 4
          %s7810 = int_to_ptr.vmem [resolvable:$true] %s7809
          %7815 = dma.vmem_to_hbm [thread:$0]  %s7810, 256, %s7808, %s7796, 128, 128, 8
        $region96: #{tpu_custom_call.1} parent=79 // pred_fallthru
          _
      $region80: #{tpu_custom_call.1} parent=5 // pred_fallthru
        _
      %p7816 = scmp.le.s32.totalorder 2, %s26
      // Predicated region
      $region97: #{tpu_custom_call.1} parent=5 // pred_check
        %p7817 = pneg %p7816
      $region98: #{tpu_custom_call.1} parent=5 // pred_check_branch
        %7819 = sbr.rel (%p7817) target = $region100
      $region99: #{tpu_custom_call.1} parent=5 // pred_region
        %s7820 = ssub.s32 %s26, 2
        // Predicated region
        $region101: #{tpu_custom_call.1} parent=99 // pred_check
          %p7821 = pneg %p375
        $region102: #{tpu_custom_call.1} parent=99 // pred_check_branch
          %7823 = sbr.rel (%p7821) target = $region104
        $region103: #{tpu_custom_call.1} parent=99 // pred_region
          %s7824 = sand.u32 %s360, 1
          %s7825 = scalar_lea.sflag [#allocation4], %s7824
          %s7826 = sand.u32 %s360, 1
          %s7827 = smul.addr %s7826, 16
          %s7828 = scalar_lea.vmem [#allocation8], %s7827
          %7829 = dma.done %s7825, 256
        $region104: #{tpu_custom_call.1} parent=99 // pred_fallthru
          _
      $region100: #{tpu_custom_call.1} parent=5 // pred_fallthru
        _
    $region6: #{tpu_custom_call.1} parent=1 // loop_footer
      %s30 = sadd.s32 1, %s26
    $region7: #{tpu_custom_call.1} parent=1 // loop_footer_branch
      %25 = sbr.rel target = $region3
    $region8: #{tpu_custom_call.1} parent=1 // loop_exit
      _
    %7830 = vsyncpa [#allocation3], 1
    %s7831 = scalar_lea.sflag [#allocation3], 1
    %7832 = vsyncpa %s7831, 1
    %7833 = vsyncpa [#allocation6], 1
    %7834 = vsyncpa [#allocation4], 1
    %s7835 = scalar_lea.sflag [#allocation4], 1
    %7836 = vsyncpa %s7835, 1

</llo_original>
